<compile_context>
chip_gen: v7x
topology: tpu7x:2x2x1
jax: 0.10.0
libtpu: 0.0.40
codegen_flags: <defaults>
</compile_context>

<pallas_src>
import functools

import jax
import jax.numpy as jnp
from jax.experimental import pallas as pl
from jax.experimental.pallas import tpu as pltpu


# ------------------------- fused forward kernel ------------------------------
def _fused_forward_kernel(*refs, num_layers, seq_len, batch):
    # refs layout (built by forward()):
    #   x (T*B, F) bf16
    #   wih0 (F,4H) bf16, whh0 (H,4H) bf16, b0 (1,4H) f32
    #   [b_l (1,4H) f32 for l in 1..L-1]
    #   [lw_hbm (L-1, 2H, 4H) bf16  (HBM, stacked [wih_l; whh_l])]   (if L>1)
    #   weff_hbm (T, H, N1) bf16 (HBM), b_eff (1,N1) f32, w2_t (N1,O) f32, b2 (1,O) f32
    #   out (B, O) f32
    #   scratch: [lw_vmem (L-1,2H,4H) bf16, lw_sem DMA(L-1,)]        (if L>1)
    #            weff_vmem (T,H,N1) bf16, weff_sem DMA(())
    T, B = seq_len, batch
    it = iter(refs)
    x_ref = next(it)
    wih0_ref = next(it)
    whh0_ref = next(it)
    b_refs = [next(it)]
    for _ in range(1, num_layers):
        b_refs.append(next(it))
    lw_hbm = next(it) if num_layers > 1 else None
    weff_hbm = next(it)
    beff_ref = next(it)
    w2_ref = next(it)
    b2_ref = next(it)
    out_ref = next(it)
    if num_layers > 1:
        lw_vmem = next(it)
        lw_sem = next(it)
    weff_vmem = next(it)
    weff_sem = next(it)

    H = whh0_ref.shape[0]
    N1 = beff_ref.shape[1]

    # Kick off every manual DMA up front; they hide behind the serial recurrence.
    lw_cps = []
    if num_layers > 1:
        for l in range(num_layers - 1):
            cp = pltpu.make_async_copy(lw_hbm.at[l], lw_vmem.at[l], lw_sem.at[l])
            cp.start()
            lw_cps.append(cp)
    weff_cp = pltpu.make_async_copy(weff_hbm, weff_vmem, weff_sem)
    weff_cp.start()

    layer_in = x_ref[...]                                    # bf16 (T*B, I)
    head_acc = jnp.zeros((B, N1), jnp.float32)
    last = num_layers - 1
    for layer in range(num_layers):
        if layer == 0:
            wih = wih0_ref[...]
            whh = whh0_ref[...]
        else:
            lw_cps[layer - 1].wait()       # DMA hidden behind previous layer(s)
            wih = lw_vmem[layer - 1, :H, :]
            whh = lw_vmem[layer - 1, H:, :]
        bias = b_refs[layer][...]

        # Hoisted input projection for all timesteps of this layer: (T*B, 4H).
        gx = jnp.dot(layer_in, wih, preferred_element_type=jnp.float32) + bias

        if layer == last:
            weff_cp.wait()                 # folded head weight, hidden behind layer 0

        h = jnp.zeros((B, H), jnp.float32)                   # zero (h_0, c_0)
        c = jnp.zeros((B, H), jnp.float32)
        outs = []
        for t in range(T):                                   # fully unrolled
            gates = gx[t * B:(t + 1) * B, :] + jnp.dot(
                h.astype(jnp.bfloat16), whh, preferred_element_type=jnp.float32)
            # Gate columns were permuted at fold time to (i, f, o, g):
            sig = jax.nn.sigmoid(gates[:, :3 * H])           # one contiguous EUP launch
            i_g = sig[:, 0 * H:1 * H]
            f_g = sig[:, 1 * H:2 * H]
            o_g = sig[:, 2 * H:3 * H]
            g_g = jnp.tanh(gates[:, 3 * H:4 * H])            # one EUP launch
            c = f_g * c + i_g * g_g
            h = o_g * jnp.tanh(c)
            if layer == last:
                # Head (conv1d + flatten + linear1 folded into W_eff) fused into
                # the recurrence: accumulate this timestep's contribution now.
                head_acc = head_acc + jnp.dot(
                    h.astype(jnp.bfloat16), weff_vmem[t],
                    preferred_element_type=jnp.float32)
            else:
                outs.append(h)
        if layer != last:
            layer_in = jnp.concatenate(outs, axis=0).astype(jnp.bfloat16)

    z = jnp.maximum(head_acc + beff_ref[...], 0.0)           # linear1 + ReLU
    out_ref[...] = (jnp.dot(z, w2_ref[...],
                            preferred_element_type=jnp.float32) + b2_ref[...])


def forward(x, kp, num_layers):
    B, T, F = x.shape
    H = kp["whh0"].shape[0]
    N1 = kp["w_eff"].shape[2]
    out_dim = kp["w2_t"].shape[1]
    BP = ((max(B, 8) + 7) // 8) * 8        # sublane-aligned padded batch

    x_p = jnp.zeros((BP, T, F), jnp.float32).at[:B, :, :].set(x)
    x_tb = jnp.transpose(x_p, (1, 0, 2)).reshape(T * BP, F).astype(jnp.bfloat16)

    vmem = pl.BlockSpec(memory_space=pltpu.MemorySpace.VMEM)
    hbm = pl.BlockSpec(memory_space=pl.ANY)                  # manual DMA inside

    args = [x_tb, kp["wih0"], kp["whh0"], kp["b0"]]
    in_specs = [vmem, vmem, vmem, vmem]
    for layer in range(1, num_layers):
        args.append(kp[f"b{layer}"])
        in_specs.append(vmem)
    if num_layers > 1:
        args.append(kp["lw"])
        in_specs.append(hbm)
    args += [kp["w_eff"], kp["b_eff"], kp["w2_t"], kp["b2"]]
    in_specs += [hbm, vmem, vmem, vmem]

    scratch_shapes = []
    if num_layers > 1:
        scratch_shapes += [
            pltpu.VMEM((num_layers - 1, 2 * H, 4 * H), jnp.bfloat16),
            pltpu.SemaphoreType.DMA((num_layers - 1,)),
        ]
    scratch_shapes += [
        pltpu.VMEM((T, H, N1), jnp.bfloat16),
        pltpu.SemaphoreType.DMA(()),
    ]

    flops = 2 * (T * BP * F * 4 * H
                 + (2 * num_layers - 1) * T * BP * H * 4 * H
                 + T * BP * H * N1
                 + BP * N1 * out_dim)
    transcendentals = num_layers * T * BP * 5 * H
    bytes_accessed = (sum(int(a.size) * a.dtype.itemsize for a in args)
                      + BP * out_dim * 4)

    kernel = functools.partial(_fused_forward_kernel,
                               num_layers=num_layers, seq_len=T, batch=BP)

    out_full = pl.pallas_call(
        kernel,
        out_shape=jax.ShapeDtypeStruct((BP, out_dim), jnp.float32),
        in_specs=in_specs,
        out_specs=vmem,
        scratch_shapes=scratch_shapes,
        cost_estimate=pl.CostEstimate(flops=flops,
                                      transcendentals=transcendentals,
                                      bytes_accessed=bytes_accessed),
    )(*args)
    return out_full[:B]


# -------------------- parameter init (PyTorch layout) ------------------------
def init_params(key, feature_size, hidden_size, num_layers,
                seq_len, out_channels, output_size, kernel_size=3):
    def uni(k, shape, scale):
        return jax.random.uniform(k, shape, jnp.float32, -scale, scale)

    params = {}
    keys = iter(jax.random.split(key, 4 * num_layers + 6))
    s_lstm = 1.0 / float(hidden_size) ** 0.5
    in_sz = feature_size
    for layer in range(num_layers):
        params[f"w_ih_{layer}"] = uni(next(keys), (4 * hidden_size, in_sz), s_lstm)
        params[f"w_hh_{layer}"] = uni(next(keys), (4 * hidden_size, hidden_size), s_lstm)
        params[f"b_ih_{layer}"] = uni(next(keys), (4 * hidden_size,), s_lstm)
        params[f"b_hh_{layer}"] = uni(next(keys), (4 * hidden_size,), s_lstm)
        in_sz = hidden_size

    s_conv = 1.0 / float(seq_len * kernel_size) ** 0.5
    params["conv_w"] = uni(next(keys), (out_channels, seq_len, kernel_size), s_conv)
    params["conv_b"] = uni(next(keys), (out_channels,), s_conv)

    lin1_in = out_channels * (hidden_size - kernel_size + 1)  # == 50 * 254
    s1 = 1.0 / float(lin1_in) ** 0.5
    params["w1"] = uni(next(keys), (256, lin1_in), s1)
    params["b1"] = uni(next(keys), (256,), s1)
    s2 = 1.0 / 256.0 ** 0.5
    params["w2"] = uni(next(keys), (output_size, 256), s2)
    params["b2"] = uni(next(keys), (output_size,), s2)
    return params


# ------------- one-time fold: conv1d + flatten + linear1 -> W_eff ------------
def _fold_conv_linear1(conv_w, conv_b, w1, b1, hidden_size):
    # conv_out[b,oc,l] = conv_b[oc] + sum_{t,k} conv_w[oc,t,k] * lstm[b,t,l+k]
    # linear1(flatten(conv_out)) == sum_t lstm[b,t,:] @ W_eff[t] + b_eff
    OC, T, K = conv_w.shape
    H = hidden_size
    L = H - K + 1
    N = w1.shape[0]
    assert w1.shape[1] == OC * L, (w1.shape, OC, L)
    w1r = w1.reshape(N, OC, L)                                # (N, OC, L)
    w_eff = jnp.zeros((T, H, N), jnp.float32)
    for k in range(K):
        # tap[t, l, n] = sum_oc conv_w[oc, t, k] * w1r[n, oc, l]
        tap = jnp.einsum("ot,nol->tln", conv_w[:, :, k], w1r)
        w_eff = w_eff.at[:, k:k + L, :].add(tap)
    b_eff = b1 + jnp.einsum("o,no->n", conv_b, jnp.sum(w1r, axis=2))
    return w_eff, b_eff                                       # (T, H, N), (N,)


def fold_params(params, num_layers, hidden_size):
    """Pre-transpose / pre-fold / pre-cast everything once (outside the jit)."""
    H = hidden_size

    def reorder(w4h):  # columns (i, f, g, o) -> (i, f, o, g)
        return jnp.concatenate([w4h[..., :2 * H], w4h[..., 3 * H:4 * H],
                                w4h[..., 2 * H:3 * H]], axis=-1)

    kp = {}
    kp["wih0"] = reorder(jnp.transpose(params["w_ih_0"])).astype(jnp.bfloat16)
    kp["whh0"] = reorder(jnp.transpose(params["w_hh_0"])).astype(jnp.bfloat16)
    kp["b0"] = reorder((params["b_ih_0"] + params["b_hh_0"]).reshape(1, -1))

    lw = []
    for layer in range(1, num_layers):
        wih = reorder(jnp.transpose(params[f"w_ih_{layer}"]))    # (H, 4H)
        whh = reorder(jnp.transpose(params[f"w_hh_{layer}"]))    # (H, 4H)
        lw.append(jnp.concatenate([wih, whh], axis=0).astype(jnp.bfloat16))
        kp[f"b{layer}"] = reorder(
            (params[f"b_ih_{layer}"] + params[f"b_hh_{layer}"]).reshape(1, -1))
    if num_layers > 1:
        kp["lw"] = jnp.stack(lw, axis=0)                         # (L-1, 2H, 4H) bf16

    w_eff, b_eff = _fold_conv_linear1(params["conv_w"], params["conv_b"],
                                      params["w1"], params["b1"], hidden_size)
    kp["w_eff"] = w_eff.astype(jnp.bfloat16)                     # (T, H, 256) bf16
    kp["b_eff"] = b_eff.reshape(1, -1)
    kp["w2_t"] = jnp.transpose(params["w2"])                     # (256, O) f32
    kp["b2"] = params["b2"].reshape(1, -1)
    return jax.tree_util.tree_map(jax.device_put, kp)


# ------------------ pure-JAX reference (unfused, for checking) ---------------
def reference_forward(x, params, num_layers, hidden_size):
    B, T, _ = x.shape
    H = hidden_size
    out = x
    for layer in range(num_layers):
        w_ih = params[f"w_ih_{layer}"]
        w_hh = params[f"w_hh_{layer}"]
        b = params[f"b_ih_{layer}"] + params[f"b_hh_{layer}"]
        h = jnp.zeros((B, H), jnp.float32)
        c = jnp.zeros((B, H), jnp.float32)
        ys = []
        for t in range(T):
            gates = out[:, t, :] @ w_ih.T + h @ w_hh.T + b
            i_g = jax.nn.sigmoid(gates[:, :H])
            f_g = jax.nn.sigmoid(gates[:, H:2 * H])
            g_g = jnp.tanh(gates[:, 2 * H:3 * H])
            o_g = jax.nn.sigmoid(gates[:, 3 * H:])
            c = f_g * c + i_g * g_g
            h = o_g * jnp.tanh(c)
            ys.append(h)
        out = jnp.stack(ys, axis=1)                                  # (B, T, H)
    conv_w, conv_b = params["conv_w"], params["conv_b"]
    OC, _, K = conv_w.shape
    L = H - K + 1
    conv = jnp.zeros((B, OC, L), jnp.float32)
    for k in range(K):
        conv = conv + jnp.einsum("btl,ot->bol", out[:, :, k:k + L], conv_w[:, :, k])
    conv = conv + conv_b[None, :, None]
    flat = conv.reshape(B, -1)
    z = jnp.maximum(flat @ params["w1"].T + params["b1"], 0.0)
    return z @ params["w2"].T + params["b2"]


# ---------------------------------- main --------------------------------------
if __name__ == "__main__":
    # hidden_size=256 and out_channels=50 are required by linear1's 50*254.
    batch, seq_len, feature_size = 2, 8, 16
    hidden_size, num_layers = 256, 2
    out_channels, output_size = 50, 10

    key = jax.random.PRNGKey(0)
    k_params, k_x = jax.random.split(key)
    params = init_params(k_params, feature_size, hidden_size, num_layers,
                         seq_len, out_channels, output_size)
    kparams = fold_params(params, num_layers, hidden_size)
    x = jax.random.normal(k_x, (batch, seq_len, feature_size), jnp.float32)

    fwd = jax.jit(functools.partial(forward, num_layers=num_layers))
    out = fwd(x, kparams)
    jax.block_until_ready(out)

    assert out.shape == (batch, output_size), out.shape
    assert bool(jnp.all(jnp.isfinite(out)))

    # Cross-check the folded/fused bf16-weight kernel against the f32 JAX ref.
    ref_fn = jax.jit(functools.partial(reference_forward,
                                       num_layers=num_layers,
                                       hidden_size=hidden_size))
    out_ref = jax.block_until_ready(ref_fn(x, params))
    # bf16 weight storage -> slightly looser tolerance than pure-f32 rev.
    assert bool(jnp.allclose(out, out_ref, rtol=2e-2, atol=2e-2)), (
        float(jnp.max(jnp.abs(out - out_ref))))

    print("KERNEL_OK")
</pallas_src>

<mosaic_0001>
module attributes {stable_mosaic.version = 11 : i64} {
  func.func @_fused_forward_kernel(%arg0: memref<64x16xbf16, #tpu.memory_space<vmem>>, %arg1: memref<16x1024xbf16, #tpu.memory_space<vmem>>, %arg2: memref<256x1024xbf16, #tpu.memory_space<vmem>>, %arg3: memref<1x1024xf32, #tpu.memory_space<vmem>>, %arg4: memref<1x1024xf32, #tpu.memory_space<vmem>>, %arg5: memref<1x512x1024xbf16, #tpu.memory_space<any>>, %arg6: memref<8x256x256xbf16, #tpu.memory_space<any>>, %arg7: memref<1x256xf32, #tpu.memory_space<vmem>>, %arg8: memref<256x10xf32, #tpu.memory_space<vmem>>, %arg9: memref<1x10xf32, #tpu.memory_space<vmem>>, %arg10: memref<8x10xf32, #tpu.memory_space<vmem>>, %arg11: memref<1x512x1024xbf16, #tpu.memory_space<vmem>>, %arg12: memref<1x!tpu.dma_semaphore, #tpu.memory_space<semaphore_mem>>, %arg13: memref<8x256x256xbf16, #tpu.memory_space<vmem>>, %arg14: memref<!tpu.dma_semaphore, #tpu.memory_space<semaphore_mem>>) attributes {dimension_semantics = [], scalar_prefetch = 0 : i64, scratch_operands = 4 : i64, tpu.core_type = #tpu.core_type<tc>} {
    %c0_i32 = arith.constant 0 : i32
    %c0_i32_0 = arith.constant 0 : i32
    %c0_i32_1 = arith.constant 0 : i32
    %c0_i32_2 = arith.constant 0 : i32
    %c0_i32_3 = arith.constant 0 : i32
    %0 = tpu.memref_slice %arg5[%c0_i32, %c0_i32_2, %c0_i32_3] : memref<1x512x1024xbf16, #tpu.memory_space<any>> -> memref<1x512x1024xbf16, #tpu.memory_space<any>>
    %1 = tpu.memref_squeeze %0 : memref<1x512x1024xbf16, #tpu.memory_space<any>> -> memref<512x1024xbf16, #tpu.memory_space<any>>
    %c0_i32_4 = arith.constant 0 : i32
    %c0_i32_5 = arith.constant 0 : i32
    %2 = tpu.memref_slice %arg11[%c0_i32_0, %c0_i32_4, %c0_i32_5] : memref<1x512x1024xbf16, #tpu.memory_space<vmem>> -> memref<1x512x1024xbf16, #tpu.memory_space<vmem>>
    %3 = tpu.memref_squeeze %2 : memref<1x512x1024xbf16, #tpu.memory_space<vmem>> -> memref<512x1024xbf16, #tpu.memory_space<vmem>>
    %4 = tpu.memref_slice %arg12[%c0_i32_1] : memref<1x!tpu.dma_semaphore, #tpu.memory_space<semaphore_mem>> -> memref<1x!tpu.dma_semaphore, #tpu.memory_space<semaphore_mem>>
    %5 = tpu.memref_squeeze %4 : memref<1x!tpu.dma_semaphore, #tpu.memory_space<semaphore_mem>> -> memref<!tpu.dma_semaphore, #tpu.memory_space<semaphore_mem>>
    tpu.enqueue_dma source(%1 : memref<512x1024xbf16, #tpu.memory_space<any>>) target(%3 : memref<512x1024xbf16, #tpu.memory_space<vmem>>) target_semaphore(%5 : memref<!tpu.dma_semaphore, #tpu.memory_space<semaphore_mem>>)
    tpu.enqueue_dma source(%arg6 : memref<8x256x256xbf16, #tpu.memory_space<any>>) target(%arg13 : memref<8x256x256xbf16, #tpu.memory_space<vmem>>) target_semaphore(%arg14 : memref<!tpu.dma_semaphore, #tpu.memory_space<semaphore_mem>>)
    %c0 = arith.constant 0 : index
    %c0_6 = arith.constant 0 : index
    %6 = vector.load %arg0[%c0, %c0_6] : memref<64x16xbf16, #tpu.memory_space<vmem>>, vector<64x16xbf16>
    %cst = arith.constant 0.000000e+00 : f32
    %7 = vector.broadcast %cst : f32 to vector<8x256xf32>
    %c0_7 = arith.constant 0 : index
    %c0_8 = arith.constant 0 : index
    %8 = vector.load %arg1[%c0_7, %c0_8] : memref<16x1024xbf16, #tpu.memory_space<vmem>>, vector<16x1024xbf16>
    %c0_9 = arith.constant 0 : index
    %c0_10 = arith.constant 0 : index
    %9 = vector.load %arg2[%c0_9, %c0_10] : memref<256x1024xbf16, #tpu.memory_space<vmem>>, vector<256x1024xbf16>
    %c0_11 = arith.constant 0 : index
    %c0_12 = arith.constant 0 : index
    %10 = vector.load %arg3[%c0_11, %c0_12] : memref<1x1024xf32, #tpu.memory_space<vmem>>, vector<1x1024xf32>
    %cst_13 = arith.constant dense<0.000000e+00> : vector<64x1024xf32>
    %11 = tpu.matmul %6, %8, %cst_13 {dimension_numbers = #tpu.dot_dimension_numbers<[1], [0], [0], [1], [0, 0, 1, 1], [], []>} : vector<64x16xbf16>, vector<16x1024xbf16>, vector<64x1024xf32> -> vector<64x1024xf32>
    %12 = vector.broadcast %10 : vector<1x1024xf32> to vector<64x1024xf32>
    %13 = arith.addf %11, %12 : vector<64x1024xf32>
    %cst_14 = arith.constant 0.000000e+00 : f32
    %14 = vector.broadcast %cst_14 : f32 to vector<8x256xf32>
    %cst_15 = arith.constant 0.000000e+00 : f32
    %15 = vector.broadcast %cst_15 : f32 to vector<8x256xf32>
    %16 = vector.extract_strided_slice %13 {offsets = [0, 0], sizes = [8, 1024], strides = [1, 1]} : vector<64x1024xf32> to vector<8x1024xf32>
    %17 = arith.truncf %14 : vector<8x256xf32> to vector<8x256xbf16>
    %cst_16 = arith.constant dense<0.000000e+00> : vector<8x1024xf32>
    %18 = tpu.matmul %17, %9, %cst_16 {dimension_numbers = #tpu.dot_dimension_numbers<[1], [0], [0], [1], [0, 0, 1, 1], [], []>} : vector<8x256xbf16>, vector<256x1024xbf16>, vector<8x1024xf32> -> vector<8x1024xf32>
    %19 = arith.addf %16, %18 : vector<8x1024xf32>
    %20 = vector.extract_strided_slice %19 {offsets = [0, 0], sizes = [8, 768], strides = [1, 1]} : vector<8x1024xf32> to vector<8x768xf32>
    %21 = arith.negf %20 : vector<8x768xf32>
    %22 = math.exp %21 : vector<8x768xf32>
    %cst_17 = arith.constant 1.000000e+00 : f32
    %23 = vector.broadcast %cst_17 : f32 to vector<8x768xf32>
    %24 = arith.addf %23, %22 : vector<8x768xf32>
    %25 = arith.divf %23, %24 : vector<8x768xf32>
    %26 = vector.extract_strided_slice %25 {offsets = [0, 0], sizes = [8, 256], strides = [1, 1]} : vector<8x768xf32> to vector<8x256xf32>
    %27 = vector.extract_strided_slice %25 {offsets = [0, 256], sizes = [8, 256], strides = [1, 1]} : vector<8x768xf32> to vector<8x256xf32>
    %28 = vector.extract_strided_slice %25 {offsets = [0, 512], sizes = [8, 256], strides = [1, 1]} : vector<8x768xf32> to vector<8x256xf32>
    %29 = vector.extract_strided_slice %19 {offsets = [0, 768], sizes = [8, 256], strides = [1, 1]} : vector<8x1024xf32> to vector<8x256xf32>
    %30 = math.tanh %29 : vector<8x256xf32>
    %31 = arith.mulf %27, %15 : vector<8x256xf32>
    %32 = arith.mulf %26, %30 : vector<8x256xf32>
    %33 = arith.addf %31, %32 : vector<8x256xf32>
    %34 = math.tanh %33 : vector<8x256xf32>
    %35 = arith.mulf %28, %34 : vector<8x256xf32>
    %36 = vector.extract_strided_slice %13 {offsets = [8, 0], sizes = [8, 1024], strides = [1, 1]} : vector<64x1024xf32> to vector<8x1024xf32>
    %37 = arith.truncf %35 : vector<8x256xf32> to vector<8x256xbf16>
    %cst_18 = arith.constant dense<0.000000e+00> : vector<8x1024xf32>
    %38 = tpu.matmul %37, %9, %cst_18 {dimension_numbers = #tpu.dot_dimension_numbers<[1], [0], [0], [1], [0, 0, 1, 1], [], []>} : vector<8x256xbf16>, vector<256x1024xbf16>, vector<8x1024xf32> -> vector<8x1024xf32>
    %39 = arith.addf %36, %38 : vector<8x1024xf32>
    %40 = vector.extract_strided_slice %39 {offsets = [0, 0], sizes = [8, 768], strides = [1, 1]} : vector<8x1024xf32> to vector<8x768xf32>
    %41 = arith.negf %40 : vector<8x768xf32>
    %42 = math.exp %41 : vector<8x768xf32>
    %cst_19 = arith.constant 1.000000e+00 : f32
    %43 = vector.broadcast %cst_19 : f32 to vector<8x768xf32>
    %44 = arith.addf %43, %42 : vector<8x768xf32>
    %45 = arith.divf %43, %44 : vector<8x768xf32>
    %46 = vector.extract_strided_slice %45 {offsets = [0, 0], sizes = [8, 256], strides = [1, 1]} : vector<8x768xf32> to vector<8x256xf32>
    %47 = vector.extract_strided_slice %45 {offsets = [0, 256], sizes = [8, 256], strides = [1, 1]} : vector<8x768xf32> to vector<8x256xf32>
    %48 = vector.extract_strided_slice %45 {offsets = [0, 512], sizes = [8, 256], strides = [1, 1]} : vector<8x768xf32> to vector<8x256xf32>
    %49 = vector.extract_strided_slice %39 {offsets = [0, 768], sizes = [8, 256], strides = [1, 1]} : vector<8x1024xf32> to vector<8x256xf32>
    %50 = math.tanh %49 : vector<8x256xf32>
    %51 = arith.mulf %47, %33 : vector<8x256xf32>
    %52 = arith.mulf %46, %50 : vector<8x256xf32>
    %53 = arith.addf %51, %52 : vector<8x256xf32>
    %54 = math.tanh %53 : vector<8x256xf32>
    %55 = arith.mulf %48, %54 : vector<8x256xf32>
    %56 = vector.extract_strided_slice %13 {offsets = [16, 0], sizes = [8, 1024], strides = [1, 1]} : vector<64x1024xf32> to vector<8x1024xf32>
    %57 = arith.truncf %55 : vector<8x256xf32> to vector<8x256xbf16>
    %cst_20 = arith.constant dense<0.000000e+00> : vector<8x1024xf32>
    %58 = tpu.matmul %57, %9, %cst_20 {dimension_numbers = #tpu.dot_dimension_numbers<[1], [0], [0], [1], [0, 0, 1, 1], [], []>} : vector<8x256xbf16>, vector<256x1024xbf16>, vector<8x1024xf32> -> vector<8x1024xf32>
    %59 = arith.addf %56, %58 : vector<8x1024xf32>
    %60 = vector.extract_strided_slice %59 {offsets = [0, 0], sizes = [8, 768], strides = [1, 1]} : vector<8x1024xf32> to vector<8x768xf32>
    %61 = arith.negf %60 : vector<8x768xf32>
    %62 = math.exp %61 : vector<8x768xf32>
    %cst_21 = arith.constant 1.000000e+00 : f32
    %63 = vector.broadcast %cst_21 : f32 to vector<8x768xf32>
    %64 = arith.addf %63, %62 : vector<8x768xf32>
    %65 = arith.divf %63, %64 : vector<8x768xf32>
    %66 = vector.extract_strided_slice %65 {offsets = [0, 0], sizes = [8, 256], strides = [1, 1]} : vector<8x768xf32> to vector<8x256xf32>
    %67 = vector.extract_strided_slice %65 {offsets = [0, 256], sizes = [8, 256], strides = [1, 1]} : vector<8x768xf32> to vector<8x256xf32>
    %68 = vector.extract_strided_slice %65 {offsets = [0, 512], sizes = [8, 256], strides = [1, 1]} : vector<8x768xf32> to vector<8x256xf32>
    %69 = vector.extract_strided_slice %59 {offsets = [0, 768], sizes = [8, 256], strides = [1, 1]} : vector<8x1024xf32> to vector<8x256xf32>
    %70 = math.tanh %69 : vector<8x256xf32>
    %71 = arith.mulf %67, %53 : vector<8x256xf32>
    %72 = arith.mulf %66, %70 : vector<8x256xf32>
    %73 = arith.addf %71, %72 : vector<8x256xf32>
    %74 = math.tanh %73 : vector<8x256xf32>
    %75 = arith.mulf %68, %74 : vector<8x256xf32>
    %76 = vector.extract_strided_slice %13 {offsets = [24, 0], sizes = [8, 1024], strides = [1, 1]} : vector<64x1024xf32> to vector<8x1024xf32>
    %77 = arith.truncf %75 : vector<8x256xf32> to vector<8x256xbf16>
    %cst_22 = arith.constant dense<0.000000e+00> : vector<8x1024xf32>
    %78 = tpu.matmul %77, %9, %cst_22 {dimension_numbers = #tpu.dot_dimension_numbers<[1], [0], [0], [1], [0, 0, 1, 1], [], []>} : vector<8x256xbf16>, vector<256x1024xbf16>, vector<8x1024xf32> -> vector<8x1024xf32>
    %79 = arith.addf %76, %78 : vector<8x1024xf32>
    %80 = vector.extract_strided_slice %79 {offsets = [0, 0], sizes = [8, 768], strides = [1, 1]} : vector<8x1024xf32> to vector<8x768xf32>
    %81 = arith.negf %80 : vector<8x768xf32>
    %82 = math.exp %81 : vector<8x768xf32>
    %cst_23 = arith.constant 1.000000e+00 : f32
    %83 = vector.broadcast %cst_23 : f32 to vector<8x768xf32>
    %84 = arith.addf %83, %82 : vector<8x768xf32>
    %85 = arith.divf %83, %84 : vector<8x768xf32>
    %86 = vector.extract_strided_slice %85 {offsets = [0, 0], sizes = [8, 256], strides = [1, 1]} : vector<8x768xf32> to vector<8x256xf32>
    %87 = vector.extract_strided_slice %85 {offsets = [0, 256], sizes = [8, 256], strides = [1, 1]} : vector<8x768xf32> to vector<8x256xf32>
    %88 = vector.extract_strided_slice %85 {offsets = [0, 512], sizes = [8, 256], strides = [1, 1]} : vector<8x768xf32> to vector<8x256xf32>
    %89 = vector.extract_strided_slice %79 {offsets = [0, 768], sizes = [8, 256], strides = [1, 1]} : vector<8x1024xf32> to vector<8x256xf32>
    %90 = math.tanh %89 : vector<8x256xf32>
    %91 = arith.mulf %87, %73 : vector<8x256xf32>
    %92 = arith.mulf %86, %90 : vector<8x256xf32>
    %93 = arith.addf %91, %92 : vector<8x256xf32>
    %94 = math.tanh %93 : vector<8x256xf32>
    %95 = arith.mulf %88, %94 : vector<8x256xf32>
    %96 = vector.extract_strided_slice %13 {offsets = [32, 0], sizes = [8, 1024], strides = [1, 1]} : vector<64x1024xf32> to vector<8x1024xf32>
    %97 = arith.truncf %95 : vector<8x256xf32> to vector<8x256xbf16>
    %cst_24 = arith.constant dense<0.000000e+00> : vector<8x1024xf32>
    %98 = tpu.matmul %97, %9, %cst_24 {dimension_numbers = #tpu.dot_dimension_numbers<[1], [0], [0], [1], [0, 0, 1, 1], [], []>} : vector<8x256xbf16>, vector<256x1024xbf16>, vector<8x1024xf32> -> vector<8x1024xf32>
    %99 = arith.addf %96, %98 : vector<8x1024xf32>
    %100 = vector.extract_strided_slice %99 {offsets = [0, 0], sizes = [8, 768], strides = [1, 1]} : vector<8x1024xf32> to vector<8x768xf32>
    %101 = arith.negf %100 : vector<8x768xf32>
    %102 = math.exp %101 : vector<8x768xf32>
    %cst_25 = arith.constant 1.000000e+00 : f32
    %103 = vector.broadcast %cst_25 : f32 to vector<8x768xf32>
    %104 = arith.addf %103, %102 : vector<8x768xf32>
    %105 = arith.divf %103, %104 : vector<8x768xf32>
    %106 = vector.extract_strided_slice %105 {offsets = [0, 0], sizes = [8, 256], strides = [1, 1]} : vector<8x768xf32> to vector<8x256xf32>
    %107 = vector.extract_strided_slice %105 {offsets = [0, 256], sizes = [8, 256], strides = [1, 1]} : vector<8x768xf32> to vector<8x256xf32>
    %108 = vector.extract_strided_slice %105 {offsets = [0, 512], sizes = [8, 256], strides = [1, 1]} : vector<8x768xf32> to vector<8x256xf32>
    %109 = vector.extract_strided_slice %99 {offsets = [0, 768], sizes = [8, 256], strides = [1, 1]} : vector<8x1024xf32> to vector<8x256xf32>
    %110 = math.tanh %109 : vector<8x256xf32>
    %111 = arith.mulf %107, %93 : vector<8x256xf32>
    %112 = arith.mulf %106, %110 : vector<8x256xf32>
    %113 = arith.addf %111, %112 : vector<8x256xf32>
    %114 = math.tanh %113 : vector<8x256xf32>
    %115 = arith.mulf %108, %114 : vector<8x256xf32>
    %116 = vector.extract_strided_slice %13 {offsets = [40, 0], sizes = [8, 1024], strides = [1, 1]} : vector<64x1024xf32> to vector<8x1024xf32>
    %117 = arith.truncf %115 : vector<8x256xf32> to vector<8x256xbf16>
    %cst_26 = arith.constant dense<0.000000e+00> : vector<8x1024xf32>
    %118 = tpu.matmul %117, %9, %cst_26 {dimension_numbers = #tpu.dot_dimension_numbers<[1], [0], [0], [1], [0, 0, 1, 1], [], []>} : vector<8x256xbf16>, vector<256x1024xbf16>, vector<8x1024xf32> -> vector<8x1024xf32>
    %119 = arith.addf %116, %118 : vector<8x1024xf32>
    %120 = vector.extract_strided_slice %119 {offsets = [0, 0], sizes = [8, 768], strides = [1, 1]} : vector<8x1024xf32> to vector<8x768xf32>
    %121 = arith.negf %120 : vector<8x768xf32>
    %122 = math.exp %121 : vector<8x768xf32>
    %cst_27 = arith.constant 1.000000e+00 : f32
    %123 = vector.broadcast %cst_27 : f32 to vector<8x768xf32>
    %124 = arith.addf %123, %122 : vector<8x768xf32>
    %125 = arith.divf %123, %124 : vector<8x768xf32>
    %126 = vector.extract_strided_slice %125 {offsets = [0, 0], sizes = [8, 256], strides = [1, 1]} : vector<8x768xf32> to vector<8x256xf32>
    %127 = vector.extract_strided_slice %125 {offsets = [0, 256], sizes = [8, 256], strides = [1, 1]} : vector<8x768xf32> to vector<8x256xf32>
    %128 = vector.extract_strided_slice %125 {offsets = [0, 512], sizes = [8, 256], strides = [1, 1]} : vector<8x768xf32> to vector<8x256xf32>
    %129 = vector.extract_strided_slice %119 {offsets = [0, 768], sizes = [8, 256], strides = [1, 1]} : vector<8x1024xf32> to vector<8x256xf32>
    %130 = math.tanh %129 : vector<8x256xf32>
    %131 = arith.mulf %127, %113 : vector<8x256xf32>
    %132 = arith.mulf %126, %130 : vector<8x256xf32>
    %133 = arith.addf %131, %132 : vector<8x256xf32>
    %134 = math.tanh %133 : vector<8x256xf32>
    %135 = arith.mulf %128, %134 : vector<8x256xf32>
    %136 = vector.extract_strided_slice %13 {offsets = [48, 0], sizes = [8, 1024], strides = [1, 1]} : vector<64x1024xf32> to vector<8x1024xf32>
    %137 = arith.truncf %135 : vector<8x256xf32> to vector<8x256xbf16>
    %cst_28 = arith.constant dense<0.000000e+00> : vector<8x1024xf32>
    %138 = tpu.matmul %137, %9, %cst_28 {dimension_numbers = #tpu.dot_dimension_numbers<[1], [0], [0], [1], [0, 0, 1, 1], [], []>} : vector<8x256xbf16>, vector<256x1024xbf16>, vector<8x1024xf32> -> vector<8x1024xf32>
    %139 = arith.addf %136, %138 : vector<8x1024xf32>
    %140 = vector.extract_strided_slice %139 {offsets = [0, 0], sizes = [8, 768], strides = [1, 1]} : vector<8x1024xf32> to vector<8x768xf32>
    %141 = arith.negf %140 : vector<8x768xf32>
    %142 = math.exp %141 : vector<8x768xf32>
    %cst_29 = arith.constant 1.000000e+00 : f32
    %143 = vector.broadcast %cst_29 : f32 to vector<8x768xf32>
    %144 = arith.addf %143, %142 : vector<8x768xf32>
    %145 = arith.divf %143, %144 : vector<8x768xf32>
    %146 = vector.extract_strided_slice %145 {offsets = [0, 0], sizes = [8, 256], strides = [1, 1]} : vector<8x768xf32> to vector<8x256xf32>
    %147 = vector.extract_strided_slice %145 {offsets = [0, 256], sizes = [8, 256], strides = [1, 1]} : vector<8x768xf32> to vector<8x256xf32>
    %148 = vector.extract_strided_slice %145 {offsets = [0, 512], sizes = [8, 256], strides = [1, 1]} : vector<8x768xf32> to vector<8x256xf32>
    %149 = vector.extract_strided_slice %139 {offsets = [0, 768], sizes = [8, 256], strides = [1, 1]} : vector<8x1024xf32> to vector<8x256xf32>
    %150 = math.tanh %149 : vector<8x256xf32>
    %151 = arith.mulf %147, %133 : vector<8x256xf32>
    %152 = arith.mulf %146, %150 : vector<8x256xf32>
    %153 = arith.addf %151, %152 : vector<8x256xf32>
    %154 = math.tanh %153 : vector<8x256xf32>
    %155 = arith.mulf %148, %154 : vector<8x256xf32>
    %156 = vector.extract_strided_slice %13 {offsets = [56, 0], sizes = [8, 1024], strides = [1, 1]} : vector<64x1024xf32> to vector<8x1024xf32>
    %157 = arith.truncf %155 : vector<8x256xf32> to vector<8x256xbf16>
    %cst_30 = arith.constant dense<0.000000e+00> : vector<8x1024xf32>
    %158 = tpu.matmul %157, %9, %cst_30 {dimension_numbers = #tpu.dot_dimension_numbers<[1], [0], [0], [1], [0, 0, 1, 1], [], []>} : vector<8x256xbf16>, vector<256x1024xbf16>, vector<8x1024xf32> -> vector<8x1024xf32>
    %159 = arith.addf %156, %158 : vector<8x1024xf32>
    %160 = vector.extract_strided_slice %159 {offsets = [0, 0], sizes = [8, 768], strides = [1, 1]} : vector<8x1024xf32> to vector<8x768xf32>
    %161 = arith.negf %160 : vector<8x768xf32>
    %162 = math.exp %161 : vector<8x768xf32>
    %cst_31 = arith.constant 1.000000e+00 : f32
    %163 = vector.broadcast %cst_31 : f32 to vector<8x768xf32>
    %164 = arith.addf %163, %162 : vector<8x768xf32>
    %165 = arith.divf %163, %164 : vector<8x768xf32>
    %166 = vector.extract_strided_slice %165 {offsets = [0, 0], sizes = [8, 256], strides = [1, 1]} : vector<8x768xf32> to vector<8x256xf32>
    %167 = vector.extract_strided_slice %165 {offsets = [0, 256], sizes = [8, 256], strides = [1, 1]} : vector<8x768xf32> to vector<8x256xf32>
    %168 = vector.extract_strided_slice %165 {offsets = [0, 512], sizes = [8, 256], strides = [1, 1]} : vector<8x768xf32> to vector<8x256xf32>
    %169 = vector.extract_strided_slice %159 {offsets = [0, 768], sizes = [8, 256], strides = [1, 1]} : vector<8x1024xf32> to vector<8x256xf32>
    %170 = math.tanh %169 : vector<8x256xf32>
    %171 = arith.mulf %167, %153 : vector<8x256xf32>
    %172 = arith.mulf %166, %170 : vector<8x256xf32>
    %173 = arith.addf %171, %172 : vector<8x256xf32>
    %174 = math.tanh %173 : vector<8x256xf32>
    %175 = arith.mulf %168, %174 : vector<8x256xf32>
    %176 = tpu.concatenate %35, %55, %75, %95, %115, %135, %155, %175 in 0 : vector<8x256xf32>, vector<8x256xf32>, vector<8x256xf32>, vector<8x256xf32>, vector<8x256xf32>, vector<8x256xf32>, vector<8x256xf32>, vector<8x256xf32> -> vector<64x256xf32>
    %177 = arith.truncf %176 : vector<64x256xf32> to vector<64x256xbf16>
    %c0_i32_32 = arith.constant 0 : i32
    %c0_i32_33 = arith.constant 0 : i32
    %c0_i32_34 = arith.constant 0 : i32
    %c0_i32_35 = arith.constant 0 : i32
    %c0_i32_36 = arith.constant 0 : i32
    %178 = tpu.memref_slice %arg5[%c0_i32_32, %c0_i32_35, %c0_i32_36] : memref<1x512x1024xbf16, #tpu.memory_space<any>> -> memref<1x512x1024xbf16, #tpu.memory_space<any>>
    %179 = tpu.memref_squeeze %178 : memref<1x512x1024xbf16, #tpu.memory_space<any>> -> memref<512x1024xbf16, #tpu.memory_space<any>>
    %c0_i32_37 = arith.constant 0 : i32
    %c0_i32_38 = arith.constant 0 : i32
    %180 = tpu.memref_slice %arg11[%c0_i32_33, %c0_i32_37, %c0_i32_38] : memref<1x512x1024xbf16, #tpu.memory_space<vmem>> -> memref<1x512x1024xbf16, #tpu.memory_space<vmem>>
    %181 = tpu.memref_squeeze %180 : memref<1x512x1024xbf16, #tpu.memory_space<vmem>> -> memref<512x1024xbf16, #tpu.memory_space<vmem>>
    %182 = tpu.memref_slice %arg12[%c0_i32_34] : memref<1x!tpu.dma_semaphore, #tpu.memory_space<semaphore_mem>> -> memref<1x!tpu.dma_semaphore, #tpu.memory_space<semaphore_mem>>
    %183 = tpu.memref_squeeze %182 : memref<1x!tpu.dma_semaphore, #tpu.memory_space<semaphore_mem>> -> memref<!tpu.dma_semaphore, #tpu.memory_space<semaphore_mem>>
    tpu.wait_dma2 semaphore(%183 : memref<!tpu.dma_semaphore, #tpu.memory_space<semaphore_mem>>) src(%179 : memref<512x1024xbf16, #tpu.memory_space<any>>) dst(%181 : memref<512x1024xbf16, #tpu.memory_space<vmem>>)
    %c0_39 = arith.constant 0 : index
    %c0_40 = arith.constant 0 : index
    %c0_41 = arith.constant 0 : index
    %184 = vector.load %arg11[%c0_39, %c0_40, %c0_41] : memref<1x512x1024xbf16, #tpu.memory_space<vmem>>, vector<1x256x1024xbf16>
    %185 = vector.shape_cast %184 : vector<1x256x1024xbf16> to vector<256x1024xbf16>
    %c0_42 = arith.constant 0 : index
    %c256 = arith.constant 256 : index
    %c0_43 = arith.constant 0 : index
    %186 = vector.load %arg11[%c0_42, %c256, %c0_43] : memref<1x512x1024xbf16, #tpu.memory_space<vmem>>, vector<1x256x1024xbf16>
    %187 = vector.shape_cast %186 : vector<1x256x1024xbf16> to vector<256x1024xbf16>
    %c0_44 = arith.constant 0 : index
    %c0_45 = arith.constant 0 : index
    %188 = vector.load %arg4[%c0_44, %c0_45] : memref<1x1024xf32, #tpu.memory_space<vmem>>, vector<1x1024xf32>
    %cst_46 = arith.constant dense<0.000000e+00> : vector<64x1024xf32>
    %189 = tpu.matmul %177, %185, %cst_46 {dimension_numbers = #tpu.dot_dimension_numbers<[1], [0], [0], [1], [0, 0, 1, 1], [], []>} : vector<64x256xbf16>, vector<256x1024xbf16>, vector<64x1024xf32> -> vector<64x1024xf32>
    %190 = vector.broadcast %188 : vector<1x1024xf32> to vector<64x1024xf32>
    %191 = arith.addf %189, %190 : vector<64x1024xf32>
    tpu.wait_dma2 semaphore(%arg14 : memref<!tpu.dma_semaphore, #tpu.memory_space<semaphore_mem>>) src(%arg6 : memref<8x256x256xbf16, #tpu.memory_space<any>>) dst(%arg13 : memref<8x256x256xbf16, #tpu.memory_space<vmem>>)
    %cst_47 = arith.constant 0.000000e+00 : f32
    %192 = vector.broadcast %cst_47 : f32 to vector<8x256xf32>
    %cst_48 = arith.constant 0.000000e+00 : f32
    %193 = vector.broadcast %cst_48 : f32 to vector<8x256xf32>
    %194 = vector.extract_strided_slice %191 {offsets = [0, 0], sizes = [8, 1024], strides = [1, 1]} : vector<64x1024xf32> to vector<8x1024xf32>
    %195 = arith.truncf %192 : vector<8x256xf32> to vector<8x256xbf16>
    %cst_49 = arith.constant dense<0.000000e+00> : vector<8x1024xf32>
    %196 = tpu.matmul %195, %187, %cst_49 {dimension_numbers = #tpu.dot_dimension_numbers<[1], [0], [0], [1], [0, 0, 1, 1], [], []>} : vector<8x256xbf16>, vector<256x1024xbf16>, vector<8x1024xf32> -> vector<8x1024xf32>
    %197 = arith.addf %194, %196 : vector<8x1024xf32>
    %198 = vector.extract_strided_slice %197 {offsets = [0, 0], sizes = [8, 768], strides = [1, 1]} : vector<8x1024xf32> to vector<8x768xf32>
    %199 = arith.negf %198 : vector<8x768xf32>
    %200 = math.exp %199 : vector<8x768xf32>
    %cst_50 = arith.constant 1.000000e+00 : f32
    %201 = vector.broadcast %cst_50 : f32 to vector<8x768xf32>
    %202 = arith.addf %201, %200 : vector<8x768xf32>
    %203 = arith.divf %201, %202 : vector<8x768xf32>
    %204 = vector.extract_strided_slice %203 {offsets = [0, 0], sizes = [8, 256], strides = [1, 1]} : vector<8x768xf32> to vector<8x256xf32>
    %205 = vector.extract_strided_slice %203 {offsets = [0, 256], sizes = [8, 256], strides = [1, 1]} : vector<8x768xf32> to vector<8x256xf32>
    %206 = vector.extract_strided_slice %203 {offsets = [0, 512], sizes = [8, 256], strides = [1, 1]} : vector<8x768xf32> to vector<8x256xf32>
    %207 = vector.extract_strided_slice %197 {offsets = [0, 768], sizes = [8, 256], strides = [1, 1]} : vector<8x1024xf32> to vector<8x256xf32>
    %208 = math.tanh %207 : vector<8x256xf32>
    %209 = arith.mulf %205, %193 : vector<8x256xf32>
    %210 = arith.mulf %204, %208 : vector<8x256xf32>
    %211 = arith.addf %209, %210 : vector<8x256xf32>
    %212 = math.tanh %211 : vector<8x256xf32>
    %213 = arith.mulf %206, %212 : vector<8x256xf32>
    %214 = arith.truncf %213 : vector<8x256xf32> to vector<8x256xbf16>
    %c0_51 = arith.constant 0 : index
    %c0_52 = arith.constant 0 : index
    %c0_53 = arith.constant 0 : index
    %215 = vector.load %arg13[%c0_51, %c0_52, %c0_53] : memref<8x256x256xbf16, #tpu.memory_space<vmem>>, vector<1x256x256xbf16>
    %216 = vector.shape_cast %215 : vector<1x256x256xbf16> to vector<256x256xbf16>
    %cst_54 = arith.constant dense<0.000000e+00> : vector<8x256xf32>
    %217 = tpu.matmul %214, %216, %cst_54 {dimension_numbers = #tpu.dot_dimension_numbers<[1], [0], [0], [1], [0, 0, 1, 1], [], []>} : vector<8x256xbf16>, vector<256x256xbf16>, vector<8x256xf32> -> vector<8x256xf32>
    %218 = arith.addf %7, %217 : vector<8x256xf32>
    %219 = vector.extract_strided_slice %191 {offsets = [8, 0], sizes = [8, 1024], strides = [1, 1]} : vector<64x1024xf32> to vector<8x1024xf32>
    %220 = arith.truncf %213 : vector<8x256xf32> to vector<8x256xbf16>
    %cst_55 = arith.constant dense<0.000000e+00> : vector<8x1024xf32>
    %221 = tpu.matmul %220, %187, %cst_55 {dimension_numbers = #tpu.dot_dimension_numbers<[1], [0], [0], [1], [0, 0, 1, 1], [], []>} : vector<8x256xbf16>, vector<256x1024xbf16>, vector<8x1024xf32> -> vector<8x1024xf32>
    %222 = arith.addf %219, %221 : vector<8x1024xf32>
    %223 = vector.extract_strided_slice %222 {offsets = [0, 0], sizes = [8, 768], strides = [1, 1]} : vector<8x1024xf32> to vector<8x768xf32>
    %224 = arith.negf %223 : vector<8x768xf32>
    %225 = math.exp %224 : vector<8x768xf32>
    %cst_56 = arith.constant 1.000000e+00 : f32
    %226 = vector.broadcast %cst_56 : f32 to vector<8x768xf32>
    %227 = arith.addf %226, %225 : vector<8x768xf32>
    %228 = arith.divf %226, %227 : vector<8x768xf32>
    %229 = vector.extract_strided_slice %228 {offsets = [0, 0], sizes = [8, 256], strides = [1, 1]} : vector<8x768xf32> to vector<8x256xf32>
    %230 = vector.extract_strided_slice %228 {offsets = [0, 256], sizes = [8, 256], strides = [1, 1]} : vector<8x768xf32> to vector<8x256xf32>
    %231 = vector.extract_strided_slice %228 {offsets = [0, 512], sizes = [8, 256], strides = [1, 1]} : vector<8x768xf32> to vector<8x256xf32>
    %232 = vector.extract_strided_slice %222 {offsets = [0, 768], sizes = [8, 256], strides = [1, 1]} : vector<8x1024xf32> to vector<8x256xf32>
    %233 = math.tanh %232 : vector<8x256xf32>
    %234 = arith.mulf %230, %211 : vector<8x256xf32>
    %235 = arith.mulf %229, %233 : vector<8x256xf32>
    %236 = arith.addf %234, %235 : vector<8x256xf32>
    %237 = math.tanh %236 : vector<8x256xf32>
    %238 = arith.mulf %231, %237 : vector<8x256xf32>
    %239 = arith.truncf %238 : vector<8x256xf32> to vector<8x256xbf16>
    %c1 = arith.constant 1 : index
    %c0_57 = arith.constant 0 : index
    %c0_58 = arith.constant 0 : index
    %240 = vector.load %arg13[%c1, %c0_57, %c0_58] : memref<8x256x256xbf16, #tpu.memory_space<vmem>>, vector<1x256x256xbf16>
    %241 = vector.shape_cast %240 : vector<1x256x256xbf16> to vector<256x256xbf16>
    %cst_59 = arith.constant dense<0.000000e+00> : vector<8x256xf32>
    %242 = tpu.matmul %239, %241, %cst_59 {dimension_numbers = #tpu.dot_dimension_numbers<[1], [0], [0], [1], [0, 0, 1, 1], [], []>} : vector<8x256xbf16>, vector<256x256xbf16>, vector<8x256xf32> -> vector<8x256xf32>
    %243 = arith.addf %218, %242 : vector<8x256xf32>
    %244 = vector.extract_strided_slice %191 {offsets = [16, 0], sizes = [8, 1024], strides = [1, 1]} : vector<64x1024xf32> to vector<8x1024xf32>
    %245 = arith.truncf %238 : vector<8x256xf32> to vector<8x256xbf16>
    %cst_60 = arith.constant dense<0.000000e+00> : vector<8x1024xf32>
    %246 = tpu.matmul %245, %187, %cst_60 {dimension_numbers = #tpu.dot_dimension_numbers<[1], [0], [0], [1], [0, 0, 1, 1], [], []>} : vector<8x256xbf16>, vector<256x1024xbf16>, vector<8x1024xf32> -> vector<8x1024xf32>
    %247 = arith.addf %244, %246 : vector<8x1024xf32>
    %248 = vector.extract_strided_slice %247 {offsets = [0, 0], sizes = [8, 768], strides = [1, 1]} : vector<8x1024xf32> to vector<8x768xf32>
    %249 = arith.negf %248 : vector<8x768xf32>
    %250 = math.exp %249 : vector<8x768xf32>
    %cst_61 = arith.constant 1.000000e+00 : f32
    %251 = vector.broadcast %cst_61 : f32 to vector<8x768xf32>
    %252 = arith.addf %251, %250 : vector<8x768xf32>
    %253 = arith.divf %251, %252 : vector<8x768xf32>
    %254 = vector.extract_strided_slice %253 {offsets = [0, 0], sizes = [8, 256], strides = [1, 1]} : vector<8x768xf32> to vector<8x256xf32>
    %255 = vector.extract_strided_slice %253 {offsets = [0, 256], sizes = [8, 256], strides = [1, 1]} : vector<8x768xf32> to vector<8x256xf32>
    %256 = vector.extract_strided_slice %253 {offsets = [0, 512], sizes = [8, 256], strides = [1, 1]} : vector<8x768xf32> to vector<8x256xf32>
    %257 = vector.extract_strided_slice %247 {offsets = [0, 768], sizes = [8, 256], strides = [1, 1]} : vector<8x1024xf32> to vector<8x256xf32>
    %258 = math.tanh %257 : vector<8x256xf32>
    %259 = arith.mulf %255, %236 : vector<8x256xf32>
    %260 = arith.mulf %254, %258 : vector<8x256xf32>
    %261 = arith.addf %259, %260 : vector<8x256xf32>
    %262 = math.tanh %261 : vector<8x256xf32>
    %263 = arith.mulf %256, %262 : vector<8x256xf32>
    %264 = arith.truncf %263 : vector<8x256xf32> to vector<8x256xbf16>
    %c2 = arith.constant 2 : index
    %c0_62 = arith.constant 0 : index
    %c0_63 = arith.constant 0 : index
    %265 = vector.load %arg13[%c2, %c0_62, %c0_63] : memref<8x256x256xbf16, #tpu.memory_space<vmem>>, vector<1x256x256xbf16>
    %266 = vector.shape_cast %265 : vector<1x256x256xbf16> to vector<256x256xbf16>
    %cst_64 = arith.constant dense<0.000000e+00> : vector<8x256xf32>
    %267 = tpu.matmul %264, %266, %cst_64 {dimension_numbers = #tpu.dot_dimension_numbers<[1], [0], [0], [1], [0, 0, 1, 1], [], []>} : vector<8x256xbf16>, vector<256x256xbf16>, vector<8x256xf32> -> vector<8x256xf32>
    %268 = arith.addf %243, %267 : vector<8x256xf32>
    %269 = vector.extract_strided_slice %191 {offsets = [24, 0], sizes = [8, 1024], strides = [1, 1]} : vector<64x1024xf32> to vector<8x1024xf32>
    %270 = arith.truncf %263 : vector<8x256xf32> to vector<8x256xbf16>
    %cst_65 = arith.constant dense<0.000000e+00> : vector<8x1024xf32>
    %271 = tpu.matmul %270, %187, %cst_65 {dimension_numbers = #tpu.dot_dimension_numbers<[1], [0], [0], [1], [0, 0, 1, 1], [], []>} : vector<8x256xbf16>, vector<256x1024xbf16>, vector<8x1024xf32> -> vector<8x1024xf32>
    %272 = arith.addf %269, %271 : vector<8x1024xf32>
    %273 = vector.extract_strided_slice %272 {offsets = [0, 0], sizes = [8, 768], strides = [1, 1]} : vector<8x1024xf32> to vector<8x768xf32>
    %274 = arith.negf %273 : vector<8x768xf32>
    %275 = math.exp %274 : vector<8x768xf32>
    %cst_66 = arith.constant 1.000000e+00 : f32
    %276 = vector.broadcast %cst_66 : f32 to vector<8x768xf32>
    %277 = arith.addf %276, %275 : vector<8x768xf32>
    %278 = arith.divf %276, %277 : vector<8x768xf32>
    %279 = vector.extract_strided_slice %278 {offsets = [0, 0], sizes = [8, 256], strides = [1, 1]} : vector<8x768xf32> to vector<8x256xf32>
    %280 = vector.extract_strided_slice %278 {offsets = [0, 256], sizes = [8, 256], strides = [1, 1]} : vector<8x768xf32> to vector<8x256xf32>
    %281 = vector.extract_strided_slice %278 {offsets = [0, 512], sizes = [8, 256], strides = [1, 1]} : vector<8x768xf32> to vector<8x256xf32>
    %282 = vector.extract_strided_slice %272 {offsets = [0, 768], sizes = [8, 256], strides = [1, 1]} : vector<8x1024xf32> to vector<8x256xf32>
    %283 = math.tanh %282 : vector<8x256xf32>
    %284 = arith.mulf %280, %261 : vector<8x256xf32>
    %285 = arith.mulf %279, %283 : vector<8x256xf32>
    %286 = arith.addf %284, %285 : vector<8x256xf32>
    %287 = math.tanh %286 : vector<8x256xf32>
    %288 = arith.mulf %281, %287 : vector<8x256xf32>
    %289 = arith.truncf %288 : vector<8x256xf32> to vector<8x256xbf16>
    %c3 = arith.constant 3 : index
    %c0_67 = arith.constant 0 : index
    %c0_68 = arith.constant 0 : index
    %290 = vector.load %arg13[%c3, %c0_67, %c0_68] : memref<8x256x256xbf16, #tpu.memory_space<vmem>>, vector<1x256x256xbf16>
    %291 = vector.shape_cast %290 : vector<1x256x256xbf16> to vector<256x256xbf16>
    %cst_69 = arith.constant dense<0.000000e+00> : vector<8x256xf32>
    %292 = tpu.matmul %289, %291, %cst_69 {dimension_numbers = #tpu.dot_dimension_numbers<[1], [0], [0], [1], [0, 0, 1, 1], [], []>} : vector<8x256xbf16>, vector<256x256xbf16>, vector<8x256xf32> -> vector<8x256xf32>
    %293 = arith.addf %268, %292 : vector<8x256xf32>
    %294 = vector.extract_strided_slice %191 {offsets = [32, 0], sizes = [8, 1024], strides = [1, 1]} : vector<64x1024xf32> to vector<8x1024xf32>
    %295 = arith.truncf %288 : vector<8x256xf32> to vector<8x256xbf16>
    %cst_70 = arith.constant dense<0.000000e+00> : vector<8x1024xf32>
    %296 = tpu.matmul %295, %187, %cst_70 {dimension_numbers = #tpu.dot_dimension_numbers<[1], [0], [0], [1], [0, 0, 1, 1], [], []>} : vector<8x256xbf16>, vector<256x1024xbf16>, vector<8x1024xf32> -> vector<8x1024xf32>
    %297 = arith.addf %294, %296 : vector<8x1024xf32>
    %298 = vector.extract_strided_slice %297 {offsets = [0, 0], sizes = [8, 768], strides = [1, 1]} : vector<8x1024xf32> to vector<8x768xf32>
    %299 = arith.negf %298 : vector<8x768xf32>
    %300 = math.exp %299 : vector<8x768xf32>
    %cst_71 = arith.constant 1.000000e+00 : f32
    %301 = vector.broadcast %cst_71 : f32 to vector<8x768xf32>
    %302 = arith.addf %301, %300 : vector<8x768xf32>
    %303 = arith.divf %301, %302 : vector<8x768xf32>
    %304 = vector.extract_strided_slice %303 {offsets = [0, 0], sizes = [8, 256], strides = [1, 1]} : vector<8x768xf32> to vector<8x256xf32>
    %305 = vector.extract_strided_slice %303 {offsets = [0, 256], sizes = [8, 256], strides = [1, 1]} : vector<8x768xf32> to vector<8x256xf32>
    %306 = vector.extract_strided_slice %303 {offsets = [0, 512], sizes = [8, 256], strides = [1, 1]} : vector<8x768xf32> to vector<8x256xf32>
    %307 = vector.extract_strided_slice %297 {offsets = [0, 768], sizes = [8, 256], strides = [1, 1]} : vector<8x1024xf32> to vector<8x256xf32>
    %308 = math.tanh %307 : vector<8x256xf32>
    %309 = arith.mulf %305, %286 : vector<8x256xf32>
    %310 = arith.mulf %304, %308 : vector<8x256xf32>
    %311 = arith.addf %309, %310 : vector<8x256xf32>
    %312 = math.tanh %311 : vector<8x256xf32>
    %313 = arith.mulf %306, %312 : vector<8x256xf32>
    %314 = arith.truncf %313 : vector<8x256xf32> to vector<8x256xbf16>
    %c4 = arith.constant 4 : index
    %c0_72 = arith.constant 0 : index
    %c0_73 = arith.constant 0 : index
    %315 = vector.load %arg13[%c4, %c0_72, %c0_73] : memref<8x256x256xbf16, #tpu.memory_space<vmem>>, vector<1x256x256xbf16>
    %316 = vector.shape_cast %315 : vector<1x256x256xbf16> to vector<256x256xbf16>
    %cst_74 = arith.constant dense<0.000000e+00> : vector<8x256xf32>
    %317 = tpu.matmul %314, %316, %cst_74 {dimension_numbers = #tpu.dot_dimension_numbers<[1], [0], [0], [1], [0, 0, 1, 1], [], []>} : vector<8x256xbf16>, vector<256x256xbf16>, vector<8x256xf32> -> vector<8x256xf32>
    %318 = arith.addf %293, %317 : vector<8x256xf32>
    %319 = vector.extract_strided_slice %191 {offsets = [40, 0], sizes = [8, 1024], strides = [1, 1]} : vector<64x1024xf32> to vector<8x1024xf32>
    %320 = arith.truncf %313 : vector<8x256xf32> to vector<8x256xbf16>
    %cst_75 = arith.constant dense<0.000000e+00> : vector<8x1024xf32>
    %321 = tpu.matmul %320, %187, %cst_75 {dimension_numbers = #tpu.dot_dimension_numbers<[1], [0], [0], [1], [0, 0, 1, 1], [], []>} : vector<8x256xbf16>, vector<256x1024xbf16>, vector<8x1024xf32> -> vector<8x1024xf32>
    %322 = arith.addf %319, %321 : vector<8x1024xf32>
    %323 = vector.extract_strided_slice %322 {offsets = [0, 0], sizes = [8, 768], strides = [1, 1]} : vector<8x1024xf32> to vector<8x768xf32>
    %324 = arith.negf %323 : vector<8x768xf32>
    %325 = math.exp %324 : vector<8x768xf32>
    %cst_76 = arith.constant 1.000000e+00 : f32
    %326 = vector.broadcast %cst_76 : f32 to vector<8x768xf32>
    %327 = arith.addf %326, %325 : vector<8x768xf32>
    %328 = arith.divf %326, %327 : vector<8x768xf32>
    %329 = vector.extract_strided_slice %328 {offsets = [0, 0], sizes = [8, 256], strides = [1, 1]} : vector<8x768xf32> to vector<8x256xf32>
    %330 = vector.extract_strided_slice %328 {offsets = [0, 256], sizes = [8, 256], strides = [1, 1]} : vector<8x768xf32> to vector<8x256xf32>
    %331 = vector.extract_strided_slice %328 {offsets = [0, 512], sizes = [8, 256], strides = [1, 1]} : vector<8x768xf32> to vector<8x256xf32>
    %332 = vector.extract_strided_slice %322 {offsets = [0, 768], sizes = [8, 256], strides = [1, 1]} : vector<8x1024xf32> to vector<8x256xf32>
    %333 = math.tanh %332 : vector<8x256xf32>
    %334 = arith.mulf %330, %311 : vector<8x256xf32>
    %335 = arith.mulf %329, %333 : vector<8x256xf32>
    %336 = arith.addf %334, %335 : vector<8x256xf32>
    %337 = math.tanh %336 : vector<8x256xf32>
    %338 = arith.mulf %331, %337 : vector<8x256xf32>
    %339 = arith.truncf %338 : vector<8x256xf32> to vector<8x256xbf16>
    %c5 = arith.constant 5 : index
    %c0_77 = arith.constant 0 : index
    %c0_78 = arith.constant 0 : index
    %340 = vector.load %arg13[%c5, %c0_77, %c0_78] : memref<8x256x256xbf16, #tpu.memory_space<vmem>>, vector<1x256x256xbf16>
    %341 = vector.shape_cast %340 : vector<1x256x256xbf16> to vector<256x256xbf16>
    %cst_79 = arith.constant dense<0.000000e+00> : vector<8x256xf32>
    %342 = tpu.matmul %339, %341, %cst_79 {dimension_numbers = #tpu.dot_dimension_numbers<[1], [0], [0], [1], [0, 0, 1, 1], [], []>} : vector<8x256xbf16>, vector<256x256xbf16>, vector<8x256xf32> -> vector<8x256xf32>
    %343 = arith.addf %318, %342 : vector<8x256xf32>
    %344 = vector.extract_strided_slice %191 {offsets = [48, 0], sizes = [8, 1024], strides = [1, 1]} : vector<64x1024xf32> to vector<8x1024xf32>
    %345 = arith.truncf %338 : vector<8x256xf32> to vector<8x256xbf16>
    %cst_80 = arith.constant dense<0.000000e+00> : vector<8x1024xf32>
    %346 = tpu.matmul %345, %187, %cst_80 {dimension_numbers = #tpu.dot_dimension_numbers<[1], [0], [0], [1], [0, 0, 1, 1], [], []>} : vector<8x256xbf16>, vector<256x1024xbf16>, vector<8x1024xf32> -> vector<8x1024xf32>
    %347 = arith.addf %344, %346 : vector<8x1024xf32>
    %348 = vector.extract_strided_slice %347 {offsets = [0, 0], sizes = [8, 768], strides = [1, 1]} : vector<8x1024xf32> to vector<8x768xf32>
    %349 = arith.negf %348 : vector<8x768xf32>
    %350 = math.exp %349 : vector<8x768xf32>
    %cst_81 = arith.constant 1.000000e+00 : f32
    %351 = vector.broadcast %cst_81 : f32 to vector<8x768xf32>
    %352 = arith.addf %351, %350 : vector<8x768xf32>
    %353 = arith.divf %351, %352 : vector<8x768xf32>
    %354 = vector.extract_strided_slice %353 {offsets = [0, 0], sizes = [8, 256], strides = [1, 1]} : vector<8x768xf32> to vector<8x256xf32>
    %355 = vector.extract_strided_slice %353 {offsets = [0, 256], sizes = [8, 256], strides = [1, 1]} : vector<8x768xf32> to vector<8x256xf32>
    %356 = vector.extract_strided_slice %353 {offsets = [0, 512], sizes = [8, 256], strides = [1, 1]} : vector<8x768xf32> to vector<8x256xf32>
    %357 = vector.extract_strided_slice %347 {offsets = [0, 768], sizes = [8, 256], strides = [1, 1]} : vector<8x1024xf32> to vector<8x256xf32>
    %358 = math.tanh %357 : vector<8x256xf32>
    %359 = arith.mulf %355, %336 : vector<8x256xf32>
    %360 = arith.mulf %354, %358 : vector<8x256xf32>
    %361 = arith.addf %359, %360 : vector<8x256xf32>
    %362 = math.tanh %361 : vector<8x256xf32>
    %363 = arith.mulf %356, %362 : vector<8x256xf32>
    %364 = arith.truncf %363 : vector<8x256xf32> to vector<8x256xbf16>
    %c6 = arith.constant 6 : index
    %c0_82 = arith.constant 0 : index
    %c0_83 = arith.constant 0 : index
    %365 = vector.load %arg13[%c6, %c0_82, %c0_83] : memref<8x256x256xbf16, #tpu.memory_space<vmem>>, vector<1x256x256xbf16>
    %366 = vector.shape_cast %365 : vector<1x256x256xbf16> to vector<256x256xbf16>
    %cst_84 = arith.constant dense<0.000000e+00> : vector<8x256xf32>
    %367 = tpu.matmul %364, %366, %cst_84 {dimension_numbers = #tpu.dot_dimension_numbers<[1], [0], [0], [1], [0, 0, 1, 1], [], []>} : vector<8x256xbf16>, vector<256x256xbf16>, vector<8x256xf32> -> vector<8x256xf32>
    %368 = arith.addf %343, %367 : vector<8x256xf32>
    %369 = vector.extract_strided_slice %191 {offsets = [56, 0], sizes = [8, 1024], strides = [1, 1]} : vector<64x1024xf32> to vector<8x1024xf32>
    %370 = arith.truncf %363 : vector<8x256xf32> to vector<8x256xbf16>
    %cst_85 = arith.constant dense<0.000000e+00> : vector<8x1024xf32>
    %371 = tpu.matmul %370, %187, %cst_85 {dimension_numbers = #tpu.dot_dimension_numbers<[1], [0], [0], [1], [0, 0, 1, 1], [], []>} : vector<8x256xbf16>, vector<256x1024xbf16>, vector<8x1024xf32> -> vector<8x1024xf32>
    %372 = arith.addf %369, %371 : vector<8x1024xf32>
    %373 = vector.extract_strided_slice %372 {offsets = [0, 0], sizes = [8, 768], strides = [1, 1]} : vector<8x1024xf32> to vector<8x768xf32>
    %374 = arith.negf %373 : vector<8x768xf32>
    %375 = math.exp %374 : vector<8x768xf32>
    %cst_86 = arith.constant 1.000000e+00 : f32
    %376 = vector.broadcast %cst_86 : f32 to vector<8x768xf32>
    %377 = arith.addf %376, %375 : vector<8x768xf32>
    %378 = arith.divf %376, %377 : vector<8x768xf32>
    %379 = vector.extract_strided_slice %378 {offsets = [0, 0], sizes = [8, 256], strides = [1, 1]} : vector<8x768xf32> to vector<8x256xf32>
    %380 = vector.extract_strided_slice %378 {offsets = [0, 256], sizes = [8, 256], strides = [1, 1]} : vector<8x768xf32> to vector<8x256xf32>
    %381 = vector.extract_strided_slice %378 {offsets = [0, 512], sizes = [8, 256], strides = [1, 1]} : vector<8x768xf32> to vector<8x256xf32>
    %382 = vector.extract_strided_slice %372 {offsets = [0, 768], sizes = [8, 256], strides = [1, 1]} : vector<8x1024xf32> to vector<8x256xf32>
    %383 = math.tanh %382 : vector<8x256xf32>
    %384 = arith.mulf %380, %361 : vector<8x256xf32>
    %385 = arith.mulf %379, %383 : vector<8x256xf32>
    %386 = arith.addf %384, %385 : vector<8x256xf32>
    %387 = math.tanh %386 : vector<8x256xf32>
    %388 = arith.mulf %381, %387 : vector<8x256xf32>
    %389 = arith.truncf %388 : vector<8x256xf32> to vector<8x256xbf16>
    %c7 = arith.constant 7 : index
    %c0_87 = arith.constant 0 : index
    %c0_88 = arith.constant 0 : index
    %390 = vector.load %arg13[%c7, %c0_87, %c0_88] : memref<8x256x256xbf16, #tpu.memory_space<vmem>>, vector<1x256x256xbf16>
    %391 = vector.shape_cast %390 : vector<1x256x256xbf16> to vector<256x256xbf16>
    %cst_89 = arith.constant dense<0.000000e+00> : vector<8x256xf32>
    %392 = tpu.matmul %389, %391, %cst_89 {dimension_numbers = #tpu.dot_dimension_numbers<[1], [0], [0], [1], [0, 0, 1, 1], [], []>} : vector<8x256xbf16>, vector<256x256xbf16>, vector<8x256xf32> -> vector<8x256xf32>
    %393 = arith.addf %368, %392 : vector<8x256xf32>
    %c0_90 = arith.constant 0 : index
    %c0_91 = arith.constant 0 : index
    %394 = vector.load %arg7[%c0_90, %c0_91] : memref<1x256xf32, #tpu.memory_space<vmem>>, vector<1x256xf32>
    %395 = vector.broadcast %394 : vector<1x256xf32> to vector<8x256xf32>
    %396 = arith.addf %393, %395 : vector<8x256xf32>
    %cst_92 = arith.constant 0.000000e+00 : f32
    %397 = vector.broadcast %cst_92 : f32 to vector<8x256xf32>
    %398 = arith.maximumf %396, %397 : vector<8x256xf32>
    %c0_93 = arith.constant 0 : index
    %c0_94 = arith.constant 0 : index
    %399 = vector.load %arg8[%c0_93, %c0_94] : memref<256x10xf32, #tpu.memory_space<vmem>>, vector<256x10xf32>
    %cst_95 = arith.constant dense<0.000000e+00> : vector<8x10xf32>
    %400 = tpu.matmul %398, %399, %cst_95 {dimension_numbers = #tpu.dot_dimension_numbers<[1], [0], [0], [1], [0, 0, 1, 1], [], []>} : vector<8x256xf32>, vector<256x10xf32>, vector<8x10xf32> -> vector<8x10xf32>
    %c0_96 = arith.constant 0 : index
    %c0_97 = arith.constant 0 : index
    %401 = vector.load %arg9[%c0_96, %c0_97] : memref<1x10xf32, #tpu.memory_space<vmem>>, vector<1x10xf32>
    %402 = vector.broadcast %401 : vector<1x10xf32> to vector<8x10xf32>
    %403 = arith.addf %400, %402 : vector<8x10xf32>
    %c0_98 = arith.constant 0 : index
    %c0_99 = arith.constant 0 : index
    %404 = vector.load %arg10[%c0_98, %c0_99] : memref<8x10xf32, #tpu.memory_space<vmem>>, vector<8x10xf32>
    tpu.vector_store %arg10[%c0_98, %c0_99], %403 {strides = array<i32>} : memref<8x10xf32, #tpu.memory_space<vmem>>, vector<8x10xf32>,
    return
  }
}

</mosaic_0001>

<llo_original>
// kernel: forward.1
$region0: #{forward.1}
  #allocation0 [shape = 'u32[]', space=smem, size = 0x4, offset = 0x4, fixed_abs, tag = 'smem constant byte address 0x4 - core index']
  #allocation1 [shape = 'u32[144,128]{1,0:T(1,128)}', space=vmem, size = 0x12000, scoped, tag = 'internal scratch']
  #allocation2 [shape = 'bf16[1,512,1024]{2,1,0:T(16,128)(2,1)}', space=vmem, size = 0x100000, scoped, tag = 'scratch operand']
  #allocation3 [shape = 's32[1]{0}', space=sflag, size = 0x4, scoped, tag = 'scratch operand']
  #allocation4 [shape = 'bf16[8,256,256]{2,1,0:T(16,128)(2,1)}', space=vmem, size = 0x100000, scoped, tag = 'scratch operand']
  #allocation5 [shape = 's32[1]{0}', space=sflag, size = 0x4, scoped, tag = 'scratch operand']
  #allocation8 [shape = 's32[]', space=sflag, size = 0x4, offset = 0, fixed_abs, tag = 'sflag constant byte address 0x0 - dummy sync flag']
  #allocation10 [shape = 's32[]', space=sflag, size = 0x4, offset = 0, fixed_abs, tag = 'sflag constant byte address 0x0 - dummy sync flag']
  %s0 = inlined_call_operand.vmem [shape: bf16[64,16], index: 0, kind: input, shape index: {}]
  %s1 = inlined_call_operand.vmem [shape: bf16[16,1024], index: 1, kind: input, shape index: {}]
  %s2 = inlined_call_operand.hbm [shape: bf16[256,1024], index: 2, kind: input, shape index: {}]
  %s3 = inlined_call_operand.vmem [shape: f32[1,1024], index: 3, kind: input, shape index: {}]
  %s4 = inlined_call_operand.vmem [shape: f32[1,1024], index: 4, kind: input, shape index: {}]
  %s5 = inlined_call_operand.hbm [shape: bf16[1,512,1024], index: 5, kind: input, shape index: {}]
  %s6 = inlined_call_operand.hbm [shape: bf16[8,256,256], index: 6, kind: input, shape index: {}]
  %s7 = inlined_call_operand.vmem [shape: f32[1,256], index: 7, kind: input, shape index: {}]
  %s8 = inlined_call_operand.vmem [shape: f32[256,10], index: 8, kind: input, shape index: {}]
  %s9 = inlined_call_operand.vmem [shape: f32[1,10], index: 9, kind: input, shape index: {}]
  %s10 = inlined_call_operand.vmem [shape: f32[8,10], index: 10, kind: output, shape index: {}]
  %s11 = sld [smem:[#allocation0]]
  $region46: #{forward.1} parent=0
    _
  %s13 = ssub.s32 1, %s11
  %s14 = scalar_select 0, %s13, %s11
  $region1: #{forward.1} parent=0
    #allocation6 [shape = 'u8[524288]{0}', space=vmem, size = 0x80000, scoped, tag = 'input window, operand 2, single buffered']
    #allocation7 [shape = 's32[1]{0}', space=sflag, size = 0x4, scoped, tag = 'scoped memory for forward.1']
    #allocation9 [shape = 'u32[9]{0}', space=smem, size = 0x24, scoped, tag = 'DMA stride descriptor']
    #allocation11 [shape = 'u32[9]{0}', space=smem, size = 0x24, scoped, tag = 'DMA stride descriptor']
    %15 = vsyncpa [#allocation7], 0
    // Predicated region
    $region2: #{forward.1} parent=1 // pred_check
      _
    $region3: #{forward.1} parent=1 // pred_check_branch
      %17 = sbr.rel (0) target = $region5
    $region4: #{forward.1} parent=1 // pred_region
      _
    $region5: #{forward.1} parent=1 // pred_fallthru
      _
    // Predicated region
    $region6: #{forward.1} parent=1 // pred_check
      _
    $region7: #{forward.1} parent=1 // pred_check_branch
      %19 = sbr.rel (0) target = $region9
    $region8: #{forward.1} parent=1 // pred_region
      _
    $region9: #{forward.1} parent=1 // pred_fallthru
      _
    // Predicated region
    $region10: #{forward.1} parent=1 // pred_check
      _
    $region11: #{forward.1} parent=1 // pred_check_branch
      %21 = sbr.rel (0) target = $region13
    $region12: #{forward.1} parent=1 // pred_region
      %s23 = ssub.s32 16384, 16384
      %24 = vsyncadd [#allocation7], %s23
      %s25 = sshll.u32 [#allocation6], 4
      %s26 = int_to_ptr.vmem [resolvable:$true] %s25
      %31 = dma.hbm_to_vmem [thread:$0]  %s2, 16384, %s26, [#allocation7], 512, 512, 32
    $region13: #{forward.1} parent=1 // pred_fallthru
      _
    // Predicated region
    $region14: #{forward.1} parent=1 // pred_check
      _
    $region15: #{forward.1} parent=1 // pred_check_branch
      %33 = sbr.rel (0) target = $region17
    $region16: #{forward.1} parent=1 // pred_region
      _
    $region17: #{forward.1} parent=1 // pred_fallthru
      _
    // Predicated region
    $region18: #{forward.1} parent=1 // pred_check
      _
    $region19: #{forward.1} parent=1 // pred_check_branch
      %35 = sbr.rel (0) target = $region21
    $region20: #{forward.1} parent=1 // pred_region
      _
    $region21: #{forward.1} parent=1 // pred_fallthru
      _
    // Predicated region
    $region22: #{forward.1} parent=1 // pred_check
      _
    $region23: #{forward.1} parent=1 // pred_check_branch
      %37 = sbr.rel (0) target = $region25
    $region24: #{forward.1} parent=1 // pred_region
      _
    $region25: #{forward.1} parent=1 // pred_fallthru
      _
    // Predicated region
    $region26: #{forward.1} parent=1 // pred_check
      _
    $region27: #{forward.1} parent=1 // pred_check_branch
      %39 = sbr.rel (0) target = $region29
    $region28: #{forward.1} parent=1 // pred_region
      _
    $region29: #{forward.1} parent=1 // pred_fallthru
      _
    // Predicated region
    $region30: #{forward.1} parent=1 // pred_check
      _
    $region31: #{forward.1} parent=1 // pred_check_branch
      %41 = sbr.rel (0) target = $region33
    $region32: #{forward.1} parent=1 // pred_region
      _
    $region33: #{forward.1} parent=1 // pred_fallthru
      _
    // Predicated region
    $region34: #{forward.1} parent=1 // pred_check
      _
    $region35: #{forward.1} parent=1 // pred_check_branch
      %43 = sbr.rel (0) target = $region37
    $region36: #{forward.1} parent=1 // pred_region
      %44 = dma.done [#allocation7], 16384
    $region37: #{forward.1} parent=1 // pred_fallthru
      _
    %s47 = sshll.u32 1, 14
    %s48 = sxor.u32 4294967295, %s47
    %s50 = sld [smem:[#allocation0]]
    %s51 = sadd.s32 2, %s50
    %s53 = sshll.u32 7, 26
    %s54 = sxor.u32 4294967295, %s53
    %s55 = sand.u32 0, %s54
    %s56 = sshll.u32 %s51, 26
    %s57 = sor.u32 %s55, %s56
    %s58 = sshll.u32 [#allocation2], 4
    %s59 = int_to_ptr.vmem [resolvable:$true] %s58
    %62 = sst [smem:[#allocation9]] 1024
    %s63 = scalar_lea.smem [#allocation9], 1
    %64 = sst [smem:[%s63]] 1024
    %s65 = scalar_lea.smem [#allocation9], 2
    %66 = sst [smem:[%s65]] 8
    %s67 = scalar_lea.smem [#allocation9], 3
    %68 = sst [smem:[%s67]] 64
    %s69 = scalar_lea.smem [#allocation9], 4
    %70 = sst [smem:[%s69]] 128
    %s71 = scalar_lea.smem [#allocation9], 5
    %72 = sst [smem:[%s71]] 2
    %s73 = scalar_lea.smem [#allocation9], 6
    %74 = sst [smem:[%s73]] 512
    %s75 = scalar_lea.smem [#allocation9], 7
    %76 = sst [smem:[%s75]] 64
    %s77 = scalar_lea.smem [#allocation9], 8
    %78 = sst [smem:[%s77]] 4
    %80 = dma.general %s5, 32768, %s59, [#allocation3], [#allocation8], [#allocation9], %s57, 0
    %s82 = sshll.u32 1, 14
    %s83 = sxor.u32 4294967295, %s82
    %s85 = sadd.s32 2, %s50
    %s87 = sshll.u32 7, 26
    %s88 = sxor.u32 4294967295, %s87
    %s89 = sand.u32 0, %s88
    %s90 = sshll.u32 %s85, 26
    %s91 = sor.u32 %s89, %s90
    %s92 = sshll.u32 [#allocation4], 4
    %s93 = int_to_ptr.vmem [resolvable:$true] %s92
    %96 = sst [smem:[#allocation11]] 256
    %s97 = scalar_lea.smem [#allocation11], 1
    %98 = sst [smem:[%s97]] 256
    %s99 = scalar_lea.smem [#allocation11], 2
    %100 = sst [smem:[%s99]] 2
    %s101 = scalar_lea.smem [#allocation11], 3
    %102 = sst [smem:[%s101]] 64
    %s103 = scalar_lea.smem [#allocation11], 4
    %104 = sst [smem:[%s103]] 128
    %s105 = scalar_lea.smem [#allocation11], 5
    %106 = sst [smem:[%s105]] 2
    %s107 = scalar_lea.smem [#allocation11], 6
    %108 = sst [smem:[%s107]] 128
    %s109 = scalar_lea.smem [#allocation11], 7
    %110 = sst [smem:[%s109]] 64
    %s111 = scalar_lea.smem [#allocation11], 8
    %112 = sst [smem:[%s111]] 4
    %114 = dma.general %s6, 32768, %s93, [#allocation5], [#allocation10], [#allocation11], %s91, 0
    %v115 = vld [vmem:[%s0] sm:$0xf]
    %v116 = vld [vmem:[%s0 + $0x4] sm:$0xf]
    %v117 = vld [vmem:[%s0 + $0x8] sm:$0xf]
    %v118 = vld [vmem:[%s0 + $0xc] sm:$0xf]
    %v119 = vld [vmem:[%s0 + $0x10] sm:$0xf]
    %v120 = vld [vmem:[%s0 + $0x14] sm:$0xf]
    %v121 = vld [vmem:[%s0 + $0x18] sm:$0xf]
    %v122 = vld [vmem:[%s0 + $0x1c] sm:$0xf]
    %v123 = vld [vmem:[%s1] sm:$0xff]
    %v124 = vld [vmem:[%s1 + $0x8] sm:$0xff]
    %v125 = vld [vmem:[%s1 + $0x10] sm:$0xff]
    %v126 = vld [vmem:[%s1 + $0x18] sm:$0xff]
    %v127 = vld [vmem:[%s1 + $0x20] sm:$0xff]
    %v128 = vld [vmem:[%s1 + $0x28] sm:$0xff]
    %v129 = vld [vmem:[%s1 + $0x30] sm:$0xff]
    %v130 = vld [vmem:[%s1 + $0x38] sm:$0xff]
    %v131 = vld [vmem:[#allocation6] sm:$0xff]
    %v132 = vld [vmem:[#allocation6 + $0x8] sm:$0xff]
    %v133 = vld [vmem:[#allocation6 + $0x10] sm:$0xff]
    %v134 = vld [vmem:[#allocation6 + $0x18] sm:$0xff]
    %v135 = vld [vmem:[#allocation6 + $0x20] sm:$0xff]
    %v136 = vld [vmem:[#allocation6 + $0x28] sm:$0xff]
    %v137 = vld [vmem:[#allocation6 + $0x30] sm:$0xff]
    %v138 = vld [vmem:[#allocation6 + $0x38] sm:$0xff]
    %v139 = vld [vmem:[#allocation6 + $0x40] sm:$0xff]
    %v140 = vld [vmem:[#allocation6 + $0x48] sm:$0xff]
    %v141 = vld [vmem:[#allocation6 + $0x50] sm:$0xff]
    %v142 = vld [vmem:[#allocation6 + $0x58] sm:$0xff]
    %v143 = vld [vmem:[#allocation6 + $0x60] sm:$0xff]
    %v144 = vld [vmem:[#allocation6 + $0x68] sm:$0xff]
    %v145 = vld [vmem:[#allocation6 + $0x70] sm:$0xff]
    %v146 = vld [vmem:[#allocation6 + $0x78] sm:$0xff]
    %v147 = vld [vmem:[#allocation6 + $0x80] sm:$0xff]
    %v148 = vld [vmem:[#allocation6 + $0x88] sm:$0xff]
    %v149 = vld [vmem:[#allocation6 + $0x90] sm:$0xff]
    %v150 = vld [vmem:[#allocation6 + $0x98] sm:$0xff]
    %v151 = vld [vmem:[#allocation6 + $0xa0] sm:$0xff]
    %v152 = vld [vmem:[#allocation6 + $0xa8] sm:$0xff]
    %v153 = vld [vmem:[#allocation6 + $0xb0] sm:$0xff]
    %v154 = vld [vmem:[#allocation6 + $0xb8] sm:$0xff]
    %v155 = vld [vmem:[#allocation6 + $0xc0] sm:$0xff]
    %v156 = vld [vmem:[#allocation6 + $0xc8] sm:$0xff]
    %v157 = vld [vmem:[#allocation6 + $0xd0] sm:$0xff]
    %v158 = vld [vmem:[#allocation6 + $0xd8] sm:$0xff]
    %v159 = vld [vmem:[#allocation6 + $0xe0] sm:$0xff]
    %v160 = vld [vmem:[#allocation6 + $0xe8] sm:$0xff]
    %v161 = vld [vmem:[#allocation6 + $0xf0] sm:$0xff]
    %v162 = vld [vmem:[#allocation6 + $0xf8] sm:$0xff]
    %v163 = vld [vmem:[#allocation6 + $0x100] sm:$0xff]
    %v164 = vld [vmem:[#allocation6 + $0x108] sm:$0xff]
    %v165 = vld [vmem:[#allocation6 + $0x110] sm:$0xff]
    %v166 = vld [vmem:[#allocation6 + $0x118] sm:$0xff]
    %v167 = vld [vmem:[#allocation6 + $0x120] sm:$0xff]
    %v168 = vld [vmem:[#allocation6 + $0x128] sm:$0xff]
    %v169 = vld [vmem:[#allocation6 + $0x130] sm:$0xff]
    %v170 = vld [vmem:[#allocation6 + $0x138] sm:$0xff]
    %v171 = vld [vmem:[#allocation6 + $0x140] sm:$0xff]
    %v172 = vld [vmem:[#allocation6 + $0x148] sm:$0xff]
    %v173 = vld [vmem:[#allocation6 + $0x150] sm:$0xff]
    %v174 = vld [vmem:[#allocation6 + $0x158] sm:$0xff]
    %v175 = vld [vmem:[#allocation6 + $0x160] sm:$0xff]
    %v176 = vld [vmem:[#allocation6 + $0x168] sm:$0xff]
    %v177 = vld [vmem:[#allocation6 + $0x170] sm:$0xff]
    %v178 = vld [vmem:[#allocation6 + $0x178] sm:$0xff]
    %v179 = vld [vmem:[#allocation6 + $0x180] sm:$0xff]
    %v180 = vld [vmem:[#allocation6 + $0x188] sm:$0xff]
    %v181 = vld [vmem:[#allocation6 + $0x190] sm:$0xff]
    %v182 = vld [vmem:[#allocation6 + $0x198] sm:$0xff]
    %v183 = vld [vmem:[#allocation6 + $0x1a0] sm:$0xff]
    %v184 = vld [vmem:[#allocation6 + $0x1a8] sm:$0xff]
    %v185 = vld [vmem:[#allocation6 + $0x1b0] sm:$0xff]
    %v186 = vld [vmem:[#allocation6 + $0x1b8] sm:$0xff]
    %v187 = vld [vmem:[#allocation6 + $0x1c0] sm:$0xff]
    %v188 = vld [vmem:[#allocation6 + $0x1c8] sm:$0xff]
    %v189 = vld [vmem:[#allocation6 + $0x1d0] sm:$0xff]
    %v190 = vld [vmem:[#allocation6 + $0x1d8] sm:$0xff]
    %v191 = vld [vmem:[#allocation6 + $0x1e0] sm:$0xff]
    %v192 = vld [vmem:[#allocation6 + $0x1e8] sm:$0xff]
    %v193 = vld [vmem:[#allocation6 + $0x1f0] sm:$0xff]
    %v194 = vld [vmem:[#allocation6 + $0x1f8] sm:$0xff]
    %v195 = vld [vmem:[#allocation6 + $0x200] sm:$0xff]
    %v196 = vld [vmem:[#allocation6 + $0x208] sm:$0xff]
    %v197 = vld [vmem:[#allocation6 + $0x210] sm:$0xff]
    %v198 = vld [vmem:[#allocation6 + $0x218] sm:$0xff]
    %v199 = vld [vmem:[#allocation6 + $0x220] sm:$0xff]
    %v200 = vld [vmem:[#allocation6 + $0x228] sm:$0xff]
    %v201 = vld [vmem:[#allocation6 + $0x230] sm:$0xff]
    %v202 = vld [vmem:[#allocation6 + $0x238] sm:$0xff]
    %v203 = vld [vmem:[#allocation6 + $0x240] sm:$0xff]
    %v204 = vld [vmem:[#allocation6 + $0x248] sm:$0xff]
    %v205 = vld [vmem:[#allocation6 + $0x250] sm:$0xff]
    %v206 = vld [vmem:[#allocation6 + $0x258] sm:$0xff]
    %v207 = vld [vmem:[#allocation6 + $0x260] sm:$0xff]
    %v208 = vld [vmem:[#allocation6 + $0x268] sm:$0xff]
    %v209 = vld [vmem:[#allocation6 + $0x270] sm:$0xff]
    %v210 = vld [vmem:[#allocation6 + $0x278] sm:$0xff]
    %v211 = vld [vmem:[#allocation6 + $0x280] sm:$0xff]
    %v212 = vld [vmem:[#allocation6 + $0x288] sm:$0xff]
    %v213 = vld [vmem:[#allocation6 + $0x290] sm:$0xff]
    %v214 = vld [vmem:[#allocation6 + $0x298] sm:$0xff]
    %v215 = vld [vmem:[#allocation6 + $0x2a0] sm:$0xff]
    %v216 = vld [vmem:[#allocation6 + $0x2a8] sm:$0xff]
    %v217 = vld [vmem:[#allocation6 + $0x2b0] sm:$0xff]
    %v218 = vld [vmem:[#allocation6 + $0x2b8] sm:$0xff]
    %v219 = vld [vmem:[#allocation6 + $0x2c0] sm:$0xff]
    %v220 = vld [vmem:[#allocation6 + $0x2c8] sm:$0xff]
    %v221 = vld [vmem:[#allocation6 + $0x2d0] sm:$0xff]
    %v222 = vld [vmem:[#allocation6 + $0x2d8] sm:$0xff]
    %v223 = vld [vmem:[#allocation6 + $0x2e0] sm:$0xff]
    %v224 = vld [vmem:[#allocation6 + $0x2e8] sm:$0xff]
    %v225 = vld [vmem:[#allocation6 + $0x2f0] sm:$0xff]
    %v226 = vld [vmem:[#allocation6 + $0x2f8] sm:$0xff]
    %v227 = vld [vmem:[#allocation6 + $0x300] sm:$0xff]
    %v228 = vld [vmem:[#allocation6 + $0x308] sm:$0xff]
    %v229 = vld [vmem:[#allocation6 + $0x310] sm:$0xff]
    %v230 = vld [vmem:[#allocation6 + $0x318] sm:$0xff]
    %v231 = vld [vmem:[#allocation6 + $0x320] sm:$0xff]
    %v232 = vld [vmem:[#allocation6 + $0x328] sm:$0xff]
    %v233 = vld [vmem:[#allocation6 + $0x330] sm:$0xff]
    %v234 = vld [vmem:[#allocation6 + $0x338] sm:$0xff]
    %v235 = vld [vmem:[#allocation6 + $0x340] sm:$0xff]
    %v236 = vld [vmem:[#allocation6 + $0x348] sm:$0xff]
    %v237 = vld [vmem:[#allocation6 + $0x350] sm:$0xff]
    %v238 = vld [vmem:[#allocation6 + $0x358] sm:$0xff]
    %v239 = vld [vmem:[#allocation6 + $0x360] sm:$0xff]
    %v240 = vld [vmem:[#allocation6 + $0x368] sm:$0xff]
    %v241 = vld [vmem:[#allocation6 + $0x370] sm:$0xff]
    %v242 = vld [vmem:[#allocation6 + $0x378] sm:$0xff]
    %v243 = vld [vmem:[#allocation6 + $0x380] sm:$0xff]
    %v244 = vld [vmem:[#allocation6 + $0x388] sm:$0xff]
    %v245 = vld [vmem:[#allocation6 + $0x390] sm:$0xff]
    %v246 = vld [vmem:[#allocation6 + $0x398] sm:$0xff]
    %v247 = vld [vmem:[#allocation6 + $0x3a0] sm:$0xff]
    %v248 = vld [vmem:[#allocation6 + $0x3a8] sm:$0xff]
    %v249 = vld [vmem:[#allocation6 + $0x3b0] sm:$0xff]
    %v250 = vld [vmem:[#allocation6 + $0x3b8] sm:$0xff]
    %v251 = vld [vmem:[#allocation6 + $0x3c0] sm:$0xff]
    %v252 = vld [vmem:[#allocation6 + $0x3c8] sm:$0xff]
    %v253 = vld [vmem:[#allocation6 + $0x3d0] sm:$0xff]
    %v254 = vld [vmem:[#allocation6 + $0x3d8] sm:$0xff]
    %v255 = vld [vmem:[#allocation6 + $0x3e0] sm:$0xff]
    %v256 = vld [vmem:[#allocation6 + $0x3e8] sm:$0xff]
    %v257 = vld [vmem:[#allocation6 + $0x3f0] sm:$0xff]
    %v258 = vld [vmem:[#allocation6 + $0x3f8] sm:$0xff]
    %v259 = vld [vmem:[%s3] sm:$0xff]
    %v261 = vlaneseq
    %v262 = vshrl.u32 %v261, 7
    %v263 = vsub.s32 0, %v262
    %v264 = vrot.slane %v259, %v263
    %v265 = vlaneseq
    %v266 = vshrl.u32 %v265, 7
    %v267 = vsub.s32 1, %v266
    %v268 = vrot.slane %v259, %v267
    %v269 = vlaneseq
    %v270 = vshrl.u32 %v269, 7
    %v271 = vsub.s32 2, %v270
    %v272 = vrot.slane %v259, %v271
    %v273 = vlaneseq
    %v274 = vshrl.u32 %v273, 7
    %v275 = vsub.s32 3, %v274
    %v276 = vrot.slane %v259, %v275
    %v277 = vlaneseq
    %v278 = vshrl.u32 %v277, 7
    %v279 = vsub.s32 4, %v278
    %v280 = vrot.slane %v259, %v279
    %v281 = vlaneseq
    %v282 = vshrl.u32 %v281, 7
    %v283 = vsub.s32 5, %v282
    %v284 = vrot.slane %v259, %v283
    %v285 = vlaneseq
    %v286 = vshrl.u32 %v285, 7
    %v287 = vsub.s32 6, %v286
    %v288 = vrot.slane %v259, %v287
    %v289 = vlaneseq
    %v290 = vshrl.u32 %v289, 7
    %v291 = vsub.s32 7, %v290
    %v292 = vrot.slane %v259, %v291
    %v309 = vunpack.c.l.b16 %v115
    %v310 = vunpack.c.l.b16 %v116
    %v311 = vunpack.c.l.b16 %v117
    %v312 = vunpack.c.l.b16 %v118
    %v313 = vunpack.c.l.b16 %v119
    %v314 = vunpack.c.l.b16 %v120
    %v315 = vunpack.c.l.b16 %v121
    %v316 = vunpack.c.l.b16 %v122
    %v317 = vpack.c.b16 %v310, %v309
    %v318 = vpack.c.b16 %v312, %v311
    %v319 = vpack.c.b16 %v314, %v313
    %v320 = vpack.c.b16 %v316, %v315
    %v329 = vunpack.c.l.b16 %v123
    %v330 = vunpack.c.h.b16 %v123
    %v331 = vunpack.c.l.b16 %v124
    %v332 = vunpack.c.h.b16 %v124
    %v333 = vunpack.c.l.b16 %v125
    %v334 = vunpack.c.h.b16 %v125
    %v335 = vunpack.c.l.b16 %v126
    %v336 = vunpack.c.h.b16 %v126
    %v337 = vunpack.c.l.b16 %v127
    %v338 = vunpack.c.h.b16 %v127
    %v339 = vunpack.c.l.b16 %v128
    %v340 = vunpack.c.h.b16 %v128
    %v341 = vunpack.c.l.b16 %v129
    %v342 = vunpack.c.h.b16 %v129
    %v343 = vunpack.c.l.b16 %v130
    %v344 = vunpack.c.h.b16 %v130
    %v345 = vpack.c.b16 %v337, %v329
    %v346 = vpack.c.b16 %v338, %v330
    %v347 = vpack.c.b16 %v339, %v331
    %v348 = vpack.c.b16 %v340, %v332
    %v349 = vpack.c.b16 %v341, %v333
    %v350 = vpack.c.b16 %v342, %v334
    %v351 = vpack.c.b16 %v343, %v335
    %v352 = vpack.c.b16 %v344, %v336
    %vm361 = vcmask 130048
    %v363 = vsel %vm361, %v317, 0
    %v366 = vsel %vm361, %v318, 0
    %v369 = vsel %vm361, %v319, 0
    %v372 = vsel %vm361, %v320, 0
    %374 = vmatprep.subr.bf16.mxu0 %v346
    %375 = vmatpush1.bf16.msra.mxu0 %v345
    %376 = vmatprep.subr.bf16.mxu0 0
    %377 = vmatpush1.bf16.msra.mxu0 0
    %378 = vmatprep.subr.bf16.mxu0 0
    %379 = vmatpush1.bf16.msra.mxu0 0
    %380 = vmatprep.subr.bf16.mxu0 0
    %381 = vmatpush1.bf16.msra.mxu0 0
    %382 = vmatprep.subr.bf16.mxu0 0
    %383 = vmatpush1.bf16.msra.mxu0 0
    %384 = vmatprep.subr.bf16.mxu0 0
    %385 = vmatpush1.bf16.msra.mxu0 0
    %386 = vmatprep.subr.bf16.mxu0 0
    %387 = vmatpush1.bf16.msra.mxu0 0
    %388 = vmatprep.subr.bf16.mxu0 0
    %389 = vmatpush1.bf16.msra.mxu0 0
    %390 = vmatprep.subr.bf16.mxu0 0
    %391 = vmatpush1.bf16.msra.mxu0 0
    %392 = vmatprep.subr.bf16.mxu0 0
    %393 = vmatpush1.bf16.msra.mxu0 0
    %394 = vmatprep.subr.bf16.mxu0 0
    %395 = vmatpush1.bf16.msra.mxu0 0
    %396 = vmatprep.subr.bf16.mxu0 0
    %397 = vmatpush1.bf16.msra.mxu0 0
    %398 = vmatprep.subr.bf16.mxu0 0
    %399 = vmatpush1.bf16.msra.mxu0 0
    %400 = vmatprep.subr.bf16.mxu0 0
    %401 = vmatpush1.bf16.msra.mxu0 0
    %402 = vmatprep.subr.bf16.mxu0 0
    %403 = vmatpush1.bf16.msra.mxu0 0
    %404 = vmatprep.subr.bf16.mxu0 0
    %405 = vmatpush1.bf16.msra.mxu0 0
    %406 = vmatprep.mubr.bf16.mxu0 0
    %407 = vmatmul.mubr.bf16.gmra.mrb[0].mxu0 %v363
    %v408 = vpop.f32.mrb[0].mxu0
    %v409 = vadd.f32 %v264, %v408
    %v410 = vpop.f32.mrb[0].mxu0
    %v411 = vadd.f32 %v268, %v410
    %v412 = vpop.f32.mrb[0].mxu0
    %v413 = vadd.f32 %v264, %v412
    %v414 = vpop.f32.mrb[0].mxu0
    %v415 = vadd.f32 %v268, %v414
    %416 = vmatprep.mubr.bf16.mxu0 0
    %417 = vmatmul.mubr.bf16.gmra.mrb[0].mxu0 %v366
    %v418 = vpop.f32.mrb[0].mxu0
    %v419 = vadd.f32 %v264, %v418
    %v420 = vpop.f32.mrb[0].mxu0
    %v421 = vadd.f32 %v268, %v420
    %v422 = vpop.f32.mrb[0].mxu0
    %v423 = vadd.f32 %v264, %v422
    %v424 = vpop.f32.mrb[0].mxu0
    %v425 = vadd.f32 %v268, %v424
    %426 = vmatprep.mubr.bf16.mxu0 0
    %427 = vmatmul.mubr.bf16.gmra.mrb[0].mxu0 %v369
    %v428 = vpop.f32.mrb[0].mxu0
    %v429 = vadd.f32 %v264, %v428
    %v430 = vpop.f32.mrb[0].mxu0
    %v431 = vadd.f32 %v268, %v430
    %v432 = vpop.f32.mrb[0].mxu0
    %v433 = vadd.f32 %v264, %v432
    %v434 = vpop.f32.mrb[0].mxu0
    %v435 = vadd.f32 %v268, %v434
    %436 = vmatprep.mubr.bf16.mxu0 0
    %437 = vmatmul.mubr.bf16.gmra.mrb[0].mxu0 %v372
    %v438 = vpop.f32.mrb[0].mxu0
    %v439 = vadd.f32 %v264, %v438
    %v440 = vpop.f32.mrb[0].mxu0
    %v441 = vadd.f32 %v268, %v440
    %v442 = vpop.f32.mrb[0].mxu0
    %v443 = vadd.f32 %v264, %v442
    %v444 = vpop.f32.mrb[0].mxu0
    %v445 = vadd.f32 %v268, %v444
    %446 = vdwg.mxu0
    %447 = vmatprep.subr.bf16.mxu0 %v348
    %448 = vmatpush1.bf16.msra.mxu0 %v347
    %449 = vmatprep.subr.bf16.mxu0 0
    %450 = vmatpush1.bf16.msra.mxu0 0
    %451 = vmatprep.subr.bf16.mxu0 0
    %452 = vmatpush1.bf16.msra.mxu0 0
    %453 = vmatprep.subr.bf16.mxu0 0
    %454 = vmatpush1.bf16.msra.mxu0 0
    %455 = vmatprep.subr.bf16.mxu0 0
    %456 = vmatpush1.bf16.msra.mxu0 0
    %457 = vmatprep.subr.bf16.mxu0 0
    %458 = vmatpush1.bf16.msra.mxu0 0
    %459 = vmatprep.subr.bf16.mxu0 0
    %460 = vmatpush1.bf16.msra.mxu0 0
    %461 = vmatprep.subr.bf16.mxu0 0
    %462 = vmatpush1.bf16.msra.mxu0 0
    %463 = vmatprep.subr.bf16.mxu0 0
    %464 = vmatpush1.bf16.msra.mxu0 0
    %465 = vmatprep.subr.bf16.mxu0 0
    %466 = vmatpush1.bf16.msra.mxu0 0
    %467 = vmatprep.subr.bf16.mxu0 0
    %468 = vmatpush1.bf16.msra.mxu0 0
    %469 = vmatprep.subr.bf16.mxu0 0
    %470 = vmatpush1.bf16.msra.mxu0 0
    %471 = vmatprep.subr.bf16.mxu0 0
    %472 = vmatpush1.bf16.msra.mxu0 0
    %473 = vmatprep.subr.bf16.mxu0 0
    %474 = vmatpush1.bf16.msra.mxu0 0
    %475 = vmatprep.subr.bf16.mxu0 0
    %476 = vmatpush1.bf16.msra.mxu0 0
    %477 = vmatprep.subr.bf16.mxu0 0
    %478 = vmatpush1.bf16.msra.mxu0 0
    %479 = vmatprep.mubr.bf16.mxu0 0
    %480 = vmatmul.mubr.bf16.gmra.mrb[0].mxu0 %v363
    %v481 = vpop.f32.mrb[0].mxu0
    %v482 = vadd.f32 %v272, %v481
    %v483 = vpop.f32.mrb[0].mxu0
    %v484 = vadd.f32 %v276, %v483
    %v485 = vpop.f32.mrb[0].mxu0
    %v486 = vadd.f32 %v272, %v485
    %v487 = vpop.f32.mrb[0].mxu0
    %v488 = vadd.f32 %v276, %v487
    %489 = vmatprep.mubr.bf16.mxu0 0
    %490 = vmatmul.mubr.bf16.gmra.mrb[0].mxu0 %v366
    %v491 = vpop.f32.mrb[0].mxu0
    %v492 = vadd.f32 %v272, %v491
    %v493 = vpop.f32.mrb[0].mxu0
    %v494 = vadd.f32 %v276, %v493
    %v495 = vpop.f32.mrb[0].mxu0
    %v496 = vadd.f32 %v272, %v495
    %v497 = vpop.f32.mrb[0].mxu0
    %v498 = vadd.f32 %v276, %v497
    %499 = vmatprep.mubr.bf16.mxu0 0
    %500 = vmatmul.mubr.bf16.gmra.mrb[0].mxu0 %v369
    %v501 = vpop.f32.mrb[0].mxu0
    %v502 = vadd.f32 %v272, %v501
    %v503 = vpop.f32.mrb[0].mxu0
    %v504 = vadd.f32 %v276, %v503
    %v505 = vpop.f32.mrb[0].mxu0
    %v506 = vadd.f32 %v272, %v505
    %v507 = vpop.f32.mrb[0].mxu0
    %v508 = vadd.f32 %v276, %v507
    %509 = vmatprep.mubr.bf16.mxu0 0
    %510 = vmatmul.mubr.bf16.gmra.mrb[0].mxu0 %v372
    %v511 = vpop.f32.mrb[0].mxu0
    %v512 = vadd.f32 %v272, %v511
    %v513 = vpop.f32.mrb[0].mxu0
    %v514 = vadd.f32 %v276, %v513
    %v515 = vpop.f32.mrb[0].mxu0
    %v516 = vadd.f32 %v272, %v515
    %v517 = vpop.f32.mrb[0].mxu0
    %v518 = vadd.f32 %v276, %v517
    %519 = vdwg.mxu0
    %520 = vmatprep.subr.bf16.mxu0 %v350
    %521 = vmatpush1.bf16.msra.mxu0 %v349
    %522 = vmatprep.subr.bf16.mxu0 0
    %523 = vmatpush1.bf16.msra.mxu0 0
    %524 = vmatprep.subr.bf16.mxu0 0
    %525 = vmatpush1.bf16.msra.mxu0 0
    %526 = vmatprep.subr.bf16.mxu0 0
    %527 = vmatpush1.bf16.msra.mxu0 0
    %528 = vmatprep.subr.bf16.mxu0 0
    %529 = vmatpush1.bf16.msra.mxu0 0
    %530 = vmatprep.subr.bf16.mxu0 0
    %531 = vmatpush1.bf16.msra.mxu0 0
    %532 = vmatprep.subr.bf16.mxu0 0
    %533 = vmatpush1.bf16.msra.mxu0 0
    %534 = vmatprep.subr.bf16.mxu0 0
    %535 = vmatpush1.bf16.msra.mxu0 0
    %536 = vmatprep.subr.bf16.mxu0 0
    %537 = vmatpush1.bf16.msra.mxu0 0
    %538 = vmatprep.subr.bf16.mxu0 0
    %539 = vmatpush1.bf16.msra.mxu0 0
    %540 = vmatprep.subr.bf16.mxu0 0
    %541 = vmatpush1.bf16.msra.mxu0 0
    %542 = vmatprep.subr.bf16.mxu0 0
    %543 = vmatpush1.bf16.msra.mxu0 0
    %544 = vmatprep.subr.bf16.mxu0 0
    %545 = vmatpush1.bf16.msra.mxu0 0
    %546 = vmatprep.subr.bf16.mxu0 0
    %547 = vmatpush1.bf16.msra.mxu0 0
    %548 = vmatprep.subr.bf16.mxu0 0
    %549 = vmatpush1.bf16.msra.mxu0 0
    %550 = vmatprep.subr.bf16.mxu0 0
    %551 = vmatpush1.bf16.msra.mxu0 0
    %552 = vmatprep.mubr.bf16.mxu0 0
    %553 = vmatmul.mubr.bf16.gmra.mrb[0].mxu0 %v363
    %v554 = vpop.f32.mrb[0].mxu0
    %v555 = vadd.f32 %v280, %v554
    %v556 = vpop.f32.mrb[0].mxu0
    %v557 = vadd.f32 %v284, %v556
    %v558 = vpop.f32.mrb[0].mxu0
    %v559 = vadd.f32 %v280, %v558
    %v560 = vpop.f32.mrb[0].mxu0
    %v561 = vadd.f32 %v284, %v560
    %562 = vmatprep.mubr.bf16.mxu0 0
    %563 = vmatmul.mubr.bf16.gmra.mrb[0].mxu0 %v366
    %v564 = vpop.f32.mrb[0].mxu0
    %v565 = vadd.f32 %v280, %v564
    %v566 = vpop.f32.mrb[0].mxu0
    %v567 = vadd.f32 %v284, %v566
    %v568 = vpop.f32.mrb[0].mxu0
    %v569 = vadd.f32 %v280, %v568
    %v570 = vpop.f32.mrb[0].mxu0
    %v571 = vadd.f32 %v284, %v570
    %572 = vmatprep.mubr.bf16.mxu0 0
    %573 = vmatmul.mubr.bf16.gmra.mrb[0].mxu0 %v369
    %v574 = vpop.f32.mrb[0].mxu0
    %v575 = vadd.f32 %v280, %v574
    %v576 = vpop.f32.mrb[0].mxu0
    %v577 = vadd.f32 %v284, %v576
    %v578 = vpop.f32.mrb[0].mxu0
    %v579 = vadd.f32 %v280, %v578
    %v580 = vpop.f32.mrb[0].mxu0
    %v581 = vadd.f32 %v284, %v580
    %582 = vmatprep.mubr.bf16.mxu0 0
    %583 = vmatmul.mubr.bf16.gmra.mrb[0].mxu0 %v372
    %v584 = vpop.f32.mrb[0].mxu0
    %v585 = vadd.f32 %v280, %v584
    %v586 = vpop.f32.mrb[0].mxu0
    %v587 = vadd.f32 %v284, %v586
    %v588 = vpop.f32.mrb[0].mxu0
    %v589 = vadd.f32 %v280, %v588
    %v590 = vpop.f32.mrb[0].mxu0
    %v591 = vadd.f32 %v284, %v590
    %592 = vdwg.mxu0
    %593 = vmatprep.subr.bf16.mxu0 %v352
    %594 = vmatpush1.bf16.msra.mxu0 %v351
    %595 = vmatprep.subr.bf16.mxu0 0
    %596 = vmatpush1.bf16.msra.mxu0 0
    %597 = vmatprep.subr.bf16.mxu0 0
    %598 = vmatpush1.bf16.msra.mxu0 0
    %599 = vmatprep.subr.bf16.mxu0 0
    %600 = vmatpush1.bf16.msra.mxu0 0
    %601 = vmatprep.subr.bf16.mxu0 0
    %602 = vmatpush1.bf16.msra.mxu0 0
    %603 = vmatprep.subr.bf16.mxu0 0
    %604 = vmatpush1.bf16.msra.mxu0 0
    %605 = vmatprep.subr.bf16.mxu0 0
    %606 = vmatpush1.bf16.msra.mxu0 0
    %607 = vmatprep.subr.bf16.mxu0 0
    %608 = vmatpush1.bf16.msra.mxu0 0
    %609 = vmatprep.subr.bf16.mxu0 0
    %610 = vmatpush1.bf16.msra.mxu0 0
    %611 = vmatprep.subr.bf16.mxu0 0
    %612 = vmatpush1.bf16.msra.mxu0 0
    %613 = vmatprep.subr.bf16.mxu0 0
    %614 = vmatpush1.bf16.msra.mxu0 0
    %615 = vmatprep.subr.bf16.mxu0 0
    %616 = vmatpush1.bf16.msra.mxu0 0
    %617 = vmatprep.subr.bf16.mxu0 0
    %618 = vmatpush1.bf16.msra.mxu0 0
    %619 = vmatprep.subr.bf16.mxu0 0
    %620 = vmatpush1.bf16.msra.mxu0 0
    %621 = vmatprep.subr.bf16.mxu0 0
    %622 = vmatpush1.bf16.msra.mxu0 0
    %623 = vmatprep.subr.bf16.mxu0 0
    %624 = vmatpush1.bf16.msra.mxu0 0
    %625 = vmatprep.mubr.bf16.mxu0 0
    %626 = vmatmul.mubr.bf16.gmra.mrb[0].mxu0 %v363
    %v627 = vpop.f32.mrb[0].mxu0
    %v628 = vadd.f32 %v288, %v627
    %v629 = vpop.f32.mrb[0].mxu0
    %v630 = vadd.f32 %v292, %v629
    %v631 = vpop.f32.mrb[0].mxu0
    %v632 = vadd.f32 %v288, %v631
    %v633 = vpop.f32.mrb[0].mxu0
    %v634 = vadd.f32 %v292, %v633
    %635 = vmatprep.mubr.bf16.mxu0 0
    %636 = vmatmul.mubr.bf16.gmra.mrb[0].mxu0 %v366
    %v637 = vpop.f32.mrb[0].mxu0
    %v638 = vadd.f32 %v288, %v637
    %v639 = vpop.f32.mrb[0].mxu0
    %v640 = vadd.f32 %v292, %v639
    %v641 = vpop.f32.mrb[0].mxu0
    %v642 = vadd.f32 %v288, %v641
    %v643 = vpop.f32.mrb[0].mxu0
    %v644 = vadd.f32 %v292, %v643
    %645 = vmatprep.mubr.bf16.mxu0 0
    %646 = vmatmul.mubr.bf16.gmra.mrb[0].mxu0 %v369
    %v647 = vpop.f32.mrb[0].mxu0
    %v648 = vadd.f32 %v288, %v647
    %v649 = vpop.f32.mrb[0].mxu0
    %v650 = vadd.f32 %v292, %v649
    %v651 = vpop.f32.mrb[0].mxu0
    %v652 = vadd.f32 %v288, %v651
    %v653 = vpop.f32.mrb[0].mxu0
    %v654 = vadd.f32 %v292, %v653
    %655 = vmatprep.mubr.bf16.mxu0 0
    %656 = vmatmul.mubr.bf16.gmra.mrb[0].mxu0 %v372
    %v657 = vpop.f32.mrb[0].mxu0
    %v658 = vadd.f32 %v288, %v657
    %v659 = vpop.f32.mrb[0].mxu0
    %v660 = vadd.f32 %v292, %v659
    %v661 = vpop.f32.mrb[0].mxu0
    %v662 = vadd.f32 %v288, %v661
    %v663 = vpop.f32.mrb[0].mxu0
    %v664 = vadd.f32 %v292, %v663
    %665 = vdwg.mxu0
    %v794 = vunpack.c.l.b16 %v131
    %v795 = vunpack.c.h.b16 %v131
    %v796 = vunpack.c.l.b16 %v132
    %v797 = vunpack.c.h.b16 %v132
    %v798 = vunpack.c.l.b16 %v133
    %v799 = vunpack.c.h.b16 %v133
    %v800 = vunpack.c.l.b16 %v134
    %v801 = vunpack.c.h.b16 %v134
    %v802 = vunpack.c.l.b16 %v135
    %v803 = vunpack.c.h.b16 %v135
    %v804 = vunpack.c.l.b16 %v136
    %v805 = vunpack.c.h.b16 %v136
    %v806 = vunpack.c.l.b16 %v137
    %v807 = vunpack.c.h.b16 %v137
    %v808 = vunpack.c.l.b16 %v138
    %v809 = vunpack.c.h.b16 %v138
    %v810 = vunpack.c.l.b16 %v139
    %v811 = vunpack.c.h.b16 %v139
    %v812 = vunpack.c.l.b16 %v140
    %v813 = vunpack.c.h.b16 %v140
    %v814 = vunpack.c.l.b16 %v141
    %v815 = vunpack.c.h.b16 %v141
    %v816 = vunpack.c.l.b16 %v142
    %v817 = vunpack.c.h.b16 %v142
    %v818 = vunpack.c.l.b16 %v143
    %v819 = vunpack.c.h.b16 %v143
    %v820 = vunpack.c.l.b16 %v144
    %v821 = vunpack.c.h.b16 %v144
    %v822 = vunpack.c.l.b16 %v145
    %v823 = vunpack.c.h.b16 %v145
    %v824 = vunpack.c.l.b16 %v146
    %v825 = vunpack.c.h.b16 %v146
    %v826 = vunpack.c.l.b16 %v147
    %v827 = vunpack.c.h.b16 %v147
    %v828 = vunpack.c.l.b16 %v148
    %v829 = vunpack.c.h.b16 %v148
    %v830 = vunpack.c.l.b16 %v149
    %v831 = vunpack.c.h.b16 %v149
    %v832 = vunpack.c.l.b16 %v150
    %v833 = vunpack.c.h.b16 %v150
    %v834 = vunpack.c.l.b16 %v151
    %v835 = vunpack.c.h.b16 %v151
    %v836 = vunpack.c.l.b16 %v152
    %v837 = vunpack.c.h.b16 %v152
    %v838 = vunpack.c.l.b16 %v153
    %v839 = vunpack.c.h.b16 %v153
    %v840 = vunpack.c.l.b16 %v154
    %v841 = vunpack.c.h.b16 %v154
    %v842 = vunpack.c.l.b16 %v155
    %v843 = vunpack.c.h.b16 %v155
    %v844 = vunpack.c.l.b16 %v156
    %v845 = vunpack.c.h.b16 %v156
    %v846 = vunpack.c.l.b16 %v157
    %v847 = vunpack.c.h.b16 %v157
    %v848 = vunpack.c.l.b16 %v158
    %v849 = vunpack.c.h.b16 %v158
    %v850 = vunpack.c.l.b16 %v159
    %v851 = vunpack.c.h.b16 %v159
    %v852 = vunpack.c.l.b16 %v160
    %v853 = vunpack.c.h.b16 %v160
    %v854 = vunpack.c.l.b16 %v161
    %v855 = vunpack.c.h.b16 %v161
    %v856 = vunpack.c.l.b16 %v162
    %v857 = vunpack.c.h.b16 %v162
    %v858 = vunpack.c.l.b16 %v163
    %v859 = vunpack.c.h.b16 %v163
    %v860 = vunpack.c.l.b16 %v164
    %v861 = vunpack.c.h.b16 %v164
    %v862 = vunpack.c.l.b16 %v165
    %v863 = vunpack.c.h.b16 %v165
    %v864 = vunpack.c.l.b16 %v166
    %v865 = vunpack.c.h.b16 %v166
    %v866 = vunpack.c.l.b16 %v167
    %v867 = vunpack.c.h.b16 %v167
    %v868 = vunpack.c.l.b16 %v168
    %v869 = vunpack.c.h.b16 %v168
    %v870 = vunpack.c.l.b16 %v169
    %v871 = vunpack.c.h.b16 %v169
    %v872 = vunpack.c.l.b16 %v170
    %v873 = vunpack.c.h.b16 %v170
    %v874 = vunpack.c.l.b16 %v171
    %v875 = vunpack.c.h.b16 %v171
    %v876 = vunpack.c.l.b16 %v172
    %v877 = vunpack.c.h.b16 %v172
    %v878 = vunpack.c.l.b16 %v173
    %v879 = vunpack.c.h.b16 %v173
    %v880 = vunpack.c.l.b16 %v174
    %v881 = vunpack.c.h.b16 %v174
    %v882 = vunpack.c.l.b16 %v175
    %v883 = vunpack.c.h.b16 %v175
    %v884 = vunpack.c.l.b16 %v176
    %v885 = vunpack.c.h.b16 %v176
    %v886 = vunpack.c.l.b16 %v177
    %v887 = vunpack.c.h.b16 %v177
    %v888 = vunpack.c.l.b16 %v178
    %v889 = vunpack.c.h.b16 %v178
    %v890 = vunpack.c.l.b16 %v179
    %v891 = vunpack.c.h.b16 %v179
    %v892 = vunpack.c.l.b16 %v180
    %v893 = vunpack.c.h.b16 %v180
    %v894 = vunpack.c.l.b16 %v181
    %v895 = vunpack.c.h.b16 %v181
    %v896 = vunpack.c.l.b16 %v182
    %v897 = vunpack.c.h.b16 %v182
    %v898 = vunpack.c.l.b16 %v183
    %v899 = vunpack.c.h.b16 %v183
    %v900 = vunpack.c.l.b16 %v184
    %v901 = vunpack.c.h.b16 %v184
    %v902 = vunpack.c.l.b16 %v185
    %v903 = vunpack.c.h.b16 %v185
    %v904 = vunpack.c.l.b16 %v186
    %v905 = vunpack.c.h.b16 %v186
    %v906 = vunpack.c.l.b16 %v187
    %v907 = vunpack.c.h.b16 %v187
    %v908 = vunpack.c.l.b16 %v188
    %v909 = vunpack.c.h.b16 %v188
    %v910 = vunpack.c.l.b16 %v189
    %v911 = vunpack.c.h.b16 %v189
    %v912 = vunpack.c.l.b16 %v190
    %v913 = vunpack.c.h.b16 %v190
    %v914 = vunpack.c.l.b16 %v191
    %v915 = vunpack.c.h.b16 %v191
    %v916 = vunpack.c.l.b16 %v192
    %v917 = vunpack.c.h.b16 %v192
    %v918 = vunpack.c.l.b16 %v193
    %v919 = vunpack.c.h.b16 %v193
    %v920 = vunpack.c.l.b16 %v194
    %v921 = vunpack.c.h.b16 %v194
    %v922 = vunpack.c.l.b16 %v195
    %v923 = vunpack.c.h.b16 %v195
    %v924 = vunpack.c.l.b16 %v196
    %v925 = vunpack.c.h.b16 %v196
    %v926 = vunpack.c.l.b16 %v197
    %v927 = vunpack.c.h.b16 %v197
    %v928 = vunpack.c.l.b16 %v198
    %v929 = vunpack.c.h.b16 %v198
    %v930 = vunpack.c.l.b16 %v199
    %v931 = vunpack.c.h.b16 %v199
    %v932 = vunpack.c.l.b16 %v200
    %v933 = vunpack.c.h.b16 %v200
    %v934 = vunpack.c.l.b16 %v201
    %v935 = vunpack.c.h.b16 %v201
    %v936 = vunpack.c.l.b16 %v202
    %v937 = vunpack.c.h.b16 %v202
    %v938 = vunpack.c.l.b16 %v203
    %v939 = vunpack.c.h.b16 %v203
    %v940 = vunpack.c.l.b16 %v204
    %v941 = vunpack.c.h.b16 %v204
    %v942 = vunpack.c.l.b16 %v205
    %v943 = vunpack.c.h.b16 %v205
    %v944 = vunpack.c.l.b16 %v206
    %v945 = vunpack.c.h.b16 %v206
    %v946 = vunpack.c.l.b16 %v207
    %v947 = vunpack.c.h.b16 %v207
    %v948 = vunpack.c.l.b16 %v208
    %v949 = vunpack.c.h.b16 %v208
    %v950 = vunpack.c.l.b16 %v209
    %v951 = vunpack.c.h.b16 %v209
    %v952 = vunpack.c.l.b16 %v210
    %v953 = vunpack.c.h.b16 %v210
    %v954 = vunpack.c.l.b16 %v211
    %v955 = vunpack.c.h.b16 %v211
    %v956 = vunpack.c.l.b16 %v212
    %v957 = vunpack.c.h.b16 %v212
    %v958 = vunpack.c.l.b16 %v213
    %v959 = vunpack.c.h.b16 %v213
    %v960 = vunpack.c.l.b16 %v214
    %v961 = vunpack.c.h.b16 %v214
    %v962 = vunpack.c.l.b16 %v215
    %v963 = vunpack.c.h.b16 %v215
    %v964 = vunpack.c.l.b16 %v216
    %v965 = vunpack.c.h.b16 %v216
    %v966 = vunpack.c.l.b16 %v217
    %v967 = vunpack.c.h.b16 %v217
    %v968 = vunpack.c.l.b16 %v218
    %v969 = vunpack.c.h.b16 %v218
    %v970 = vunpack.c.l.b16 %v219
    %v971 = vunpack.c.h.b16 %v219
    %v972 = vunpack.c.l.b16 %v220
    %v973 = vunpack.c.h.b16 %v220
    %v974 = vunpack.c.l.b16 %v221
    %v975 = vunpack.c.h.b16 %v221
    %v976 = vunpack.c.l.b16 %v222
    %v977 = vunpack.c.h.b16 %v222
    %v978 = vunpack.c.l.b16 %v223
    %v979 = vunpack.c.h.b16 %v223
    %v980 = vunpack.c.l.b16 %v224
    %v981 = vunpack.c.h.b16 %v224
    %v982 = vunpack.c.l.b16 %v225
    %v983 = vunpack.c.h.b16 %v225
    %v984 = vunpack.c.l.b16 %v226
    %v985 = vunpack.c.h.b16 %v226
    %v986 = vunpack.c.l.b16 %v227
    %v987 = vunpack.c.h.b16 %v227
    %v988 = vunpack.c.l.b16 %v228
    %v989 = vunpack.c.h.b16 %v228
    %v990 = vunpack.c.l.b16 %v229
    %v991 = vunpack.c.h.b16 %v229
    %v992 = vunpack.c.l.b16 %v230
    %v993 = vunpack.c.h.b16 %v230
    %v994 = vunpack.c.l.b16 %v231
    %v995 = vunpack.c.h.b16 %v231
    %v996 = vunpack.c.l.b16 %v232
    %v997 = vunpack.c.h.b16 %v232
    %v998 = vunpack.c.l.b16 %v233
    %v999 = vunpack.c.h.b16 %v233
    %v1000 = vunpack.c.l.b16 %v234
    %v1001 = vunpack.c.h.b16 %v234
    %v1002 = vunpack.c.l.b16 %v235
    %v1003 = vunpack.c.h.b16 %v235
    %v1004 = vunpack.c.l.b16 %v236
    %v1005 = vunpack.c.h.b16 %v236
    %v1006 = vunpack.c.l.b16 %v237
    %v1007 = vunpack.c.h.b16 %v237
    %v1008 = vunpack.c.l.b16 %v238
    %v1009 = vunpack.c.h.b16 %v238
    %v1010 = vunpack.c.l.b16 %v239
    %v1011 = vunpack.c.h.b16 %v239
    %v1012 = vunpack.c.l.b16 %v240
    %v1013 = vunpack.c.h.b16 %v240
    %v1014 = vunpack.c.l.b16 %v241
    %v1015 = vunpack.c.h.b16 %v241
    %v1016 = vunpack.c.l.b16 %v242
    %v1017 = vunpack.c.h.b16 %v242
    %v1018 = vunpack.c.l.b16 %v243
    %v1019 = vunpack.c.h.b16 %v243
    %v1020 = vunpack.c.l.b16 %v244
    %v1021 = vunpack.c.h.b16 %v244
    %v1022 = vunpack.c.l.b16 %v245
    %v1023 = vunpack.c.h.b16 %v245
    %v1024 = vunpack.c.l.b16 %v246
    %v1025 = vunpack.c.h.b16 %v246
    %v1026 = vunpack.c.l.b16 %v247
    %v1027 = vunpack.c.h.b16 %v247
    %v1028 = vunpack.c.l.b16 %v248
    %v1029 = vunpack.c.h.b16 %v248
    %v1030 = vunpack.c.l.b16 %v249
    %v1031 = vunpack.c.h.b16 %v249
    %v1032 = vunpack.c.l.b16 %v250
    %v1033 = vunpack.c.h.b16 %v250
    %v1034 = vunpack.c.l.b16 %v251
    %v1035 = vunpack.c.h.b16 %v251
    %v1036 = vunpack.c.l.b16 %v252
    %v1037 = vunpack.c.h.b16 %v252
    %v1038 = vunpack.c.l.b16 %v253
    %v1039 = vunpack.c.h.b16 %v253
    %v1040 = vunpack.c.l.b16 %v254
    %v1041 = vunpack.c.h.b16 %v254
    %v1042 = vunpack.c.l.b16 %v255
    %v1043 = vunpack.c.h.b16 %v255
    %v1044 = vunpack.c.l.b16 %v256
    %v1045 = vunpack.c.h.b16 %v256
    %v1046 = vunpack.c.l.b16 %v257
    %v1047 = vunpack.c.h.b16 %v257
    %v1048 = vunpack.c.l.b16 %v258
    %v1049 = vunpack.c.h.b16 %v258
    %v1050 = vpack.c.b16 %v802, %v794
    %v1051 = vpack.c.b16 %v803, %v795
    %v1052 = vpack.c.b16 %v804, %v796
    %v1053 = vpack.c.b16 %v805, %v797
    %v1054 = vpack.c.b16 %v806, %v798
    %v1055 = vpack.c.b16 %v807, %v799
    %v1056 = vpack.c.b16 %v808, %v800
    %v1057 = vpack.c.b16 %v809, %v801
    %v1058 = vpack.c.b16 %v818, %v810
    %v1059 = vpack.c.b16 %v819, %v811
    %v1060 = vpack.c.b16 %v820, %v812
    %v1061 = vpack.c.b16 %v821, %v813
    %v1062 = vpack.c.b16 %v822, %v814
    %v1063 = vpack.c.b16 %v823, %v815
    %v1064 = vpack.c.b16 %v824, %v816
    %v1065 = vpack.c.b16 %v825, %v817
    %v1066 = vpack.c.b16 %v834, %v826
    %v1067 = vpack.c.b16 %v835, %v827
    %v1068 = vpack.c.b16 %v836, %v828
    %v1069 = vpack.c.b16 %v837, %v829
    %v1070 = vpack.c.b16 %v838, %v830
    %v1071 = vpack.c.b16 %v839, %v831
    %v1072 = vpack.c.b16 %v840, %v832
    %v1073 = vpack.c.b16 %v841, %v833
    %v1074 = vpack.c.b16 %v850, %v842
    %v1075 = vpack.c.b16 %v851, %v843
    %v1076 = vpack.c.b16 %v852, %v844
    %v1077 = vpack.c.b16 %v853, %v845
    %v1078 = vpack.c.b16 %v854, %v846
    %v1079 = vpack.c.b16 %v855, %v847
    %v1080 = vpack.c.b16 %v856, %v848
    %v1081 = vpack.c.b16 %v857, %v849
    %v1082 = vpack.c.b16 %v866, %v858
    %v1083 = vpack.c.b16 %v867, %v859
    %v1084 = vpack.c.b16 %v868, %v860
    %v1085 = vpack.c.b16 %v869, %v861
    %v1086 = vpack.c.b16 %v870, %v862
    %v1087 = vpack.c.b16 %v871, %v863
    %v1088 = vpack.c.b16 %v872, %v864
    %v1089 = vpack.c.b16 %v873, %v865
    %v1090 = vpack.c.b16 %v882, %v874
    %v1091 = vpack.c.b16 %v883, %v875
    %v1092 = vpack.c.b16 %v884, %v876
    %v1093 = vpack.c.b16 %v885, %v877
    %v1094 = vpack.c.b16 %v886, %v878
    %v1095 = vpack.c.b16 %v887, %v879
    %v1096 = vpack.c.b16 %v888, %v880
    %v1097 = vpack.c.b16 %v889, %v881
    %v1098 = vpack.c.b16 %v898, %v890
    %v1099 = vpack.c.b16 %v899, %v891
    %v1100 = vpack.c.b16 %v900, %v892
    %v1101 = vpack.c.b16 %v901, %v893
    %v1102 = vpack.c.b16 %v902, %v894
    %v1103 = vpack.c.b16 %v903, %v895
    %v1104 = vpack.c.b16 %v904, %v896
    %v1105 = vpack.c.b16 %v905, %v897
    %v1106 = vpack.c.b16 %v914, %v906
    %v1107 = vpack.c.b16 %v915, %v907
    %v1108 = vpack.c.b16 %v916, %v908
    %v1109 = vpack.c.b16 %v917, %v909
    %v1110 = vpack.c.b16 %v918, %v910
    %v1111 = vpack.c.b16 %v919, %v911
    %v1112 = vpack.c.b16 %v920, %v912
    %v1113 = vpack.c.b16 %v921, %v913
    %v1114 = vpack.c.b16 %v930, %v922
    %v1115 = vpack.c.b16 %v931, %v923
    %v1116 = vpack.c.b16 %v932, %v924
    %v1117 = vpack.c.b16 %v933, %v925
    %v1118 = vpack.c.b16 %v934, %v926
    %v1119 = vpack.c.b16 %v935, %v927
    %v1120 = vpack.c.b16 %v936, %v928
    %v1121 = vpack.c.b16 %v937, %v929
    %v1122 = vpack.c.b16 %v946, %v938
    %v1123 = vpack.c.b16 %v947, %v939
    %v1124 = vpack.c.b16 %v948, %v940
    %v1125 = vpack.c.b16 %v949, %v941
    %v1126 = vpack.c.b16 %v950, %v942
    %v1127 = vpack.c.b16 %v951, %v943
    %v1128 = vpack.c.b16 %v952, %v944
    %v1129 = vpack.c.b16 %v953, %v945
    %v1130 = vpack.c.b16 %v962, %v954
    %v1131 = vpack.c.b16 %v963, %v955
    %v1132 = vpack.c.b16 %v964, %v956
    %v1133 = vpack.c.b16 %v965, %v957
    %v1134 = vpack.c.b16 %v966, %v958
    %v1135 = vpack.c.b16 %v967, %v959
    %v1136 = vpack.c.b16 %v968, %v960
    %v1137 = vpack.c.b16 %v969, %v961
    %v1138 = vpack.c.b16 %v978, %v970
    %v1139 = vpack.c.b16 %v979, %v971
    %v1140 = vpack.c.b16 %v980, %v972
    %v1141 = vpack.c.b16 %v981, %v973
    %v1142 = vpack.c.b16 %v982, %v974
    %v1143 = vpack.c.b16 %v983, %v975
    %v1144 = vpack.c.b16 %v984, %v976
    %v1145 = vpack.c.b16 %v985, %v977
    %v1146 = vpack.c.b16 %v994, %v986
    %v1147 = vpack.c.b16 %v995, %v987
    %v1148 = vpack.c.b16 %v996, %v988
    %v1149 = vpack.c.b16 %v997, %v989
    %v1150 = vpack.c.b16 %v998, %v990
    %v1151 = vpack.c.b16 %v999, %v991
    %v1152 = vpack.c.b16 %v1000, %v992
    %v1153 = vpack.c.b16 %v1001, %v993
    %v1154 = vpack.c.b16 %v1010, %v1002
    %v1155 = vpack.c.b16 %v1011, %v1003
    %v1156 = vpack.c.b16 %v1012, %v1004
    %v1157 = vpack.c.b16 %v1013, %v1005
    %v1158 = vpack.c.b16 %v1014, %v1006
    %v1159 = vpack.c.b16 %v1015, %v1007
    %v1160 = vpack.c.b16 %v1016, %v1008
    %v1161 = vpack.c.b16 %v1017, %v1009
    %v1162 = vpack.c.b16 %v1026, %v1018
    %v1163 = vpack.c.b16 %v1027, %v1019
    %v1164 = vpack.c.b16 %v1028, %v1020
    %v1165 = vpack.c.b16 %v1029, %v1021
    %v1166 = vpack.c.b16 %v1030, %v1022
    %v1167 = vpack.c.b16 %v1031, %v1023
    %v1168 = vpack.c.b16 %v1032, %v1024
    %v1169 = vpack.c.b16 %v1033, %v1025
    %v1170 = vpack.c.b16 %v1042, %v1034
    %v1171 = vpack.c.b16 %v1043, %v1035
    %v1172 = vpack.c.b16 %v1044, %v1036
    %v1173 = vpack.c.b16 %v1045, %v1037
    %v1174 = vpack.c.b16 %v1046, %v1038
    %v1175 = vpack.c.b16 %v1047, %v1039
    %v1176 = vpack.c.b16 %v1048, %v1040
    %v1177 = vpack.c.b16 %v1049, %v1041
    %1306 = vmatprep.subr.bf16.mxu0 %v1051
    %1307 = vmatpush1.bf16.msra.mxu0 %v1050
    %1308 = vmatprep.subr.bf16.mxu0 %v1059
    %1309 = vmatpush1.bf16.msra.mxu0 %v1058
    %1310 = vmatprep.subr.bf16.mxu0 %v1067
    %1311 = vmatpush1.bf16.msra.mxu0 %v1066
    %1312 = vmatprep.subr.bf16.mxu0 %v1075
    %1313 = vmatpush1.bf16.msra.mxu0 %v1074
    %1314 = vmatprep.subr.bf16.mxu0 %v1083
    %1315 = vmatpush1.bf16.msra.mxu0 %v1082
    %1316 = vmatprep.subr.bf16.mxu0 %v1091
    %1317 = vmatpush1.bf16.msra.mxu0 %v1090
    %1318 = vmatprep.subr.bf16.mxu0 %v1099
    %1319 = vmatpush1.bf16.msra.mxu0 %v1098
    %1320 = vmatprep.subr.bf16.mxu0 %v1107
    %1321 = vmatpush1.bf16.msra.mxu0 %v1106
    %1322 = vmatprep.subr.bf16.mxu0 %v1115
    %1323 = vmatpush1.bf16.msra.mxu0 %v1114
    %1324 = vmatprep.subr.bf16.mxu0 %v1123
    %1325 = vmatpush1.bf16.msra.mxu0 %v1122
    %1326 = vmatprep.subr.bf16.mxu0 %v1131
    %1327 = vmatpush1.bf16.msra.mxu0 %v1130
    %1328 = vmatprep.subr.bf16.mxu0 %v1139
    %1329 = vmatpush1.bf16.msra.mxu0 %v1138
    %1330 = vmatprep.subr.bf16.mxu0 %v1147
    %1331 = vmatpush1.bf16.msra.mxu0 %v1146
    %1332 = vmatprep.subr.bf16.mxu0 %v1155
    %1333 = vmatpush1.bf16.msra.mxu0 %v1154
    %1334 = vmatprep.subr.bf16.mxu0 %v1163
    %1335 = vmatpush1.bf16.msra.mxu0 %v1162
    %1336 = vmatprep.subr.bf16.mxu0 %v1171
    %1337 = vmatpush1.bf16.msra.mxu0 %v1170
    %1338 = vmatprep.mubr.bf16.mxu0 0
    %1339 = vmatmul.mubr.bf16.gmra.mrb[0].mxu0 0
    %v1340 = vpop.f32.mrb[0].mxu0
    %v1341 = vadd.f32 0.0, %v1340
    %v1342 = vpop.f32.mrb[0].mxu0
    %v1343 = vadd.f32 0.0, %v1342
    %v1344 = vpop.f32.mrb[0].mxu0
    %v1345 = vpop.f32.mrb[0].mxu0
    %1346 = vdwg.mxu0
    %1347 = vmatprep.subr.bf16.mxu0 %v1053
    %1348 = vmatpush1.bf16.msra.mxu0 %v1052
    %1349 = vmatprep.subr.bf16.mxu0 %v1061
    %1350 = vmatpush1.bf16.msra.mxu0 %v1060
    %1351 = vmatprep.subr.bf16.mxu0 %v1069
    %1352 = vmatpush1.bf16.msra.mxu0 %v1068
    %1353 = vmatprep.subr.bf16.mxu0 %v1077
    %1354 = vmatpush1.bf16.msra.mxu0 %v1076
    %1355 = vmatprep.subr.bf16.mxu0 %v1085
    %1356 = vmatpush1.bf16.msra.mxu0 %v1084
    %1357 = vmatprep.subr.bf16.mxu0 %v1093
    %1358 = vmatpush1.bf16.msra.mxu0 %v1092
    %1359 = vmatprep.subr.bf16.mxu0 %v1101
    %1360 = vmatpush1.bf16.msra.mxu0 %v1100
    %1361 = vmatprep.subr.bf16.mxu0 %v1109
    %1362 = vmatpush1.bf16.msra.mxu0 %v1108
    %1363 = vmatprep.subr.bf16.mxu0 %v1117
    %1364 = vmatpush1.bf16.msra.mxu0 %v1116
    %1365 = vmatprep.subr.bf16.mxu0 %v1125
    %1366 = vmatpush1.bf16.msra.mxu0 %v1124
    %1367 = vmatprep.subr.bf16.mxu0 %v1133
    %1368 = vmatpush1.bf16.msra.mxu0 %v1132
    %1369 = vmatprep.subr.bf16.mxu0 %v1141
    %1370 = vmatpush1.bf16.msra.mxu0 %v1140
    %1371 = vmatprep.subr.bf16.mxu0 %v1149
    %1372 = vmatpush1.bf16.msra.mxu0 %v1148
    %1373 = vmatprep.subr.bf16.mxu0 %v1157
    %1374 = vmatpush1.bf16.msra.mxu0 %v1156
    %1375 = vmatprep.subr.bf16.mxu0 %v1165
    %1376 = vmatpush1.bf16.msra.mxu0 %v1164
    %1377 = vmatprep.subr.bf16.mxu0 %v1173
    %1378 = vmatpush1.bf16.msra.mxu0 %v1172
    %1379 = vmatprep.mubr.bf16.mxu0 0
    %1380 = vmatmul.mubr.bf16.gmra.mrb[0].mxu0 0
    %v1381 = vpop.f32.mrb[0].mxu0
    %v1382 = vadd.f32 0.0, %v1381
    %v1383 = vpop.f32.mrb[0].mxu0
    %v1384 = vadd.f32 0.0, %v1383
    %v1385 = vpop.f32.mrb[0].mxu0
    %v1386 = vpop.f32.mrb[0].mxu0
    %1387 = vdwg.mxu0
    %1388 = vmatprep.subr.bf16.mxu0 %v1055
    %1389 = vmatpush1.bf16.msra.mxu0 %v1054
    %1390 = vmatprep.subr.bf16.mxu0 %v1063
    %1391 = vmatpush1.bf16.msra.mxu0 %v1062
    %1392 = vmatprep.subr.bf16.mxu0 %v1071
    %1393 = vmatpush1.bf16.msra.mxu0 %v1070
    %1394 = vmatprep.subr.bf16.mxu0 %v1079
    %1395 = vmatpush1.bf16.msra.mxu0 %v1078
    %1396 = vmatprep.subr.bf16.mxu0 %v1087
    %1397 = vmatpush1.bf16.msra.mxu0 %v1086
    %1398 = vmatprep.subr.bf16.mxu0 %v1095
    %1399 = vmatpush1.bf16.msra.mxu0 %v1094
    %1400 = vmatprep.subr.bf16.mxu0 %v1103
    %1401 = vmatpush1.bf16.msra.mxu0 %v1102
    %1402 = vmatprep.subr.bf16.mxu0 %v1111
    %1403 = vmatpush1.bf16.msra.mxu0 %v1110
    %1404 = vmatprep.subr.bf16.mxu0 %v1119
    %1405 = vmatpush1.bf16.msra.mxu0 %v1118
    %1406 = vmatprep.subr.bf16.mxu0 %v1127
    %1407 = vmatpush1.bf16.msra.mxu0 %v1126
    %1408 = vmatprep.subr.bf16.mxu0 %v1135
    %1409 = vmatpush1.bf16.msra.mxu0 %v1134
    %1410 = vmatprep.subr.bf16.mxu0 %v1143
    %1411 = vmatpush1.bf16.msra.mxu0 %v1142
    %1412 = vmatprep.subr.bf16.mxu0 %v1151
    %1413 = vmatpush1.bf16.msra.mxu0 %v1150
    %1414 = vmatprep.subr.bf16.mxu0 %v1159
    %1415 = vmatpush1.bf16.msra.mxu0 %v1158
    %1416 = vmatprep.subr.bf16.mxu0 %v1167
    %1417 = vmatpush1.bf16.msra.mxu0 %v1166
    %1418 = vmatprep.subr.bf16.mxu0 %v1175
    %1419 = vmatpush1.bf16.msra.mxu0 %v1174
    %1420 = vmatprep.mubr.bf16.mxu0 0
    %1421 = vmatmul.mubr.bf16.gmra.mrb[0].mxu0 0
    %v1422 = vpop.f32.mrb[0].mxu0
    %v1423 = vadd.f32 0.0, %v1422
    %v1424 = vpop.f32.mrb[0].mxu0
    %v1425 = vadd.f32 0.0, %v1424
    %v1426 = vpop.f32.mrb[0].mxu0
    %v1427 = vpop.f32.mrb[0].mxu0
    %1428 = vdwg.mxu0
    %1429 = vmatprep.subr.bf16.mxu0 %v1057
    %1430 = vmatpush1.bf16.msra.mxu0 %v1056
    %1431 = vmatprep.subr.bf16.mxu0 %v1065
    %1432 = vmatpush1.bf16.msra.mxu0 %v1064
    %1433 = vmatprep.subr.bf16.mxu0 %v1073
    %1434 = vmatpush1.bf16.msra.mxu0 %v1072
    %1435 = vmatprep.subr.bf16.mxu0 %v1081
    %1436 = vmatpush1.bf16.msra.mxu0 %v1080
    %1437 = vmatprep.subr.bf16.mxu0 %v1089
    %1438 = vmatpush1.bf16.msra.mxu0 %v1088
    %1439 = vmatprep.subr.bf16.mxu0 %v1097
    %1440 = vmatpush1.bf16.msra.mxu0 %v1096
    %1441 = vmatprep.subr.bf16.mxu0 %v1105
    %1442 = vmatpush1.bf16.msra.mxu0 %v1104
    %1443 = vmatprep.subr.bf16.mxu0 %v1113
    %1444 = vmatpush1.bf16.msra.mxu0 %v1112
    %1445 = vmatprep.subr.bf16.mxu0 %v1121
    %1446 = vmatpush1.bf16.msra.mxu0 %v1120
    %1447 = vmatprep.subr.bf16.mxu0 %v1129
    %1448 = vmatpush1.bf16.msra.mxu0 %v1128
    %1449 = vmatprep.subr.bf16.mxu0 %v1137
    %1450 = vmatpush1.bf16.msra.mxu0 %v1136
    %1451 = vmatprep.subr.bf16.mxu0 %v1145
    %1452 = vmatpush1.bf16.msra.mxu0 %v1144
    %1453 = vmatprep.subr.bf16.mxu0 %v1153
    %1454 = vmatpush1.bf16.msra.mxu0 %v1152
    %1455 = vmatprep.subr.bf16.mxu0 %v1161
    %1456 = vmatpush1.bf16.msra.mxu0 %v1160
    %1457 = vmatprep.subr.bf16.mxu0 %v1169
    %1458 = vmatpush1.bf16.msra.mxu0 %v1168
    %1459 = vmatprep.subr.bf16.mxu0 %v1177
    %1460 = vmatpush1.bf16.msra.mxu0 %v1176
    %1461 = vmatprep.mubr.bf16.mxu0 0
    %1462 = vmatmul.mubr.bf16.gmra.mrb[0].mxu0 0
    %v1463 = vpop.f32.mrb[0].mxu0
    %v1464 = vadd.f32 0.0, %v1463
    %v1465 = vpop.f32.mrb[0].mxu0
    %v1466 = vadd.f32 0.0, %v1465
    %v1467 = vpop.f32.mrb[0].mxu0
    %v1468 = vpop.f32.mrb[0].mxu0
    %1469 = vdwg.mxu0
    %v1470 = vadd.f32 %v409, %v1341
    %v1471 = vadd.f32 %v411, %v1343
    %v1472 = vadd.f32 %v482, %v1382
    %v1473 = vadd.f32 %v484, %v1384
    %v1474 = vadd.f32 %v555, %v1423
    %v1475 = vadd.f32 %v557, %v1425
    %v1476 = vadd.f32 %v628, %v1464
    %v1477 = vadd.f32 %v630, %v1466
    %v1478 = vxor.u32 %v1470, 2147483648
    %v1479 = vxor.u32 %v1471, 2147483648
    %v1480 = vxor.u32 %v1472, 2147483648
    %v1481 = vxor.u32 %v1473, 2147483648
    %v1482 = vxor.u32 %v1474, 2147483648
    %v1483 = vxor.u32 %v1475, 2147483648
    %v1484 = vmul.f32 %v1478, 1.442695
    %v1485 = vpow.pop %v1484
    %v1486 = vmul.f32 %v1479, 1.442695
    %v1487 = vpow.pop %v1486
    %v1488 = vmul.f32 %v1480, 1.442695
    %v1489 = vpow.pop %v1488
    %v1490 = vmul.f32 %v1481, 1.442695
    %v1491 = vpow.pop %v1490
    %v1492 = vmul.f32 %v1482, 1.442695
    %v1493 = vpow.pop %v1492
    %v1494 = vmul.f32 %v1483, 1.442695
    %v1495 = vpow.pop %v1494
    %v1496 = vadd.f32 %v1485, 1.0
    %v1497 = vadd.f32 %v1487, 1.0
    %v1498 = vadd.f32 %v1489, 1.0
    %v1499 = vadd.f32 %v1491, 1.0
    %v1500 = vadd.f32 %v1493, 1.0
    %v1501 = vadd.f32 %v1495, 1.0
    %v1502 = vrcp.pop %v1496
    %v1503 = vmul.f32 1.0, %v1502
    %v1504 = vrcp.pop %v1497
    %v1505 = vmul.f32 1.0, %v1504
    %v1506 = vrcp.pop %v1498
    %v1507 = vmul.f32 1.0, %v1506
    %v1508 = vrcp.pop %v1499
    %v1509 = vmul.f32 1.0, %v1508
    %v1510 = vrcp.pop %v1500
    %v1511 = vmul.f32 1.0, %v1510
    %v1512 = vrcp.pop %v1501
    %v1513 = vmul.f32 1.0, %v1512
    %v1514 = vtanh.pop %v1476
    %v1515 = vtanh.pop %v1477
    %v1516 = vmul.f32 %v1507, 0.0
    %v1517 = vmul.f32 %v1509, 0.0
    %v1518 = vmul.f32 %v1503, %v1514
    %v1519 = vmul.f32 %v1505, %v1515
    %v1520 = vadd.f32 %v1516, %v1518
    %v1521 = vadd.f32 %v1517, %v1519
    %v1522 = vtanh.pop %v1520
    %v1523 = vtanh.pop %v1521
    %v1524 = vmul.f32 %v1511, %v1522
    %v1525 = vmul.f32 %v1513, %v1523
    %v1526 = vpack.c.bf16 %v1524, %v1524
    %v1527 = vpack.c.bf16 %v1525, %v1525
    %1528 = vmatprep.subr.bf16.mxu0 %v1051
    %1529 = vmatpush1.bf16.msra.mxu0 %v1050
    %1530 = vmatprep.subr.bf16.mxu0 %v1059
    %1531 = vmatpush1.bf16.msra.mxu0 %v1058
    %1532 = vmatprep.subr.bf16.mxu0 %v1067
    %1533 = vmatpush1.bf16.msra.mxu0 %v1066
    %1534 = vmatprep.subr.bf16.mxu0 %v1075
    %1535 = vmatpush1.bf16.msra.mxu0 %v1074
    %1536 = vmatprep.subr.bf16.mxu0 %v1083
    %1537 = vmatpush1.bf16.msra.mxu0 %v1082
    %1538 = vmatprep.subr.bf16.mxu0 %v1091
    %1539 = vmatpush1.bf16.msra.mxu0 %v1090
    %1540 = vmatprep.subr.bf16.mxu0 %v1099
    %1541 = vmatpush1.bf16.msra.mxu0 %v1098
    %1542 = vmatprep.subr.bf16.mxu0 %v1107
    %1543 = vmatpush1.bf16.msra.mxu0 %v1106
    %1544 = vmatprep.subr.bf16.mxu0 %v1115
    %1545 = vmatpush1.bf16.msra.mxu0 %v1114
    %1546 = vmatprep.subr.bf16.mxu0 %v1123
    %1547 = vmatpush1.bf16.msra.mxu0 %v1122
    %1548 = vmatprep.subr.bf16.mxu0 %v1131
    %1549 = vmatpush1.bf16.msra.mxu0 %v1130
    %1550 = vmatprep.subr.bf16.mxu0 %v1139
    %1551 = vmatpush1.bf16.msra.mxu0 %v1138
    %1552 = vmatprep.subr.bf16.mxu0 %v1147
    %1553 = vmatpush1.bf16.msra.mxu0 %v1146
    %1554 = vmatprep.subr.bf16.mxu0 %v1155
    %1555 = vmatpush1.bf16.msra.mxu0 %v1154
    %1556 = vmatprep.subr.bf16.mxu0 %v1163
    %1557 = vmatpush1.bf16.msra.mxu0 %v1162
    %1558 = vmatprep.subr.bf16.mxu0 %v1171
    %1559 = vmatpush1.bf16.msra.mxu0 %v1170
    %1560 = vmatprep.mubr.bf16.mxu0 %v1527
    %1561 = vmatmul.mubr.bf16.gmra.mrb[0].mxu0 %v1526
    %v1562 = vpop.f32.mrb[0].mxu0
    %v1563 = vadd.f32 0.0, %v1562
    %v1564 = vpop.f32.mrb[0].mxu0
    %v1565 = vadd.f32 0.0, %v1564
    %v1566 = vpop.f32.mrb[0].mxu0
    %v1567 = vpop.f32.mrb[0].mxu0
    %1568 = vdwg.mxu0
    %1569 = vmatprep.subr.bf16.mxu0 %v1053
    %1570 = vmatpush1.bf16.msra.mxu0 %v1052
    %1571 = vmatprep.subr.bf16.mxu0 %v1061
    %1572 = vmatpush1.bf16.msra.mxu0 %v1060
    %1573 = vmatprep.subr.bf16.mxu0 %v1069
    %1574 = vmatpush1.bf16.msra.mxu0 %v1068
    %1575 = vmatprep.subr.bf16.mxu0 %v1077
    %1576 = vmatpush1.bf16.msra.mxu0 %v1076
    %1577 = vmatprep.subr.bf16.mxu0 %v1085
    %1578 = vmatpush1.bf16.msra.mxu0 %v1084
    %1579 = vmatprep.subr.bf16.mxu0 %v1093
    %1580 = vmatpush1.bf16.msra.mxu0 %v1092
    %1581 = vmatprep.subr.bf16.mxu0 %v1101
    %1582 = vmatpush1.bf16.msra.mxu0 %v1100
    %1583 = vmatprep.subr.bf16.mxu0 %v1109
    %1584 = vmatpush1.bf16.msra.mxu0 %v1108
    %1585 = vmatprep.subr.bf16.mxu0 %v1117
    %1586 = vmatpush1.bf16.msra.mxu0 %v1116
    %1587 = vmatprep.subr.bf16.mxu0 %v1125
    %1588 = vmatpush1.bf16.msra.mxu0 %v1124
    %1589 = vmatprep.subr.bf16.mxu0 %v1133
    %1590 = vmatpush1.bf16.msra.mxu0 %v1132
    %1591 = vmatprep.subr.bf16.mxu0 %v1141
    %1592 = vmatpush1.bf16.msra.mxu0 %v1140
    %1593 = vmatprep.subr.bf16.mxu0 %v1149
    %1594 = vmatpush1.bf16.msra.mxu0 %v1148
    %1595 = vmatprep.subr.bf16.mxu0 %v1157
    %1596 = vmatpush1.bf16.msra.mxu0 %v1156
    %1597 = vmatprep.subr.bf16.mxu0 %v1165
    %1598 = vmatpush1.bf16.msra.mxu0 %v1164
    %1599 = vmatprep.subr.bf16.mxu0 %v1173
    %1600 = vmatpush1.bf16.msra.mxu0 %v1172
    %1601 = vmatprep.mubr.bf16.mxu0 %v1527
    %1602 = vmatmul.mubr.bf16.gmra.mrb[0].mxu0 %v1526
    %v1603 = vpop.f32.mrb[0].mxu0
    %v1604 = vadd.f32 0.0, %v1603
    %v1605 = vpop.f32.mrb[0].mxu0
    %v1606 = vadd.f32 0.0, %v1605
    %v1607 = vpop.f32.mrb[0].mxu0
    %v1608 = vpop.f32.mrb[0].mxu0
    %1609 = vdwg.mxu0
    %1610 = vmatprep.subr.bf16.mxu0 %v1055
    %1611 = vmatpush1.bf16.msra.mxu0 %v1054
    %1612 = vmatprep.subr.bf16.mxu0 %v1063
    %1613 = vmatpush1.bf16.msra.mxu0 %v1062
    %1614 = vmatprep.subr.bf16.mxu0 %v1071
    %1615 = vmatpush1.bf16.msra.mxu0 %v1070
    %1616 = vmatprep.subr.bf16.mxu0 %v1079
    %1617 = vmatpush1.bf16.msra.mxu0 %v1078
    %1618 = vmatprep.subr.bf16.mxu0 %v1087
    %1619 = vmatpush1.bf16.msra.mxu0 %v1086
    %1620 = vmatprep.subr.bf16.mxu0 %v1095
    %1621 = vmatpush1.bf16.msra.mxu0 %v1094
    %1622 = vmatprep.subr.bf16.mxu0 %v1103
    %1623 = vmatpush1.bf16.msra.mxu0 %v1102
    %1624 = vmatprep.subr.bf16.mxu0 %v1111
    %1625 = vmatpush1.bf16.msra.mxu0 %v1110
    %1626 = vmatprep.subr.bf16.mxu0 %v1119
    %1627 = vmatpush1.bf16.msra.mxu0 %v1118
    %1628 = vmatprep.subr.bf16.mxu0 %v1127
    %1629 = vmatpush1.bf16.msra.mxu0 %v1126
    %1630 = vmatprep.subr.bf16.mxu0 %v1135
    %1631 = vmatpush1.bf16.msra.mxu0 %v1134
    %1632 = vmatprep.subr.bf16.mxu0 %v1143
    %1633 = vmatpush1.bf16.msra.mxu0 %v1142
    %1634 = vmatprep.subr.bf16.mxu0 %v1151
    %1635 = vmatpush1.bf16.msra.mxu0 %v1150
    %1636 = vmatprep.subr.bf16.mxu0 %v1159
    %1637 = vmatpush1.bf16.msra.mxu0 %v1158
    %1638 = vmatprep.subr.bf16.mxu0 %v1167
    %1639 = vmatpush1.bf16.msra.mxu0 %v1166
    %1640 = vmatprep.subr.bf16.mxu0 %v1175
    %1641 = vmatpush1.bf16.msra.mxu0 %v1174
    %1642 = vmatprep.mubr.bf16.mxu0 %v1527
    %1643 = vmatmul.mubr.bf16.gmra.mrb[0].mxu0 %v1526
    %v1644 = vpop.f32.mrb[0].mxu0
    %v1645 = vadd.f32 0.0, %v1644
    %v1646 = vpop.f32.mrb[0].mxu0
    %v1647 = vadd.f32 0.0, %v1646
    %v1648 = vpop.f32.mrb[0].mxu0
    %v1649 = vpop.f32.mrb[0].mxu0
    %1650 = vdwg.mxu0
    %1651 = vmatprep.subr.bf16.mxu0 %v1057
    %1652 = vmatpush1.bf16.msra.mxu0 %v1056
    %1653 = vmatprep.subr.bf16.mxu0 %v1065
    %1654 = vmatpush1.bf16.msra.mxu0 %v1064
    %1655 = vmatprep.subr.bf16.mxu0 %v1073
    %1656 = vmatpush1.bf16.msra.mxu0 %v1072
    %1657 = vmatprep.subr.bf16.mxu0 %v1081
    %1658 = vmatpush1.bf16.msra.mxu0 %v1080
    %1659 = vmatprep.subr.bf16.mxu0 %v1089
    %1660 = vmatpush1.bf16.msra.mxu0 %v1088
    %1661 = vmatprep.subr.bf16.mxu0 %v1097
    %1662 = vmatpush1.bf16.msra.mxu0 %v1096
    %1663 = vmatprep.subr.bf16.mxu0 %v1105
    %1664 = vmatpush1.bf16.msra.mxu0 %v1104
    %1665 = vmatprep.subr.bf16.mxu0 %v1113
    %1666 = vmatpush1.bf16.msra.mxu0 %v1112
    %1667 = vmatprep.subr.bf16.mxu0 %v1121
    %1668 = vmatpush1.bf16.msra.mxu0 %v1120
    %1669 = vmatprep.subr.bf16.mxu0 %v1129
    %1670 = vmatpush1.bf16.msra.mxu0 %v1128
    %1671 = vmatprep.subr.bf16.mxu0 %v1137
    %1672 = vmatpush1.bf16.msra.mxu0 %v1136
    %1673 = vmatprep.subr.bf16.mxu0 %v1145
    %1674 = vmatpush1.bf16.msra.mxu0 %v1144
    %1675 = vmatprep.subr.bf16.mxu0 %v1153
    %1676 = vmatpush1.bf16.msra.mxu0 %v1152
    %1677 = vmatprep.subr.bf16.mxu0 %v1161
    %1678 = vmatpush1.bf16.msra.mxu0 %v1160
    %1679 = vmatprep.subr.bf16.mxu0 %v1169
    %1680 = vmatpush1.bf16.msra.mxu0 %v1168
    %1681 = vmatprep.subr.bf16.mxu0 %v1177
    %1682 = vmatpush1.bf16.msra.mxu0 %v1176
    %1683 = vmatprep.mubr.bf16.mxu0 %v1527
    %1684 = vmatmul.mubr.bf16.gmra.mrb[0].mxu0 %v1526
    %v1685 = vpop.f32.mrb[0].mxu0
    %v1686 = vadd.f32 0.0, %v1685
    %v1687 = vpop.f32.mrb[0].mxu0
    %v1688 = vadd.f32 0.0, %v1687
    %v1689 = vpop.f32.mrb[0].mxu0
    %v1690 = vpop.f32.mrb[0].mxu0
    %1691 = vdwg.mxu0
    %v1692 = vadd.f32 %v413, %v1563
    %v1693 = vadd.f32 %v415, %v1565
    %v1694 = vadd.f32 %v486, %v1604
    %v1695 = vadd.f32 %v488, %v1606
    %v1696 = vadd.f32 %v559, %v1645
    %v1697 = vadd.f32 %v561, %v1647
    %v1698 = vadd.f32 %v632, %v1686
    %v1699 = vadd.f32 %v634, %v1688
    %v1700 = vxor.u32 %v1692, 2147483648
    %v1701 = vxor.u32 %v1693, 2147483648
    %v1702 = vxor.u32 %v1694, 2147483648
    %v1703 = vxor.u32 %v1695, 2147483648
    %v1704 = vxor.u32 %v1696, 2147483648
    %v1705 = vxor.u32 %v1697, 2147483648
    %v1706 = vmul.f32 %v1700, 1.442695
    %v1707 = vpow.pop %v1706
    %v1708 = vmul.f32 %v1701, 1.442695
    %v1709 = vpow.pop %v1708
    %v1710 = vmul.f32 %v1702, 1.442695
    %v1711 = vpow.pop %v1710
    %v1712 = vmul.f32 %v1703, 1.442695
    %v1713 = vpow.pop %v1712
    %v1714 = vmul.f32 %v1704, 1.442695
    %v1715 = vpow.pop %v1714
    %v1716 = vmul.f32 %v1705, 1.442695
    %v1717 = vpow.pop %v1716
    %v1718 = vadd.f32 %v1707, 1.0
    %v1719 = vadd.f32 %v1709, 1.0
    %v1720 = vadd.f32 %v1711, 1.0
    %v1721 = vadd.f32 %v1713, 1.0
    %v1722 = vadd.f32 %v1715, 1.0
    %v1723 = vadd.f32 %v1717, 1.0
    %v1724 = vrcp.pop %v1718
    %v1725 = vmul.f32 1.0, %v1724
    %v1726 = vrcp.pop %v1719
    %v1727 = vmul.f32 1.0, %v1726
    %v1728 = vrcp.pop %v1720
    %v1729 = vmul.f32 1.0, %v1728
    %v1730 = vrcp.pop %v1721
    %v1731 = vmul.f32 1.0, %v1730
    %v1732 = vrcp.pop %v1722
    %v1733 = vmul.f32 1.0, %v1732
    %v1734 = vrcp.pop %v1723
    %v1735 = vmul.f32 1.0, %v1734
    %v1736 = vtanh.pop %v1698
    %v1737 = vtanh.pop %v1699
    %v1738 = vmul.f32 %v1729, %v1520
    %v1739 = vmul.f32 %v1731, %v1521
    %v1740 = vmul.f32 %v1725, %v1736
    %v1741 = vmul.f32 %v1727, %v1737
    %v1742 = vadd.f32 %v1738, %v1740
    %v1743 = vadd.f32 %v1739, %v1741
    %v1744 = vtanh.pop %v1742
    %v1745 = vtanh.pop %v1743
    %v1746 = vmul.f32 %v1733, %v1744
    %v1747 = vmul.f32 %v1735, %v1745
    %v1748 = vpack.c.bf16 %v1746, %v1746
    %v1749 = vpack.c.bf16 %v1747, %v1747
    %1750 = vmatprep.subr.bf16.mxu0 %v1051
    %1751 = vmatpush1.bf16.msra.mxu0 %v1050
    %1752 = vmatprep.subr.bf16.mxu0 %v1059
    %1753 = vmatpush1.bf16.msra.mxu0 %v1058
    %1754 = vmatprep.subr.bf16.mxu0 %v1067
    %1755 = vmatpush1.bf16.msra.mxu0 %v1066
    %1756 = vmatprep.subr.bf16.mxu0 %v1075
    %1757 = vmatpush1.bf16.msra.mxu0 %v1074
    %1758 = vmatprep.subr.bf16.mxu0 %v1083
    %1759 = vmatpush1.bf16.msra.mxu0 %v1082
    %1760 = vmatprep.subr.bf16.mxu0 %v1091
    %1761 = vmatpush1.bf16.msra.mxu0 %v1090
    %1762 = vmatprep.subr.bf16.mxu0 %v1099
    %1763 = vmatpush1.bf16.msra.mxu0 %v1098
    %1764 = vmatprep.subr.bf16.mxu0 %v1107
    %1765 = vmatpush1.bf16.msra.mxu0 %v1106
    %1766 = vmatprep.subr.bf16.mxu0 %v1115
    %1767 = vmatpush1.bf16.msra.mxu0 %v1114
    %1768 = vmatprep.subr.bf16.mxu0 %v1123
    %1769 = vmatpush1.bf16.msra.mxu0 %v1122
    %1770 = vmatprep.subr.bf16.mxu0 %v1131
    %1771 = vmatpush1.bf16.msra.mxu0 %v1130
    %1772 = vmatprep.subr.bf16.mxu0 %v1139
    %1773 = vmatpush1.bf16.msra.mxu0 %v1138
    %1774 = vmatprep.subr.bf16.mxu0 %v1147
    %1775 = vmatpush1.bf16.msra.mxu0 %v1146
    %1776 = vmatprep.subr.bf16.mxu0 %v1155
    %1777 = vmatpush1.bf16.msra.mxu0 %v1154
    %1778 = vmatprep.subr.bf16.mxu0 %v1163
    %1779 = vmatpush1.bf16.msra.mxu0 %v1162
    %1780 = vmatprep.subr.bf16.mxu0 %v1171
    %1781 = vmatpush1.bf16.msra.mxu0 %v1170
    %1782 = vmatprep.mubr.bf16.mxu0 %v1749
    %1783 = vmatmul.mubr.bf16.gmra.mrb[0].mxu0 %v1748
    %v1784 = vpop.f32.mrb[0].mxu0
    %v1785 = vadd.f32 0.0, %v1784
    %v1786 = vpop.f32.mrb[0].mxu0
    %v1787 = vadd.f32 0.0, %v1786
    %v1788 = vpop.f32.mrb[0].mxu0
    %v1789 = vpop.f32.mrb[0].mxu0
    %1790 = vdwg.mxu0
    %1791 = vmatprep.subr.bf16.mxu0 %v1053
    %1792 = vmatpush1.bf16.msra.mxu0 %v1052
    %1793 = vmatprep.subr.bf16.mxu0 %v1061
    %1794 = vmatpush1.bf16.msra.mxu0 %v1060
    %1795 = vmatprep.subr.bf16.mxu0 %v1069
    %1796 = vmatpush1.bf16.msra.mxu0 %v1068
    %1797 = vmatprep.subr.bf16.mxu0 %v1077
    %1798 = vmatpush1.bf16.msra.mxu0 %v1076
    %1799 = vmatprep.subr.bf16.mxu0 %v1085
    %1800 = vmatpush1.bf16.msra.mxu0 %v1084
    %1801 = vmatprep.subr.bf16.mxu0 %v1093
    %1802 = vmatpush1.bf16.msra.mxu0 %v1092
    %1803 = vmatprep.subr.bf16.mxu0 %v1101
    %1804 = vmatpush1.bf16.msra.mxu0 %v1100
    %1805 = vmatprep.subr.bf16.mxu0 %v1109
    %1806 = vmatpush1.bf16.msra.mxu0 %v1108
    %1807 = vmatprep.subr.bf16.mxu0 %v1117
    %1808 = vmatpush1.bf16.msra.mxu0 %v1116
    %1809 = vmatprep.subr.bf16.mxu0 %v1125
    %1810 = vmatpush1.bf16.msra.mxu0 %v1124
    %1811 = vmatprep.subr.bf16.mxu0 %v1133
    %1812 = vmatpush1.bf16.msra.mxu0 %v1132
    %1813 = vmatprep.subr.bf16.mxu0 %v1141
    %1814 = vmatpush1.bf16.msra.mxu0 %v1140
    %1815 = vmatprep.subr.bf16.mxu0 %v1149
    %1816 = vmatpush1.bf16.msra.mxu0 %v1148
    %1817 = vmatprep.subr.bf16.mxu0 %v1157
    %1818 = vmatpush1.bf16.msra.mxu0 %v1156
    %1819 = vmatprep.subr.bf16.mxu0 %v1165
    %1820 = vmatpush1.bf16.msra.mxu0 %v1164
    %1821 = vmatprep.subr.bf16.mxu0 %v1173
    %1822 = vmatpush1.bf16.msra.mxu0 %v1172
    %1823 = vmatprep.mubr.bf16.mxu0 %v1749
    %1824 = vmatmul.mubr.bf16.gmra.mrb[0].mxu0 %v1748
    %v1825 = vpop.f32.mrb[0].mxu0
    %v1826 = vadd.f32 0.0, %v1825
    %v1827 = vpop.f32.mrb[0].mxu0
    %v1828 = vadd.f32 0.0, %v1827
    %v1829 = vpop.f32.mrb[0].mxu0
    %v1830 = vpop.f32.mrb[0].mxu0
    %1831 = vdwg.mxu0
    %1832 = vmatprep.subr.bf16.mxu0 %v1055
    %1833 = vmatpush1.bf16.msra.mxu0 %v1054
    %1834 = vmatprep.subr.bf16.mxu0 %v1063
    %1835 = vmatpush1.bf16.msra.mxu0 %v1062
    %1836 = vmatprep.subr.bf16.mxu0 %v1071
    %1837 = vmatpush1.bf16.msra.mxu0 %v1070
    %1838 = vmatprep.subr.bf16.mxu0 %v1079
    %1839 = vmatpush1.bf16.msra.mxu0 %v1078
    %1840 = vmatprep.subr.bf16.mxu0 %v1087
    %1841 = vmatpush1.bf16.msra.mxu0 %v1086
    %1842 = vmatprep.subr.bf16.mxu0 %v1095
    %1843 = vmatpush1.bf16.msra.mxu0 %v1094
    %1844 = vmatprep.subr.bf16.mxu0 %v1103
    %1845 = vmatpush1.bf16.msra.mxu0 %v1102
    %1846 = vmatprep.subr.bf16.mxu0 %v1111
    %1847 = vmatpush1.bf16.msra.mxu0 %v1110
    %1848 = vmatprep.subr.bf16.mxu0 %v1119
    %1849 = vmatpush1.bf16.msra.mxu0 %v1118
    %1850 = vmatprep.subr.bf16.mxu0 %v1127
    %1851 = vmatpush1.bf16.msra.mxu0 %v1126
    %1852 = vmatprep.subr.bf16.mxu0 %v1135
    %1853 = vmatpush1.bf16.msra.mxu0 %v1134
    %1854 = vmatprep.subr.bf16.mxu0 %v1143
    %1855 = vmatpush1.bf16.msra.mxu0 %v1142
    %1856 = vmatprep.subr.bf16.mxu0 %v1151
    %1857 = vmatpush1.bf16.msra.mxu0 %v1150
    %1858 = vmatprep.subr.bf16.mxu0 %v1159
    %1859 = vmatpush1.bf16.msra.mxu0 %v1158
    %1860 = vmatprep.subr.bf16.mxu0 %v1167
    %1861 = vmatpush1.bf16.msra.mxu0 %v1166
    %1862 = vmatprep.subr.bf16.mxu0 %v1175
    %1863 = vmatpush1.bf16.msra.mxu0 %v1174
    %1864 = vmatprep.mubr.bf16.mxu0 %v1749
    %1865 = vmatmul.mubr.bf16.gmra.mrb[0].mxu0 %v1748
    %v1866 = vpop.f32.mrb[0].mxu0
    %v1867 = vadd.f32 0.0, %v1866
    %v1868 = vpop.f32.mrb[0].mxu0
    %v1869 = vadd.f32 0.0, %v1868
    %v1870 = vpop.f32.mrb[0].mxu0
    %v1871 = vpop.f32.mrb[0].mxu0
    %1872 = vdwg.mxu0
    %1873 = vmatprep.subr.bf16.mxu0 %v1057
    %1874 = vmatpush1.bf16.msra.mxu0 %v1056
    %1875 = vmatprep.subr.bf16.mxu0 %v1065
    %1876 = vmatpush1.bf16.msra.mxu0 %v1064
    %1877 = vmatprep.subr.bf16.mxu0 %v1073
    %1878 = vmatpush1.bf16.msra.mxu0 %v1072
    %1879 = vmatprep.subr.bf16.mxu0 %v1081
    %1880 = vmatpush1.bf16.msra.mxu0 %v1080
    %1881 = vmatprep.subr.bf16.mxu0 %v1089
    %1882 = vmatpush1.bf16.msra.mxu0 %v1088
    %1883 = vmatprep.subr.bf16.mxu0 %v1097
    %1884 = vmatpush1.bf16.msra.mxu0 %v1096
    %1885 = vmatprep.subr.bf16.mxu0 %v1105
    %1886 = vmatpush1.bf16.msra.mxu0 %v1104
    %1887 = vmatprep.subr.bf16.mxu0 %v1113
    %1888 = vmatpush1.bf16.msra.mxu0 %v1112
    %1889 = vmatprep.subr.bf16.mxu0 %v1121
    %1890 = vmatpush1.bf16.msra.mxu0 %v1120
    %1891 = vmatprep.subr.bf16.mxu0 %v1129
    %1892 = vmatpush1.bf16.msra.mxu0 %v1128
    %1893 = vmatprep.subr.bf16.mxu0 %v1137
    %1894 = vmatpush1.bf16.msra.mxu0 %v1136
    %1895 = vmatprep.subr.bf16.mxu0 %v1145
    %1896 = vmatpush1.bf16.msra.mxu0 %v1144
    %1897 = vmatprep.subr.bf16.mxu0 %v1153
    %1898 = vmatpush1.bf16.msra.mxu0 %v1152
    %1899 = vmatprep.subr.bf16.mxu0 %v1161
    %1900 = vmatpush1.bf16.msra.mxu0 %v1160
    %1901 = vmatprep.subr.bf16.mxu0 %v1169
    %1902 = vmatpush1.bf16.msra.mxu0 %v1168
    %1903 = vmatprep.subr.bf16.mxu0 %v1177
    %1904 = vmatpush1.bf16.msra.mxu0 %v1176
    %1905 = vmatprep.mubr.bf16.mxu0 %v1749
    %1906 = vmatmul.mubr.bf16.gmra.mrb[0].mxu0 %v1748
    %v1907 = vpop.f32.mrb[0].mxu0
    %v1908 = vadd.f32 0.0, %v1907
    %v1909 = vpop.f32.mrb[0].mxu0
    %v1910 = vadd.f32 0.0, %v1909
    %v1911 = vpop.f32.mrb[0].mxu0
    %v1912 = vpop.f32.mrb[0].mxu0
    %1913 = vdwg.mxu0
    %v1914 = vadd.f32 %v419, %v1785
    %v1915 = vadd.f32 %v421, %v1787
    %v1916 = vadd.f32 %v492, %v1826
    %v1917 = vadd.f32 %v494, %v1828
    %v1918 = vadd.f32 %v565, %v1867
    %v1919 = vadd.f32 %v567, %v1869
    %v1920 = vadd.f32 %v638, %v1908
    %v1921 = vadd.f32 %v640, %v1910
    %v1922 = vxor.u32 %v1914, 2147483648
    %v1923 = vxor.u32 %v1915, 2147483648
    %v1924 = vxor.u32 %v1916, 2147483648
    %v1925 = vxor.u32 %v1917, 2147483648
    %v1926 = vxor.u32 %v1918, 2147483648
    %v1927 = vxor.u32 %v1919, 2147483648
    %v1928 = vmul.f32 %v1922, 1.442695
    %v1929 = vpow.pop %v1928
    %v1930 = vmul.f32 %v1923, 1.442695
    %v1931 = vpow.pop %v1930
    %v1932 = vmul.f32 %v1924, 1.442695
    %v1933 = vpow.pop %v1932
    %v1934 = vmul.f32 %v1925, 1.442695
    %v1935 = vpow.pop %v1934
    %v1936 = vmul.f32 %v1926, 1.442695
    %v1937 = vpow.pop %v1936
    %v1938 = vmul.f32 %v1927, 1.442695
    %v1939 = vpow.pop %v1938
    %v1940 = vadd.f32 %v1929, 1.0
    %v1941 = vadd.f32 %v1931, 1.0
    %v1942 = vadd.f32 %v1933, 1.0
    %v1943 = vadd.f32 %v1935, 1.0
    %v1944 = vadd.f32 %v1937, 1.0
    %v1945 = vadd.f32 %v1939, 1.0
    %v1946 = vrcp.pop %v1940
    %v1947 = vmul.f32 1.0, %v1946
    %v1948 = vrcp.pop %v1941
    %v1949 = vmul.f32 1.0, %v1948
    %v1950 = vrcp.pop %v1942
    %v1951 = vmul.f32 1.0, %v1950
    %v1952 = vrcp.pop %v1943
    %v1953 = vmul.f32 1.0, %v1952
    %v1954 = vrcp.pop %v1944
    %v1955 = vmul.f32 1.0, %v1954
    %v1956 = vrcp.pop %v1945
    %v1957 = vmul.f32 1.0, %v1956
    %v1958 = vtanh.pop %v1920
    %v1959 = vtanh.pop %v1921
    %v1960 = vmul.f32 %v1951, %v1742
    %v1961 = vmul.f32 %v1953, %v1743
    %v1962 = vmul.f32 %v1947, %v1958
    %v1963 = vmul.f32 %v1949, %v1959
    %v1964 = vadd.f32 %v1960, %v1962
    %v1965 = vadd.f32 %v1961, %v1963
    %v1966 = vtanh.pop %v1964
    %v1967 = vtanh.pop %v1965
    %v1968 = vmul.f32 %v1955, %v1966
    %v1969 = vmul.f32 %v1957, %v1967
    %v1970 = vpack.c.bf16 %v1968, %v1968
    %v1971 = vpack.c.bf16 %v1969, %v1969
    %1972 = vmatprep.subr.bf16.mxu0 %v1051
    %1973 = vmatpush1.bf16.msra.mxu0 %v1050
    %1974 = vmatprep.subr.bf16.mxu0 %v1059
    %1975 = vmatpush1.bf16.msra.mxu0 %v1058
    %1976 = vmatprep.subr.bf16.mxu0 %v1067
    %1977 = vmatpush1.bf16.msra.mxu0 %v1066
    %1978 = vmatprep.subr.bf16.mxu0 %v1075
    %1979 = vmatpush1.bf16.msra.mxu0 %v1074
    %1980 = vmatprep.subr.bf16.mxu0 %v1083
    %1981 = vmatpush1.bf16.msra.mxu0 %v1082
    %1982 = vmatprep.subr.bf16.mxu0 %v1091
    %1983 = vmatpush1.bf16.msra.mxu0 %v1090
    %1984 = vmatprep.subr.bf16.mxu0 %v1099
    %1985 = vmatpush1.bf16.msra.mxu0 %v1098
    %1986 = vmatprep.subr.bf16.mxu0 %v1107
    %1987 = vmatpush1.bf16.msra.mxu0 %v1106
    %1988 = vmatprep.subr.bf16.mxu0 %v1115
    %1989 = vmatpush1.bf16.msra.mxu0 %v1114
    %1990 = vmatprep.subr.bf16.mxu0 %v1123
    %1991 = vmatpush1.bf16.msra.mxu0 %v1122
    %1992 = vmatprep.subr.bf16.mxu0 %v1131
    %1993 = vmatpush1.bf16.msra.mxu0 %v1130
    %1994 = vmatprep.subr.bf16.mxu0 %v1139
    %1995 = vmatpush1.bf16.msra.mxu0 %v1138
    %1996 = vmatprep.subr.bf16.mxu0 %v1147
    %1997 = vmatpush1.bf16.msra.mxu0 %v1146
    %1998 = vmatprep.subr.bf16.mxu0 %v1155
    %1999 = vmatpush1.bf16.msra.mxu0 %v1154
    %2000 = vmatprep.subr.bf16.mxu0 %v1163
    %2001 = vmatpush1.bf16.msra.mxu0 %v1162
    %2002 = vmatprep.subr.bf16.mxu0 %v1171
    %2003 = vmatpush1.bf16.msra.mxu0 %v1170
    %2004 = vmatprep.mubr.bf16.mxu0 %v1971
    %2005 = vmatmul.mubr.bf16.gmra.mrb[0].mxu0 %v1970
    %v2006 = vpop.f32.mrb[0].mxu0
    %v2007 = vadd.f32 0.0, %v2006
    %v2008 = vpop.f32.mrb[0].mxu0
    %v2009 = vadd.f32 0.0, %v2008
    %v2010 = vpop.f32.mrb[0].mxu0
    %v2011 = vpop.f32.mrb[0].mxu0
    %2012 = vdwg.mxu0
    %2013 = vmatprep.subr.bf16.mxu0 %v1053
    %2014 = vmatpush1.bf16.msra.mxu0 %v1052
    %2015 = vmatprep.subr.bf16.mxu0 %v1061
    %2016 = vmatpush1.bf16.msra.mxu0 %v1060
    %2017 = vmatprep.subr.bf16.mxu0 %v1069
    %2018 = vmatpush1.bf16.msra.mxu0 %v1068
    %2019 = vmatprep.subr.bf16.mxu0 %v1077
    %2020 = vmatpush1.bf16.msra.mxu0 %v1076
    %2021 = vmatprep.subr.bf16.mxu0 %v1085
    %2022 = vmatpush1.bf16.msra.mxu0 %v1084
    %2023 = vmatprep.subr.bf16.mxu0 %v1093
    %2024 = vmatpush1.bf16.msra.mxu0 %v1092
    %2025 = vmatprep.subr.bf16.mxu0 %v1101
    %2026 = vmatpush1.bf16.msra.mxu0 %v1100
    %2027 = vmatprep.subr.bf16.mxu0 %v1109
    %2028 = vmatpush1.bf16.msra.mxu0 %v1108
    %2029 = vmatprep.subr.bf16.mxu0 %v1117
    %2030 = vmatpush1.bf16.msra.mxu0 %v1116
    %2031 = vmatprep.subr.bf16.mxu0 %v1125
    %2032 = vmatpush1.bf16.msra.mxu0 %v1124
    %2033 = vmatprep.subr.bf16.mxu0 %v1133
    %2034 = vmatpush1.bf16.msra.mxu0 %v1132
    %2035 = vmatprep.subr.bf16.mxu0 %v1141
    %2036 = vmatpush1.bf16.msra.mxu0 %v1140
    %2037 = vmatprep.subr.bf16.mxu0 %v1149
    %2038 = vmatpush1.bf16.msra.mxu0 %v1148
    %2039 = vmatprep.subr.bf16.mxu0 %v1157
    %2040 = vmatpush1.bf16.msra.mxu0 %v1156
    %2041 = vmatprep.subr.bf16.mxu0 %v1165
    %2042 = vmatpush1.bf16.msra.mxu0 %v1164
    %2043 = vmatprep.subr.bf16.mxu0 %v1173
    %2044 = vmatpush1.bf16.msra.mxu0 %v1172
    %2045 = vmatprep.mubr.bf16.mxu0 %v1971
    %2046 = vmatmul.mubr.bf16.gmra.mrb[0].mxu0 %v1970
    %v2047 = vpop.f32.mrb[0].mxu0
    %v2048 = vadd.f32 0.0, %v2047
    %v2049 = vpop.f32.mrb[0].mxu0
    %v2050 = vadd.f32 0.0, %v2049
    %v2051 = vpop.f32.mrb[0].mxu0
    %v2052 = vpop.f32.mrb[0].mxu0
    %2053 = vdwg.mxu0
    %2054 = vmatprep.subr.bf16.mxu0 %v1055
    %2055 = vmatpush1.bf16.msra.mxu0 %v1054
    %2056 = vmatprep.subr.bf16.mxu0 %v1063
    %2057 = vmatpush1.bf16.msra.mxu0 %v1062
    %2058 = vmatprep.subr.bf16.mxu0 %v1071
    %2059 = vmatpush1.bf16.msra.mxu0 %v1070
    %2060 = vmatprep.subr.bf16.mxu0 %v1079
    %2061 = vmatpush1.bf16.msra.mxu0 %v1078
    %2062 = vmatprep.subr.bf16.mxu0 %v1087
    %2063 = vmatpush1.bf16.msra.mxu0 %v1086
    %2064 = vmatprep.subr.bf16.mxu0 %v1095
    %2065 = vmatpush1.bf16.msra.mxu0 %v1094
    %2066 = vmatprep.subr.bf16.mxu0 %v1103
    %2067 = vmatpush1.bf16.msra.mxu0 %v1102
    %2068 = vmatprep.subr.bf16.mxu0 %v1111
    %2069 = vmatpush1.bf16.msra.mxu0 %v1110
    %2070 = vmatprep.subr.bf16.mxu0 %v1119
    %2071 = vmatpush1.bf16.msra.mxu0 %v1118
    %2072 = vmatprep.subr.bf16.mxu0 %v1127
    %2073 = vmatpush1.bf16.msra.mxu0 %v1126
    %2074 = vmatprep.subr.bf16.mxu0 %v1135
    %2075 = vmatpush1.bf16.msra.mxu0 %v1134
    %2076 = vmatprep.subr.bf16.mxu0 %v1143
    %2077 = vmatpush1.bf16.msra.mxu0 %v1142
    %2078 = vmatprep.subr.bf16.mxu0 %v1151
    %2079 = vmatpush1.bf16.msra.mxu0 %v1150
    %2080 = vmatprep.subr.bf16.mxu0 %v1159
    %2081 = vmatpush1.bf16.msra.mxu0 %v1158
    %2082 = vmatprep.subr.bf16.mxu0 %v1167
    %2083 = vmatpush1.bf16.msra.mxu0 %v1166
    %2084 = vmatprep.subr.bf16.mxu0 %v1175
    %2085 = vmatpush1.bf16.msra.mxu0 %v1174
    %2086 = vmatprep.mubr.bf16.mxu0 %v1971
    %2087 = vmatmul.mubr.bf16.gmra.mrb[0].mxu0 %v1970
    %v2088 = vpop.f32.mrb[0].mxu0
    %v2089 = vadd.f32 0.0, %v2088
    %v2090 = vpop.f32.mrb[0].mxu0
    %v2091 = vadd.f32 0.0, %v2090
    %v2092 = vpop.f32.mrb[0].mxu0
    %v2093 = vpop.f32.mrb[0].mxu0
    %2094 = vdwg.mxu0
    %2095 = vmatprep.subr.bf16.mxu0 %v1057
    %2096 = vmatpush1.bf16.msra.mxu0 %v1056
    %2097 = vmatprep.subr.bf16.mxu0 %v1065
    %2098 = vmatpush1.bf16.msra.mxu0 %v1064
    %2099 = vmatprep.subr.bf16.mxu0 %v1073
    %2100 = vmatpush1.bf16.msra.mxu0 %v1072
    %2101 = vmatprep.subr.bf16.mxu0 %v1081
    %2102 = vmatpush1.bf16.msra.mxu0 %v1080
    %2103 = vmatprep.subr.bf16.mxu0 %v1089
    %2104 = vmatpush1.bf16.msra.mxu0 %v1088
    %2105 = vmatprep.subr.bf16.mxu0 %v1097
    %2106 = vmatpush1.bf16.msra.mxu0 %v1096
    %2107 = vmatprep.subr.bf16.mxu0 %v1105
    %2108 = vmatpush1.bf16.msra.mxu0 %v1104
    %2109 = vmatprep.subr.bf16.mxu0 %v1113
    %2110 = vmatpush1.bf16.msra.mxu0 %v1112
    %2111 = vmatprep.subr.bf16.mxu0 %v1121
    %2112 = vmatpush1.bf16.msra.mxu0 %v1120
    %2113 = vmatprep.subr.bf16.mxu0 %v1129
    %2114 = vmatpush1.bf16.msra.mxu0 %v1128
    %2115 = vmatprep.subr.bf16.mxu0 %v1137
    %2116 = vmatpush1.bf16.msra.mxu0 %v1136
    %2117 = vmatprep.subr.bf16.mxu0 %v1145
    %2118 = vmatpush1.bf16.msra.mxu0 %v1144
    %2119 = vmatprep.subr.bf16.mxu0 %v1153
    %2120 = vmatpush1.bf16.msra.mxu0 %v1152
    %2121 = vmatprep.subr.bf16.mxu0 %v1161
    %2122 = vmatpush1.bf16.msra.mxu0 %v1160
    %2123 = vmatprep.subr.bf16.mxu0 %v1169
    %2124 = vmatpush1.bf16.msra.mxu0 %v1168
    %2125 = vmatprep.subr.bf16.mxu0 %v1177
    %2126 = vmatpush1.bf16.msra.mxu0 %v1176
    %2127 = vmatprep.mubr.bf16.mxu0 %v1971
    %2128 = vmatmul.mubr.bf16.gmra.mrb[0].mxu0 %v1970
    %v2129 = vpop.f32.mrb[0].mxu0
    %v2130 = vadd.f32 0.0, %v2129
    %v2131 = vpop.f32.mrb[0].mxu0
    %v2132 = vadd.f32 0.0, %v2131
    %v2133 = vpop.f32.mrb[0].mxu0
    %v2134 = vpop.f32.mrb[0].mxu0
    %2135 = vdwg.mxu0
    %v2136 = vadd.f32 %v423, %v2007
    %v2137 = vadd.f32 %v425, %v2009
    %v2138 = vadd.f32 %v496, %v2048
    %v2139 = vadd.f32 %v498, %v2050
    %v2140 = vadd.f32 %v569, %v2089
    %v2141 = vadd.f32 %v571, %v2091
    %v2142 = vadd.f32 %v642, %v2130
    %v2143 = vadd.f32 %v644, %v2132
    %v2144 = vxor.u32 %v2136, 2147483648
    %v2145 = vxor.u32 %v2137, 2147483648
    %v2146 = vxor.u32 %v2138, 2147483648
    %v2147 = vxor.u32 %v2139, 2147483648
    %v2148 = vxor.u32 %v2140, 2147483648
    %v2149 = vxor.u32 %v2141, 2147483648
    %v2150 = vmul.f32 %v2144, 1.442695
    %v2151 = vpow.pop %v2150
    %v2152 = vmul.f32 %v2145, 1.442695
    %v2153 = vpow.pop %v2152
    %v2154 = vmul.f32 %v2146, 1.442695
    %v2155 = vpow.pop %v2154
    %v2156 = vmul.f32 %v2147, 1.442695
    %v2157 = vpow.pop %v2156
    %v2158 = vmul.f32 %v2148, 1.442695
    %v2159 = vpow.pop %v2158
    %v2160 = vmul.f32 %v2149, 1.442695
    %v2161 = vpow.pop %v2160
    %v2162 = vadd.f32 %v2151, 1.0
    %v2163 = vadd.f32 %v2153, 1.0
    %v2164 = vadd.f32 %v2155, 1.0
    %v2165 = vadd.f32 %v2157, 1.0
    %v2166 = vadd.f32 %v2159, 1.0
    %v2167 = vadd.f32 %v2161, 1.0
    %v2168 = vrcp.pop %v2162
    %v2169 = vmul.f32 1.0, %v2168
    %v2170 = vrcp.pop %v2163
    %v2171 = vmul.f32 1.0, %v2170
    %v2172 = vrcp.pop %v2164
    %v2173 = vmul.f32 1.0, %v2172
    %v2174 = vrcp.pop %v2165
    %v2175 = vmul.f32 1.0, %v2174
    %v2176 = vrcp.pop %v2166
    %v2177 = vmul.f32 1.0, %v2176
    %v2178 = vrcp.pop %v2167
    %v2179 = vmul.f32 1.0, %v2178
    %v2180 = vtanh.pop %v2142
    %v2181 = vtanh.pop %v2143
    %v2182 = vmul.f32 %v2173, %v1964
    %v2183 = vmul.f32 %v2175, %v1965
    %v2184 = vmul.f32 %v2169, %v2180
    %v2185 = vmul.f32 %v2171, %v2181
    %v2186 = vadd.f32 %v2182, %v2184
    %v2187 = vadd.f32 %v2183, %v2185
    %v2188 = vtanh.pop %v2186
    %v2189 = vtanh.pop %v2187
    %v2190 = vmul.f32 %v2177, %v2188
    %v2191 = vmul.f32 %v2179, %v2189
    %v2192 = vpack.c.bf16 %v2190, %v2190
    %v2193 = vpack.c.bf16 %v2191, %v2191
    %2194 = vmatprep.subr.bf16.mxu0 %v1051
    %2195 = vmatpush1.bf16.msra.mxu0 %v1050
    %2196 = vmatprep.subr.bf16.mxu0 %v1059
    %2197 = vmatpush1.bf16.msra.mxu0 %v1058
    %2198 = vmatprep.subr.bf16.mxu0 %v1067
    %2199 = vmatpush1.bf16.msra.mxu0 %v1066
    %2200 = vmatprep.subr.bf16.mxu0 %v1075
    %2201 = vmatpush1.bf16.msra.mxu0 %v1074
    %2202 = vmatprep.subr.bf16.mxu0 %v1083
    %2203 = vmatpush1.bf16.msra.mxu0 %v1082
    %2204 = vmatprep.subr.bf16.mxu0 %v1091
    %2205 = vmatpush1.bf16.msra.mxu0 %v1090
    %2206 = vmatprep.subr.bf16.mxu0 %v1099
    %2207 = vmatpush1.bf16.msra.mxu0 %v1098
    %2208 = vmatprep.subr.bf16.mxu0 %v1107
    %2209 = vmatpush1.bf16.msra.mxu0 %v1106
    %2210 = vmatprep.subr.bf16.mxu0 %v1115
    %2211 = vmatpush1.bf16.msra.mxu0 %v1114
    %2212 = vmatprep.subr.bf16.mxu0 %v1123
    %2213 = vmatpush1.bf16.msra.mxu0 %v1122
    %2214 = vmatprep.subr.bf16.mxu0 %v1131
    %2215 = vmatpush1.bf16.msra.mxu0 %v1130
    %2216 = vmatprep.subr.bf16.mxu0 %v1139
    %2217 = vmatpush1.bf16.msra.mxu0 %v1138
    %2218 = vmatprep.subr.bf16.mxu0 %v1147
    %2219 = vmatpush1.bf16.msra.mxu0 %v1146
    %2220 = vmatprep.subr.bf16.mxu0 %v1155
    %2221 = vmatpush1.bf16.msra.mxu0 %v1154
    %2222 = vmatprep.subr.bf16.mxu0 %v1163
    %2223 = vmatpush1.bf16.msra.mxu0 %v1162
    %2224 = vmatprep.subr.bf16.mxu0 %v1171
    %2225 = vmatpush1.bf16.msra.mxu0 %v1170
    %2226 = vmatprep.mubr.bf16.mxu0 %v2193
    %2227 = vmatmul.mubr.bf16.gmra.mrb[0].mxu0 %v2192
    %v2228 = vpop.f32.mrb[0].mxu0
    %v2229 = vadd.f32 0.0, %v2228
    %v2230 = vpop.f32.mrb[0].mxu0
    %v2231 = vadd.f32 0.0, %v2230
    %v2232 = vpop.f32.mrb[0].mxu0
    %v2233 = vpop.f32.mrb[0].mxu0
    %2234 = vdwg.mxu0
    %2235 = vmatprep.subr.bf16.mxu0 %v1053
    %2236 = vmatpush1.bf16.msra.mxu0 %v1052
    %2237 = vmatprep.subr.bf16.mxu0 %v1061
    %2238 = vmatpush1.bf16.msra.mxu0 %v1060
    %2239 = vmatprep.subr.bf16.mxu0 %v1069
    %2240 = vmatpush1.bf16.msra.mxu0 %v1068
    %2241 = vmatprep.subr.bf16.mxu0 %v1077
    %2242 = vmatpush1.bf16.msra.mxu0 %v1076
    %2243 = vmatprep.subr.bf16.mxu0 %v1085
    %2244 = vmatpush1.bf16.msra.mxu0 %v1084
    %2245 = vmatprep.subr.bf16.mxu0 %v1093
    %2246 = vmatpush1.bf16.msra.mxu0 %v1092
    %2247 = vmatprep.subr.bf16.mxu0 %v1101
    %2248 = vmatpush1.bf16.msra.mxu0 %v1100
    %2249 = vmatprep.subr.bf16.mxu0 %v1109
    %2250 = vmatpush1.bf16.msra.mxu0 %v1108
    %2251 = vmatprep.subr.bf16.mxu0 %v1117
    %2252 = vmatpush1.bf16.msra.mxu0 %v1116
    %2253 = vmatprep.subr.bf16.mxu0 %v1125
    %2254 = vmatpush1.bf16.msra.mxu0 %v1124
    %2255 = vmatprep.subr.bf16.mxu0 %v1133
    %2256 = vmatpush1.bf16.msra.mxu0 %v1132
    %2257 = vmatprep.subr.bf16.mxu0 %v1141
    %2258 = vmatpush1.bf16.msra.mxu0 %v1140
    %2259 = vmatprep.subr.bf16.mxu0 %v1149
    %2260 = vmatpush1.bf16.msra.mxu0 %v1148
    %2261 = vmatprep.subr.bf16.mxu0 %v1157
    %2262 = vmatpush1.bf16.msra.mxu0 %v1156
    %2263 = vmatprep.subr.bf16.mxu0 %v1165
    %2264 = vmatpush1.bf16.msra.mxu0 %v1164
    %2265 = vmatprep.subr.bf16.mxu0 %v1173
    %2266 = vmatpush1.bf16.msra.mxu0 %v1172
    %2267 = vmatprep.mubr.bf16.mxu0 %v2193
    %2268 = vmatmul.mubr.bf16.gmra.mrb[0].mxu0 %v2192
    %v2269 = vpop.f32.mrb[0].mxu0
    %v2270 = vadd.f32 0.0, %v2269
    %v2271 = vpop.f32.mrb[0].mxu0
    %v2272 = vadd.f32 0.0, %v2271
    %v2273 = vpop.f32.mrb[0].mxu0
    %v2274 = vpop.f32.mrb[0].mxu0
    %2275 = vdwg.mxu0
    %2276 = vmatprep.subr.bf16.mxu0 %v1055
    %2277 = vmatpush1.bf16.msra.mxu0 %v1054
    %2278 = vmatprep.subr.bf16.mxu0 %v1063
    %2279 = vmatpush1.bf16.msra.mxu0 %v1062
    %2280 = vmatprep.subr.bf16.mxu0 %v1071
    %2281 = vmatpush1.bf16.msra.mxu0 %v1070
    %2282 = vmatprep.subr.bf16.mxu0 %v1079
    %2283 = vmatpush1.bf16.msra.mxu0 %v1078
    %2284 = vmatprep.subr.bf16.mxu0 %v1087
    %2285 = vmatpush1.bf16.msra.mxu0 %v1086
    %2286 = vmatprep.subr.bf16.mxu0 %v1095
    %2287 = vmatpush1.bf16.msra.mxu0 %v1094
    %2288 = vmatprep.subr.bf16.mxu0 %v1103
    %2289 = vmatpush1.bf16.msra.mxu0 %v1102
    %2290 = vmatprep.subr.bf16.mxu0 %v1111
    %2291 = vmatpush1.bf16.msra.mxu0 %v1110
    %2292 = vmatprep.subr.bf16.mxu0 %v1119
    %2293 = vmatpush1.bf16.msra.mxu0 %v1118
    %2294 = vmatprep.subr.bf16.mxu0 %v1127
    %2295 = vmatpush1.bf16.msra.mxu0 %v1126
    %2296 = vmatprep.subr.bf16.mxu0 %v1135
    %2297 = vmatpush1.bf16.msra.mxu0 %v1134
    %2298 = vmatprep.subr.bf16.mxu0 %v1143
    %2299 = vmatpush1.bf16.msra.mxu0 %v1142
    %2300 = vmatprep.subr.bf16.mxu0 %v1151
    %2301 = vmatpush1.bf16.msra.mxu0 %v1150
    %2302 = vmatprep.subr.bf16.mxu0 %v1159
    %2303 = vmatpush1.bf16.msra.mxu0 %v1158
    %2304 = vmatprep.subr.bf16.mxu0 %v1167
    %2305 = vmatpush1.bf16.msra.mxu0 %v1166
    %2306 = vmatprep.subr.bf16.mxu0 %v1175
    %2307 = vmatpush1.bf16.msra.mxu0 %v1174
    %2308 = vmatprep.mubr.bf16.mxu0 %v2193
    %2309 = vmatmul.mubr.bf16.gmra.mrb[0].mxu0 %v2192
    %v2310 = vpop.f32.mrb[0].mxu0
    %v2311 = vadd.f32 0.0, %v2310
    %v2312 = vpop.f32.mrb[0].mxu0
    %v2313 = vadd.f32 0.0, %v2312
    %v2314 = vpop.f32.mrb[0].mxu0
    %v2315 = vpop.f32.mrb[0].mxu0
    %2316 = vdwg.mxu0
    %2317 = vmatprep.subr.bf16.mxu0 %v1057
    %2318 = vmatpush1.bf16.msra.mxu0 %v1056
    %2319 = vmatprep.subr.bf16.mxu0 %v1065
    %2320 = vmatpush1.bf16.msra.mxu0 %v1064
    %2321 = vmatprep.subr.bf16.mxu0 %v1073
    %2322 = vmatpush1.bf16.msra.mxu0 %v1072
    %2323 = vmatprep.subr.bf16.mxu0 %v1081
    %2324 = vmatpush1.bf16.msra.mxu0 %v1080
    %2325 = vmatprep.subr.bf16.mxu0 %v1089
    %2326 = vmatpush1.bf16.msra.mxu0 %v1088
    %2327 = vmatprep.subr.bf16.mxu0 %v1097
    %2328 = vmatpush1.bf16.msra.mxu0 %v1096
    %2329 = vmatprep.subr.bf16.mxu0 %v1105
    %2330 = vmatpush1.bf16.msra.mxu0 %v1104
    %2331 = vmatprep.subr.bf16.mxu0 %v1113
    %2332 = vmatpush1.bf16.msra.mxu0 %v1112
    %2333 = vmatprep.subr.bf16.mxu0 %v1121
    %2334 = vmatpush1.bf16.msra.mxu0 %v1120
    %2335 = vmatprep.subr.bf16.mxu0 %v1129
    %2336 = vmatpush1.bf16.msra.mxu0 %v1128
    %2337 = vmatprep.subr.bf16.mxu0 %v1137
    %2338 = vmatpush1.bf16.msra.mxu0 %v1136
    %2339 = vmatprep.subr.bf16.mxu0 %v1145
    %2340 = vmatpush1.bf16.msra.mxu0 %v1144
    %2341 = vmatprep.subr.bf16.mxu0 %v1153
    %2342 = vmatpush1.bf16.msra.mxu0 %v1152
    %2343 = vmatprep.subr.bf16.mxu0 %v1161
    %2344 = vmatpush1.bf16.msra.mxu0 %v1160
    %2345 = vmatprep.subr.bf16.mxu0 %v1169
    %2346 = vmatpush1.bf16.msra.mxu0 %v1168
    %2347 = vmatprep.subr.bf16.mxu0 %v1177
    %2348 = vmatpush1.bf16.msra.mxu0 %v1176
    %2349 = vmatprep.mubr.bf16.mxu0 %v2193
    %2350 = vmatmul.mubr.bf16.gmra.mrb[0].mxu0 %v2192
    %v2351 = vpop.f32.mrb[0].mxu0
    %v2352 = vadd.f32 0.0, %v2351
    %v2353 = vpop.f32.mrb[0].mxu0
    %v2354 = vadd.f32 0.0, %v2353
    %v2355 = vpop.f32.mrb[0].mxu0
    %v2356 = vpop.f32.mrb[0].mxu0
    %2357 = vdwg.mxu0
    %v2358 = vadd.f32 %v429, %v2229
    %v2359 = vadd.f32 %v431, %v2231
    %v2360 = vadd.f32 %v502, %v2270
    %v2361 = vadd.f32 %v504, %v2272
    %v2362 = vadd.f32 %v575, %v2311
    %v2363 = vadd.f32 %v577, %v2313
    %v2364 = vadd.f32 %v648, %v2352
    %v2365 = vadd.f32 %v650, %v2354
    %v2366 = vxor.u32 %v2358, 2147483648
    %v2367 = vxor.u32 %v2359, 2147483648
    %v2368 = vxor.u32 %v2360, 2147483648
    %v2369 = vxor.u32 %v2361, 2147483648
    %v2370 = vxor.u32 %v2362, 2147483648
    %v2371 = vxor.u32 %v2363, 2147483648
    %v2372 = vmul.f32 %v2366, 1.442695
    %v2373 = vpow.pop %v2372
    %v2374 = vmul.f32 %v2367, 1.442695
    %v2375 = vpow.pop %v2374
    %v2376 = vmul.f32 %v2368, 1.442695
    %v2377 = vpow.pop %v2376
    %v2378 = vmul.f32 %v2369, 1.442695
    %v2379 = vpow.pop %v2378
    %v2380 = vmul.f32 %v2370, 1.442695
    %v2381 = vpow.pop %v2380
    %v2382 = vmul.f32 %v2371, 1.442695
    %v2383 = vpow.pop %v2382
    %v2384 = vadd.f32 %v2373, 1.0
    %v2385 = vadd.f32 %v2375, 1.0
    %v2386 = vadd.f32 %v2377, 1.0
    %v2387 = vadd.f32 %v2379, 1.0
    %v2388 = vadd.f32 %v2381, 1.0
    %v2389 = vadd.f32 %v2383, 1.0
    %v2390 = vrcp.pop %v2384
    %v2391 = vmul.f32 1.0, %v2390
    %v2392 = vrcp.pop %v2385
    %v2393 = vmul.f32 1.0, %v2392
    %v2394 = vrcp.pop %v2386
    %v2395 = vmul.f32 1.0, %v2394
    %v2396 = vrcp.pop %v2387
    %v2397 = vmul.f32 1.0, %v2396
    %v2398 = vrcp.pop %v2388
    %v2399 = vmul.f32 1.0, %v2398
    %v2400 = vrcp.pop %v2389
    %v2401 = vmul.f32 1.0, %v2400
    %v2402 = vtanh.pop %v2364
    %v2403 = vtanh.pop %v2365
    %v2404 = vmul.f32 %v2395, %v2186
    %v2405 = vmul.f32 %v2397, %v2187
    %v2406 = vmul.f32 %v2391, %v2402
    %v2407 = vmul.f32 %v2393, %v2403
    %v2408 = vadd.f32 %v2404, %v2406
    %v2409 = vadd.f32 %v2405, %v2407
    %v2410 = vtanh.pop %v2408
    %v2411 = vtanh.pop %v2409
    %v2412 = vmul.f32 %v2399, %v2410
    %v2413 = vmul.f32 %v2401, %v2411
    %v2414 = vpack.c.bf16 %v2412, %v2412
    %v2415 = vpack.c.bf16 %v2413, %v2413
    %2416 = vmatprep.subr.bf16.mxu0 %v1051
    %2417 = vmatpush1.bf16.msra.mxu0 %v1050
    %2418 = vmatprep.subr.bf16.mxu0 %v1059
    %2419 = vmatpush1.bf16.msra.mxu0 %v1058
    %2420 = vmatprep.subr.bf16.mxu0 %v1067
    %2421 = vmatpush1.bf16.msra.mxu0 %v1066
    %2422 = vmatprep.subr.bf16.mxu0 %v1075
    %2423 = vmatpush1.bf16.msra.mxu0 %v1074
    %2424 = vmatprep.subr.bf16.mxu0 %v1083
    %2425 = vmatpush1.bf16.msra.mxu0 %v1082
    %2426 = vmatprep.subr.bf16.mxu0 %v1091
    %2427 = vmatpush1.bf16.msra.mxu0 %v1090
    %2428 = vmatprep.subr.bf16.mxu0 %v1099
    %2429 = vmatpush1.bf16.msra.mxu0 %v1098
    %2430 = vmatprep.subr.bf16.mxu0 %v1107
    %2431 = vmatpush1.bf16.msra.mxu0 %v1106
    %2432 = vmatprep.subr.bf16.mxu0 %v1115
    %2433 = vmatpush1.bf16.msra.mxu0 %v1114
    %2434 = vmatprep.subr.bf16.mxu0 %v1123
    %2435 = vmatpush1.bf16.msra.mxu0 %v1122
    %2436 = vmatprep.subr.bf16.mxu0 %v1131
    %2437 = vmatpush1.bf16.msra.mxu0 %v1130
    %2438 = vmatprep.subr.bf16.mxu0 %v1139
    %2439 = vmatpush1.bf16.msra.mxu0 %v1138
    %2440 = vmatprep.subr.bf16.mxu0 %v1147
    %2441 = vmatpush1.bf16.msra.mxu0 %v1146
    %2442 = vmatprep.subr.bf16.mxu0 %v1155
    %2443 = vmatpush1.bf16.msra.mxu0 %v1154
    %2444 = vmatprep.subr.bf16.mxu0 %v1163
    %2445 = vmatpush1.bf16.msra.mxu0 %v1162
    %2446 = vmatprep.subr.bf16.mxu0 %v1171
    %2447 = vmatpush1.bf16.msra.mxu0 %v1170
    %2448 = vmatprep.mubr.bf16.mxu0 %v2415
    %2449 = vmatmul.mubr.bf16.gmra.mrb[0].mxu0 %v2414
    %v2450 = vpop.f32.mrb[0].mxu0
    %v2451 = vadd.f32 0.0, %v2450
    %v2452 = vpop.f32.mrb[0].mxu0
    %v2453 = vadd.f32 0.0, %v2452
    %v2454 = vpop.f32.mrb[0].mxu0
    %v2455 = vpop.f32.mrb[0].mxu0
    %2456 = vdwg.mxu0
    %2457 = vmatprep.subr.bf16.mxu0 %v1053
    %2458 = vmatpush1.bf16.msra.mxu0 %v1052
    %2459 = vmatprep.subr.bf16.mxu0 %v1061
    %2460 = vmatpush1.bf16.msra.mxu0 %v1060
    %2461 = vmatprep.subr.bf16.mxu0 %v1069
    %2462 = vmatpush1.bf16.msra.mxu0 %v1068
    %2463 = vmatprep.subr.bf16.mxu0 %v1077
    %2464 = vmatpush1.bf16.msra.mxu0 %v1076
    %2465 = vmatprep.subr.bf16.mxu0 %v1085
    %2466 = vmatpush1.bf16.msra.mxu0 %v1084
    %2467 = vmatprep.subr.bf16.mxu0 %v1093
    %2468 = vmatpush1.bf16.msra.mxu0 %v1092
    %2469 = vmatprep.subr.bf16.mxu0 %v1101
    %2470 = vmatpush1.bf16.msra.mxu0 %v1100
    %2471 = vmatprep.subr.bf16.mxu0 %v1109
    %2472 = vmatpush1.bf16.msra.mxu0 %v1108
    %2473 = vmatprep.subr.bf16.mxu0 %v1117
    %2474 = vmatpush1.bf16.msra.mxu0 %v1116
    %2475 = vmatprep.subr.bf16.mxu0 %v1125
    %2476 = vmatpush1.bf16.msra.mxu0 %v1124
    %2477 = vmatprep.subr.bf16.mxu0 %v1133
    %2478 = vmatpush1.bf16.msra.mxu0 %v1132
    %2479 = vmatprep.subr.bf16.mxu0 %v1141
    %2480 = vmatpush1.bf16.msra.mxu0 %v1140
    %2481 = vmatprep.subr.bf16.mxu0 %v1149
    %2482 = vmatpush1.bf16.msra.mxu0 %v1148
    %2483 = vmatprep.subr.bf16.mxu0 %v1157
    %2484 = vmatpush1.bf16.msra.mxu0 %v1156
    %2485 = vmatprep.subr.bf16.mxu0 %v1165
    %2486 = vmatpush1.bf16.msra.mxu0 %v1164
    %2487 = vmatprep.subr.bf16.mxu0 %v1173
    %2488 = vmatpush1.bf16.msra.mxu0 %v1172
    %2489 = vmatprep.mubr.bf16.mxu0 %v2415
    %2490 = vmatmul.mubr.bf16.gmra.mrb[0].mxu0 %v2414
    %v2491 = vpop.f32.mrb[0].mxu0
    %v2492 = vadd.f32 0.0, %v2491
    %v2493 = vpop.f32.mrb[0].mxu0
    %v2494 = vadd.f32 0.0, %v2493
    %v2495 = vpop.f32.mrb[0].mxu0
    %v2496 = vpop.f32.mrb[0].mxu0
    %2497 = vdwg.mxu0
    %2498 = vmatprep.subr.bf16.mxu0 %v1055
    %2499 = vmatpush1.bf16.msra.mxu0 %v1054
    %2500 = vmatprep.subr.bf16.mxu0 %v1063
    %2501 = vmatpush1.bf16.msra.mxu0 %v1062
    %2502 = vmatprep.subr.bf16.mxu0 %v1071
    %2503 = vmatpush1.bf16.msra.mxu0 %v1070
    %2504 = vmatprep.subr.bf16.mxu0 %v1079
    %2505 = vmatpush1.bf16.msra.mxu0 %v1078
    %2506 = vmatprep.subr.bf16.mxu0 %v1087
    %2507 = vmatpush1.bf16.msra.mxu0 %v1086
    %2508 = vmatprep.subr.bf16.mxu0 %v1095
    %2509 = vmatpush1.bf16.msra.mxu0 %v1094
    %2510 = vmatprep.subr.bf16.mxu0 %v1103
    %2511 = vmatpush1.bf16.msra.mxu0 %v1102
    %2512 = vmatprep.subr.bf16.mxu0 %v1111
    %2513 = vmatpush1.bf16.msra.mxu0 %v1110
    %2514 = vmatprep.subr.bf16.mxu0 %v1119
    %2515 = vmatpush1.bf16.msra.mxu0 %v1118
    %2516 = vmatprep.subr.bf16.mxu0 %v1127
    %2517 = vmatpush1.bf16.msra.mxu0 %v1126
    %2518 = vmatprep.subr.bf16.mxu0 %v1135
    %2519 = vmatpush1.bf16.msra.mxu0 %v1134
    %2520 = vmatprep.subr.bf16.mxu0 %v1143
    %2521 = vmatpush1.bf16.msra.mxu0 %v1142
    %2522 = vmatprep.subr.bf16.mxu0 %v1151
    %2523 = vmatpush1.bf16.msra.mxu0 %v1150
    %2524 = vmatprep.subr.bf16.mxu0 %v1159
    %2525 = vmatpush1.bf16.msra.mxu0 %v1158
    %2526 = vmatprep.subr.bf16.mxu0 %v1167
    %2527 = vmatpush1.bf16.msra.mxu0 %v1166
    %2528 = vmatprep.subr.bf16.mxu0 %v1175
    %2529 = vmatpush1.bf16.msra.mxu0 %v1174
    %2530 = vmatprep.mubr.bf16.mxu0 %v2415
    %2531 = vmatmul.mubr.bf16.gmra.mrb[0].mxu0 %v2414
    %v2532 = vpop.f32.mrb[0].mxu0
    %v2533 = vadd.f32 0.0, %v2532
    %v2534 = vpop.f32.mrb[0].mxu0
    %v2535 = vadd.f32 0.0, %v2534
    %v2536 = vpop.f32.mrb[0].mxu0
    %v2537 = vpop.f32.mrb[0].mxu0
    %2538 = vdwg.mxu0
    %2539 = vmatprep.subr.bf16.mxu0 %v1057
    %2540 = vmatpush1.bf16.msra.mxu0 %v1056
    %2541 = vmatprep.subr.bf16.mxu0 %v1065
    %2542 = vmatpush1.bf16.msra.mxu0 %v1064
    %2543 = vmatprep.subr.bf16.mxu0 %v1073
    %2544 = vmatpush1.bf16.msra.mxu0 %v1072
    %2545 = vmatprep.subr.bf16.mxu0 %v1081
    %2546 = vmatpush1.bf16.msra.mxu0 %v1080
    %2547 = vmatprep.subr.bf16.mxu0 %v1089
    %2548 = vmatpush1.bf16.msra.mxu0 %v1088
    %2549 = vmatprep.subr.bf16.mxu0 %v1097
    %2550 = vmatpush1.bf16.msra.mxu0 %v1096
    %2551 = vmatprep.subr.bf16.mxu0 %v1105
    %2552 = vmatpush1.bf16.msra.mxu0 %v1104
    %2553 = vmatprep.subr.bf16.mxu0 %v1113
    %2554 = vmatpush1.bf16.msra.mxu0 %v1112
    %2555 = vmatprep.subr.bf16.mxu0 %v1121
    %2556 = vmatpush1.bf16.msra.mxu0 %v1120
    %2557 = vmatprep.subr.bf16.mxu0 %v1129
    %2558 = vmatpush1.bf16.msra.mxu0 %v1128
    %2559 = vmatprep.subr.bf16.mxu0 %v1137
    %2560 = vmatpush1.bf16.msra.mxu0 %v1136
    %2561 = vmatprep.subr.bf16.mxu0 %v1145
    %2562 = vmatpush1.bf16.msra.mxu0 %v1144
    %2563 = vmatprep.subr.bf16.mxu0 %v1153
    %2564 = vmatpush1.bf16.msra.mxu0 %v1152
    %2565 = vmatprep.subr.bf16.mxu0 %v1161
    %2566 = vmatpush1.bf16.msra.mxu0 %v1160
    %2567 = vmatprep.subr.bf16.mxu0 %v1169
    %2568 = vmatpush1.bf16.msra.mxu0 %v1168
    %2569 = vmatprep.subr.bf16.mxu0 %v1177
    %2570 = vmatpush1.bf16.msra.mxu0 %v1176
    %2571 = vmatprep.mubr.bf16.mxu0 %v2415
    %2572 = vmatmul.mubr.bf16.gmra.mrb[0].mxu0 %v2414
    %v2573 = vpop.f32.mrb[0].mxu0
    %v2574 = vadd.f32 0.0, %v2573
    %v2575 = vpop.f32.mrb[0].mxu0
    %v2576 = vadd.f32 0.0, %v2575
    %v2577 = vpop.f32.mrb[0].mxu0
    %v2578 = vpop.f32.mrb[0].mxu0
    %2579 = vdwg.mxu0
    %v2580 = vadd.f32 %v433, %v2451
    %v2581 = vadd.f32 %v435, %v2453
    %v2582 = vadd.f32 %v506, %v2492
    %v2583 = vadd.f32 %v508, %v2494
    %v2584 = vadd.f32 %v579, %v2533
    %v2585 = vadd.f32 %v581, %v2535
    %v2586 = vadd.f32 %v652, %v2574
    %v2587 = vadd.f32 %v654, %v2576
    %v2588 = vxor.u32 %v2580, 2147483648
    %v2589 = vxor.u32 %v2581, 2147483648
    %v2590 = vxor.u32 %v2582, 2147483648
    %v2591 = vxor.u32 %v2583, 2147483648
    %v2592 = vxor.u32 %v2584, 2147483648
    %v2593 = vxor.u32 %v2585, 2147483648
    %v2594 = vmul.f32 %v2588, 1.442695
    %v2595 = vpow.pop %v2594
    %v2596 = vmul.f32 %v2589, 1.442695
    %v2597 = vpow.pop %v2596
    %v2598 = vmul.f32 %v2590, 1.442695
    %v2599 = vpow.pop %v2598
    %v2600 = vmul.f32 %v2591, 1.442695
    %v2601 = vpow.pop %v2600
    %v2602 = vmul.f32 %v2592, 1.442695
    %v2603 = vpow.pop %v2602
    %v2604 = vmul.f32 %v2593, 1.442695
    %v2605 = vpow.pop %v2604
    %v2606 = vadd.f32 %v2595, 1.0
    %v2607 = vadd.f32 %v2597, 1.0
    %v2608 = vadd.f32 %v2599, 1.0
    %v2609 = vadd.f32 %v2601, 1.0
    %v2610 = vadd.f32 %v2603, 1.0
    %v2611 = vadd.f32 %v2605, 1.0
    %v2612 = vrcp.pop %v2606
    %v2613 = vmul.f32 1.0, %v2612
    %v2614 = vrcp.pop %v2607
    %v2615 = vmul.f32 1.0, %v2614
    %v2616 = vrcp.pop %v2608
    %v2617 = vmul.f32 1.0, %v2616
    %v2618 = vrcp.pop %v2609
    %v2619 = vmul.f32 1.0, %v2618
    %v2620 = vrcp.pop %v2610
    %v2621 = vmul.f32 1.0, %v2620
    %v2622 = vrcp.pop %v2611
    %v2623 = vmul.f32 1.0, %v2622
    %v2624 = vtanh.pop %v2586
    %v2625 = vtanh.pop %v2587
    %v2626 = vmul.f32 %v2617, %v2408
    %v2627 = vmul.f32 %v2619, %v2409
    %v2628 = vmul.f32 %v2613, %v2624
    %v2629 = vmul.f32 %v2615, %v2625
    %v2630 = vadd.f32 %v2626, %v2628
    %v2631 = vadd.f32 %v2627, %v2629
    %v2632 = vtanh.pop %v2630
    %v2633 = vtanh.pop %v2631
    %v2634 = vmul.f32 %v2621, %v2632
    %v2635 = vmul.f32 %v2623, %v2633
    %v2636 = vpack.c.bf16 %v2634, %v2634
    %v2637 = vpack.c.bf16 %v2635, %v2635
    %2638 = vmatprep.subr.bf16.mxu0 %v1051
    %2639 = vmatpush1.bf16.msra.mxu0 %v1050
    %2640 = vmatprep.subr.bf16.mxu0 %v1059
    %2641 = vmatpush1.bf16.msra.mxu0 %v1058
    %2642 = vmatprep.subr.bf16.mxu0 %v1067
    %2643 = vmatpush1.bf16.msra.mxu0 %v1066
    %2644 = vmatprep.subr.bf16.mxu0 %v1075
    %2645 = vmatpush1.bf16.msra.mxu0 %v1074
    %2646 = vmatprep.subr.bf16.mxu0 %v1083
    %2647 = vmatpush1.bf16.msra.mxu0 %v1082
    %2648 = vmatprep.subr.bf16.mxu0 %v1091
    %2649 = vmatpush1.bf16.msra.mxu0 %v1090
    %2650 = vmatprep.subr.bf16.mxu0 %v1099
    %2651 = vmatpush1.bf16.msra.mxu0 %v1098
    %2652 = vmatprep.subr.bf16.mxu0 %v1107
    %2653 = vmatpush1.bf16.msra.mxu0 %v1106
    %2654 = vmatprep.subr.bf16.mxu0 %v1115
    %2655 = vmatpush1.bf16.msra.mxu0 %v1114
    %2656 = vmatprep.subr.bf16.mxu0 %v1123
    %2657 = vmatpush1.bf16.msra.mxu0 %v1122
    %2658 = vmatprep.subr.bf16.mxu0 %v1131
    %2659 = vmatpush1.bf16.msra.mxu0 %v1130
    %2660 = vmatprep.subr.bf16.mxu0 %v1139
    %2661 = vmatpush1.bf16.msra.mxu0 %v1138
    %2662 = vmatprep.subr.bf16.mxu0 %v1147
    %2663 = vmatpush1.bf16.msra.mxu0 %v1146
    %2664 = vmatprep.subr.bf16.mxu0 %v1155
    %2665 = vmatpush1.bf16.msra.mxu0 %v1154
    %2666 = vmatprep.subr.bf16.mxu0 %v1163
    %2667 = vmatpush1.bf16.msra.mxu0 %v1162
    %2668 = vmatprep.subr.bf16.mxu0 %v1171
    %2669 = vmatpush1.bf16.msra.mxu0 %v1170
    %2670 = vmatprep.mubr.bf16.mxu0 %v2637
    %2671 = vmatmul.mubr.bf16.gmra.mrb[0].mxu0 %v2636
    %v2672 = vpop.f32.mrb[0].mxu0
    %v2673 = vadd.f32 0.0, %v2672
    %v2674 = vpop.f32.mrb[0].mxu0
    %v2675 = vadd.f32 0.0, %v2674
    %v2676 = vpop.f32.mrb[0].mxu0
    %v2677 = vpop.f32.mrb[0].mxu0
    %2678 = vdwg.mxu0
    %2679 = vmatprep.subr.bf16.mxu0 %v1053
    %2680 = vmatpush1.bf16.msra.mxu0 %v1052
    %2681 = vmatprep.subr.bf16.mxu0 %v1061
    %2682 = vmatpush1.bf16.msra.mxu0 %v1060
    %2683 = vmatprep.subr.bf16.mxu0 %v1069
    %2684 = vmatpush1.bf16.msra.mxu0 %v1068
    %2685 = vmatprep.subr.bf16.mxu0 %v1077
    %2686 = vmatpush1.bf16.msra.mxu0 %v1076
    %2687 = vmatprep.subr.bf16.mxu0 %v1085
    %2688 = vmatpush1.bf16.msra.mxu0 %v1084
    %2689 = vmatprep.subr.bf16.mxu0 %v1093
    %2690 = vmatpush1.bf16.msra.mxu0 %v1092
    %2691 = vmatprep.subr.bf16.mxu0 %v1101
    %2692 = vmatpush1.bf16.msra.mxu0 %v1100
    %2693 = vmatprep.subr.bf16.mxu0 %v1109
    %2694 = vmatpush1.bf16.msra.mxu0 %v1108
    %2695 = vmatprep.subr.bf16.mxu0 %v1117
    %2696 = vmatpush1.bf16.msra.mxu0 %v1116
    %2697 = vmatprep.subr.bf16.mxu0 %v1125
    %2698 = vmatpush1.bf16.msra.mxu0 %v1124
    %2699 = vmatprep.subr.bf16.mxu0 %v1133
    %2700 = vmatpush1.bf16.msra.mxu0 %v1132
    %2701 = vmatprep.subr.bf16.mxu0 %v1141
    %2702 = vmatpush1.bf16.msra.mxu0 %v1140
    %2703 = vmatprep.subr.bf16.mxu0 %v1149
    %2704 = vmatpush1.bf16.msra.mxu0 %v1148
    %2705 = vmatprep.subr.bf16.mxu0 %v1157
    %2706 = vmatpush1.bf16.msra.mxu0 %v1156
    %2707 = vmatprep.subr.bf16.mxu0 %v1165
    %2708 = vmatpush1.bf16.msra.mxu0 %v1164
    %2709 = vmatprep.subr.bf16.mxu0 %v1173
    %2710 = vmatpush1.bf16.msra.mxu0 %v1172
    %2711 = vmatprep.mubr.bf16.mxu0 %v2637
    %2712 = vmatmul.mubr.bf16.gmra.mrb[0].mxu0 %v2636
    %v2713 = vpop.f32.mrb[0].mxu0
    %v2714 = vadd.f32 0.0, %v2713
    %v2715 = vpop.f32.mrb[0].mxu0
    %v2716 = vadd.f32 0.0, %v2715
    %v2717 = vpop.f32.mrb[0].mxu0
    %v2718 = vpop.f32.mrb[0].mxu0
    %2719 = vdwg.mxu0
    %2720 = vmatprep.subr.bf16.mxu0 %v1055
    %2721 = vmatpush1.bf16.msra.mxu0 %v1054
    %2722 = vmatprep.subr.bf16.mxu0 %v1063
    %2723 = vmatpush1.bf16.msra.mxu0 %v1062
    %2724 = vmatprep.subr.bf16.mxu0 %v1071
    %2725 = vmatpush1.bf16.msra.mxu0 %v1070
    %2726 = vmatprep.subr.bf16.mxu0 %v1079
    %2727 = vmatpush1.bf16.msra.mxu0 %v1078
    %2728 = vmatprep.subr.bf16.mxu0 %v1087
    %2729 = vmatpush1.bf16.msra.mxu0 %v1086
    %2730 = vmatprep.subr.bf16.mxu0 %v1095
    %2731 = vmatpush1.bf16.msra.mxu0 %v1094
    %2732 = vmatprep.subr.bf16.mxu0 %v1103
    %2733 = vmatpush1.bf16.msra.mxu0 %v1102
    %2734 = vmatprep.subr.bf16.mxu0 %v1111
    %2735 = vmatpush1.bf16.msra.mxu0 %v1110
    %2736 = vmatprep.subr.bf16.mxu0 %v1119
    %2737 = vmatpush1.bf16.msra.mxu0 %v1118
    %2738 = vmatprep.subr.bf16.mxu0 %v1127
    %2739 = vmatpush1.bf16.msra.mxu0 %v1126
    %2740 = vmatprep.subr.bf16.mxu0 %v1135
    %2741 = vmatpush1.bf16.msra.mxu0 %v1134
    %2742 = vmatprep.subr.bf16.mxu0 %v1143
    %2743 = vmatpush1.bf16.msra.mxu0 %v1142
    %2744 = vmatprep.subr.bf16.mxu0 %v1151
    %2745 = vmatpush1.bf16.msra.mxu0 %v1150
    %2746 = vmatprep.subr.bf16.mxu0 %v1159
    %2747 = vmatpush1.bf16.msra.mxu0 %v1158
    %2748 = vmatprep.subr.bf16.mxu0 %v1167
    %2749 = vmatpush1.bf16.msra.mxu0 %v1166
    %2750 = vmatprep.subr.bf16.mxu0 %v1175
    %2751 = vmatpush1.bf16.msra.mxu0 %v1174
    %2752 = vmatprep.mubr.bf16.mxu0 %v2637
    %2753 = vmatmul.mubr.bf16.gmra.mrb[0].mxu0 %v2636
    %v2754 = vpop.f32.mrb[0].mxu0
    %v2755 = vadd.f32 0.0, %v2754
    %v2756 = vpop.f32.mrb[0].mxu0
    %v2757 = vadd.f32 0.0, %v2756
    %v2758 = vpop.f32.mrb[0].mxu0
    %v2759 = vpop.f32.mrb[0].mxu0
    %2760 = vdwg.mxu0
    %2761 = vmatprep.subr.bf16.mxu0 %v1057
    %2762 = vmatpush1.bf16.msra.mxu0 %v1056
    %2763 = vmatprep.subr.bf16.mxu0 %v1065
    %2764 = vmatpush1.bf16.msra.mxu0 %v1064
    %2765 = vmatprep.subr.bf16.mxu0 %v1073
    %2766 = vmatpush1.bf16.msra.mxu0 %v1072
    %2767 = vmatprep.subr.bf16.mxu0 %v1081
    %2768 = vmatpush1.bf16.msra.mxu0 %v1080
    %2769 = vmatprep.subr.bf16.mxu0 %v1089
    %2770 = vmatpush1.bf16.msra.mxu0 %v1088
    %2771 = vmatprep.subr.bf16.mxu0 %v1097
    %2772 = vmatpush1.bf16.msra.mxu0 %v1096
    %2773 = vmatprep.subr.bf16.mxu0 %v1105
    %2774 = vmatpush1.bf16.msra.mxu0 %v1104
    %2775 = vmatprep.subr.bf16.mxu0 %v1113
    %2776 = vmatpush1.bf16.msra.mxu0 %v1112
    %2777 = vmatprep.subr.bf16.mxu0 %v1121
    %2778 = vmatpush1.bf16.msra.mxu0 %v1120
    %2779 = vmatprep.subr.bf16.mxu0 %v1129
    %2780 = vmatpush1.bf16.msra.mxu0 %v1128
    %2781 = vmatprep.subr.bf16.mxu0 %v1137
    %2782 = vmatpush1.bf16.msra.mxu0 %v1136
    %2783 = vmatprep.subr.bf16.mxu0 %v1145
    %2784 = vmatpush1.bf16.msra.mxu0 %v1144
    %2785 = vmatprep.subr.bf16.mxu0 %v1153
    %2786 = vmatpush1.bf16.msra.mxu0 %v1152
    %2787 = vmatprep.subr.bf16.mxu0 %v1161
    %2788 = vmatpush1.bf16.msra.mxu0 %v1160
    %2789 = vmatprep.subr.bf16.mxu0 %v1169
    %2790 = vmatpush1.bf16.msra.mxu0 %v1168
    %2791 = vmatprep.subr.bf16.mxu0 %v1177
    %2792 = vmatpush1.bf16.msra.mxu0 %v1176
    %2793 = vmatprep.mubr.bf16.mxu0 %v2637
    %2794 = vmatmul.mubr.bf16.gmra.mrb[0].mxu0 %v2636
    %v2795 = vpop.f32.mrb[0].mxu0
    %v2796 = vadd.f32 0.0, %v2795
    %v2797 = vpop.f32.mrb[0].mxu0
    %v2798 = vadd.f32 0.0, %v2797
    %v2799 = vpop.f32.mrb[0].mxu0
    %v2800 = vpop.f32.mrb[0].mxu0
    %2801 = vdwg.mxu0
    %v2802 = vadd.f32 %v439, %v2673
    %v2803 = vadd.f32 %v441, %v2675
    %v2804 = vadd.f32 %v512, %v2714
    %v2805 = vadd.f32 %v514, %v2716
    %v2806 = vadd.f32 %v585, %v2755
    %v2807 = vadd.f32 %v587, %v2757
    %v2808 = vadd.f32 %v658, %v2796
    %v2809 = vadd.f32 %v660, %v2798
    %v2810 = vxor.u32 %v2802, 2147483648
    %v2811 = vxor.u32 %v2803, 2147483648
    %v2812 = vxor.u32 %v2804, 2147483648
    %v2813 = vxor.u32 %v2805, 2147483648
    %v2814 = vxor.u32 %v2806, 2147483648
    %v2815 = vxor.u32 %v2807, 2147483648
    %v2816 = vmul.f32 %v2810, 1.442695
    %v2817 = vpow.pop %v2816
    %v2818 = vmul.f32 %v2811, 1.442695
    %v2819 = vpow.pop %v2818
    %v2820 = vmul.f32 %v2812, 1.442695
    %v2821 = vpow.pop %v2820
    %v2822 = vmul.f32 %v2813, 1.442695
    %v2823 = vpow.pop %v2822
    %v2824 = vmul.f32 %v2814, 1.442695
    %v2825 = vpow.pop %v2824
    %v2826 = vmul.f32 %v2815, 1.442695
    %v2827 = vpow.pop %v2826
    %v2828 = vadd.f32 %v2817, 1.0
    %v2829 = vadd.f32 %v2819, 1.0
    %v2830 = vadd.f32 %v2821, 1.0
    %v2831 = vadd.f32 %v2823, 1.0
    %v2832 = vadd.f32 %v2825, 1.0
    %v2833 = vadd.f32 %v2827, 1.0
    %v2834 = vrcp.pop %v2828
    %v2835 = vmul.f32 1.0, %v2834
    %v2836 = vrcp.pop %v2829
    %v2837 = vmul.f32 1.0, %v2836
    %v2838 = vrcp.pop %v2830
    %v2839 = vmul.f32 1.0, %v2838
    %v2840 = vrcp.pop %v2831
    %v2841 = vmul.f32 1.0, %v2840
    %v2842 = vrcp.pop %v2832
    %v2843 = vmul.f32 1.0, %v2842
    %v2844 = vrcp.pop %v2833
    %v2845 = vmul.f32 1.0, %v2844
    %v2846 = vtanh.pop %v2808
    %v2847 = vtanh.pop %v2809
    %v2848 = vmul.f32 %v2839, %v2630
    %v2849 = vmul.f32 %v2841, %v2631
    %v2850 = vmul.f32 %v2835, %v2846
    %v2851 = vmul.f32 %v2837, %v2847
    %v2852 = vadd.f32 %v2848, %v2850
    %v2853 = vadd.f32 %v2849, %v2851
    %v2854 = vtanh.pop %v2852
    %v2855 = vtanh.pop %v2853
    %v2856 = vmul.f32 %v2843, %v2854
    %v2857 = vmul.f32 %v2845, %v2855
    %v2858 = vpack.c.bf16 %v2856, %v2856
    %v2859 = vpack.c.bf16 %v2857, %v2857
    %2860 = vmatprep.subr.bf16.mxu0 %v1051
    %2861 = vmatpush1.bf16.msra.mxu0 %v1050
    %2862 = vmatprep.subr.bf16.mxu0 %v1059
    %2863 = vmatpush1.bf16.msra.mxu0 %v1058
    %2864 = vmatprep.subr.bf16.mxu0 %v1067
    %2865 = vmatpush1.bf16.msra.mxu0 %v1066
    %2866 = vmatprep.subr.bf16.mxu0 %v1075
    %2867 = vmatpush1.bf16.msra.mxu0 %v1074
    %2868 = vmatprep.subr.bf16.mxu0 %v1083
    %2869 = vmatpush1.bf16.msra.mxu0 %v1082
    %2870 = vmatprep.subr.bf16.mxu0 %v1091
    %2871 = vmatpush1.bf16.msra.mxu0 %v1090
    %2872 = vmatprep.subr.bf16.mxu0 %v1099
    %2873 = vmatpush1.bf16.msra.mxu0 %v1098
    %2874 = vmatprep.subr.bf16.mxu0 %v1107
    %2875 = vmatpush1.bf16.msra.mxu0 %v1106
    %2876 = vmatprep.subr.bf16.mxu0 %v1115
    %2877 = vmatpush1.bf16.msra.mxu0 %v1114
    %2878 = vmatprep.subr.bf16.mxu0 %v1123
    %2879 = vmatpush1.bf16.msra.mxu0 %v1122
    %2880 = vmatprep.subr.bf16.mxu0 %v1131
    %2881 = vmatpush1.bf16.msra.mxu0 %v1130
    %2882 = vmatprep.subr.bf16.mxu0 %v1139
    %2883 = vmatpush1.bf16.msra.mxu0 %v1138
    %2884 = vmatprep.subr.bf16.mxu0 %v1147
    %2885 = vmatpush1.bf16.msra.mxu0 %v1146
    %2886 = vmatprep.subr.bf16.mxu0 %v1155
    %2887 = vmatpush1.bf16.msra.mxu0 %v1154
    %2888 = vmatprep.subr.bf16.mxu0 %v1163
    %2889 = vmatpush1.bf16.msra.mxu0 %v1162
    %2890 = vmatprep.subr.bf16.mxu0 %v1171
    %2891 = vmatpush1.bf16.msra.mxu0 %v1170
    %2892 = vmatprep.mubr.bf16.mxu0 %v2859
    %2893 = vmatmul.mubr.bf16.gmra.mrb[0].mxu0 %v2858
    %v2894 = vpop.f32.mrb[0].mxu0
    %v2895 = vadd.f32 0.0, %v2894
    %v2896 = vpop.f32.mrb[0].mxu0
    %v2897 = vadd.f32 0.0, %v2896
    %v2898 = vpop.f32.mrb[0].mxu0
    %v2899 = vpop.f32.mrb[0].mxu0
    %2900 = vdwg.mxu0
    %2901 = vmatprep.subr.bf16.mxu0 %v1053
    %2902 = vmatpush1.bf16.msra.mxu0 %v1052
    %2903 = vmatprep.subr.bf16.mxu0 %v1061
    %2904 = vmatpush1.bf16.msra.mxu0 %v1060
    %2905 = vmatprep.subr.bf16.mxu0 %v1069
    %2906 = vmatpush1.bf16.msra.mxu0 %v1068
    %2907 = vmatprep.subr.bf16.mxu0 %v1077
    %2908 = vmatpush1.bf16.msra.mxu0 %v1076
    %2909 = vmatprep.subr.bf16.mxu0 %v1085
    %2910 = vmatpush1.bf16.msra.mxu0 %v1084
    %2911 = vmatprep.subr.bf16.mxu0 %v1093
    %2912 = vmatpush1.bf16.msra.mxu0 %v1092
    %2913 = vmatprep.subr.bf16.mxu0 %v1101
    %2914 = vmatpush1.bf16.msra.mxu0 %v1100
    %2915 = vmatprep.subr.bf16.mxu0 %v1109
    %2916 = vmatpush1.bf16.msra.mxu0 %v1108
    %2917 = vmatprep.subr.bf16.mxu0 %v1117
    %2918 = vmatpush1.bf16.msra.mxu0 %v1116
    %2919 = vmatprep.subr.bf16.mxu0 %v1125
    %2920 = vmatpush1.bf16.msra.mxu0 %v1124
    %2921 = vmatprep.subr.bf16.mxu0 %v1133
    %2922 = vmatpush1.bf16.msra.mxu0 %v1132
    %2923 = vmatprep.subr.bf16.mxu0 %v1141
    %2924 = vmatpush1.bf16.msra.mxu0 %v1140
    %2925 = vmatprep.subr.bf16.mxu0 %v1149
    %2926 = vmatpush1.bf16.msra.mxu0 %v1148
    %2927 = vmatprep.subr.bf16.mxu0 %v1157
    %2928 = vmatpush1.bf16.msra.mxu0 %v1156
    %2929 = vmatprep.subr.bf16.mxu0 %v1165
    %2930 = vmatpush1.bf16.msra.mxu0 %v1164
    %2931 = vmatprep.subr.bf16.mxu0 %v1173
    %2932 = vmatpush1.bf16.msra.mxu0 %v1172
    %2933 = vmatprep.mubr.bf16.mxu0 %v2859
    %2934 = vmatmul.mubr.bf16.gmra.mrb[0].mxu0 %v2858
    %v2935 = vpop.f32.mrb[0].mxu0
    %v2936 = vadd.f32 0.0, %v2935
    %v2937 = vpop.f32.mrb[0].mxu0
    %v2938 = vadd.f32 0.0, %v2937
    %v2939 = vpop.f32.mrb[0].mxu0
    %v2940 = vpop.f32.mrb[0].mxu0
    %2941 = vdwg.mxu0
    %2942 = vmatprep.subr.bf16.mxu0 %v1055
    %2943 = vmatpush1.bf16.msra.mxu0 %v1054
    %2944 = vmatprep.subr.bf16.mxu0 %v1063
    %2945 = vmatpush1.bf16.msra.mxu0 %v1062
    %2946 = vmatprep.subr.bf16.mxu0 %v1071
    %2947 = vmatpush1.bf16.msra.mxu0 %v1070
    %2948 = vmatprep.subr.bf16.mxu0 %v1079
    %2949 = vmatpush1.bf16.msra.mxu0 %v1078
    %2950 = vmatprep.subr.bf16.mxu0 %v1087
    %2951 = vmatpush1.bf16.msra.mxu0 %v1086
    %2952 = vmatprep.subr.bf16.mxu0 %v1095
    %2953 = vmatpush1.bf16.msra.mxu0 %v1094
    %2954 = vmatprep.subr.bf16.mxu0 %v1103
    %2955 = vmatpush1.bf16.msra.mxu0 %v1102
    %2956 = vmatprep.subr.bf16.mxu0 %v1111
    %2957 = vmatpush1.bf16.msra.mxu0 %v1110
    %2958 = vmatprep.subr.bf16.mxu0 %v1119
    %2959 = vmatpush1.bf16.msra.mxu0 %v1118
    %2960 = vmatprep.subr.bf16.mxu0 %v1127
    %2961 = vmatpush1.bf16.msra.mxu0 %v1126
    %2962 = vmatprep.subr.bf16.mxu0 %v1135
    %2963 = vmatpush1.bf16.msra.mxu0 %v1134
    %2964 = vmatprep.subr.bf16.mxu0 %v1143
    %2965 = vmatpush1.bf16.msra.mxu0 %v1142
    %2966 = vmatprep.subr.bf16.mxu0 %v1151
    %2967 = vmatpush1.bf16.msra.mxu0 %v1150
    %2968 = vmatprep.subr.bf16.mxu0 %v1159
    %2969 = vmatpush1.bf16.msra.mxu0 %v1158
    %2970 = vmatprep.subr.bf16.mxu0 %v1167
    %2971 = vmatpush1.bf16.msra.mxu0 %v1166
    %2972 = vmatprep.subr.bf16.mxu0 %v1175
    %2973 = vmatpush1.bf16.msra.mxu0 %v1174
    %2974 = vmatprep.mubr.bf16.mxu0 %v2859
    %2975 = vmatmul.mubr.bf16.gmra.mrb[0].mxu0 %v2858
    %v2976 = vpop.f32.mrb[0].mxu0
    %v2977 = vadd.f32 0.0, %v2976
    %v2978 = vpop.f32.mrb[0].mxu0
    %v2979 = vadd.f32 0.0, %v2978
    %v2980 = vpop.f32.mrb[0].mxu0
    %v2981 = vpop.f32.mrb[0].mxu0
    %2982 = vdwg.mxu0
    %2983 = vmatprep.subr.bf16.mxu0 %v1057
    %2984 = vmatpush1.bf16.msra.mxu0 %v1056
    %2985 = vmatprep.subr.bf16.mxu0 %v1065
    %2986 = vmatpush1.bf16.msra.mxu0 %v1064
    %2987 = vmatprep.subr.bf16.mxu0 %v1073
    %2988 = vmatpush1.bf16.msra.mxu0 %v1072
    %2989 = vmatprep.subr.bf16.mxu0 %v1081
    %2990 = vmatpush1.bf16.msra.mxu0 %v1080
    %2991 = vmatprep.subr.bf16.mxu0 %v1089
    %2992 = vmatpush1.bf16.msra.mxu0 %v1088
    %2993 = vmatprep.subr.bf16.mxu0 %v1097
    %2994 = vmatpush1.bf16.msra.mxu0 %v1096
    %2995 = vmatprep.subr.bf16.mxu0 %v1105
    %2996 = vmatpush1.bf16.msra.mxu0 %v1104
    %2997 = vmatprep.subr.bf16.mxu0 %v1113
    %2998 = vmatpush1.bf16.msra.mxu0 %v1112
    %2999 = vmatprep.subr.bf16.mxu0 %v1121
    %3000 = vmatpush1.bf16.msra.mxu0 %v1120
    %3001 = vmatprep.subr.bf16.mxu0 %v1129
    %3002 = vmatpush1.bf16.msra.mxu0 %v1128
    %3003 = vmatprep.subr.bf16.mxu0 %v1137
    %3004 = vmatpush1.bf16.msra.mxu0 %v1136
    %3005 = vmatprep.subr.bf16.mxu0 %v1145
    %3006 = vmatpush1.bf16.msra.mxu0 %v1144
    %3007 = vmatprep.subr.bf16.mxu0 %v1153
    %3008 = vmatpush1.bf16.msra.mxu0 %v1152
    %3009 = vmatprep.subr.bf16.mxu0 %v1161
    %3010 = vmatpush1.bf16.msra.mxu0 %v1160
    %3011 = vmatprep.subr.bf16.mxu0 %v1169
    %3012 = vmatpush1.bf16.msra.mxu0 %v1168
    %3013 = vmatprep.subr.bf16.mxu0 %v1177
    %3014 = vmatpush1.bf16.msra.mxu0 %v1176
    %3015 = vmatprep.mubr.bf16.mxu0 %v2859
    %3016 = vmatmul.mubr.bf16.gmra.mrb[0].mxu0 %v2858
    %v3017 = vpop.f32.mrb[0].mxu0
    %v3018 = vadd.f32 0.0, %v3017
    %v3019 = vpop.f32.mrb[0].mxu0
    %v3020 = vadd.f32 0.0, %v3019
    %v3021 = vpop.f32.mrb[0].mxu0
    %v3022 = vpop.f32.mrb[0].mxu0
    %3023 = vdwg.mxu0
    %v3024 = vadd.f32 %v443, %v2895
    %v3025 = vadd.f32 %v445, %v2897
    %v3026 = vadd.f32 %v516, %v2936
    %v3027 = vadd.f32 %v518, %v2938
    %v3028 = vadd.f32 %v589, %v2977
    %v3029 = vadd.f32 %v591, %v2979
    %v3030 = vadd.f32 %v662, %v3018
    %v3031 = vadd.f32 %v664, %v3020
    %v3032 = vxor.u32 %v3024, 2147483648
    %v3033 = vxor.u32 %v3025, 2147483648
    %v3034 = vxor.u32 %v3026, 2147483648
    %v3035 = vxor.u32 %v3027, 2147483648
    %v3036 = vxor.u32 %v3028, 2147483648
    %v3037 = vxor.u32 %v3029, 2147483648
    %v3038 = vmul.f32 %v3032, 1.442695
    %v3039 = vpow.pop %v3038
    %v3040 = vmul.f32 %v3033, 1.442695
    %v3041 = vpow.pop %v3040
    %v3042 = vmul.f32 %v3034, 1.442695
    %v3043 = vpow.pop %v3042
    %v3044 = vmul.f32 %v3035, 1.442695
    %v3045 = vpow.pop %v3044
    %v3046 = vmul.f32 %v3036, 1.442695
    %v3047 = vpow.pop %v3046
    %v3048 = vmul.f32 %v3037, 1.442695
    %v3049 = vpow.pop %v3048
    %v3050 = vadd.f32 %v3039, 1.0
    %v3051 = vadd.f32 %v3041, 1.0
    %v3052 = vadd.f32 %v3043, 1.0
    %v3053 = vadd.f32 %v3045, 1.0
    %v3054 = vadd.f32 %v3047, 1.0
    %v3055 = vadd.f32 %v3049, 1.0
    %v3056 = vrcp.pop %v3050
    %v3057 = vmul.f32 1.0, %v3056
    %v3058 = vrcp.pop %v3051
    %v3059 = vmul.f32 1.0, %v3058
    %v3060 = vrcp.pop %v3052
    %v3061 = vmul.f32 1.0, %v3060
    %v3062 = vrcp.pop %v3053
    %v3063 = vmul.f32 1.0, %v3062
    %v3064 = vrcp.pop %v3054
    %v3065 = vmul.f32 1.0, %v3064
    %v3066 = vrcp.pop %v3055
    %v3067 = vmul.f32 1.0, %v3066
    %v3068 = vtanh.pop %v3030
    %v3069 = vtanh.pop %v3031
    %v3070 = vmul.f32 %v3061, %v2852
    %v3071 = vmul.f32 %v3063, %v2853
    %v3072 = vmul.f32 %v3057, %v3068
    %v3073 = vmul.f32 %v3059, %v3069
    %v3074 = vadd.f32 %v3070, %v3072
    %v3075 = vadd.f32 %v3071, %v3073
    %v3076 = vtanh.pop %v3074
    %v3077 = vtanh.pop %v3075
    %v3078 = vmul.f32 %v3065, %v3076
    %v3079 = vmul.f32 %v3067, %v3077
    %v3080 = vpack.c.bf16 %v1746, %v1524
    %v3081 = vpack.c.bf16 %v1747, %v1525
    %v3082 = vpack.c.bf16 %v2190, %v1968
    %v3083 = vpack.c.bf16 %v2191, %v1969
    %v3084 = vpack.c.bf16 %v2634, %v2412
    %v3085 = vpack.c.bf16 %v2635, %v2413
    %v3086 = vpack.c.bf16 %v3078, %v2856
    %v3087 = vpack.c.bf16 %v3079, %v2857
    %s3088 = smul.u32 4, 64
    %s3089 = smul.u32 %s3088, 8
    %s3090 = sshll.u32 %s3089, 4
    %3091 = dma.done [#allocation3], %s3090
    %v3092 = vld [vmem:[#allocation2] sm:$0xff]
    %v3093 = vld [vmem:[#allocation2 + $0x8] sm:$0xff]
    %v3094 = vld [vmem:[#allocation2 + $0x10] sm:$0xff]
    %v3095 = vld [vmem:[#allocation2 + $0x18] sm:$0xff]
    %v3096 = vld [vmem:[#allocation2 + $0x20] sm:$0xff]
    %v3097 = vld [vmem:[#allocation2 + $0x28] sm:$0xff]
    %v3098 = vld [vmem:[#allocation2 + $0x30] sm:$0xff]
    %v3099 = vld [vmem:[#allocation2 + $0x38] sm:$0xff]
    %v3100 = vld [vmem:[#allocation2 + $0x40] sm:$0xff]
    %v3101 = vld [vmem:[#allocation2 + $0x48] sm:$0xff]
    %v3102 = vld [vmem:[#allocation2 + $0x50] sm:$0xff]
    %v3103 = vld [vmem:[#allocation2 + $0x58] sm:$0xff]
    %v3104 = vld [vmem:[#allocation2 + $0x60] sm:$0xff]
    %v3105 = vld [vmem:[#allocation2 + $0x68] sm:$0xff]
    %v3106 = vld [vmem:[#allocation2 + $0x70] sm:$0xff]
    %v3107 = vld [vmem:[#allocation2 + $0x78] sm:$0xff]
    %v3108 = vld [vmem:[#allocation2 + $0x80] sm:$0xff]
    %v3109 = vld [vmem:[#allocation2 + $0x88] sm:$0xff]
    %v3110 = vld [vmem:[#allocation2 + $0x90] sm:$0xff]
    %v3111 = vld [vmem:[#allocation2 + $0x98] sm:$0xff]
    %v3112 = vld [vmem:[#allocation2 + $0xa0] sm:$0xff]
    %v3113 = vld [vmem:[#allocation2 + $0xa8] sm:$0xff]
    %v3114 = vld [vmem:[#allocation2 + $0xb0] sm:$0xff]
    %v3115 = vld [vmem:[#allocation2 + $0xb8] sm:$0xff]
    %v3116 = vld [vmem:[#allocation2 + $0xc0] sm:$0xff]
    %v3117 = vld [vmem:[#allocation2 + $0xc8] sm:$0xff]
    %v3118 = vld [vmem:[#allocation2 + $0xd0] sm:$0xff]
    %v3119 = vld [vmem:[#allocation2 + $0xd8] sm:$0xff]
    %v3120 = vld [vmem:[#allocation2 + $0xe0] sm:$0xff]
    %v3121 = vld [vmem:[#allocation2 + $0xe8] sm:$0xff]
    %v3122 = vld [vmem:[#allocation2 + $0xf0] sm:$0xff]
    %v3123 = vld [vmem:[#allocation2 + $0xf8] sm:$0xff]
    %v3124 = vld [vmem:[#allocation2 + $0x100] sm:$0xff]
    %v3125 = vld [vmem:[#allocation2 + $0x108] sm:$0xff]
    %v3126 = vld [vmem:[#allocation2 + $0x110] sm:$0xff]
    %v3127 = vld [vmem:[#allocation2 + $0x118] sm:$0xff]
    %v3128 = vld [vmem:[#allocation2 + $0x120] sm:$0xff]
    %v3129 = vld [vmem:[#allocation2 + $0x128] sm:$0xff]
    %v3130 = vld [vmem:[#allocation2 + $0x130] sm:$0xff]
    %v3131 = vld [vmem:[#allocation2 + $0x138] sm:$0xff]
    %v3132 = vld [vmem:[#allocation2 + $0x140] sm:$0xff]
    %v3133 = vld [vmem:[#allocation2 + $0x148] sm:$0xff]
    %v3134 = vld [vmem:[#allocation2 + $0x150] sm:$0xff]
    %v3135 = vld [vmem:[#allocation2 + $0x158] sm:$0xff]
    %v3136 = vld [vmem:[#allocation2 + $0x160] sm:$0xff]
    %v3137 = vld [vmem:[#allocation2 + $0x168] sm:$0xff]
    %v3138 = vld [vmem:[#allocation2 + $0x170] sm:$0xff]
    %v3139 = vld [vmem:[#allocation2 + $0x178] sm:$0xff]
    %v3140 = vld [vmem:[#allocation2 + $0x180] sm:$0xff]
    %v3141 = vld [vmem:[#allocation2 + $0x188] sm:$0xff]
    %v3142 = vld [vmem:[#allocation2 + $0x190] sm:$0xff]
    %v3143 = vld [vmem:[#allocation2 + $0x198] sm:$0xff]
    %v3144 = vld [vmem:[#allocation2 + $0x1a0] sm:$0xff]
    %v3145 = vld [vmem:[#allocation2 + $0x1a8] sm:$0xff]
    %v3146 = vld [vmem:[#allocation2 + $0x1b0] sm:$0xff]
    %v3147 = vld [vmem:[#allocation2 + $0x1b8] sm:$0xff]
    %v3148 = vld [vmem:[#allocation2 + $0x1c0] sm:$0xff]
    %v3149 = vld [vmem:[#allocation2 + $0x1c8] sm:$0xff]
    %v3150 = vld [vmem:[#allocation2 + $0x1d0] sm:$0xff]
    %v3151 = vld [vmem:[#allocation2 + $0x1d8] sm:$0xff]
    %v3152 = vld [vmem:[#allocation2 + $0x1e0] sm:$0xff]
    %v3153 = vld [vmem:[#allocation2 + $0x1e8] sm:$0xff]
    %v3154 = vld [vmem:[#allocation2 + $0x1f0] sm:$0xff]
    %v3155 = vld [vmem:[#allocation2 + $0x1f8] sm:$0xff]
    %v3156 = vld [vmem:[#allocation2 + $0x200] sm:$0xff]
    %v3157 = vld [vmem:[#allocation2 + $0x208] sm:$0xff]
    %v3158 = vld [vmem:[#allocation2 + $0x210] sm:$0xff]
    %v3159 = vld [vmem:[#allocation2 + $0x218] sm:$0xff]
    %v3160 = vld [vmem:[#allocation2 + $0x220] sm:$0xff]
    %v3161 = vld [vmem:[#allocation2 + $0x228] sm:$0xff]
    %v3162 = vld [vmem:[#allocation2 + $0x230] sm:$0xff]
    %v3163 = vld [vmem:[#allocation2 + $0x238] sm:$0xff]
    %v3164 = vld [vmem:[#allocation2 + $0x240] sm:$0xff]
    %v3165 = vld [vmem:[#allocation2 + $0x248] sm:$0xff]
    %v3166 = vld [vmem:[#allocation2 + $0x250] sm:$0xff]
    %v3167 = vld [vmem:[#allocation2 + $0x258] sm:$0xff]
    %v3168 = vld [vmem:[#allocation2 + $0x260] sm:$0xff]
    %v3169 = vld [vmem:[#allocation2 + $0x268] sm:$0xff]
    %v3170 = vld [vmem:[#allocation2 + $0x270] sm:$0xff]
    %v3171 = vld [vmem:[#allocation2 + $0x278] sm:$0xff]
    %v3172 = vld [vmem:[#allocation2 + $0x280] sm:$0xff]
    %v3173 = vld [vmem:[#allocation2 + $0x288] sm:$0xff]
    %v3174 = vld [vmem:[#allocation2 + $0x290] sm:$0xff]
    %v3175 = vld [vmem:[#allocation2 + $0x298] sm:$0xff]
    %v3176 = vld [vmem:[#allocation2 + $0x2a0] sm:$0xff]
    %v3177 = vld [vmem:[#allocation2 + $0x2a8] sm:$0xff]
    %v3178 = vld [vmem:[#allocation2 + $0x2b0] sm:$0xff]
    %v3179 = vld [vmem:[#allocation2 + $0x2b8] sm:$0xff]
    %v3180 = vld [vmem:[#allocation2 + $0x2c0] sm:$0xff]
    %v3181 = vld [vmem:[#allocation2 + $0x2c8] sm:$0xff]
    %v3182 = vld [vmem:[#allocation2 + $0x2d0] sm:$0xff]
    %v3183 = vld [vmem:[#allocation2 + $0x2d8] sm:$0xff]
    %v3184 = vld [vmem:[#allocation2 + $0x2e0] sm:$0xff]
    %v3185 = vld [vmem:[#allocation2 + $0x2e8] sm:$0xff]
    %v3186 = vld [vmem:[#allocation2 + $0x2f0] sm:$0xff]
    %v3187 = vld [vmem:[#allocation2 + $0x2f8] sm:$0xff]
    %v3188 = vld [vmem:[#allocation2 + $0x300] sm:$0xff]
    %v3189 = vld [vmem:[#allocation2 + $0x308] sm:$0xff]
    %v3190 = vld [vmem:[#allocation2 + $0x310] sm:$0xff]
    %v3191 = vld [vmem:[#allocation2 + $0x318] sm:$0xff]
    %v3192 = vld [vmem:[#allocation2 + $0x320] sm:$0xff]
    %v3193 = vld [vmem:[#allocation2 + $0x328] sm:$0xff]
    %v3194 = vld [vmem:[#allocation2 + $0x330] sm:$0xff]
    %v3195 = vld [vmem:[#allocation2 + $0x338] sm:$0xff]
    %v3196 = vld [vmem:[#allocation2 + $0x340] sm:$0xff]
    %v3197 = vld [vmem:[#allocation2 + $0x348] sm:$0xff]
    %v3198 = vld [vmem:[#allocation2 + $0x350] sm:$0xff]
    %v3199 = vld [vmem:[#allocation2 + $0x358] sm:$0xff]
    %v3200 = vld [vmem:[#allocation2 + $0x360] sm:$0xff]
    %v3201 = vld [vmem:[#allocation2 + $0x368] sm:$0xff]
    %v3202 = vld [vmem:[#allocation2 + $0x370] sm:$0xff]
    %v3203 = vld [vmem:[#allocation2 + $0x378] sm:$0xff]
    %v3204 = vld [vmem:[#allocation2 + $0x380] sm:$0xff]
    %v3205 = vld [vmem:[#allocation2 + $0x388] sm:$0xff]
    %v3206 = vld [vmem:[#allocation2 + $0x390] sm:$0xff]
    %v3207 = vld [vmem:[#allocation2 + $0x398] sm:$0xff]
    %v3208 = vld [vmem:[#allocation2 + $0x3a0] sm:$0xff]
    %v3209 = vld [vmem:[#allocation2 + $0x3a8] sm:$0xff]
    %v3210 = vld [vmem:[#allocation2 + $0x3b0] sm:$0xff]
    %v3211 = vld [vmem:[#allocation2 + $0x3b8] sm:$0xff]
    %v3212 = vld [vmem:[#allocation2 + $0x3c0] sm:$0xff]
    %v3213 = vld [vmem:[#allocation2 + $0x3c8] sm:$0xff]
    %v3214 = vld [vmem:[#allocation2 + $0x3d0] sm:$0xff]
    %v3215 = vld [vmem:[#allocation2 + $0x3d8] sm:$0xff]
    %v3216 = vld [vmem:[#allocation2 + $0x3e0] sm:$0xff]
    %v3217 = vld [vmem:[#allocation2 + $0x3e8] sm:$0xff]
    %v3218 = vld [vmem:[#allocation2 + $0x3f0] sm:$0xff]
    %v3219 = vld [vmem:[#allocation2 + $0x3f8] sm:$0xff]
    %v3220 = vld [vmem:[#allocation2 + $0x400] sm:$0xff]
    %v3221 = vld [vmem:[#allocation2 + $0x408] sm:$0xff]
    %v3222 = vld [vmem:[#allocation2 + $0x410] sm:$0xff]
    %v3223 = vld [vmem:[#allocation2 + $0x418] sm:$0xff]
    %v3224 = vld [vmem:[#allocation2 + $0x420] sm:$0xff]
    %v3225 = vld [vmem:[#allocation2 + $0x428] sm:$0xff]
    %v3226 = vld [vmem:[#allocation2 + $0x430] sm:$0xff]
    %v3227 = vld [vmem:[#allocation2 + $0x438] sm:$0xff]
    %v3228 = vld [vmem:[#allocation2 + $0x440] sm:$0xff]
    %v3229 = vld [vmem:[#allocation2 + $0x448] sm:$0xff]
    %v3230 = vld [vmem:[#allocation2 + $0x450] sm:$0xff]
    %v3231 = vld [vmem:[#allocation2 + $0x458] sm:$0xff]
    %v3232 = vld [vmem:[#allocation2 + $0x460] sm:$0xff]
    %v3233 = vld [vmem:[#allocation2 + $0x468] sm:$0xff]
    %v3234 = vld [vmem:[#allocation2 + $0x470] sm:$0xff]
    %v3235 = vld [vmem:[#allocation2 + $0x478] sm:$0xff]
    %v3236 = vld [vmem:[#allocation2 + $0x480] sm:$0xff]
    %v3237 = vld [vmem:[#allocation2 + $0x488] sm:$0xff]
    %v3238 = vld [vmem:[#allocation2 + $0x490] sm:$0xff]
    %v3239 = vld [vmem:[#allocation2 + $0x498] sm:$0xff]
    %v3240 = vld [vmem:[#allocation2 + $0x4a0] sm:$0xff]
    %v3241 = vld [vmem:[#allocation2 + $0x4a8] sm:$0xff]
    %v3242 = vld [vmem:[#allocation2 + $0x4b0] sm:$0xff]
    %v3243 = vld [vmem:[#allocation2 + $0x4b8] sm:$0xff]
    %v3244 = vld [vmem:[#allocation2 + $0x4c0] sm:$0xff]
    %v3245 = vld [vmem:[#allocation2 + $0x4c8] sm:$0xff]
    %v3246 = vld [vmem:[#allocation2 + $0x4d0] sm:$0xff]
    %v3247 = vld [vmem:[#allocation2 + $0x4d8] sm:$0xff]
    %v3248 = vld [vmem:[#allocation2 + $0x4e0] sm:$0xff]
    %v3249 = vld [vmem:[#allocation2 + $0x4e8] sm:$0xff]
    %v3250 = vld [vmem:[#allocation2 + $0x4f0] sm:$0xff]
    %v3251 = vld [vmem:[#allocation2 + $0x4f8] sm:$0xff]
    %v3252 = vld [vmem:[#allocation2 + $0x500] sm:$0xff]
    %v3253 = vld [vmem:[#allocation2 + $0x508] sm:$0xff]
    %v3254 = vld [vmem:[#allocation2 + $0x510] sm:$0xff]
    %v3255 = vld [vmem:[#allocation2 + $0x518] sm:$0xff]
    %v3256 = vld [vmem:[#allocation2 + $0x520] sm:$0xff]
    %v3257 = vld [vmem:[#allocation2 + $0x528] sm:$0xff]
    %v3258 = vld [vmem:[#allocation2 + $0x530] sm:$0xff]
    %v3259 = vld [vmem:[#allocation2 + $0x538] sm:$0xff]
    %v3260 = vld [vmem:[#allocation2 + $0x540] sm:$0xff]
    %v3261 = vld [vmem:[#allocation2 + $0x548] sm:$0xff]
    %v3262 = vld [vmem:[#allocation2 + $0x550] sm:$0xff]
    %v3263 = vld [vmem:[#allocation2 + $0x558] sm:$0xff]
    %v3264 = vld [vmem:[#allocation2 + $0x560] sm:$0xff]
    %v3265 = vld [vmem:[#allocation2 + $0x568] sm:$0xff]
    %v3266 = vld [vmem:[#allocation2 + $0x570] sm:$0xff]
    %v3267 = vld [vmem:[#allocation2 + $0x578] sm:$0xff]
    %v3268 = vld [vmem:[#allocation2 + $0x580] sm:$0xff]
    %v3269 = vld [vmem:[#allocation2 + $0x588] sm:$0xff]
    %v3270 = vld [vmem:[#allocation2 + $0x590] sm:$0xff]
    %v3271 = vld [vmem:[#allocation2 + $0x598] sm:$0xff]
    %v3272 = vld [vmem:[#allocation2 + $0x5a0] sm:$0xff]
    %v3273 = vld [vmem:[#allocation2 + $0x5a8] sm:$0xff]
    %v3274 = vld [vmem:[#allocation2 + $0x5b0] sm:$0xff]
    %v3275 = vld [vmem:[#allocation2 + $0x5b8] sm:$0xff]
    %v3276 = vld [vmem:[#allocation2 + $0x5c0] sm:$0xff]
    %v3277 = vld [vmem:[#allocation2 + $0x5c8] sm:$0xff]
    %v3278 = vld [vmem:[#allocation2 + $0x5d0] sm:$0xff]
    %v3279 = vld [vmem:[#allocation2 + $0x5d8] sm:$0xff]
    %v3280 = vld [vmem:[#allocation2 + $0x5e0] sm:$0xff]
    %v3281 = vld [vmem:[#allocation2 + $0x5e8] sm:$0xff]
    %v3282 = vld [vmem:[#allocation2 + $0x5f0] sm:$0xff]
    %v3283 = vld [vmem:[#allocation2 + $0x5f8] sm:$0xff]
    %v3284 = vld [vmem:[#allocation2 + $0x600] sm:$0xff]
    %v3285 = vld [vmem:[#allocation2 + $0x608] sm:$0xff]
    %v3286 = vld [vmem:[#allocation2 + $0x610] sm:$0xff]
    %v3287 = vld [vmem:[#allocation2 + $0x618] sm:$0xff]
    %v3288 = vld [vmem:[#allocation2 + $0x620] sm:$0xff]
    %v3289 = vld [vmem:[#allocation2 + $0x628] sm:$0xff]
    %v3290 = vld [vmem:[#allocation2 + $0x630] sm:$0xff]
    %v3291 = vld [vmem:[#allocation2 + $0x638] sm:$0xff]
    %v3292 = vld [vmem:[#allocation2 + $0x640] sm:$0xff]
    %v3293 = vld [vmem:[#allocation2 + $0x648] sm:$0xff]
    %v3294 = vld [vmem:[#allocation2 + $0x650] sm:$0xff]
    %v3295 = vld [vmem:[#allocation2 + $0x658] sm:$0xff]
    %v3296 = vld [vmem:[#allocation2 + $0x660] sm:$0xff]
    %v3297 = vld [vmem:[#allocation2 + $0x668] sm:$0xff]
    %v3298 = vld [vmem:[#allocation2 + $0x670] sm:$0xff]
    %v3299 = vld [vmem:[#allocation2 + $0x678] sm:$0xff]
    %v3300 = vld [vmem:[#allocation2 + $0x680] sm:$0xff]
    %v3301 = vld [vmem:[#allocation2 + $0x688] sm:$0xff]
    %v3302 = vld [vmem:[#allocation2 + $0x690] sm:$0xff]
    %v3303 = vld [vmem:[#allocation2 + $0x698] sm:$0xff]
    %v3304 = vld [vmem:[#allocation2 + $0x6a0] sm:$0xff]
    %v3305 = vld [vmem:[#allocation2 + $0x6a8] sm:$0xff]
    %v3306 = vld [vmem:[#allocation2 + $0x6b0] sm:$0xff]
    %v3307 = vld [vmem:[#allocation2 + $0x6b8] sm:$0xff]
    %v3308 = vld [vmem:[#allocation2 + $0x6c0] sm:$0xff]
    %v3309 = vld [vmem:[#allocation2 + $0x6c8] sm:$0xff]
    %v3310 = vld [vmem:[#allocation2 + $0x6d0] sm:$0xff]
    %v3311 = vld [vmem:[#allocation2 + $0x6d8] sm:$0xff]
    %v3312 = vld [vmem:[#allocation2 + $0x6e0] sm:$0xff]
    %v3313 = vld [vmem:[#allocation2 + $0x6e8] sm:$0xff]
    %v3314 = vld [vmem:[#allocation2 + $0x6f0] sm:$0xff]
    %v3315 = vld [vmem:[#allocation2 + $0x6f8] sm:$0xff]
    %v3316 = vld [vmem:[#allocation2 + $0x700] sm:$0xff]
    %v3317 = vld [vmem:[#allocation2 + $0x708] sm:$0xff]
    %v3318 = vld [vmem:[#allocation2 + $0x710] sm:$0xff]
    %v3319 = vld [vmem:[#allocation2 + $0x718] sm:$0xff]
    %v3320 = vld [vmem:[#allocation2 + $0x720] sm:$0xff]
    %v3321 = vld [vmem:[#allocation2 + $0x728] sm:$0xff]
    %v3322 = vld [vmem:[#allocation2 + $0x730] sm:$0xff]
    %v3323 = vld [vmem:[#allocation2 + $0x738] sm:$0xff]
    %v3324 = vld [vmem:[#allocation2 + $0x740] sm:$0xff]
    %v3325 = vld [vmem:[#allocation2 + $0x748] sm:$0xff]
    %v3326 = vld [vmem:[#allocation2 + $0x750] sm:$0xff]
    %v3327 = vld [vmem:[#allocation2 + $0x758] sm:$0xff]
    %v3328 = vld [vmem:[#allocation2 + $0x760] sm:$0xff]
    %v3329 = vld [vmem:[#allocation2 + $0x768] sm:$0xff]
    %v3330 = vld [vmem:[#allocation2 + $0x770] sm:$0xff]
    %v3331 = vld [vmem:[#allocation2 + $0x778] sm:$0xff]
    %v3332 = vld [vmem:[#allocation2 + $0x780] sm:$0xff]
    %v3333 = vld [vmem:[#allocation2 + $0x788] sm:$0xff]
    %v3334 = vld [vmem:[#allocation2 + $0x790] sm:$0xff]
    %v3335 = vld [vmem:[#allocation2 + $0x798] sm:$0xff]
    %v3336 = vld [vmem:[#allocation2 + $0x7a0] sm:$0xff]
    %v3337 = vld [vmem:[#allocation2 + $0x7a8] sm:$0xff]
    %v3338 = vld [vmem:[#allocation2 + $0x7b0] sm:$0xff]
    %v3339 = vld [vmem:[#allocation2 + $0x7b8] sm:$0xff]
    %v3340 = vld [vmem:[#allocation2 + $0x7c0] sm:$0xff]
    %v3341 = vld [vmem:[#allocation2 + $0x7c8] sm:$0xff]
    %v3342 = vld [vmem:[#allocation2 + $0x7d0] sm:$0xff]
    %v3343 = vld [vmem:[#allocation2 + $0x7d8] sm:$0xff]
    %v3344 = vld [vmem:[#allocation2 + $0x7e0] sm:$0xff]
    %v3345 = vld [vmem:[#allocation2 + $0x7e8] sm:$0xff]
    %v3346 = vld [vmem:[#allocation2 + $0x7f0] sm:$0xff]
    %v3347 = vld [vmem:[#allocation2 + $0x7f8] sm:$0xff]
    %v3348 = vld [vmem:[%s4] sm:$0xff]
    %v3350 = vlaneseq
    %v3351 = vshrl.u32 %v3350, 7
    %v3352 = vsub.s32 0, %v3351
    %v3353 = vrot.slane %v3348, %v3352
    %v3354 = vlaneseq
    %v3355 = vshrl.u32 %v3354, 7
    %v3356 = vsub.s32 1, %v3355
    %v3357 = vrot.slane %v3348, %v3356
    %v3358 = vlaneseq
    %v3359 = vshrl.u32 %v3358, 7
    %v3360 = vsub.s32 2, %v3359
    %v3361 = vrot.slane %v3348, %v3360
    %v3362 = vlaneseq
    %v3363 = vshrl.u32 %v3362, 7
    %v3364 = vsub.s32 3, %v3363
    %v3365 = vrot.slane %v3348, %v3364
    %v3366 = vlaneseq
    %v3367 = vshrl.u32 %v3366, 7
    %v3368 = vsub.s32 4, %v3367
    %v3369 = vrot.slane %v3348, %v3368
    %v3370 = vlaneseq
    %v3371 = vshrl.u32 %v3370, 7
    %v3372 = vsub.s32 5, %v3371
    %v3373 = vrot.slane %v3348, %v3372
    %v3374 = vlaneseq
    %v3375 = vshrl.u32 %v3374, 7
    %v3376 = vsub.s32 6, %v3375
    %v3377 = vrot.slane %v3348, %v3376
    %v3378 = vlaneseq
    %v3379 = vshrl.u32 %v3378, 7
    %v3380 = vsub.s32 7, %v3379
    %v3381 = vrot.slane %v3348, %v3380
    %3390 = vmatprep.subr.bf16.mxu0 %v3093
    %3391 = vmatpush1.bf16.msra.mxu0 %v3092
    %3392 = vmatprep.subr.bf16.mxu0 %v3101
    %3393 = vmatpush1.bf16.msra.mxu0 %v3100
    %3394 = vmatprep.subr.bf16.mxu0 %v3109
    %3395 = vmatpush1.bf16.msra.mxu0 %v3108
    %3396 = vmatprep.subr.bf16.mxu0 %v3117
    %3397 = vmatpush1.bf16.msra.mxu0 %v3116
    %3398 = vmatprep.subr.bf16.mxu0 %v3125
    %3399 = vmatpush1.bf16.msra.mxu0 %v3124
    %3400 = vmatprep.subr.bf16.mxu0 %v3133
    %3401 = vmatpush1.bf16.msra.mxu0 %v3132
    %3402 = vmatprep.subr.bf16.mxu0 %v3141
    %3403 = vmatpush1.bf16.msra.mxu0 %v3140
    %3404 = vmatprep.subr.bf16.mxu0 %v3149
    %3405 = vmatpush1.bf16.msra.mxu0 %v3148
    %3406 = vmatprep.subr.bf16.mxu0 %v3157
    %3407 = vmatpush1.bf16.msra.mxu0 %v3156
    %3408 = vmatprep.subr.bf16.mxu0 %v3165
    %3409 = vmatpush1.bf16.msra.mxu0 %v3164
    %3410 = vmatprep.subr.bf16.mxu0 %v3173
    %3411 = vmatpush1.bf16.msra.mxu0 %v3172
    %3412 = vmatprep.subr.bf16.mxu0 %v3181
    %3413 = vmatpush1.bf16.msra.mxu0 %v3180
    %3414 = vmatprep.subr.bf16.mxu0 %v3189
    %3415 = vmatpush1.bf16.msra.mxu0 %v3188
    %3416 = vmatprep.subr.bf16.mxu0 %v3197
    %3417 = vmatpush1.bf16.msra.mxu0 %v3196
    %3418 = vmatprep.subr.bf16.mxu0 %v3205
    %3419 = vmatpush1.bf16.msra.mxu0 %v3204
    %3420 = vmatprep.subr.bf16.mxu0 %v3213
    %3421 = vmatpush1.bf16.msra.mxu0 %v3212
    %3422 = vmatprep.mubr.bf16.mxu0 %v3081
    %3423 = vmatmul.mubr.bf16.gmra.mrb[0].mxu0 %v3080
    %v3424 = vpop.f32.mrb[0].mxu0
    %v3425 = vadd.f32 %v3353, %v3424
    %v3426 = vpop.f32.mrb[0].mxu0
    %v3427 = vadd.f32 %v3357, %v3426
    %v3428 = vpop.f32.mrb[0].mxu0
    %v3429 = vadd.f32 %v3353, %v3428
    %v3430 = vpop.f32.mrb[0].mxu0
    %v3431 = vadd.f32 %v3357, %v3430
    %3432 = vmatprep.mubr.bf16.mxu0 %v3083
    %3433 = vmatmul.mubr.bf16.gmra.mrb[0].mxu0 %v3082
    %v3434 = vpop.f32.mrb[0].mxu0
    %v3435 = vadd.f32 %v3353, %v3434
    %v3436 = vpop.f32.mrb[0].mxu0
    %v3437 = vadd.f32 %v3357, %v3436
    %v3438 = vpop.f32.mrb[0].mxu0
    %v3439 = vadd.f32 %v3353, %v3438
    %v3440 = vpop.f32.mrb[0].mxu0
    %v3441 = vadd.f32 %v3357, %v3440
    %3442 = vmatprep.mubr.bf16.mxu0 %v3085
    %3443 = vmatmul.mubr.bf16.gmra.mrb[0].mxu0 %v3084
    %v3444 = vpop.f32.mrb[0].mxu0
    %v3445 = vadd.f32 %v3353, %v3444
    %v3446 = vpop.f32.mrb[0].mxu0
    %v3447 = vadd.f32 %v3357, %v3446
    %v3448 = vpop.f32.mrb[0].mxu0
    %v3449 = vadd.f32 %v3353, %v3448
    %v3450 = vpop.f32.mrb[0].mxu0
    %v3451 = vadd.f32 %v3357, %v3450
    %3452 = vmatprep.mubr.bf16.mxu0 %v3087
    %3453 = vmatmul.mubr.bf16.gmra.mrb[0].mxu0 %v3086
    %v3454 = vpop.f32.mrb[0].mxu0
    %v3455 = vadd.f32 %v3353, %v3454
    %v3456 = vpop.f32.mrb[0].mxu0
    %v3457 = vadd.f32 %v3357, %v3456
    %v3458 = vpop.f32.mrb[0].mxu0
    %v3459 = vadd.f32 %v3353, %v3458
    %v3460 = vpop.f32.mrb[0].mxu0
    %v3461 = vadd.f32 %v3357, %v3460
    %3462 = vdwg.mxu0
    %3463 = vmatprep.subr.bf16.mxu0 %v3095
    %3464 = vmatpush1.bf16.msra.mxu0 %v3094
    %3465 = vmatprep.subr.bf16.mxu0 %v3103
    %3466 = vmatpush1.bf16.msra.mxu0 %v3102
    %3467 = vmatprep.subr.bf16.mxu0 %v3111
    %3468 = vmatpush1.bf16.msra.mxu0 %v3110
    %3469 = vmatprep.subr.bf16.mxu0 %v3119
    %3470 = vmatpush1.bf16.msra.mxu0 %v3118
    %3471 = vmatprep.subr.bf16.mxu0 %v3127
    %3472 = vmatpush1.bf16.msra.mxu0 %v3126
    %3473 = vmatprep.subr.bf16.mxu0 %v3135
    %3474 = vmatpush1.bf16.msra.mxu0 %v3134
    %3475 = vmatprep.subr.bf16.mxu0 %v3143
    %3476 = vmatpush1.bf16.msra.mxu0 %v3142
    %3477 = vmatprep.subr.bf16.mxu0 %v3151
    %3478 = vmatpush1.bf16.msra.mxu0 %v3150
    %3479 = vmatprep.subr.bf16.mxu0 %v3159
    %3480 = vmatpush1.bf16.msra.mxu0 %v3158
    %3481 = vmatprep.subr.bf16.mxu0 %v3167
    %3482 = vmatpush1.bf16.msra.mxu0 %v3166
    %3483 = vmatprep.subr.bf16.mxu0 %v3175
    %3484 = vmatpush1.bf16.msra.mxu0 %v3174
    %3485 = vmatprep.subr.bf16.mxu0 %v3183
    %3486 = vmatpush1.bf16.msra.mxu0 %v3182
    %3487 = vmatprep.subr.bf16.mxu0 %v3191
    %3488 = vmatpush1.bf16.msra.mxu0 %v3190
    %3489 = vmatprep.subr.bf16.mxu0 %v3199
    %3490 = vmatpush1.bf16.msra.mxu0 %v3198
    %3491 = vmatprep.subr.bf16.mxu0 %v3207
    %3492 = vmatpush1.bf16.msra.mxu0 %v3206
    %3493 = vmatprep.subr.bf16.mxu0 %v3215
    %3494 = vmatpush1.bf16.msra.mxu0 %v3214
    %3495 = vmatprep.mubr.bf16.mxu0 %v3081
    %3496 = vmatmul.mubr.bf16.gmra.mrb[0].mxu0 %v3080
    %v3497 = vpop.f32.mrb[0].mxu0
    %v3498 = vadd.f32 %v3361, %v3497
    %v3499 = vpop.f32.mrb[0].mxu0
    %v3500 = vadd.f32 %v3365, %v3499
    %v3501 = vpop.f32.mrb[0].mxu0
    %v3502 = vadd.f32 %v3361, %v3501
    %v3503 = vpop.f32.mrb[0].mxu0
    %v3504 = vadd.f32 %v3365, %v3503
    %3505 = vmatprep.mubr.bf16.mxu0 %v3083
    %3506 = vmatmul.mubr.bf16.gmra.mrb[0].mxu0 %v3082
    %v3507 = vpop.f32.mrb[0].mxu0
    %v3508 = vadd.f32 %v3361, %v3507
    %v3509 = vpop.f32.mrb[0].mxu0
    %v3510 = vadd.f32 %v3365, %v3509
    %v3511 = vpop.f32.mrb[0].mxu0
    %v3512 = vadd.f32 %v3361, %v3511
    %v3513 = vpop.f32.mrb[0].mxu0
    %v3514 = vadd.f32 %v3365, %v3513
    %3515 = vmatprep.mubr.bf16.mxu0 %v3085
    %3516 = vmatmul.mubr.bf16.gmra.mrb[0].mxu0 %v3084
    %v3517 = vpop.f32.mrb[0].mxu0
    %v3518 = vadd.f32 %v3361, %v3517
    %v3519 = vpop.f32.mrb[0].mxu0
    %v3520 = vadd.f32 %v3365, %v3519
    %v3521 = vpop.f32.mrb[0].mxu0
    %v3522 = vadd.f32 %v3361, %v3521
    %v3523 = vpop.f32.mrb[0].mxu0
    %v3524 = vadd.f32 %v3365, %v3523
    %3525 = vmatprep.mubr.bf16.mxu0 %v3087
    %3526 = vmatmul.mubr.bf16.gmra.mrb[0].mxu0 %v3086
    %v3527 = vpop.f32.mrb[0].mxu0
    %v3528 = vadd.f32 %v3361, %v3527
    %v3529 = vpop.f32.mrb[0].mxu0
    %v3530 = vadd.f32 %v3365, %v3529
    %v3531 = vpop.f32.mrb[0].mxu0
    %v3532 = vadd.f32 %v3361, %v3531
    %v3533 = vpop.f32.mrb[0].mxu0
    %v3534 = vadd.f32 %v3365, %v3533
    %3535 = vdwg.mxu0
    %3536 = vmatprep.subr.bf16.mxu0 %v3097
    %3537 = vmatpush1.bf16.msra.mxu0 %v3096
    %3538 = vmatprep.subr.bf16.mxu0 %v3105
    %3539 = vmatpush1.bf16.msra.mxu0 %v3104
    %3540 = vmatprep.subr.bf16.mxu0 %v3113
    %3541 = vmatpush1.bf16.msra.mxu0 %v3112
    %3542 = vmatprep.subr.bf16.mxu0 %v3121
    %3543 = vmatpush1.bf16.msra.mxu0 %v3120
    %3544 = vmatprep.subr.bf16.mxu0 %v3129
    %3545 = vmatpush1.bf16.msra.mxu0 %v3128
    %3546 = vmatprep.subr.bf16.mxu0 %v3137
    %3547 = vmatpush1.bf16.msra.mxu0 %v3136
    %3548 = vmatprep.subr.bf16.mxu0 %v3145
    %3549 = vmatpush1.bf16.msra.mxu0 %v3144
    %3550 = vmatprep.subr.bf16.mxu0 %v3153
    %3551 = vmatpush1.bf16.msra.mxu0 %v3152
    %3552 = vmatprep.subr.bf16.mxu0 %v3161
    %3553 = vmatpush1.bf16.msra.mxu0 %v3160
    %3554 = vmatprep.subr.bf16.mxu0 %v3169
    %3555 = vmatpush1.bf16.msra.mxu0 %v3168
    %3556 = vmatprep.subr.bf16.mxu0 %v3177
    %3557 = vmatpush1.bf16.msra.mxu0 %v3176
    %3558 = vmatprep.subr.bf16.mxu0 %v3185
    %3559 = vmatpush1.bf16.msra.mxu0 %v3184
    %3560 = vmatprep.subr.bf16.mxu0 %v3193
    %3561 = vmatpush1.bf16.msra.mxu0 %v3192
    %3562 = vmatprep.subr.bf16.mxu0 %v3201
    %3563 = vmatpush1.bf16.msra.mxu0 %v3200
    %3564 = vmatprep.subr.bf16.mxu0 %v3209
    %3565 = vmatpush1.bf16.msra.mxu0 %v3208
    %3566 = vmatprep.subr.bf16.mxu0 %v3217
    %3567 = vmatpush1.bf16.msra.mxu0 %v3216
    %3568 = vmatprep.mubr.bf16.mxu0 %v3081
    %3569 = vmatmul.mubr.bf16.gmra.mrb[0].mxu0 %v3080
    %v3570 = vpop.f32.mrb[0].mxu0
    %v3571 = vadd.f32 %v3369, %v3570
    %v3572 = vpop.f32.mrb[0].mxu0
    %v3573 = vadd.f32 %v3373, %v3572
    %v3574 = vpop.f32.mrb[0].mxu0
    %v3575 = vadd.f32 %v3369, %v3574
    %v3576 = vpop.f32.mrb[0].mxu0
    %v3577 = vadd.f32 %v3373, %v3576
    %3578 = vmatprep.mubr.bf16.mxu0 %v3083
    %3579 = vmatmul.mubr.bf16.gmra.mrb[0].mxu0 %v3082
    %v3580 = vpop.f32.mrb[0].mxu0
    %v3581 = vadd.f32 %v3369, %v3580
    %v3582 = vpop.f32.mrb[0].mxu0
    %v3583 = vadd.f32 %v3373, %v3582
    %v3584 = vpop.f32.mrb[0].mxu0
    %v3585 = vadd.f32 %v3369, %v3584
    %v3586 = vpop.f32.mrb[0].mxu0
    %v3587 = vadd.f32 %v3373, %v3586
    %3588 = vmatprep.mubr.bf16.mxu0 %v3085
    %3589 = vmatmul.mubr.bf16.gmra.mrb[0].mxu0 %v3084
    %v3590 = vpop.f32.mrb[0].mxu0
    %v3591 = vadd.f32 %v3369, %v3590
    %v3592 = vpop.f32.mrb[0].mxu0
    %v3593 = vadd.f32 %v3373, %v3592
    %v3594 = vpop.f32.mrb[0].mxu0
    %v3595 = vadd.f32 %v3369, %v3594
    %v3596 = vpop.f32.mrb[0].mxu0
    %v3597 = vadd.f32 %v3373, %v3596
    %3598 = vmatprep.mubr.bf16.mxu0 %v3087
    %3599 = vmatmul.mubr.bf16.gmra.mrb[0].mxu0 %v3086
    %v3600 = vpop.f32.mrb[0].mxu0
    %v3601 = vadd.f32 %v3369, %v3600
    %v3602 = vpop.f32.mrb[0].mxu0
    %v3603 = vadd.f32 %v3373, %v3602
    %v3604 = vpop.f32.mrb[0].mxu0
    %v3605 = vadd.f32 %v3369, %v3604
    %v3606 = vpop.f32.mrb[0].mxu0
    %v3607 = vadd.f32 %v3373, %v3606
    %3608 = vdwg.mxu0
    %3609 = vmatprep.subr.bf16.mxu0 %v3099
    %3610 = vmatpush1.bf16.msra.mxu0 %v3098
    %3611 = vmatprep.subr.bf16.mxu0 %v3107
    %3612 = vmatpush1.bf16.msra.mxu0 %v3106
    %3613 = vmatprep.subr.bf16.mxu0 %v3115
    %3614 = vmatpush1.bf16.msra.mxu0 %v3114
    %3615 = vmatprep.subr.bf16.mxu0 %v3123
    %3616 = vmatpush1.bf16.msra.mxu0 %v3122
    %3617 = vmatprep.subr.bf16.mxu0 %v3131
    %3618 = vmatpush1.bf16.msra.mxu0 %v3130
    %3619 = vmatprep.subr.bf16.mxu0 %v3139
    %3620 = vmatpush1.bf16.msra.mxu0 %v3138
    %3621 = vmatprep.subr.bf16.mxu0 %v3147
    %3622 = vmatpush1.bf16.msra.mxu0 %v3146
    %3623 = vmatprep.subr.bf16.mxu0 %v3155
    %3624 = vmatpush1.bf16.msra.mxu0 %v3154
    %3625 = vmatprep.subr.bf16.mxu0 %v3163
    %3626 = vmatpush1.bf16.msra.mxu0 %v3162
    %3627 = vmatprep.subr.bf16.mxu0 %v3171
    %3628 = vmatpush1.bf16.msra.mxu0 %v3170
    %3629 = vmatprep.subr.bf16.mxu0 %v3179
    %3630 = vmatpush1.bf16.msra.mxu0 %v3178
    %3631 = vmatprep.subr.bf16.mxu0 %v3187
    %3632 = vmatpush1.bf16.msra.mxu0 %v3186
    %3633 = vmatprep.subr.bf16.mxu0 %v3195
    %3634 = vmatpush1.bf16.msra.mxu0 %v3194
    %3635 = vmatprep.subr.bf16.mxu0 %v3203
    %3636 = vmatpush1.bf16.msra.mxu0 %v3202
    %3637 = vmatprep.subr.bf16.mxu0 %v3211
    %3638 = vmatpush1.bf16.msra.mxu0 %v3210
    %3639 = vmatprep.subr.bf16.mxu0 %v3219
    %3640 = vmatpush1.bf16.msra.mxu0 %v3218
    %3641 = vmatprep.mubr.bf16.mxu0 %v3081
    %3642 = vmatmul.mubr.bf16.gmra.mrb[0].mxu0 %v3080
    %v3643 = vpop.f32.mrb[0].mxu0
    %v3644 = vadd.f32 %v3377, %v3643
    %v3645 = vpop.f32.mrb[0].mxu0
    %v3646 = vadd.f32 %v3381, %v3645
    %v3647 = vpop.f32.mrb[0].mxu0
    %v3648 = vadd.f32 %v3377, %v3647
    %v3649 = vpop.f32.mrb[0].mxu0
    %v3650 = vadd.f32 %v3381, %v3649
    %3651 = vmatprep.mubr.bf16.mxu0 %v3083
    %3652 = vmatmul.mubr.bf16.gmra.mrb[0].mxu0 %v3082
    %v3653 = vpop.f32.mrb[0].mxu0
    %v3654 = vadd.f32 %v3377, %v3653
    %v3655 = vpop.f32.mrb[0].mxu0
    %v3656 = vadd.f32 %v3381, %v3655
    %v3657 = vpop.f32.mrb[0].mxu0
    %v3658 = vadd.f32 %v3377, %v3657
    %v3659 = vpop.f32.mrb[0].mxu0
    %v3660 = vadd.f32 %v3381, %v3659
    %3661 = vmatprep.mubr.bf16.mxu0 %v3085
    %3662 = vmatmul.mubr.bf16.gmra.mrb[0].mxu0 %v3084
    %v3663 = vpop.f32.mrb[0].mxu0
    %v3664 = vadd.f32 %v3377, %v3663
    %v3665 = vpop.f32.mrb[0].mxu0
    %v3666 = vadd.f32 %v3381, %v3665
    %v3667 = vpop.f32.mrb[0].mxu0
    %v3668 = vadd.f32 %v3377, %v3667
    %v3669 = vpop.f32.mrb[0].mxu0
    %v3670 = vadd.f32 %v3381, %v3669
    %3671 = vmatprep.mubr.bf16.mxu0 %v3087
    %3672 = vmatmul.mubr.bf16.gmra.mrb[0].mxu0 %v3086
    %v3673 = vpop.f32.mrb[0].mxu0
    %v3674 = vadd.f32 %v3377, %v3673
    %v3675 = vpop.f32.mrb[0].mxu0
    %v3676 = vadd.f32 %v3381, %v3675
    %v3677 = vpop.f32.mrb[0].mxu0
    %v3678 = vadd.f32 %v3377, %v3677
    %v3679 = vpop.f32.mrb[0].mxu0
    %v3680 = vadd.f32 %v3381, %v3679
    %3681 = vdwg.mxu0
    %s3682 = smul.u32 4, 8
    %s3683 = smul.u32 %s3682, 32
    %s3684 = smul.u32 %s3683, 2
    %s3685 = sshll.u32 %s3684, 4
    %3686 = dma.done [#allocation5], %s3685
    %3687 = vmatprep.subr.bf16.mxu0 %v3221
    %3688 = vmatpush1.bf16.msra.mxu0 %v3220
    %3689 = vmatprep.subr.bf16.mxu0 %v3229
    %3690 = vmatpush1.bf16.msra.mxu0 %v3228
    %3691 = vmatprep.subr.bf16.mxu0 %v3237
    %3692 = vmatpush1.bf16.msra.mxu0 %v3236
    %3693 = vmatprep.subr.bf16.mxu0 %v3245
    %3694 = vmatpush1.bf16.msra.mxu0 %v3244
    %3695 = vmatprep.subr.bf16.mxu0 %v3253
    %3696 = vmatpush1.bf16.msra.mxu0 %v3252
    %3697 = vmatprep.subr.bf16.mxu0 %v3261
    %3698 = vmatpush1.bf16.msra.mxu0 %v3260
    %3699 = vmatprep.subr.bf16.mxu0 %v3269
    %3700 = vmatpush1.bf16.msra.mxu0 %v3268
    %3701 = vmatprep.subr.bf16.mxu0 %v3277
    %3702 = vmatpush1.bf16.msra.mxu0 %v3276
    %3703 = vmatprep.subr.bf16.mxu0 %v3285
    %3704 = vmatpush1.bf16.msra.mxu0 %v3284
    %3705 = vmatprep.subr.bf16.mxu0 %v3293
    %3706 = vmatpush1.bf16.msra.mxu0 %v3292
    %3707 = vmatprep.subr.bf16.mxu0 %v3301
    %3708 = vmatpush1.bf16.msra.mxu0 %v3300
    %3709 = vmatprep.subr.bf16.mxu0 %v3309
    %3710 = vmatpush1.bf16.msra.mxu0 %v3308
    %3711 = vmatprep.subr.bf16.mxu0 %v3317
    %3712 = vmatpush1.bf16.msra.mxu0 %v3316
    %3713 = vmatprep.subr.bf16.mxu0 %v3325
    %3714 = vmatpush1.bf16.msra.mxu0 %v3324
    %3715 = vmatprep.subr.bf16.mxu0 %v3333
    %3716 = vmatpush1.bf16.msra.mxu0 %v3332
    %3717 = vmatprep.subr.bf16.mxu0 %v3341
    %3718 = vmatpush1.bf16.msra.mxu0 %v3340
    %3719 = vmatprep.mubr.bf16.mxu0 0
    %3720 = vmatmul.mubr.bf16.gmra.mrb[0].mxu0 0
    %v3721 = vpop.f32.mrb[0].mxu0
    %v3722 = vadd.f32 0.0, %v3721
    %v3723 = vpop.f32.mrb[0].mxu0
    %v3724 = vadd.f32 0.0, %v3723
    %v3725 = vpop.f32.mrb[0].mxu0
    %v3726 = vpop.f32.mrb[0].mxu0
    %3727 = vdwg.mxu0
    %3728 = vmatprep.subr.bf16.mxu0 %v3223
    %3729 = vmatpush1.bf16.msra.mxu0 %v3222
    %3730 = vmatprep.subr.bf16.mxu0 %v3231
    %3731 = vmatpush1.bf16.msra.mxu0 %v3230
    %3732 = vmatprep.subr.bf16.mxu0 %v3239
    %3733 = vmatpush1.bf16.msra.mxu0 %v3238
    %3734 = vmatprep.subr.bf16.mxu0 %v3247
    %3735 = vmatpush1.bf16.msra.mxu0 %v3246
    %3736 = vmatprep.subr.bf16.mxu0 %v3255
    %3737 = vmatpush1.bf16.msra.mxu0 %v3254
    %3738 = vmatprep.subr.bf16.mxu0 %v3263
    %3739 = vmatpush1.bf16.msra.mxu0 %v3262
    %3740 = vmatprep.subr.bf16.mxu0 %v3271
    %3741 = vmatpush1.bf16.msra.mxu0 %v3270
    %3742 = vmatprep.subr.bf16.mxu0 %v3279
    %3743 = vmatpush1.bf16.msra.mxu0 %v3278
    %3744 = vmatprep.subr.bf16.mxu0 %v3287
    %3745 = vmatpush1.bf16.msra.mxu0 %v3286
    %3746 = vmatprep.subr.bf16.mxu0 %v3295
    %3747 = vmatpush1.bf16.msra.mxu0 %v3294
    %3748 = vmatprep.subr.bf16.mxu0 %v3303
    %3749 = vmatpush1.bf16.msra.mxu0 %v3302
    %3750 = vmatprep.subr.bf16.mxu0 %v3311
    %3751 = vmatpush1.bf16.msra.mxu0 %v3310
    %3752 = vmatprep.subr.bf16.mxu0 %v3319
    %3753 = vmatpush1.bf16.msra.mxu0 %v3318
    %3754 = vmatprep.subr.bf16.mxu0 %v3327
    %3755 = vmatpush1.bf16.msra.mxu0 %v3326
    %3756 = vmatprep.subr.bf16.mxu0 %v3335
    %3757 = vmatpush1.bf16.msra.mxu0 %v3334
    %3758 = vmatprep.subr.bf16.mxu0 %v3343
    %3759 = vmatpush1.bf16.msra.mxu0 %v3342
    %3760 = vmatprep.mubr.bf16.mxu0 0
    %3761 = vmatmul.mubr.bf16.gmra.mrb[0].mxu0 0
    %v3762 = vpop.f32.mrb[0].mxu0
    %v3763 = vadd.f32 0.0, %v3762
    %v3764 = vpop.f32.mrb[0].mxu0
    %v3765 = vadd.f32 0.0, %v3764
    %v3766 = vpop.f32.mrb[0].mxu0
    %v3767 = vpop.f32.mrb[0].mxu0
    %3768 = vdwg.mxu0
    %3769 = vmatprep.subr.bf16.mxu0 %v3225
    %3770 = vmatpush1.bf16.msra.mxu0 %v3224
    %3771 = vmatprep.subr.bf16.mxu0 %v3233
    %3772 = vmatpush1.bf16.msra.mxu0 %v3232
    %3773 = vmatprep.subr.bf16.mxu0 %v3241
    %3774 = vmatpush1.bf16.msra.mxu0 %v3240
    %3775 = vmatprep.subr.bf16.mxu0 %v3249
    %3776 = vmatpush1.bf16.msra.mxu0 %v3248
    %3777 = vmatprep.subr.bf16.mxu0 %v3257
    %3778 = vmatpush1.bf16.msra.mxu0 %v3256
    %3779 = vmatprep.subr.bf16.mxu0 %v3265
    %3780 = vmatpush1.bf16.msra.mxu0 %v3264
    %3781 = vmatprep.subr.bf16.mxu0 %v3273
    %3782 = vmatpush1.bf16.msra.mxu0 %v3272
    %3783 = vmatprep.subr.bf16.mxu0 %v3281
    %3784 = vmatpush1.bf16.msra.mxu0 %v3280
    %3785 = vmatprep.subr.bf16.mxu0 %v3289
    %3786 = vmatpush1.bf16.msra.mxu0 %v3288
    %3787 = vmatprep.subr.bf16.mxu0 %v3297
    %3788 = vmatpush1.bf16.msra.mxu0 %v3296
    %3789 = vmatprep.subr.bf16.mxu0 %v3305
    %3790 = vmatpush1.bf16.msra.mxu0 %v3304
    %3791 = vmatprep.subr.bf16.mxu0 %v3313
    %3792 = vmatpush1.bf16.msra.mxu0 %v3312
    %3793 = vmatprep.subr.bf16.mxu0 %v3321
    %3794 = vmatpush1.bf16.msra.mxu0 %v3320
    %3795 = vmatprep.subr.bf16.mxu0 %v3329
    %3796 = vmatpush1.bf16.msra.mxu0 %v3328
    %3797 = vmatprep.subr.bf16.mxu0 %v3337
    %3798 = vmatpush1.bf16.msra.mxu0 %v3336
    %3799 = vmatprep.subr.bf16.mxu0 %v3345
    %3800 = vmatpush1.bf16.msra.mxu0 %v3344
    %3801 = vmatprep.mubr.bf16.mxu0 0
    %3802 = vmatmul.mubr.bf16.gmra.mrb[0].mxu0 0
    %v3803 = vpop.f32.mrb[0].mxu0
    %v3804 = vadd.f32 0.0, %v3803
    %v3805 = vpop.f32.mrb[0].mxu0
    %v3806 = vadd.f32 0.0, %v3805
    %v3807 = vpop.f32.mrb[0].mxu0
    %v3808 = vpop.f32.mrb[0].mxu0
    %3809 = vdwg.mxu0
    %3810 = vmatprep.subr.bf16.mxu0 %v3227
    %3811 = vmatpush1.bf16.msra.mxu0 %v3226
    %3812 = vmatprep.subr.bf16.mxu0 %v3235
    %3813 = vmatpush1.bf16.msra.mxu0 %v3234
    %3814 = vmatprep.subr.bf16.mxu0 %v3243
    %3815 = vmatpush1.bf16.msra.mxu0 %v3242
    %3816 = vmatprep.subr.bf16.mxu0 %v3251
    %3817 = vmatpush1.bf16.msra.mxu0 %v3250
    %3818 = vmatprep.subr.bf16.mxu0 %v3259
    %3819 = vmatpush1.bf16.msra.mxu0 %v3258
    %3820 = vmatprep.subr.bf16.mxu0 %v3267
    %3821 = vmatpush1.bf16.msra.mxu0 %v3266
    %3822 = vmatprep.subr.bf16.mxu0 %v3275
    %3823 = vmatpush1.bf16.msra.mxu0 %v3274
    %3824 = vmatprep.subr.bf16.mxu0 %v3283
    %3825 = vmatpush1.bf16.msra.mxu0 %v3282
    %3826 = vmatprep.subr.bf16.mxu0 %v3291
    %3827 = vmatpush1.bf16.msra.mxu0 %v3290
    %3828 = vmatprep.subr.bf16.mxu0 %v3299
    %3829 = vmatpush1.bf16.msra.mxu0 %v3298
    %3830 = vmatprep.subr.bf16.mxu0 %v3307
    %3831 = vmatpush1.bf16.msra.mxu0 %v3306
    %3832 = vmatprep.subr.bf16.mxu0 %v3315
    %3833 = vmatpush1.bf16.msra.mxu0 %v3314
    %3834 = vmatprep.subr.bf16.mxu0 %v3323
    %3835 = vmatpush1.bf16.msra.mxu0 %v3322
    %3836 = vmatprep.subr.bf16.mxu0 %v3331
    %3837 = vmatpush1.bf16.msra.mxu0 %v3330
    %3838 = vmatprep.subr.bf16.mxu0 %v3339
    %3839 = vmatpush1.bf16.msra.mxu0 %v3338
    %3840 = vmatprep.subr.bf16.mxu0 %v3347
    %3841 = vmatpush1.bf16.msra.mxu0 %v3346
    %3842 = vmatprep.mubr.bf16.mxu0 0
    %3843 = vmatmul.mubr.bf16.gmra.mrb[0].mxu0 0
    %v3844 = vpop.f32.mrb[0].mxu0
    %v3845 = vadd.f32 0.0, %v3844
    %v3846 = vpop.f32.mrb[0].mxu0
    %v3847 = vadd.f32 0.0, %v3846
    %v3848 = vpop.f32.mrb[0].mxu0
    %v3849 = vpop.f32.mrb[0].mxu0
    %3850 = vdwg.mxu0
    %v3851 = vadd.f32 %v3425, %v3722
    %v3852 = vadd.f32 %v3427, %v3724
    %v3853 = vadd.f32 %v3498, %v3763
    %v3854 = vadd.f32 %v3500, %v3765
    %v3855 = vadd.f32 %v3571, %v3804
    %v3856 = vadd.f32 %v3573, %v3806
    %v3857 = vadd.f32 %v3644, %v3845
    %v3858 = vadd.f32 %v3646, %v3847
    %v3859 = vxor.u32 %v3851, 2147483648
    %v3860 = vxor.u32 %v3852, 2147483648
    %v3861 = vxor.u32 %v3853, 2147483648
    %v3862 = vxor.u32 %v3854, 2147483648
    %v3863 = vxor.u32 %v3855, 2147483648
    %v3864 = vxor.u32 %v3856, 2147483648
    %v3865 = vmul.f32 %v3859, 1.442695
    %v3866 = vpow.pop %v3865
    %v3867 = vmul.f32 %v3860, 1.442695
    %v3868 = vpow.pop %v3867
    %v3869 = vmul.f32 %v3861, 1.442695
    %v3870 = vpow.pop %v3869
    %v3871 = vmul.f32 %v3862, 1.442695
    %v3872 = vpow.pop %v3871
    %v3873 = vmul.f32 %v3863, 1.442695
    %v3874 = vpow.pop %v3873
    %v3875 = vmul.f32 %v3864, 1.442695
    %v3876 = vpow.pop %v3875
    %v3877 = vadd.f32 %v3866, 1.0
    %v3878 = vadd.f32 %v3868, 1.0
    %v3879 = vadd.f32 %v3870, 1.0
    %v3880 = vadd.f32 %v3872, 1.0
    %v3881 = vadd.f32 %v3874, 1.0
    %v3882 = vadd.f32 %v3876, 1.0
    %v3883 = vrcp.pop %v3877
    %v3884 = vmul.f32 1.0, %v3883
    %v3885 = vrcp.pop %v3878
    %v3886 = vmul.f32 1.0, %v3885
    %v3887 = vrcp.pop %v3879
    %v3888 = vmul.f32 1.0, %v3887
    %v3889 = vrcp.pop %v3880
    %v3890 = vmul.f32 1.0, %v3889
    %v3891 = vrcp.pop %v3881
    %v3892 = vmul.f32 1.0, %v3891
    %v3893 = vrcp.pop %v3882
    %v3894 = vmul.f32 1.0, %v3893
    %v3895 = vtanh.pop %v3857
    %v3896 = vtanh.pop %v3858
    %v3897 = vmul.f32 %v3888, 0.0
    %v3898 = vmul.f32 %v3890, 0.0
    %v3899 = vmul.f32 %v3884, %v3895
    %v3900 = vmul.f32 %v3886, %v3896
    %v3901 = vadd.f32 %v3897, %v3899
    %v3902 = vadd.f32 %v3898, %v3900
    %v3903 = vtanh.pop %v3901
    %v3904 = vtanh.pop %v3902
    %v3905 = vmul.f32 %v3892, %v3903
    %v3906 = vmul.f32 %v3894, %v3904
    %v3907 = vpack.c.bf16 %v3905, %v3905
    %v3908 = vpack.c.bf16 %v3906, %v3906
    %v3909 = vld [vmem:[#allocation4] sm:$0xff]
    %v3910 = vld [vmem:[#allocation4 + $0x8] sm:$0xff]
    %v3911 = vld [vmem:[#allocation4 + $0x10] sm:$0xff]
    %v3912 = vld [vmem:[#allocation4 + $0x18] sm:$0xff]
    %v3913 = vld [vmem:[#allocation4 + $0x20] sm:$0xff]
    %v3914 = vld [vmem:[#allocation4 + $0x28] sm:$0xff]
    %v3915 = vld [vmem:[#allocation4 + $0x30] sm:$0xff]
    %v3916 = vld [vmem:[#allocation4 + $0x38] sm:$0xff]
    %v3917 = vld [vmem:[#allocation4 + $0x40] sm:$0xff]
    %v3918 = vld [vmem:[#allocation4 + $0x48] sm:$0xff]
    %v3919 = vld [vmem:[#allocation4 + $0x50] sm:$0xff]
    %v3920 = vld [vmem:[#allocation4 + $0x58] sm:$0xff]
    %v3921 = vld [vmem:[#allocation4 + $0x60] sm:$0xff]
    %v3922 = vld [vmem:[#allocation4 + $0x68] sm:$0xff]
    %v3923 = vld [vmem:[#allocation4 + $0x70] sm:$0xff]
    %v3924 = vld [vmem:[#allocation4 + $0x78] sm:$0xff]
    %v3925 = vld [vmem:[#allocation4 + $0x80] sm:$0xff]
    %v3926 = vld [vmem:[#allocation4 + $0x88] sm:$0xff]
    %v3927 = vld [vmem:[#allocation4 + $0x90] sm:$0xff]
    %v3928 = vld [vmem:[#allocation4 + $0x98] sm:$0xff]
    %v3929 = vld [vmem:[#allocation4 + $0xa0] sm:$0xff]
    %v3930 = vld [vmem:[#allocation4 + $0xa8] sm:$0xff]
    %v3931 = vld [vmem:[#allocation4 + $0xb0] sm:$0xff]
    %v3932 = vld [vmem:[#allocation4 + $0xb8] sm:$0xff]
    %v3933 = vld [vmem:[#allocation4 + $0xc0] sm:$0xff]
    %v3934 = vld [vmem:[#allocation4 + $0xc8] sm:$0xff]
    %v3935 = vld [vmem:[#allocation4 + $0xd0] sm:$0xff]
    %v3936 = vld [vmem:[#allocation4 + $0xd8] sm:$0xff]
    %v3937 = vld [vmem:[#allocation4 + $0xe0] sm:$0xff]
    %v3938 = vld [vmem:[#allocation4 + $0xe8] sm:$0xff]
    %v3939 = vld [vmem:[#allocation4 + $0xf0] sm:$0xff]
    %v3940 = vld [vmem:[#allocation4 + $0xf8] sm:$0xff]
    %3941 = vmatprep.subr.bf16.mxu0 %v3221
    %3942 = vmatpush1.bf16.msra.mxu0 %v3220
    %3943 = vmatprep.subr.bf16.mxu0 %v3229
    %3944 = vmatpush1.bf16.msra.mxu0 %v3228
    %3945 = vmatprep.subr.bf16.mxu0 %v3237
    %3946 = vmatpush1.bf16.msra.mxu0 %v3236
    %3947 = vmatprep.subr.bf16.mxu0 %v3245
    %3948 = vmatpush1.bf16.msra.mxu0 %v3244
    %3949 = vmatprep.subr.bf16.mxu0 %v3253
    %3950 = vmatpush1.bf16.msra.mxu0 %v3252
    %3951 = vmatprep.subr.bf16.mxu0 %v3261
    %3952 = vmatpush1.bf16.msra.mxu0 %v3260
    %3953 = vmatprep.subr.bf16.mxu0 %v3269
    %3954 = vmatpush1.bf16.msra.mxu0 %v3268
    %3955 = vmatprep.subr.bf16.mxu0 %v3277
    %3956 = vmatpush1.bf16.msra.mxu0 %v3276
    %3957 = vmatprep.subr.bf16.mxu0 %v3285
    %3958 = vmatpush1.bf16.msra.mxu0 %v3284
    %3959 = vmatprep.subr.bf16.mxu0 %v3293
    %3960 = vmatpush1.bf16.msra.mxu0 %v3292
    %3961 = vmatprep.subr.bf16.mxu0 %v3301
    %3962 = vmatpush1.bf16.msra.mxu0 %v3300
    %3963 = vmatprep.subr.bf16.mxu0 %v3309
    %3964 = vmatpush1.bf16.msra.mxu0 %v3308
    %3965 = vmatprep.subr.bf16.mxu0 %v3317
    %3966 = vmatpush1.bf16.msra.mxu0 %v3316
    %3967 = vmatprep.subr.bf16.mxu0 %v3325
    %3968 = vmatpush1.bf16.msra.mxu0 %v3324
    %3969 = vmatprep.subr.bf16.mxu0 %v3333
    %3970 = vmatpush1.bf16.msra.mxu0 %v3332
    %3971 = vmatprep.subr.bf16.mxu0 %v3341
    %3972 = vmatpush1.bf16.msra.mxu0 %v3340
    %3973 = vmatprep.mubr.bf16.mxu0 %v3908
    %3974 = vmatmul.mubr.bf16.gmra.mrb[0].mxu0 %v3907
    %v3975 = vpop.f32.mrb[0].mxu0
    %v3976 = vadd.f32 0.0, %v3975
    %v3977 = vpop.f32.mrb[0].mxu0
    %v3978 = vadd.f32 0.0, %v3977
    %v3979 = vpop.f32.mrb[0].mxu0
    %v3980 = vpop.f32.mrb[0].mxu0
    %3981 = vdwg.mxu0
    %3982 = vmatprep.subr.bf16.mxu0 %v3223
    %3983 = vmatpush1.bf16.msra.mxu0 %v3222
    %3984 = vmatprep.subr.bf16.mxu0 %v3231
    %3985 = vmatpush1.bf16.msra.mxu0 %v3230
    %3986 = vmatprep.subr.bf16.mxu0 %v3239
    %3987 = vmatpush1.bf16.msra.mxu0 %v3238
    %3988 = vmatprep.subr.bf16.mxu0 %v3247
    %3989 = vmatpush1.bf16.msra.mxu0 %v3246
    %3990 = vmatprep.subr.bf16.mxu0 %v3255
    %3991 = vmatpush1.bf16.msra.mxu0 %v3254
    %3992 = vmatprep.subr.bf16.mxu0 %v3263
    %3993 = vmatpush1.bf16.msra.mxu0 %v3262
    %3994 = vmatprep.subr.bf16.mxu0 %v3271
    %3995 = vmatpush1.bf16.msra.mxu0 %v3270
    %3996 = vmatprep.subr.bf16.mxu0 %v3279
    %3997 = vmatpush1.bf16.msra.mxu0 %v3278
    %3998 = vmatprep.subr.bf16.mxu0 %v3287
    %3999 = vmatpush1.bf16.msra.mxu0 %v3286
    %4000 = vmatprep.subr.bf16.mxu0 %v3295
    %4001 = vmatpush1.bf16.msra.mxu0 %v3294
    %4002 = vmatprep.subr.bf16.mxu0 %v3303
    %4003 = vmatpush1.bf16.msra.mxu0 %v3302
    %4004 = vmatprep.subr.bf16.mxu0 %v3311
    %4005 = vmatpush1.bf16.msra.mxu0 %v3310
    %4006 = vmatprep.subr.bf16.mxu0 %v3319
    %4007 = vmatpush1.bf16.msra.mxu0 %v3318
    %4008 = vmatprep.subr.bf16.mxu0 %v3327
    %4009 = vmatpush1.bf16.msra.mxu0 %v3326
    %4010 = vmatprep.subr.bf16.mxu0 %v3335
    %4011 = vmatpush1.bf16.msra.mxu0 %v3334
    %4012 = vmatprep.subr.bf16.mxu0 %v3343
    %4013 = vmatpush1.bf16.msra.mxu0 %v3342
    %4014 = vmatprep.mubr.bf16.mxu0 %v3908
    %4015 = vmatmul.mubr.bf16.gmra.mrb[0].mxu0 %v3907
    %v4016 = vpop.f32.mrb[0].mxu0
    %v4017 = vadd.f32 0.0, %v4016
    %v4018 = vpop.f32.mrb[0].mxu0
    %v4019 = vadd.f32 0.0, %v4018
    %v4020 = vpop.f32.mrb[0].mxu0
    %v4021 = vpop.f32.mrb[0].mxu0
    %4022 = vdwg.mxu0
    %4023 = vmatprep.subr.bf16.mxu0 %v3225
    %4024 = vmatpush1.bf16.msra.mxu0 %v3224
    %4025 = vmatprep.subr.bf16.mxu0 %v3233
    %4026 = vmatpush1.bf16.msra.mxu0 %v3232
    %4027 = vmatprep.subr.bf16.mxu0 %v3241
    %4028 = vmatpush1.bf16.msra.mxu0 %v3240
    %4029 = vmatprep.subr.bf16.mxu0 %v3249
    %4030 = vmatpush1.bf16.msra.mxu0 %v3248
    %4031 = vmatprep.subr.bf16.mxu0 %v3257
    %4032 = vmatpush1.bf16.msra.mxu0 %v3256
    %4033 = vmatprep.subr.bf16.mxu0 %v3265
    %4034 = vmatpush1.bf16.msra.mxu0 %v3264
    %4035 = vmatprep.subr.bf16.mxu0 %v3273
    %4036 = vmatpush1.bf16.msra.mxu0 %v3272
    %4037 = vmatprep.subr.bf16.mxu0 %v3281
    %4038 = vmatpush1.bf16.msra.mxu0 %v3280
    %4039 = vmatprep.subr.bf16.mxu0 %v3289
    %4040 = vmatpush1.bf16.msra.mxu0 %v3288
    %4041 = vmatprep.subr.bf16.mxu0 %v3297
    %4042 = vmatpush1.bf16.msra.mxu0 %v3296
    %4043 = vmatprep.subr.bf16.mxu0 %v3305
    %4044 = vmatpush1.bf16.msra.mxu0 %v3304
    %4045 = vmatprep.subr.bf16.mxu0 %v3313
    %4046 = vmatpush1.bf16.msra.mxu0 %v3312
    %4047 = vmatprep.subr.bf16.mxu0 %v3321
    %4048 = vmatpush1.bf16.msra.mxu0 %v3320
    %4049 = vmatprep.subr.bf16.mxu0 %v3329
    %4050 = vmatpush1.bf16.msra.mxu0 %v3328
    %4051 = vmatprep.subr.bf16.mxu0 %v3337
    %4052 = vmatpush1.bf16.msra.mxu0 %v3336
    %4053 = vmatprep.subr.bf16.mxu0 %v3345
    %4054 = vmatpush1.bf16.msra.mxu0 %v3344
    %4055 = vmatprep.mubr.bf16.mxu0 %v3908
    %4056 = vmatmul.mubr.bf16.gmra.mrb[0].mxu0 %v3907
    %v4057 = vpop.f32.mrb[0].mxu0
    %v4058 = vadd.f32 0.0, %v4057
    %v4059 = vpop.f32.mrb[0].mxu0
    %v4060 = vadd.f32 0.0, %v4059
    %v4061 = vpop.f32.mrb[0].mxu0
    %v4062 = vpop.f32.mrb[0].mxu0
    %4063 = vdwg.mxu0
    %4064 = vmatprep.subr.bf16.mxu0 %v3227
    %4065 = vmatpush1.bf16.msra.mxu0 %v3226
    %4066 = vmatprep.subr.bf16.mxu0 %v3235
    %4067 = vmatpush1.bf16.msra.mxu0 %v3234
    %4068 = vmatprep.subr.bf16.mxu0 %v3243
    %4069 = vmatpush1.bf16.msra.mxu0 %v3242
    %4070 = vmatprep.subr.bf16.mxu0 %v3251
    %4071 = vmatpush1.bf16.msra.mxu0 %v3250
    %4072 = vmatprep.subr.bf16.mxu0 %v3259
    %4073 = vmatpush1.bf16.msra.mxu0 %v3258
    %4074 = vmatprep.subr.bf16.mxu0 %v3267
    %4075 = vmatpush1.bf16.msra.mxu0 %v3266
    %4076 = vmatprep.subr.bf16.mxu0 %v3275
    %4077 = vmatpush1.bf16.msra.mxu0 %v3274
    %4078 = vmatprep.subr.bf16.mxu0 %v3283
    %4079 = vmatpush1.bf16.msra.mxu0 %v3282
    %4080 = vmatprep.subr.bf16.mxu0 %v3291
    %4081 = vmatpush1.bf16.msra.mxu0 %v3290
    %4082 = vmatprep.subr.bf16.mxu0 %v3299
    %4083 = vmatpush1.bf16.msra.mxu0 %v3298
    %4084 = vmatprep.subr.bf16.mxu0 %v3307
    %4085 = vmatpush1.bf16.msra.mxu0 %v3306
    %4086 = vmatprep.subr.bf16.mxu0 %v3315
    %4087 = vmatpush1.bf16.msra.mxu0 %v3314
    %4088 = vmatprep.subr.bf16.mxu0 %v3323
    %4089 = vmatpush1.bf16.msra.mxu0 %v3322
    %4090 = vmatprep.subr.bf16.mxu0 %v3331
    %4091 = vmatpush1.bf16.msra.mxu0 %v3330
    %4092 = vmatprep.subr.bf16.mxu0 %v3339
    %4093 = vmatpush1.bf16.msra.mxu0 %v3338
    %4094 = vmatprep.subr.bf16.mxu0 %v3347
    %4095 = vmatpush1.bf16.msra.mxu0 %v3346
    %4096 = vmatprep.mubr.bf16.mxu0 %v3908
    %4097 = vmatmul.mubr.bf16.gmra.mrb[0].mxu0 %v3907
    %v4098 = vpop.f32.mrb[0].mxu0
    %v4099 = vadd.f32 0.0, %v4098
    %v4100 = vpop.f32.mrb[0].mxu0
    %v4101 = vadd.f32 0.0, %v4100
    %v4102 = vpop.f32.mrb[0].mxu0
    %v4103 = vpop.f32.mrb[0].mxu0
    %4104 = vdwg.mxu0
    %v4105 = vadd.f32 %v3429, %v3976
    %v4106 = vadd.f32 %v3431, %v3978
    %v4107 = vadd.f32 %v3502, %v4017
    %v4108 = vadd.f32 %v3504, %v4019
    %v4109 = vadd.f32 %v3575, %v4058
    %v4110 = vadd.f32 %v3577, %v4060
    %v4111 = vadd.f32 %v3648, %v4099
    %v4112 = vadd.f32 %v3650, %v4101
    %v4113 = vxor.u32 %v4105, 2147483648
    %v4114 = vxor.u32 %v4106, 2147483648
    %v4115 = vxor.u32 %v4107, 2147483648
    %v4116 = vxor.u32 %v4108, 2147483648
    %v4117 = vxor.u32 %v4109, 2147483648
    %v4118 = vxor.u32 %v4110, 2147483648
    %v4119 = vmul.f32 %v4113, 1.442695
    %v4120 = vpow.pop %v4119
    %v4121 = vmul.f32 %v4114, 1.442695
    %v4122 = vpow.pop %v4121
    %v4123 = vmul.f32 %v4115, 1.442695
    %v4124 = vpow.pop %v4123
    %v4125 = vmul.f32 %v4116, 1.442695
    %v4126 = vpow.pop %v4125
    %v4127 = vmul.f32 %v4117, 1.442695
    %v4128 = vpow.pop %v4127
    %v4129 = vmul.f32 %v4118, 1.442695
    %v4130 = vpow.pop %v4129
    %v4131 = vadd.f32 %v4120, 1.0
    %v4132 = vadd.f32 %v4122, 1.0
    %v4133 = vadd.f32 %v4124, 1.0
    %v4134 = vadd.f32 %v4126, 1.0
    %v4135 = vadd.f32 %v4128, 1.0
    %v4136 = vadd.f32 %v4130, 1.0
    %v4137 = vrcp.pop %v4131
    %v4138 = vmul.f32 1.0, %v4137
    %v4139 = vrcp.pop %v4132
    %v4140 = vmul.f32 1.0, %v4139
    %v4141 = vrcp.pop %v4133
    %v4142 = vmul.f32 1.0, %v4141
    %v4143 = vrcp.pop %v4134
    %v4144 = vmul.f32 1.0, %v4143
    %v4145 = vrcp.pop %v4135
    %v4146 = vmul.f32 1.0, %v4145
    %v4147 = vrcp.pop %v4136
    %v4148 = vmul.f32 1.0, %v4147
    %v4149 = vtanh.pop %v4111
    %v4150 = vtanh.pop %v4112
    %v4151 = vmul.f32 %v4142, %v3901
    %v4152 = vmul.f32 %v4144, %v3902
    %v4153 = vmul.f32 %v4138, %v4149
    %v4154 = vmul.f32 %v4140, %v4150
    %v4155 = vadd.f32 %v4151, %v4153
    %v4156 = vadd.f32 %v4152, %v4154
    %v4157 = vtanh.pop %v4155
    %v4158 = vtanh.pop %v4156
    %v4159 = vmul.f32 %v4146, %v4157
    %v4160 = vmul.f32 %v4148, %v4158
    %v4161 = vpack.c.bf16 %v4159, %v4159
    %v4162 = vpack.c.bf16 %v4160, %v4160
    %s4163 = scalar_lea.vmem [#allocation4], 256
    %v4164 = vld [vmem:[%s4163] sm:$0xff]
    %v4165 = vld [vmem:[%s4163 + $0x8] sm:$0xff]
    %v4166 = vld [vmem:[%s4163 + $0x10] sm:$0xff]
    %v4167 = vld [vmem:[%s4163 + $0x18] sm:$0xff]
    %v4168 = vld [vmem:[%s4163 + $0x20] sm:$0xff]
    %v4169 = vld [vmem:[%s4163 + $0x28] sm:$0xff]
    %v4170 = vld [vmem:[%s4163 + $0x30] sm:$0xff]
    %v4171 = vld [vmem:[%s4163 + $0x38] sm:$0xff]
    %v4172 = vld [vmem:[%s4163 + $0x40] sm:$0xff]
    %v4173 = vld [vmem:[%s4163 + $0x48] sm:$0xff]
    %v4174 = vld [vmem:[%s4163 + $0x50] sm:$0xff]
    %v4175 = vld [vmem:[%s4163 + $0x58] sm:$0xff]
    %v4176 = vld [vmem:[%s4163 + $0x60] sm:$0xff]
    %v4177 = vld [vmem:[%s4163 + $0x68] sm:$0xff]
    %v4178 = vld [vmem:[%s4163 + $0x70] sm:$0xff]
    %v4179 = vld [vmem:[%s4163 + $0x78] sm:$0xff]
    %v4180 = vld [vmem:[%s4163 + $0x80] sm:$0xff]
    %v4181 = vld [vmem:[%s4163 + $0x88] sm:$0xff]
    %v4182 = vld [vmem:[%s4163 + $0x90] sm:$0xff]
    %v4183 = vld [vmem:[%s4163 + $0x98] sm:$0xff]
    %v4184 = vld [vmem:[%s4163 + $0xa0] sm:$0xff]
    %v4185 = vld [vmem:[%s4163 + $0xa8] sm:$0xff]
    %v4186 = vld [vmem:[%s4163 + $0xb0] sm:$0xff]
    %v4187 = vld [vmem:[%s4163 + $0xb8] sm:$0xff]
    %v4188 = vld [vmem:[%s4163 + $0xc0] sm:$0xff]
    %v4189 = vld [vmem:[%s4163 + $0xc8] sm:$0xff]
    %v4190 = vld [vmem:[%s4163 + $0xd0] sm:$0xff]
    %v4191 = vld [vmem:[%s4163 + $0xd8] sm:$0xff]
    %v4192 = vld [vmem:[%s4163 + $0xe0] sm:$0xff]
    %v4193 = vld [vmem:[%s4163 + $0xe8] sm:$0xff]
    %v4194 = vld [vmem:[%s4163 + $0xf0] sm:$0xff]
    %v4195 = vld [vmem:[%s4163 + $0xf8] sm:$0xff]
    %4196 = vmatprep.subr.bf16.mxu0 %v4165
    %4197 = vmatpush1.bf16.msra.mxu0 %v4164
    %4198 = vmatprep.subr.bf16.mxu0 %v4167
    %4199 = vmatpush1.bf16.msra.mxu0 %v4166
    %4200 = vmatprep.subr.bf16.mxu0 %v4169
    %4201 = vmatpush1.bf16.msra.mxu0 %v4168
    %4202 = vmatprep.subr.bf16.mxu0 %v4171
    %4203 = vmatpush1.bf16.msra.mxu0 %v4170
    %4204 = vmatprep.subr.bf16.mxu0 %v4173
    %4205 = vmatpush1.bf16.msra.mxu0 %v4172
    %4206 = vmatprep.subr.bf16.mxu0 %v4175
    %4207 = vmatpush1.bf16.msra.mxu0 %v4174
    %4208 = vmatprep.subr.bf16.mxu0 %v4177
    %4209 = vmatpush1.bf16.msra.mxu0 %v4176
    %4210 = vmatprep.subr.bf16.mxu0 %v4179
    %4211 = vmatpush1.bf16.msra.mxu0 %v4178
    %4212 = vmatprep.subr.bf16.mxu0 %v4181
    %4213 = vmatpush1.bf16.msra.mxu0 %v4180
    %4214 = vmatprep.subr.bf16.mxu0 %v4183
    %4215 = vmatpush1.bf16.msra.mxu0 %v4182
    %4216 = vmatprep.subr.bf16.mxu0 %v4185
    %4217 = vmatpush1.bf16.msra.mxu0 %v4184
    %4218 = vmatprep.subr.bf16.mxu0 %v4187
    %4219 = vmatpush1.bf16.msra.mxu0 %v4186
    %4220 = vmatprep.subr.bf16.mxu0 %v4189
    %4221 = vmatpush1.bf16.msra.mxu0 %v4188
    %4222 = vmatprep.subr.bf16.mxu0 %v4191
    %4223 = vmatpush1.bf16.msra.mxu0 %v4190
    %4224 = vmatprep.subr.bf16.mxu0 %v4193
    %4225 = vmatpush1.bf16.msra.mxu0 %v4192
    %4226 = vmatprep.subr.bf16.mxu0 %v4195
    %4227 = vmatpush1.bf16.msra.mxu0 %v4194
    %4228 = vmatprep.mubr.bf16.mxu0 %v4162
    %4229 = vmatmul.mubr.bf16.gmra.mrb[0].mxu0 %v4161
    %v4230 = vpop.f32.mrb[0].mxu0
    %v4231 = vadd.f32 0.0, %v4230
    %v4232 = vpop.f32.mrb[0].mxu0
    %v4233 = vadd.f32 0.0, %v4232
    %v4234 = vpop.f32.mrb[0].mxu0
    %v4235 = vpop.f32.mrb[0].mxu0
    %4236 = vdwg.mxu0
    %4237 = vmatprep.subr.bf16.mxu0 %v3910
    %4238 = vmatpush1.bf16.msra.mxu0 %v3909
    %4239 = vmatprep.subr.bf16.mxu0 %v3912
    %4240 = vmatpush1.bf16.msra.mxu0 %v3911
    %4241 = vmatprep.subr.bf16.mxu0 %v3914
    %4242 = vmatpush1.bf16.msra.mxu0 %v3913
    %4243 = vmatprep.subr.bf16.mxu0 %v3916
    %4244 = vmatpush1.bf16.msra.mxu0 %v3915
    %4245 = vmatprep.subr.bf16.mxu0 %v3918
    %4246 = vmatpush1.bf16.msra.mxu0 %v3917
    %4247 = vmatprep.subr.bf16.mxu0 %v3920
    %4248 = vmatpush1.bf16.msra.mxu0 %v3919
    %4249 = vmatprep.subr.bf16.mxu0 %v3922
    %4250 = vmatpush1.bf16.msra.mxu0 %v3921
    %4251 = vmatprep.subr.bf16.mxu0 %v3924
    %4252 = vmatpush1.bf16.msra.mxu0 %v3923
    %4253 = vmatprep.subr.bf16.mxu0 %v3926
    %4254 = vmatpush1.bf16.msra.mxu0 %v3925
    %4255 = vmatprep.subr.bf16.mxu0 %v3928
    %4256 = vmatpush1.bf16.msra.mxu0 %v3927
    %4257 = vmatprep.subr.bf16.mxu0 %v3930
    %4258 = vmatpush1.bf16.msra.mxu0 %v3929
    %4259 = vmatprep.subr.bf16.mxu0 %v3932
    %4260 = vmatpush1.bf16.msra.mxu0 %v3931
    %4261 = vmatprep.subr.bf16.mxu0 %v3934
    %4262 = vmatpush1.bf16.msra.mxu0 %v3933
    %4263 = vmatprep.subr.bf16.mxu0 %v3936
    %4264 = vmatpush1.bf16.msra.mxu0 %v3935
    %4265 = vmatprep.subr.bf16.mxu0 %v3938
    %4266 = vmatpush1.bf16.msra.mxu0 %v3937
    %4267 = vmatprep.subr.bf16.mxu0 %v3940
    %4268 = vmatpush1.bf16.msra.mxu0 %v3939
    %4269 = vmatprep.mubr.bf16.mxu0 %v3908
    %4270 = vmatmul.mubr.bf16.gmra.mrb[0].mxu0 %v3907
    %v4271 = vpop.f32.mrb[0].mxu0
    %v4272 = vadd.f32 %v4231, %v4271
    %v4273 = vpop.f32.mrb[0].mxu0
    %v4274 = vadd.f32 %v4233, %v4273
    %v4275 = vpop.f32.mrb[0].mxu0
    %v4276 = vpop.f32.mrb[0].mxu0
    %4277 = vdwg.mxu0
    %4278 = vmatprep.subr.bf16.mxu0 %v3221
    %4279 = vmatpush1.bf16.msra.mxu0 %v3220
    %4280 = vmatprep.subr.bf16.mxu0 %v3229
    %4281 = vmatpush1.bf16.msra.mxu0 %v3228
    %4282 = vmatprep.subr.bf16.mxu0 %v3237
    %4283 = vmatpush1.bf16.msra.mxu0 %v3236
    %4284 = vmatprep.subr.bf16.mxu0 %v3245
    %4285 = vmatpush1.bf16.msra.mxu0 %v3244
    %4286 = vmatprep.subr.bf16.mxu0 %v3253
    %4287 = vmatpush1.bf16.msra.mxu0 %v3252
    %4288 = vmatprep.subr.bf16.mxu0 %v3261
    %4289 = vmatpush1.bf16.msra.mxu0 %v3260
    %4290 = vmatprep.subr.bf16.mxu0 %v3269
    %4291 = vmatpush1.bf16.msra.mxu0 %v3268
    %4292 = vmatprep.subr.bf16.mxu0 %v3277
    %4293 = vmatpush1.bf16.msra.mxu0 %v3276
    %4294 = vmatprep.subr.bf16.mxu0 %v3285
    %4295 = vmatpush1.bf16.msra.mxu0 %v3284
    %4296 = vmatprep.subr.bf16.mxu0 %v3293
    %4297 = vmatpush1.bf16.msra.mxu0 %v3292
    %4298 = vmatprep.subr.bf16.mxu0 %v3301
    %4299 = vmatpush1.bf16.msra.mxu0 %v3300
    %4300 = vmatprep.subr.bf16.mxu0 %v3309
    %4301 = vmatpush1.bf16.msra.mxu0 %v3308
    %4302 = vmatprep.subr.bf16.mxu0 %v3317
    %4303 = vmatpush1.bf16.msra.mxu0 %v3316
    %4304 = vmatprep.subr.bf16.mxu0 %v3325
    %4305 = vmatpush1.bf16.msra.mxu0 %v3324
    %4306 = vmatprep.subr.bf16.mxu0 %v3333
    %4307 = vmatpush1.bf16.msra.mxu0 %v3332
    %4308 = vmatprep.subr.bf16.mxu0 %v3341
    %4309 = vmatpush1.bf16.msra.mxu0 %v3340
    %4310 = vmatprep.mubr.bf16.mxu0 %v4162
    %4311 = vmatmul.mubr.bf16.gmra.mrb[0].mxu0 %v4161
    %v4312 = vpop.f32.mrb[0].mxu0
    %v4313 = vadd.f32 0.0, %v4312
    %v4314 = vpop.f32.mrb[0].mxu0
    %v4315 = vadd.f32 0.0, %v4314
    %v4316 = vpop.f32.mrb[0].mxu0
    %v4317 = vpop.f32.mrb[0].mxu0
    %4318 = vdwg.mxu0
    %4319 = vmatprep.subr.bf16.mxu0 %v3223
    %4320 = vmatpush1.bf16.msra.mxu0 %v3222
    %4321 = vmatprep.subr.bf16.mxu0 %v3231
    %4322 = vmatpush1.bf16.msra.mxu0 %v3230
    %4323 = vmatprep.subr.bf16.mxu0 %v3239
    %4324 = vmatpush1.bf16.msra.mxu0 %v3238
    %4325 = vmatprep.subr.bf16.mxu0 %v3247
    %4326 = vmatpush1.bf16.msra.mxu0 %v3246
    %4327 = vmatprep.subr.bf16.mxu0 %v3255
    %4328 = vmatpush1.bf16.msra.mxu0 %v3254
    %4329 = vmatprep.subr.bf16.mxu0 %v3263
    %4330 = vmatpush1.bf16.msra.mxu0 %v3262
    %4331 = vmatprep.subr.bf16.mxu0 %v3271
    %4332 = vmatpush1.bf16.msra.mxu0 %v3270
    %4333 = vmatprep.subr.bf16.mxu0 %v3279
    %4334 = vmatpush1.bf16.msra.mxu0 %v3278
    %4335 = vmatprep.subr.bf16.mxu0 %v3287
    %4336 = vmatpush1.bf16.msra.mxu0 %v3286
    %4337 = vmatprep.subr.bf16.mxu0 %v3295
    %4338 = vmatpush1.bf16.msra.mxu0 %v3294
    %4339 = vmatprep.subr.bf16.mxu0 %v3303
    %4340 = vmatpush1.bf16.msra.mxu0 %v3302
    %4341 = vmatprep.subr.bf16.mxu0 %v3311
    %4342 = vmatpush1.bf16.msra.mxu0 %v3310
    %4343 = vmatprep.subr.bf16.mxu0 %v3319
    %4344 = vmatpush1.bf16.msra.mxu0 %v3318
    %4345 = vmatprep.subr.bf16.mxu0 %v3327
    %4346 = vmatpush1.bf16.msra.mxu0 %v3326
    %4347 = vmatprep.subr.bf16.mxu0 %v3335
    %4348 = vmatpush1.bf16.msra.mxu0 %v3334
    %4349 = vmatprep.subr.bf16.mxu0 %v3343
    %4350 = vmatpush1.bf16.msra.mxu0 %v3342
    %4351 = vmatprep.mubr.bf16.mxu0 %v4162
    %4352 = vmatmul.mubr.bf16.gmra.mrb[0].mxu0 %v4161
    %v4353 = vpop.f32.mrb[0].mxu0
    %v4354 = vadd.f32 0.0, %v4353
    %v4355 = vpop.f32.mrb[0].mxu0
    %v4356 = vadd.f32 0.0, %v4355
    %v4357 = vpop.f32.mrb[0].mxu0
    %v4358 = vpop.f32.mrb[0].mxu0
    %4359 = vdwg.mxu0
    %4360 = vmatprep.subr.bf16.mxu0 %v3225
    %4361 = vmatpush1.bf16.msra.mxu0 %v3224
    %4362 = vmatprep.subr.bf16.mxu0 %v3233
    %4363 = vmatpush1.bf16.msra.mxu0 %v3232
    %4364 = vmatprep.subr.bf16.mxu0 %v3241
    %4365 = vmatpush1.bf16.msra.mxu0 %v3240
    %4366 = vmatprep.subr.bf16.mxu0 %v3249
    %4367 = vmatpush1.bf16.msra.mxu0 %v3248
    %4368 = vmatprep.subr.bf16.mxu0 %v3257
    %4369 = vmatpush1.bf16.msra.mxu0 %v3256
    %4370 = vmatprep.subr.bf16.mxu0 %v3265
    %4371 = vmatpush1.bf16.msra.mxu0 %v3264
    %4372 = vmatprep.subr.bf16.mxu0 %v3273
    %4373 = vmatpush1.bf16.msra.mxu0 %v3272
    %4374 = vmatprep.subr.bf16.mxu0 %v3281
    %4375 = vmatpush1.bf16.msra.mxu0 %v3280
    %4376 = vmatprep.subr.bf16.mxu0 %v3289
    %4377 = vmatpush1.bf16.msra.mxu0 %v3288
    %4378 = vmatprep.subr.bf16.mxu0 %v3297
    %4379 = vmatpush1.bf16.msra.mxu0 %v3296
    %4380 = vmatprep.subr.bf16.mxu0 %v3305
    %4381 = vmatpush1.bf16.msra.mxu0 %v3304
    %4382 = vmatprep.subr.bf16.mxu0 %v3313
    %4383 = vmatpush1.bf16.msra.mxu0 %v3312
    %4384 = vmatprep.subr.bf16.mxu0 %v3321
    %4385 = vmatpush1.bf16.msra.mxu0 %v3320
    %4386 = vmatprep.subr.bf16.mxu0 %v3329
    %4387 = vmatpush1.bf16.msra.mxu0 %v3328
    %4388 = vmatprep.subr.bf16.mxu0 %v3337
    %4389 = vmatpush1.bf16.msra.mxu0 %v3336
    %4390 = vmatprep.subr.bf16.mxu0 %v3345
    %4391 = vmatpush1.bf16.msra.mxu0 %v3344
    %4392 = vmatprep.mubr.bf16.mxu0 %v4162
    %4393 = vmatmul.mubr.bf16.gmra.mrb[0].mxu0 %v4161
    %v4394 = vpop.f32.mrb[0].mxu0
    %v4395 = vadd.f32 0.0, %v4394
    %v4396 = vpop.f32.mrb[0].mxu0
    %v4397 = vadd.f32 0.0, %v4396
    %v4398 = vpop.f32.mrb[0].mxu0
    %v4399 = vpop.f32.mrb[0].mxu0
    %4400 = vdwg.mxu0
    %4401 = vmatprep.subr.bf16.mxu0 %v3227
    %4402 = vmatpush1.bf16.msra.mxu0 %v3226
    %4403 = vmatprep.subr.bf16.mxu0 %v3235
    %4404 = vmatpush1.bf16.msra.mxu0 %v3234
    %4405 = vmatprep.subr.bf16.mxu0 %v3243
    %4406 = vmatpush1.bf16.msra.mxu0 %v3242
    %4407 = vmatprep.subr.bf16.mxu0 %v3251
    %4408 = vmatpush1.bf16.msra.mxu0 %v3250
    %4409 = vmatprep.subr.bf16.mxu0 %v3259
    %4410 = vmatpush1.bf16.msra.mxu0 %v3258
    %4411 = vmatprep.subr.bf16.mxu0 %v3267
    %4412 = vmatpush1.bf16.msra.mxu0 %v3266
    %4413 = vmatprep.subr.bf16.mxu0 %v3275
    %4414 = vmatpush1.bf16.msra.mxu0 %v3274
    %4415 = vmatprep.subr.bf16.mxu0 %v3283
    %4416 = vmatpush1.bf16.msra.mxu0 %v3282
    %4417 = vmatprep.subr.bf16.mxu0 %v3291
    %4418 = vmatpush1.bf16.msra.mxu0 %v3290
    %4419 = vmatprep.subr.bf16.mxu0 %v3299
    %4420 = vmatpush1.bf16.msra.mxu0 %v3298
    %4421 = vmatprep.subr.bf16.mxu0 %v3307
    %4422 = vmatpush1.bf16.msra.mxu0 %v3306
    %4423 = vmatprep.subr.bf16.mxu0 %v3315
    %4424 = vmatpush1.bf16.msra.mxu0 %v3314
    %4425 = vmatprep.subr.bf16.mxu0 %v3323
    %4426 = vmatpush1.bf16.msra.mxu0 %v3322
    %4427 = vmatprep.subr.bf16.mxu0 %v3331
    %4428 = vmatpush1.bf16.msra.mxu0 %v3330
    %4429 = vmatprep.subr.bf16.mxu0 %v3339
    %4430 = vmatpush1.bf16.msra.mxu0 %v3338
    %4431 = vmatprep.subr.bf16.mxu0 %v3347
    %4432 = vmatpush1.bf16.msra.mxu0 %v3346
    %4433 = vmatprep.mubr.bf16.mxu0 %v4162
    %4434 = vmatmul.mubr.bf16.gmra.mrb[0].mxu0 %v4161
    %v4435 = vpop.f32.mrb[0].mxu0
    %v4436 = vadd.f32 0.0, %v4435
    %v4437 = vpop.f32.mrb[0].mxu0
    %v4438 = vadd.f32 0.0, %v4437
    %v4439 = vpop.f32.mrb[0].mxu0
    %v4440 = vpop.f32.mrb[0].mxu0
    %4441 = vdwg.mxu0
    %v4442 = vadd.f32 %v3435, %v4313
    %v4443 = vadd.f32 %v3437, %v4315
    %v4444 = vadd.f32 %v3508, %v4354
    %v4445 = vadd.f32 %v3510, %v4356
    %v4446 = vadd.f32 %v3581, %v4395
    %v4447 = vadd.f32 %v3583, %v4397
    %v4448 = vadd.f32 %v3654, %v4436
    %v4449 = vadd.f32 %v3656, %v4438
    %v4450 = vxor.u32 %v4442, 2147483648
    %v4451 = vxor.u32 %v4443, 2147483648
    %v4452 = vxor.u32 %v4444, 2147483648
    %v4453 = vxor.u32 %v4445, 2147483648
    %v4454 = vxor.u32 %v4446, 2147483648
    %v4455 = vxor.u32 %v4447, 2147483648
    %v4456 = vmul.f32 %v4450, 1.442695
    %v4457 = vpow.pop %v4456
    %v4458 = vmul.f32 %v4451, 1.442695
    %v4459 = vpow.pop %v4458
    %v4460 = vmul.f32 %v4452, 1.442695
    %v4461 = vpow.pop %v4460
    %v4462 = vmul.f32 %v4453, 1.442695
    %v4463 = vpow.pop %v4462
    %v4464 = vmul.f32 %v4454, 1.442695
    %v4465 = vpow.pop %v4464
    %v4466 = vmul.f32 %v4455, 1.442695
    %v4467 = vpow.pop %v4466
    %v4468 = vadd.f32 %v4457, 1.0
    %v4469 = vadd.f32 %v4459, 1.0
    %v4470 = vadd.f32 %v4461, 1.0
    %v4471 = vadd.f32 %v4463, 1.0
    %v4472 = vadd.f32 %v4465, 1.0
    %v4473 = vadd.f32 %v4467, 1.0
    %v4474 = vrcp.pop %v4468
    %v4475 = vmul.f32 1.0, %v4474
    %v4476 = vrcp.pop %v4469
    %v4477 = vmul.f32 1.0, %v4476
    %v4478 = vrcp.pop %v4470
    %v4479 = vmul.f32 1.0, %v4478
    %v4480 = vrcp.pop %v4471
    %v4481 = vmul.f32 1.0, %v4480
    %v4482 = vrcp.pop %v4472
    %v4483 = vmul.f32 1.0, %v4482
    %v4484 = vrcp.pop %v4473
    %v4485 = vmul.f32 1.0, %v4484
    %v4486 = vtanh.pop %v4448
    %v4487 = vtanh.pop %v4449
    %v4488 = vmul.f32 %v4479, %v4155
    %v4489 = vmul.f32 %v4481, %v4156
    %v4490 = vmul.f32 %v4475, %v4486
    %v4491 = vmul.f32 %v4477, %v4487
    %v4492 = vadd.f32 %v4488, %v4490
    %v4493 = vadd.f32 %v4489, %v4491
    %v4494 = vtanh.pop %v4492
    %v4495 = vtanh.pop %v4493
    %v4496 = vmul.f32 %v4483, %v4494
    %v4497 = vmul.f32 %v4485, %v4495
    %v4498 = vpack.c.bf16 %v4496, %v4496
    %v4499 = vpack.c.bf16 %v4497, %v4497
    %s4500 = scalar_lea.vmem [#allocation4], 512
    %v4501 = vld [vmem:[%s4500] sm:$0xff]
    %v4502 = vld [vmem:[%s4500 + $0x8] sm:$0xff]
    %v4503 = vld [vmem:[%s4500 + $0x10] sm:$0xff]
    %v4504 = vld [vmem:[%s4500 + $0x18] sm:$0xff]
    %v4505 = vld [vmem:[%s4500 + $0x20] sm:$0xff]
    %v4506 = vld [vmem:[%s4500 + $0x28] sm:$0xff]
    %v4507 = vld [vmem:[%s4500 + $0x30] sm:$0xff]
    %v4508 = vld [vmem:[%s4500 + $0x38] sm:$0xff]
    %v4509 = vld [vmem:[%s4500 + $0x40] sm:$0xff]
    %v4510 = vld [vmem:[%s4500 + $0x48] sm:$0xff]
    %v4511 = vld [vmem:[%s4500 + $0x50] sm:$0xff]
    %v4512 = vld [vmem:[%s4500 + $0x58] sm:$0xff]
    %v4513 = vld [vmem:[%s4500 + $0x60] sm:$0xff]
    %v4514 = vld [vmem:[%s4500 + $0x68] sm:$0xff]
    %v4515 = vld [vmem:[%s4500 + $0x70] sm:$0xff]
    %v4516 = vld [vmem:[%s4500 + $0x78] sm:$0xff]
    %v4517 = vld [vmem:[%s4500 + $0x80] sm:$0xff]
    %v4518 = vld [vmem:[%s4500 + $0x88] sm:$0xff]
    %v4519 = vld [vmem:[%s4500 + $0x90] sm:$0xff]
    %v4520 = vld [vmem:[%s4500 + $0x98] sm:$0xff]
    %v4521 = vld [vmem:[%s4500 + $0xa0] sm:$0xff]
    %v4522 = vld [vmem:[%s4500 + $0xa8] sm:$0xff]
    %v4523 = vld [vmem:[%s4500 + $0xb0] sm:$0xff]
    %v4524 = vld [vmem:[%s4500 + $0xb8] sm:$0xff]
    %v4525 = vld [vmem:[%s4500 + $0xc0] sm:$0xff]
    %v4526 = vld [vmem:[%s4500 + $0xc8] sm:$0xff]
    %v4527 = vld [vmem:[%s4500 + $0xd0] sm:$0xff]
    %v4528 = vld [vmem:[%s4500 + $0xd8] sm:$0xff]
    %v4529 = vld [vmem:[%s4500 + $0xe0] sm:$0xff]
    %v4530 = vld [vmem:[%s4500 + $0xe8] sm:$0xff]
    %v4531 = vld [vmem:[%s4500 + $0xf0] sm:$0xff]
    %v4532 = vld [vmem:[%s4500 + $0xf8] sm:$0xff]
    %4533 = vmatprep.subr.bf16.mxu0 %v4502
    %4534 = vmatpush1.bf16.msra.mxu0 %v4501
    %4535 = vmatprep.subr.bf16.mxu0 %v4504
    %4536 = vmatpush1.bf16.msra.mxu0 %v4503
    %4537 = vmatprep.subr.bf16.mxu0 %v4506
    %4538 = vmatpush1.bf16.msra.mxu0 %v4505
    %4539 = vmatprep.subr.bf16.mxu0 %v4508
    %4540 = vmatpush1.bf16.msra.mxu0 %v4507
    %4541 = vmatprep.subr.bf16.mxu0 %v4510
    %4542 = vmatpush1.bf16.msra.mxu0 %v4509
    %4543 = vmatprep.subr.bf16.mxu0 %v4512
    %4544 = vmatpush1.bf16.msra.mxu0 %v4511
    %4545 = vmatprep.subr.bf16.mxu0 %v4514
    %4546 = vmatpush1.bf16.msra.mxu0 %v4513
    %4547 = vmatprep.subr.bf16.mxu0 %v4516
    %4548 = vmatpush1.bf16.msra.mxu0 %v4515
    %4549 = vmatprep.subr.bf16.mxu0 %v4518
    %4550 = vmatpush1.bf16.msra.mxu0 %v4517
    %4551 = vmatprep.subr.bf16.mxu0 %v4520
    %4552 = vmatpush1.bf16.msra.mxu0 %v4519
    %4553 = vmatprep.subr.bf16.mxu0 %v4522
    %4554 = vmatpush1.bf16.msra.mxu0 %v4521
    %4555 = vmatprep.subr.bf16.mxu0 %v4524
    %4556 = vmatpush1.bf16.msra.mxu0 %v4523
    %4557 = vmatprep.subr.bf16.mxu0 %v4526
    %4558 = vmatpush1.bf16.msra.mxu0 %v4525
    %4559 = vmatprep.subr.bf16.mxu0 %v4528
    %4560 = vmatpush1.bf16.msra.mxu0 %v4527
    %4561 = vmatprep.subr.bf16.mxu0 %v4530
    %4562 = vmatpush1.bf16.msra.mxu0 %v4529
    %4563 = vmatprep.subr.bf16.mxu0 %v4532
    %4564 = vmatpush1.bf16.msra.mxu0 %v4531
    %4565 = vmatprep.mubr.bf16.mxu0 %v4499
    %4566 = vmatmul.mubr.bf16.gmra.mrb[0].mxu0 %v4498
    %v4567 = vpop.f32.mrb[0].mxu0
    %v4568 = vadd.f32 0.0, %v4567
    %v4569 = vpop.f32.mrb[0].mxu0
    %v4570 = vadd.f32 0.0, %v4569
    %v4571 = vpop.f32.mrb[0].mxu0
    %v4572 = vpop.f32.mrb[0].mxu0
    %4573 = vdwg.mxu0
    %v4574 = vadd.f32 %v4272, %v4568
    %v4575 = vadd.f32 %v4274, %v4570
    %4576 = vmatprep.subr.bf16.mxu0 %v3221
    %4577 = vmatpush1.bf16.msra.mxu0 %v3220
    %4578 = vmatprep.subr.bf16.mxu0 %v3229
    %4579 = vmatpush1.bf16.msra.mxu0 %v3228
    %4580 = vmatprep.subr.bf16.mxu0 %v3237
    %4581 = vmatpush1.bf16.msra.mxu0 %v3236
    %4582 = vmatprep.subr.bf16.mxu0 %v3245
    %4583 = vmatpush1.bf16.msra.mxu0 %v3244
    %4584 = vmatprep.subr.bf16.mxu0 %v3253
    %4585 = vmatpush1.bf16.msra.mxu0 %v3252
    %4586 = vmatprep.subr.bf16.mxu0 %v3261
    %4587 = vmatpush1.bf16.msra.mxu0 %v3260
    %4588 = vmatprep.subr.bf16.mxu0 %v3269
    %4589 = vmatpush1.bf16.msra.mxu0 %v3268
    %4590 = vmatprep.subr.bf16.mxu0 %v3277
    %4591 = vmatpush1.bf16.msra.mxu0 %v3276
    %4592 = vmatprep.subr.bf16.mxu0 %v3285
    %4593 = vmatpush1.bf16.msra.mxu0 %v3284
    %4594 = vmatprep.subr.bf16.mxu0 %v3293
    %4595 = vmatpush1.bf16.msra.mxu0 %v3292
    %4596 = vmatprep.subr.bf16.mxu0 %v3301
    %4597 = vmatpush1.bf16.msra.mxu0 %v3300
    %4598 = vmatprep.subr.bf16.mxu0 %v3309
    %4599 = vmatpush1.bf16.msra.mxu0 %v3308
    %4600 = vmatprep.subr.bf16.mxu0 %v3317
    %4601 = vmatpush1.bf16.msra.mxu0 %v3316
    %4602 = vmatprep.subr.bf16.mxu0 %v3325
    %4603 = vmatpush1.bf16.msra.mxu0 %v3324
    %4604 = vmatprep.subr.bf16.mxu0 %v3333
    %4605 = vmatpush1.bf16.msra.mxu0 %v3332
    %4606 = vmatprep.subr.bf16.mxu0 %v3341
    %4607 = vmatpush1.bf16.msra.mxu0 %v3340
    %4608 = vmatprep.mubr.bf16.mxu0 %v4499
    %4609 = vmatmul.mubr.bf16.gmra.mrb[0].mxu0 %v4498
    %v4610 = vpop.f32.mrb[0].mxu0
    %v4611 = vadd.f32 0.0, %v4610
    %v4612 = vpop.f32.mrb[0].mxu0
    %v4613 = vadd.f32 0.0, %v4612
    %v4614 = vpop.f32.mrb[0].mxu0
    %v4615 = vpop.f32.mrb[0].mxu0
    %4616 = vdwg.mxu0
    %4617 = vmatprep.subr.bf16.mxu0 %v3223
    %4618 = vmatpush1.bf16.msra.mxu0 %v3222
    %4619 = vmatprep.subr.bf16.mxu0 %v3231
    %4620 = vmatpush1.bf16.msra.mxu0 %v3230
    %4621 = vmatprep.subr.bf16.mxu0 %v3239
    %4622 = vmatpush1.bf16.msra.mxu0 %v3238
    %4623 = vmatprep.subr.bf16.mxu0 %v3247
    %4624 = vmatpush1.bf16.msra.mxu0 %v3246
    %4625 = vmatprep.subr.bf16.mxu0 %v3255
    %4626 = vmatpush1.bf16.msra.mxu0 %v3254
    %4627 = vmatprep.subr.bf16.mxu0 %v3263
    %4628 = vmatpush1.bf16.msra.mxu0 %v3262
    %4629 = vmatprep.subr.bf16.mxu0 %v3271
    %4630 = vmatpush1.bf16.msra.mxu0 %v3270
    %4631 = vmatprep.subr.bf16.mxu0 %v3279
    %4632 = vmatpush1.bf16.msra.mxu0 %v3278
    %4633 = vmatprep.subr.bf16.mxu0 %v3287
    %4634 = vmatpush1.bf16.msra.mxu0 %v3286
    %4635 = vmatprep.subr.bf16.mxu0 %v3295
    %4636 = vmatpush1.bf16.msra.mxu0 %v3294
    %4637 = vmatprep.subr.bf16.mxu0 %v3303
    %4638 = vmatpush1.bf16.msra.mxu0 %v3302
    %4639 = vmatprep.subr.bf16.mxu0 %v3311
    %4640 = vmatpush1.bf16.msra.mxu0 %v3310
    %4641 = vmatprep.subr.bf16.mxu0 %v3319
    %4642 = vmatpush1.bf16.msra.mxu0 %v3318
    %4643 = vmatprep.subr.bf16.mxu0 %v3327
    %4644 = vmatpush1.bf16.msra.mxu0 %v3326
    %4645 = vmatprep.subr.bf16.mxu0 %v3335
    %4646 = vmatpush1.bf16.msra.mxu0 %v3334
    %4647 = vmatprep.subr.bf16.mxu0 %v3343
    %4648 = vmatpush1.bf16.msra.mxu0 %v3342
    %4649 = vmatprep.mubr.bf16.mxu0 %v4499
    %4650 = vmatmul.mubr.bf16.gmra.mrb[0].mxu0 %v4498
    %v4651 = vpop.f32.mrb[0].mxu0
    %v4652 = vadd.f32 0.0, %v4651
    %v4653 = vpop.f32.mrb[0].mxu0
    %v4654 = vadd.f32 0.0, %v4653
    %v4655 = vpop.f32.mrb[0].mxu0
    %v4656 = vpop.f32.mrb[0].mxu0
    %4657 = vdwg.mxu0
    %4658 = vmatprep.subr.bf16.mxu0 %v3225
    %4659 = vmatpush1.bf16.msra.mxu0 %v3224
    %4660 = vmatprep.subr.bf16.mxu0 %v3233
    %4661 = vmatpush1.bf16.msra.mxu0 %v3232
    %4662 = vmatprep.subr.bf16.mxu0 %v3241
    %4663 = vmatpush1.bf16.msra.mxu0 %v3240
    %4664 = vmatprep.subr.bf16.mxu0 %v3249
    %4665 = vmatpush1.bf16.msra.mxu0 %v3248
    %4666 = vmatprep.subr.bf16.mxu0 %v3257
    %4667 = vmatpush1.bf16.msra.mxu0 %v3256
    %4668 = vmatprep.subr.bf16.mxu0 %v3265
    %4669 = vmatpush1.bf16.msra.mxu0 %v3264
    %4670 = vmatprep.subr.bf16.mxu0 %v3273
    %4671 = vmatpush1.bf16.msra.mxu0 %v3272
    %4672 = vmatprep.subr.bf16.mxu0 %v3281
    %4673 = vmatpush1.bf16.msra.mxu0 %v3280
    %4674 = vmatprep.subr.bf16.mxu0 %v3289
    %4675 = vmatpush1.bf16.msra.mxu0 %v3288
    %4676 = vmatprep.subr.bf16.mxu0 %v3297
    %4677 = vmatpush1.bf16.msra.mxu0 %v3296
    %4678 = vmatprep.subr.bf16.mxu0 %v3305
    %4679 = vmatpush1.bf16.msra.mxu0 %v3304
    %4680 = vmatprep.subr.bf16.mxu0 %v3313
    %4681 = vmatpush1.bf16.msra.mxu0 %v3312
    %4682 = vmatprep.subr.bf16.mxu0 %v3321
    %4683 = vmatpush1.bf16.msra.mxu0 %v3320
    %4684 = vmatprep.subr.bf16.mxu0 %v3329
    %4685 = vmatpush1.bf16.msra.mxu0 %v3328
    %4686 = vmatprep.subr.bf16.mxu0 %v3337
    %4687 = vmatpush1.bf16.msra.mxu0 %v3336
    %4688 = vmatprep.subr.bf16.mxu0 %v3345
    %4689 = vmatpush1.bf16.msra.mxu0 %v3344
    %4690 = vmatprep.mubr.bf16.mxu0 %v4499
    %4691 = vmatmul.mubr.bf16.gmra.mrb[0].mxu0 %v4498
    %v4692 = vpop.f32.mrb[0].mxu0
    %v4693 = vadd.f32 0.0, %v4692
    %v4694 = vpop.f32.mrb[0].mxu0
    %v4695 = vadd.f32 0.0, %v4694
    %v4696 = vpop.f32.mrb[0].mxu0
    %v4697 = vpop.f32.mrb[0].mxu0
    %4698 = vdwg.mxu0
    %4699 = vmatprep.subr.bf16.mxu0 %v3227
    %4700 = vmatpush1.bf16.msra.mxu0 %v3226
    %4701 = vmatprep.subr.bf16.mxu0 %v3235
    %4702 = vmatpush1.bf16.msra.mxu0 %v3234
    %4703 = vmatprep.subr.bf16.mxu0 %v3243
    %4704 = vmatpush1.bf16.msra.mxu0 %v3242
    %4705 = vmatprep.subr.bf16.mxu0 %v3251
    %4706 = vmatpush1.bf16.msra.mxu0 %v3250
    %4707 = vmatprep.subr.bf16.mxu0 %v3259
    %4708 = vmatpush1.bf16.msra.mxu0 %v3258
    %4709 = vmatprep.subr.bf16.mxu0 %v3267
    %4710 = vmatpush1.bf16.msra.mxu0 %v3266
    %4711 = vmatprep.subr.bf16.mxu0 %v3275
    %4712 = vmatpush1.bf16.msra.mxu0 %v3274
    %4713 = vmatprep.subr.bf16.mxu0 %v3283
    %4714 = vmatpush1.bf16.msra.mxu0 %v3282
    %4715 = vmatprep.subr.bf16.mxu0 %v3291
    %4716 = vmatpush1.bf16.msra.mxu0 %v3290
    %4717 = vmatprep.subr.bf16.mxu0 %v3299
    %4718 = vmatpush1.bf16.msra.mxu0 %v3298
    %4719 = vmatprep.subr.bf16.mxu0 %v3307
    %4720 = vmatpush1.bf16.msra.mxu0 %v3306
    %4721 = vmatprep.subr.bf16.mxu0 %v3315
    %4722 = vmatpush1.bf16.msra.mxu0 %v3314
    %4723 = vmatprep.subr.bf16.mxu0 %v3323
    %4724 = vmatpush1.bf16.msra.mxu0 %v3322
    %4725 = vmatprep.subr.bf16.mxu0 %v3331
    %4726 = vmatpush1.bf16.msra.mxu0 %v3330
    %4727 = vmatprep.subr.bf16.mxu0 %v3339
    %4728 = vmatpush1.bf16.msra.mxu0 %v3338
    %4729 = vmatprep.subr.bf16.mxu0 %v3347
    %4730 = vmatpush1.bf16.msra.mxu0 %v3346
    %4731 = vmatprep.mubr.bf16.mxu0 %v4499
    %4732 = vmatmul.mubr.bf16.gmra.mrb[0].mxu0 %v4498
    %v4733 = vpop.f32.mrb[0].mxu0
    %v4734 = vadd.f32 0.0, %v4733
    %v4735 = vpop.f32.mrb[0].mxu0
    %v4736 = vadd.f32 0.0, %v4735
    %v4737 = vpop.f32.mrb[0].mxu0
    %v4738 = vpop.f32.mrb[0].mxu0
    %4739 = vdwg.mxu0
    %v4740 = vadd.f32 %v3439, %v4611
    %v4741 = vadd.f32 %v3441, %v4613
    %v4742 = vadd.f32 %v3512, %v4652
    %v4743 = vadd.f32 %v3514, %v4654
    %v4744 = vadd.f32 %v3585, %v4693
    %v4745 = vadd.f32 %v3587, %v4695
    %v4746 = vadd.f32 %v3658, %v4734
    %v4747 = vadd.f32 %v3660, %v4736
    %v4748 = vxor.u32 %v4740, 2147483648
    %v4749 = vxor.u32 %v4741, 2147483648
    %v4750 = vxor.u32 %v4742, 2147483648
    %v4751 = vxor.u32 %v4743, 2147483648
    %v4752 = vxor.u32 %v4744, 2147483648
    %v4753 = vxor.u32 %v4745, 2147483648
    %v4754 = vmul.f32 %v4748, 1.442695
    %v4755 = vpow.pop %v4754
    %v4756 = vmul.f32 %v4749, 1.442695
    %v4757 = vpow.pop %v4756
    %v4758 = vmul.f32 %v4750, 1.442695
    %v4759 = vpow.pop %v4758
    %v4760 = vmul.f32 %v4751, 1.442695
    %v4761 = vpow.pop %v4760
    %v4762 = vmul.f32 %v4752, 1.442695
    %v4763 = vpow.pop %v4762
    %v4764 = vmul.f32 %v4753, 1.442695
    %v4765 = vpow.pop %v4764
    %v4766 = vadd.f32 %v4755, 1.0
    %v4767 = vadd.f32 %v4757, 1.0
    %v4768 = vadd.f32 %v4759, 1.0
    %v4769 = vadd.f32 %v4761, 1.0
    %v4770 = vadd.f32 %v4763, 1.0
    %v4771 = vadd.f32 %v4765, 1.0
    %v4772 = vrcp.pop %v4766
    %v4773 = vmul.f32 1.0, %v4772
    %v4774 = vrcp.pop %v4767
    %v4775 = vmul.f32 1.0, %v4774
    %v4776 = vrcp.pop %v4768
    %v4777 = vmul.f32 1.0, %v4776
    %v4778 = vrcp.pop %v4769
    %v4779 = vmul.f32 1.0, %v4778
    %v4780 = vrcp.pop %v4770
    %v4781 = vmul.f32 1.0, %v4780
    %v4782 = vrcp.pop %v4771
    %v4783 = vmul.f32 1.0, %v4782
    %v4784 = vtanh.pop %v4746
    %v4785 = vtanh.pop %v4747
    %v4786 = vmul.f32 %v4777, %v4492
    %v4787 = vmul.f32 %v4779, %v4493
    %v4788 = vmul.f32 %v4773, %v4784
    %v4789 = vmul.f32 %v4775, %v4785
    %v4790 = vadd.f32 %v4786, %v4788
    %v4791 = vadd.f32 %v4787, %v4789
    %v4792 = vtanh.pop %v4790
    %v4793 = vtanh.pop %v4791
    %v4794 = vmul.f32 %v4781, %v4792
    %v4795 = vmul.f32 %v4783, %v4793
    %v4796 = vpack.c.bf16 %v4794, %v4794
    %v4797 = vpack.c.bf16 %v4795, %v4795
    %s4798 = scalar_lea.vmem [#allocation4], 768
    %v4799 = vld [vmem:[%s4798] sm:$0xff]
    %v4800 = vld [vmem:[%s4798 + $0x8] sm:$0xff]
    %v4801 = vld [vmem:[%s4798 + $0x10] sm:$0xff]
    %v4802 = vld [vmem:[%s4798 + $0x18] sm:$0xff]
    %v4803 = vld [vmem:[%s4798 + $0x20] sm:$0xff]
    %v4804 = vld [vmem:[%s4798 + $0x28] sm:$0xff]
    %v4805 = vld [vmem:[%s4798 + $0x30] sm:$0xff]
    %v4806 = vld [vmem:[%s4798 + $0x38] sm:$0xff]
    %v4807 = vld [vmem:[%s4798 + $0x40] sm:$0xff]
    %v4808 = vld [vmem:[%s4798 + $0x48] sm:$0xff]
    %v4809 = vld [vmem:[%s4798 + $0x50] sm:$0xff]
    %v4810 = vld [vmem:[%s4798 + $0x58] sm:$0xff]
    %v4811 = vld [vmem:[%s4798 + $0x60] sm:$0xff]
    %v4812 = vld [vmem:[%s4798 + $0x68] sm:$0xff]
    %v4813 = vld [vmem:[%s4798 + $0x70] sm:$0xff]
    %v4814 = vld [vmem:[%s4798 + $0x78] sm:$0xff]
    %v4815 = vld [vmem:[%s4798 + $0x80] sm:$0xff]
    %v4816 = vld [vmem:[%s4798 + $0x88] sm:$0xff]
    %v4817 = vld [vmem:[%s4798 + $0x90] sm:$0xff]
    %v4818 = vld [vmem:[%s4798 + $0x98] sm:$0xff]
    %v4819 = vld [vmem:[%s4798 + $0xa0] sm:$0xff]
    %v4820 = vld [vmem:[%s4798 + $0xa8] sm:$0xff]
    %v4821 = vld [vmem:[%s4798 + $0xb0] sm:$0xff]
    %v4822 = vld [vmem:[%s4798 + $0xb8] sm:$0xff]
    %v4823 = vld [vmem:[%s4798 + $0xc0] sm:$0xff]
    %v4824 = vld [vmem:[%s4798 + $0xc8] sm:$0xff]
    %v4825 = vld [vmem:[%s4798 + $0xd0] sm:$0xff]
    %v4826 = vld [vmem:[%s4798 + $0xd8] sm:$0xff]
    %v4827 = vld [vmem:[%s4798 + $0xe0] sm:$0xff]
    %v4828 = vld [vmem:[%s4798 + $0xe8] sm:$0xff]
    %v4829 = vld [vmem:[%s4798 + $0xf0] sm:$0xff]
    %v4830 = vld [vmem:[%s4798 + $0xf8] sm:$0xff]
    %4831 = vmatprep.subr.bf16.mxu0 %v4800
    %4832 = vmatpush1.bf16.msra.mxu0 %v4799
    %4833 = vmatprep.subr.bf16.mxu0 %v4802
    %4834 = vmatpush1.bf16.msra.mxu0 %v4801
    %4835 = vmatprep.subr.bf16.mxu0 %v4804
    %4836 = vmatpush1.bf16.msra.mxu0 %v4803
    %4837 = vmatprep.subr.bf16.mxu0 %v4806
    %4838 = vmatpush1.bf16.msra.mxu0 %v4805
    %4839 = vmatprep.subr.bf16.mxu0 %v4808
    %4840 = vmatpush1.bf16.msra.mxu0 %v4807
    %4841 = vmatprep.subr.bf16.mxu0 %v4810
    %4842 = vmatpush1.bf16.msra.mxu0 %v4809
    %4843 = vmatprep.subr.bf16.mxu0 %v4812
    %4844 = vmatpush1.bf16.msra.mxu0 %v4811
    %4845 = vmatprep.subr.bf16.mxu0 %v4814
    %4846 = vmatpush1.bf16.msra.mxu0 %v4813
    %4847 = vmatprep.subr.bf16.mxu0 %v4816
    %4848 = vmatpush1.bf16.msra.mxu0 %v4815
    %4849 = vmatprep.subr.bf16.mxu0 %v4818
    %4850 = vmatpush1.bf16.msra.mxu0 %v4817
    %4851 = vmatprep.subr.bf16.mxu0 %v4820
    %4852 = vmatpush1.bf16.msra.mxu0 %v4819
    %4853 = vmatprep.subr.bf16.mxu0 %v4822
    %4854 = vmatpush1.bf16.msra.mxu0 %v4821
    %4855 = vmatprep.subr.bf16.mxu0 %v4824
    %4856 = vmatpush1.bf16.msra.mxu0 %v4823
    %4857 = vmatprep.subr.bf16.mxu0 %v4826
    %4858 = vmatpush1.bf16.msra.mxu0 %v4825
    %4859 = vmatprep.subr.bf16.mxu0 %v4828
    %4860 = vmatpush1.bf16.msra.mxu0 %v4827
    %4861 = vmatprep.subr.bf16.mxu0 %v4830
    %4862 = vmatpush1.bf16.msra.mxu0 %v4829
    %4863 = vmatprep.mubr.bf16.mxu0 %v4797
    %4864 = vmatmul.mubr.bf16.gmra.mrb[0].mxu0 %v4796
    %v4865 = vpop.f32.mrb[0].mxu0
    %v4866 = vadd.f32 0.0, %v4865
    %v4867 = vpop.f32.mrb[0].mxu0
    %v4868 = vadd.f32 0.0, %v4867
    %v4869 = vpop.f32.mrb[0].mxu0
    %v4870 = vpop.f32.mrb[0].mxu0
    %4871 = vdwg.mxu0
    %v4872 = vadd.f32 %v4574, %v4866
    %v4873 = vadd.f32 %v4575, %v4868
    %4874 = vmatprep.subr.bf16.mxu0 %v3221
    %4875 = vmatpush1.bf16.msra.mxu0 %v3220
    %4876 = vmatprep.subr.bf16.mxu0 %v3229
    %4877 = vmatpush1.bf16.msra.mxu0 %v3228
    %4878 = vmatprep.subr.bf16.mxu0 %v3237
    %4879 = vmatpush1.bf16.msra.mxu0 %v3236
    %4880 = vmatprep.subr.bf16.mxu0 %v3245
    %4881 = vmatpush1.bf16.msra.mxu0 %v3244
    %4882 = vmatprep.subr.bf16.mxu0 %v3253
    %4883 = vmatpush1.bf16.msra.mxu0 %v3252
    %4884 = vmatprep.subr.bf16.mxu0 %v3261
    %4885 = vmatpush1.bf16.msra.mxu0 %v3260
    %4886 = vmatprep.subr.bf16.mxu0 %v3269
    %4887 = vmatpush1.bf16.msra.mxu0 %v3268
    %4888 = vmatprep.subr.bf16.mxu0 %v3277
    %4889 = vmatpush1.bf16.msra.mxu0 %v3276
    %4890 = vmatprep.subr.bf16.mxu0 %v3285
    %4891 = vmatpush1.bf16.msra.mxu0 %v3284
    %4892 = vmatprep.subr.bf16.mxu0 %v3293
    %4893 = vmatpush1.bf16.msra.mxu0 %v3292
    %4894 = vmatprep.subr.bf16.mxu0 %v3301
    %4895 = vmatpush1.bf16.msra.mxu0 %v3300
    %4896 = vmatprep.subr.bf16.mxu0 %v3309
    %4897 = vmatpush1.bf16.msra.mxu0 %v3308
    %4898 = vmatprep.subr.bf16.mxu0 %v3317
    %4899 = vmatpush1.bf16.msra.mxu0 %v3316
    %4900 = vmatprep.subr.bf16.mxu0 %v3325
    %4901 = vmatpush1.bf16.msra.mxu0 %v3324
    %4902 = vmatprep.subr.bf16.mxu0 %v3333
    %4903 = vmatpush1.bf16.msra.mxu0 %v3332
    %4904 = vmatprep.subr.bf16.mxu0 %v3341
    %4905 = vmatpush1.bf16.msra.mxu0 %v3340
    %4906 = vmatprep.mubr.bf16.mxu0 %v4797
    %4907 = vmatmul.mubr.bf16.gmra.mrb[0].mxu0 %v4796
    %v4908 = vpop.f32.mrb[0].mxu0
    %v4909 = vadd.f32 0.0, %v4908
    %v4910 = vpop.f32.mrb[0].mxu0
    %v4911 = vadd.f32 0.0, %v4910
    %v4912 = vpop.f32.mrb[0].mxu0
    %v4913 = vpop.f32.mrb[0].mxu0
    %4914 = vdwg.mxu0
    %4915 = vmatprep.subr.bf16.mxu0 %v3223
    %4916 = vmatpush1.bf16.msra.mxu0 %v3222
    %4917 = vmatprep.subr.bf16.mxu0 %v3231
    %4918 = vmatpush1.bf16.msra.mxu0 %v3230
    %4919 = vmatprep.subr.bf16.mxu0 %v3239
    %4920 = vmatpush1.bf16.msra.mxu0 %v3238
    %4921 = vmatprep.subr.bf16.mxu0 %v3247
    %4922 = vmatpush1.bf16.msra.mxu0 %v3246
    %4923 = vmatprep.subr.bf16.mxu0 %v3255
    %4924 = vmatpush1.bf16.msra.mxu0 %v3254
    %4925 = vmatprep.subr.bf16.mxu0 %v3263
    %4926 = vmatpush1.bf16.msra.mxu0 %v3262
    %4927 = vmatprep.subr.bf16.mxu0 %v3271
    %4928 = vmatpush1.bf16.msra.mxu0 %v3270
    %4929 = vmatprep.subr.bf16.mxu0 %v3279
    %4930 = vmatpush1.bf16.msra.mxu0 %v3278
    %4931 = vmatprep.subr.bf16.mxu0 %v3287
    %4932 = vmatpush1.bf16.msra.mxu0 %v3286
    %4933 = vmatprep.subr.bf16.mxu0 %v3295
    %4934 = vmatpush1.bf16.msra.mxu0 %v3294
    %4935 = vmatprep.subr.bf16.mxu0 %v3303
    %4936 = vmatpush1.bf16.msra.mxu0 %v3302
    %4937 = vmatprep.subr.bf16.mxu0 %v3311
    %4938 = vmatpush1.bf16.msra.mxu0 %v3310
    %4939 = vmatprep.subr.bf16.mxu0 %v3319
    %4940 = vmatpush1.bf16.msra.mxu0 %v3318
    %4941 = vmatprep.subr.bf16.mxu0 %v3327
    %4942 = vmatpush1.bf16.msra.mxu0 %v3326
    %4943 = vmatprep.subr.bf16.mxu0 %v3335
    %4944 = vmatpush1.bf16.msra.mxu0 %v3334
    %4945 = vmatprep.subr.bf16.mxu0 %v3343
    %4946 = vmatpush1.bf16.msra.mxu0 %v3342
    %4947 = vmatprep.mubr.bf16.mxu0 %v4797
    %4948 = vmatmul.mubr.bf16.gmra.mrb[0].mxu0 %v4796
    %v4949 = vpop.f32.mrb[0].mxu0
    %v4950 = vadd.f32 0.0, %v4949
    %v4951 = vpop.f32.mrb[0].mxu0
    %v4952 = vadd.f32 0.0, %v4951
    %v4953 = vpop.f32.mrb[0].mxu0
    %v4954 = vpop.f32.mrb[0].mxu0
    %4955 = vdwg.mxu0
    %4956 = vmatprep.subr.bf16.mxu0 %v3225
    %4957 = vmatpush1.bf16.msra.mxu0 %v3224
    %4958 = vmatprep.subr.bf16.mxu0 %v3233
    %4959 = vmatpush1.bf16.msra.mxu0 %v3232
    %4960 = vmatprep.subr.bf16.mxu0 %v3241
    %4961 = vmatpush1.bf16.msra.mxu0 %v3240
    %4962 = vmatprep.subr.bf16.mxu0 %v3249
    %4963 = vmatpush1.bf16.msra.mxu0 %v3248
    %4964 = vmatprep.subr.bf16.mxu0 %v3257
    %4965 = vmatpush1.bf16.msra.mxu0 %v3256
    %4966 = vmatprep.subr.bf16.mxu0 %v3265
    %4967 = vmatpush1.bf16.msra.mxu0 %v3264
    %4968 = vmatprep.subr.bf16.mxu0 %v3273
    %4969 = vmatpush1.bf16.msra.mxu0 %v3272
    %4970 = vmatprep.subr.bf16.mxu0 %v3281
    %4971 = vmatpush1.bf16.msra.mxu0 %v3280
    %4972 = vmatprep.subr.bf16.mxu0 %v3289
    %4973 = vmatpush1.bf16.msra.mxu0 %v3288
    %4974 = vmatprep.subr.bf16.mxu0 %v3297
    %4975 = vmatpush1.bf16.msra.mxu0 %v3296
    %4976 = vmatprep.subr.bf16.mxu0 %v3305
    %4977 = vmatpush1.bf16.msra.mxu0 %v3304
    %4978 = vmatprep.subr.bf16.mxu0 %v3313
    %4979 = vmatpush1.bf16.msra.mxu0 %v3312
    %4980 = vmatprep.subr.bf16.mxu0 %v3321
    %4981 = vmatpush1.bf16.msra.mxu0 %v3320
    %4982 = vmatprep.subr.bf16.mxu0 %v3329
    %4983 = vmatpush1.bf16.msra.mxu0 %v3328
    %4984 = vmatprep.subr.bf16.mxu0 %v3337
    %4985 = vmatpush1.bf16.msra.mxu0 %v3336
    %4986 = vmatprep.subr.bf16.mxu0 %v3345
    %4987 = vmatpush1.bf16.msra.mxu0 %v3344
    %4988 = vmatprep.mubr.bf16.mxu0 %v4797
    %4989 = vmatmul.mubr.bf16.gmra.mrb[0].mxu0 %v4796
    %v4990 = vpop.f32.mrb[0].mxu0
    %v4991 = vadd.f32 0.0, %v4990
    %v4992 = vpop.f32.mrb[0].mxu0
    %v4993 = vadd.f32 0.0, %v4992
    %v4994 = vpop.f32.mrb[0].mxu0
    %v4995 = vpop.f32.mrb[0].mxu0
    %4996 = vdwg.mxu0
    %4997 = vmatprep.subr.bf16.mxu0 %v3227
    %4998 = vmatpush1.bf16.msra.mxu0 %v3226
    %4999 = vmatprep.subr.bf16.mxu0 %v3235
    %5000 = vmatpush1.bf16.msra.mxu0 %v3234
    %5001 = vmatprep.subr.bf16.mxu0 %v3243
    %5002 = vmatpush1.bf16.msra.mxu0 %v3242
    %5003 = vmatprep.subr.bf16.mxu0 %v3251
    %5004 = vmatpush1.bf16.msra.mxu0 %v3250
    %5005 = vmatprep.subr.bf16.mxu0 %v3259
    %5006 = vmatpush1.bf16.msra.mxu0 %v3258
    %5007 = vmatprep.subr.bf16.mxu0 %v3267
    %5008 = vmatpush1.bf16.msra.mxu0 %v3266
    %5009 = vmatprep.subr.bf16.mxu0 %v3275
    %5010 = vmatpush1.bf16.msra.mxu0 %v3274
    %5011 = vmatprep.subr.bf16.mxu0 %v3283
    %5012 = vmatpush1.bf16.msra.mxu0 %v3282
    %5013 = vmatprep.subr.bf16.mxu0 %v3291
    %5014 = vmatpush1.bf16.msra.mxu0 %v3290
    %5015 = vmatprep.subr.bf16.mxu0 %v3299
    %5016 = vmatpush1.bf16.msra.mxu0 %v3298
    %5017 = vmatprep.subr.bf16.mxu0 %v3307
    %5018 = vmatpush1.bf16.msra.mxu0 %v3306
    %5019 = vmatprep.subr.bf16.mxu0 %v3315
    %5020 = vmatpush1.bf16.msra.mxu0 %v3314
    %5021 = vmatprep.subr.bf16.mxu0 %v3323
    %5022 = vmatpush1.bf16.msra.mxu0 %v3322
    %5023 = vmatprep.subr.bf16.mxu0 %v3331
    %5024 = vmatpush1.bf16.msra.mxu0 %v3330
    %5025 = vmatprep.subr.bf16.mxu0 %v3339
    %5026 = vmatpush1.bf16.msra.mxu0 %v3338
    %5027 = vmatprep.subr.bf16.mxu0 %v3347
    %5028 = vmatpush1.bf16.msra.mxu0 %v3346
    %5029 = vmatprep.mubr.bf16.mxu0 %v4797
    %5030 = vmatmul.mubr.bf16.gmra.mrb[0].mxu0 %v4796
    %v5031 = vpop.f32.mrb[0].mxu0
    %v5032 = vadd.f32 0.0, %v5031
    %v5033 = vpop.f32.mrb[0].mxu0
    %v5034 = vadd.f32 0.0, %v5033
    %v5035 = vpop.f32.mrb[0].mxu0
    %v5036 = vpop.f32.mrb[0].mxu0
    %5037 = vdwg.mxu0
    %v5038 = vadd.f32 %v3445, %v4909
    %v5039 = vadd.f32 %v3447, %v4911
    %v5040 = vadd.f32 %v3518, %v4950
    %v5041 = vadd.f32 %v3520, %v4952
    %v5042 = vadd.f32 %v3591, %v4991
    %v5043 = vadd.f32 %v3593, %v4993
    %v5044 = vadd.f32 %v3664, %v5032
    %v5045 = vadd.f32 %v3666, %v5034
    %v5046 = vxor.u32 %v5038, 2147483648
    %v5047 = vxor.u32 %v5039, 2147483648
    %v5048 = vxor.u32 %v5040, 2147483648
    %v5049 = vxor.u32 %v5041, 2147483648
    %v5050 = vxor.u32 %v5042, 2147483648
    %v5051 = vxor.u32 %v5043, 2147483648
    %v5052 = vmul.f32 %v5046, 1.442695
    %v5053 = vpow.pop %v5052
    %v5054 = vmul.f32 %v5047, 1.442695
    %v5055 = vpow.pop %v5054
    %v5056 = vmul.f32 %v5048, 1.442695
    %v5057 = vpow.pop %v5056
    %v5058 = vmul.f32 %v5049, 1.442695
    %v5059 = vpow.pop %v5058
    %v5060 = vmul.f32 %v5050, 1.442695
    %v5061 = vpow.pop %v5060
    %v5062 = vmul.f32 %v5051, 1.442695
    %v5063 = vpow.pop %v5062
    %v5064 = vadd.f32 %v5053, 1.0
    %v5065 = vadd.f32 %v5055, 1.0
    %v5066 = vadd.f32 %v5057, 1.0
    %v5067 = vadd.f32 %v5059, 1.0
    %v5068 = vadd.f32 %v5061, 1.0
    %v5069 = vadd.f32 %v5063, 1.0
    %v5070 = vrcp.pop %v5064
    %v5071 = vmul.f32 1.0, %v5070
    %v5072 = vrcp.pop %v5065
    %v5073 = vmul.f32 1.0, %v5072
    %v5074 = vrcp.pop %v5066
    %v5075 = vmul.f32 1.0, %v5074
    %v5076 = vrcp.pop %v5067
    %v5077 = vmul.f32 1.0, %v5076
    %v5078 = vrcp.pop %v5068
    %v5079 = vmul.f32 1.0, %v5078
    %v5080 = vrcp.pop %v5069
    %v5081 = vmul.f32 1.0, %v5080
    %v5082 = vtanh.pop %v5044
    %v5083 = vtanh.pop %v5045
    %v5084 = vmul.f32 %v5075, %v4790
    %v5085 = vmul.f32 %v5077, %v4791
    %v5086 = vmul.f32 %v5071, %v5082
    %v5087 = vmul.f32 %v5073, %v5083
    %v5088 = vadd.f32 %v5084, %v5086
    %v5089 = vadd.f32 %v5085, %v5087
    %v5090 = vtanh.pop %v5088
    %v5091 = vtanh.pop %v5089
    %v5092 = vmul.f32 %v5079, %v5090
    %v5093 = vmul.f32 %v5081, %v5091
    %v5094 = vpack.c.bf16 %v5092, %v5092
    %v5095 = vpack.c.bf16 %v5093, %v5093
    %s5096 = scalar_lea.vmem [#allocation4], 1024
    %v5097 = vld [vmem:[%s5096] sm:$0xff]
    %v5098 = vld [vmem:[%s5096 + $0x8] sm:$0xff]
    %v5099 = vld [vmem:[%s5096 + $0x10] sm:$0xff]
    %v5100 = vld [vmem:[%s5096 + $0x18] sm:$0xff]
    %v5101 = vld [vmem:[%s5096 + $0x20] sm:$0xff]
    %v5102 = vld [vmem:[%s5096 + $0x28] sm:$0xff]
    %v5103 = vld [vmem:[%s5096 + $0x30] sm:$0xff]
    %v5104 = vld [vmem:[%s5096 + $0x38] sm:$0xff]
    %v5105 = vld [vmem:[%s5096 + $0x40] sm:$0xff]
    %v5106 = vld [vmem:[%s5096 + $0x48] sm:$0xff]
    %v5107 = vld [vmem:[%s5096 + $0x50] sm:$0xff]
    %v5108 = vld [vmem:[%s5096 + $0x58] sm:$0xff]
    %v5109 = vld [vmem:[%s5096 + $0x60] sm:$0xff]
    %v5110 = vld [vmem:[%s5096 + $0x68] sm:$0xff]
    %v5111 = vld [vmem:[%s5096 + $0x70] sm:$0xff]
    %v5112 = vld [vmem:[%s5096 + $0x78] sm:$0xff]
    %v5113 = vld [vmem:[%s5096 + $0x80] sm:$0xff]
    %v5114 = vld [vmem:[%s5096 + $0x88] sm:$0xff]
    %v5115 = vld [vmem:[%s5096 + $0x90] sm:$0xff]
    %v5116 = vld [vmem:[%s5096 + $0x98] sm:$0xff]
    %v5117 = vld [vmem:[%s5096 + $0xa0] sm:$0xff]
    %v5118 = vld [vmem:[%s5096 + $0xa8] sm:$0xff]
    %v5119 = vld [vmem:[%s5096 + $0xb0] sm:$0xff]
    %v5120 = vld [vmem:[%s5096 + $0xb8] sm:$0xff]
    %v5121 = vld [vmem:[%s5096 + $0xc0] sm:$0xff]
    %v5122 = vld [vmem:[%s5096 + $0xc8] sm:$0xff]
    %v5123 = vld [vmem:[%s5096 + $0xd0] sm:$0xff]
    %v5124 = vld [vmem:[%s5096 + $0xd8] sm:$0xff]
    %v5125 = vld [vmem:[%s5096 + $0xe0] sm:$0xff]
    %v5126 = vld [vmem:[%s5096 + $0xe8] sm:$0xff]
    %v5127 = vld [vmem:[%s5096 + $0xf0] sm:$0xff]
    %v5128 = vld [vmem:[%s5096 + $0xf8] sm:$0xff]
    %5129 = vmatprep.subr.bf16.mxu0 %v5098
    %5130 = vmatpush1.bf16.msra.mxu0 %v5097
    %5131 = vmatprep.subr.bf16.mxu0 %v5100
    %5132 = vmatpush1.bf16.msra.mxu0 %v5099
    %5133 = vmatprep.subr.bf16.mxu0 %v5102
    %5134 = vmatpush1.bf16.msra.mxu0 %v5101
    %5135 = vmatprep.subr.bf16.mxu0 %v5104
    %5136 = vmatpush1.bf16.msra.mxu0 %v5103
    %5137 = vmatprep.subr.bf16.mxu0 %v5106
    %5138 = vmatpush1.bf16.msra.mxu0 %v5105
    %5139 = vmatprep.subr.bf16.mxu0 %v5108
    %5140 = vmatpush1.bf16.msra.mxu0 %v5107
    %5141 = vmatprep.subr.bf16.mxu0 %v5110
    %5142 = vmatpush1.bf16.msra.mxu0 %v5109
    %5143 = vmatprep.subr.bf16.mxu0 %v5112
    %5144 = vmatpush1.bf16.msra.mxu0 %v5111
    %5145 = vmatprep.subr.bf16.mxu0 %v5114
    %5146 = vmatpush1.bf16.msra.mxu0 %v5113
    %5147 = vmatprep.subr.bf16.mxu0 %v5116
    %5148 = vmatpush1.bf16.msra.mxu0 %v5115
    %5149 = vmatprep.subr.bf16.mxu0 %v5118
    %5150 = vmatpush1.bf16.msra.mxu0 %v5117
    %5151 = vmatprep.subr.bf16.mxu0 %v5120
    %5152 = vmatpush1.bf16.msra.mxu0 %v5119
    %5153 = vmatprep.subr.bf16.mxu0 %v5122
    %5154 = vmatpush1.bf16.msra.mxu0 %v5121
    %5155 = vmatprep.subr.bf16.mxu0 %v5124
    %5156 = vmatpush1.bf16.msra.mxu0 %v5123
    %5157 = vmatprep.subr.bf16.mxu0 %v5126
    %5158 = vmatpush1.bf16.msra.mxu0 %v5125
    %5159 = vmatprep.subr.bf16.mxu0 %v5128
    %5160 = vmatpush1.bf16.msra.mxu0 %v5127
    %5161 = vmatprep.mubr.bf16.mxu0 %v5095
    %5162 = vmatmul.mubr.bf16.gmra.mrb[0].mxu0 %v5094
    %v5163 = vpop.f32.mrb[0].mxu0
    %v5164 = vadd.f32 0.0, %v5163
    %v5165 = vpop.f32.mrb[0].mxu0
    %v5166 = vadd.f32 0.0, %v5165
    %v5167 = vpop.f32.mrb[0].mxu0
    %v5168 = vpop.f32.mrb[0].mxu0
    %5169 = vdwg.mxu0
    %v5170 = vadd.f32 %v4872, %v5164
    %v5171 = vadd.f32 %v4873, %v5166
    %5172 = vmatprep.subr.bf16.mxu0 %v3221
    %5173 = vmatpush1.bf16.msra.mxu0 %v3220
    %5174 = vmatprep.subr.bf16.mxu0 %v3229
    %5175 = vmatpush1.bf16.msra.mxu0 %v3228
    %5176 = vmatprep.subr.bf16.mxu0 %v3237
    %5177 = vmatpush1.bf16.msra.mxu0 %v3236
    %5178 = vmatprep.subr.bf16.mxu0 %v3245
    %5179 = vmatpush1.bf16.msra.mxu0 %v3244
    %5180 = vmatprep.subr.bf16.mxu0 %v3253
    %5181 = vmatpush1.bf16.msra.mxu0 %v3252
    %5182 = vmatprep.subr.bf16.mxu0 %v3261
    %5183 = vmatpush1.bf16.msra.mxu0 %v3260
    %5184 = vmatprep.subr.bf16.mxu0 %v3269
    %5185 = vmatpush1.bf16.msra.mxu0 %v3268
    %5186 = vmatprep.subr.bf16.mxu0 %v3277
    %5187 = vmatpush1.bf16.msra.mxu0 %v3276
    %5188 = vmatprep.subr.bf16.mxu0 %v3285
    %5189 = vmatpush1.bf16.msra.mxu0 %v3284
    %5190 = vmatprep.subr.bf16.mxu0 %v3293
    %5191 = vmatpush1.bf16.msra.mxu0 %v3292
    %5192 = vmatprep.subr.bf16.mxu0 %v3301
    %5193 = vmatpush1.bf16.msra.mxu0 %v3300
    %5194 = vmatprep.subr.bf16.mxu0 %v3309
    %5195 = vmatpush1.bf16.msra.mxu0 %v3308
    %5196 = vmatprep.subr.bf16.mxu0 %v3317
    %5197 = vmatpush1.bf16.msra.mxu0 %v3316
    %5198 = vmatprep.subr.bf16.mxu0 %v3325
    %5199 = vmatpush1.bf16.msra.mxu0 %v3324
    %5200 = vmatprep.subr.bf16.mxu0 %v3333
    %5201 = vmatpush1.bf16.msra.mxu0 %v3332
    %5202 = vmatprep.subr.bf16.mxu0 %v3341
    %5203 = vmatpush1.bf16.msra.mxu0 %v3340
    %5204 = vmatprep.mubr.bf16.mxu0 %v5095
    %5205 = vmatmul.mubr.bf16.gmra.mrb[0].mxu0 %v5094
    %v5206 = vpop.f32.mrb[0].mxu0
    %v5207 = vadd.f32 0.0, %v5206
    %v5208 = vpop.f32.mrb[0].mxu0
    %v5209 = vadd.f32 0.0, %v5208
    %v5210 = vpop.f32.mrb[0].mxu0
    %v5211 = vpop.f32.mrb[0].mxu0
    %5212 = vdwg.mxu0
    %5213 = vmatprep.subr.bf16.mxu0 %v3223
    %5214 = vmatpush1.bf16.msra.mxu0 %v3222
    %5215 = vmatprep.subr.bf16.mxu0 %v3231
    %5216 = vmatpush1.bf16.msra.mxu0 %v3230
    %5217 = vmatprep.subr.bf16.mxu0 %v3239
    %5218 = vmatpush1.bf16.msra.mxu0 %v3238
    %5219 = vmatprep.subr.bf16.mxu0 %v3247
    %5220 = vmatpush1.bf16.msra.mxu0 %v3246
    %5221 = vmatprep.subr.bf16.mxu0 %v3255
    %5222 = vmatpush1.bf16.msra.mxu0 %v3254
    %5223 = vmatprep.subr.bf16.mxu0 %v3263
    %5224 = vmatpush1.bf16.msra.mxu0 %v3262
    %5225 = vmatprep.subr.bf16.mxu0 %v3271
    %5226 = vmatpush1.bf16.msra.mxu0 %v3270
    %5227 = vmatprep.subr.bf16.mxu0 %v3279
    %5228 = vmatpush1.bf16.msra.mxu0 %v3278
    %5229 = vmatprep.subr.bf16.mxu0 %v3287
    %5230 = vmatpush1.bf16.msra.mxu0 %v3286
    %5231 = vmatprep.subr.bf16.mxu0 %v3295
    %5232 = vmatpush1.bf16.msra.mxu0 %v3294
    %5233 = vmatprep.subr.bf16.mxu0 %v3303
    %5234 = vmatpush1.bf16.msra.mxu0 %v3302
    %5235 = vmatprep.subr.bf16.mxu0 %v3311
    %5236 = vmatpush1.bf16.msra.mxu0 %v3310
    %5237 = vmatprep.subr.bf16.mxu0 %v3319
    %5238 = vmatpush1.bf16.msra.mxu0 %v3318
    %5239 = vmatprep.subr.bf16.mxu0 %v3327
    %5240 = vmatpush1.bf16.msra.mxu0 %v3326
    %5241 = vmatprep.subr.bf16.mxu0 %v3335
    %5242 = vmatpush1.bf16.msra.mxu0 %v3334
    %5243 = vmatprep.subr.bf16.mxu0 %v3343
    %5244 = vmatpush1.bf16.msra.mxu0 %v3342
    %5245 = vmatprep.mubr.bf16.mxu0 %v5095
    %5246 = vmatmul.mubr.bf16.gmra.mrb[0].mxu0 %v5094
    %v5247 = vpop.f32.mrb[0].mxu0
    %v5248 = vadd.f32 0.0, %v5247
    %v5249 = vpop.f32.mrb[0].mxu0
    %v5250 = vadd.f32 0.0, %v5249
    %v5251 = vpop.f32.mrb[0].mxu0
    %v5252 = vpop.f32.mrb[0].mxu0
    %5253 = vdwg.mxu0
    %5254 = vmatprep.subr.bf16.mxu0 %v3225
    %5255 = vmatpush1.bf16.msra.mxu0 %v3224
    %5256 = vmatprep.subr.bf16.mxu0 %v3233
    %5257 = vmatpush1.bf16.msra.mxu0 %v3232
    %5258 = vmatprep.subr.bf16.mxu0 %v3241
    %5259 = vmatpush1.bf16.msra.mxu0 %v3240
    %5260 = vmatprep.subr.bf16.mxu0 %v3249
    %5261 = vmatpush1.bf16.msra.mxu0 %v3248
    %5262 = vmatprep.subr.bf16.mxu0 %v3257
    %5263 = vmatpush1.bf16.msra.mxu0 %v3256
    %5264 = vmatprep.subr.bf16.mxu0 %v3265
    %5265 = vmatpush1.bf16.msra.mxu0 %v3264
    %5266 = vmatprep.subr.bf16.mxu0 %v3273
    %5267 = vmatpush1.bf16.msra.mxu0 %v3272
    %5268 = vmatprep.subr.bf16.mxu0 %v3281
    %5269 = vmatpush1.bf16.msra.mxu0 %v3280
    %5270 = vmatprep.subr.bf16.mxu0 %v3289
    %5271 = vmatpush1.bf16.msra.mxu0 %v3288
    %5272 = vmatprep.subr.bf16.mxu0 %v3297
    %5273 = vmatpush1.bf16.msra.mxu0 %v3296
    %5274 = vmatprep.subr.bf16.mxu0 %v3305
    %5275 = vmatpush1.bf16.msra.mxu0 %v3304
    %5276 = vmatprep.subr.bf16.mxu0 %v3313
    %5277 = vmatpush1.bf16.msra.mxu0 %v3312
    %5278 = vmatprep.subr.bf16.mxu0 %v3321
    %5279 = vmatpush1.bf16.msra.mxu0 %v3320
    %5280 = vmatprep.subr.bf16.mxu0 %v3329
    %5281 = vmatpush1.bf16.msra.mxu0 %v3328
    %5282 = vmatprep.subr.bf16.mxu0 %v3337
    %5283 = vmatpush1.bf16.msra.mxu0 %v3336
    %5284 = vmatprep.subr.bf16.mxu0 %v3345
    %5285 = vmatpush1.bf16.msra.mxu0 %v3344
    %5286 = vmatprep.mubr.bf16.mxu0 %v5095
    %5287 = vmatmul.mubr.bf16.gmra.mrb[0].mxu0 %v5094
    %v5288 = vpop.f32.mrb[0].mxu0
    %v5289 = vadd.f32 0.0, %v5288
    %v5290 = vpop.f32.mrb[0].mxu0
    %v5291 = vadd.f32 0.0, %v5290
    %v5292 = vpop.f32.mrb[0].mxu0
    %v5293 = vpop.f32.mrb[0].mxu0
    %5294 = vdwg.mxu0
    %5295 = vmatprep.subr.bf16.mxu0 %v3227
    %5296 = vmatpush1.bf16.msra.mxu0 %v3226
    %5297 = vmatprep.subr.bf16.mxu0 %v3235
    %5298 = vmatpush1.bf16.msra.mxu0 %v3234
    %5299 = vmatprep.subr.bf16.mxu0 %v3243
    %5300 = vmatpush1.bf16.msra.mxu0 %v3242
    %5301 = vmatprep.subr.bf16.mxu0 %v3251
    %5302 = vmatpush1.bf16.msra.mxu0 %v3250
    %5303 = vmatprep.subr.bf16.mxu0 %v3259
    %5304 = vmatpush1.bf16.msra.mxu0 %v3258
    %5305 = vmatprep.subr.bf16.mxu0 %v3267
    %5306 = vmatpush1.bf16.msra.mxu0 %v3266
    %5307 = vmatprep.subr.bf16.mxu0 %v3275
    %5308 = vmatpush1.bf16.msra.mxu0 %v3274
    %5309 = vmatprep.subr.bf16.mxu0 %v3283
    %5310 = vmatpush1.bf16.msra.mxu0 %v3282
    %5311 = vmatprep.subr.bf16.mxu0 %v3291
    %5312 = vmatpush1.bf16.msra.mxu0 %v3290
    %5313 = vmatprep.subr.bf16.mxu0 %v3299
    %5314 = vmatpush1.bf16.msra.mxu0 %v3298
    %5315 = vmatprep.subr.bf16.mxu0 %v3307
    %5316 = vmatpush1.bf16.msra.mxu0 %v3306
    %5317 = vmatprep.subr.bf16.mxu0 %v3315
    %5318 = vmatpush1.bf16.msra.mxu0 %v3314
    %5319 = vmatprep.subr.bf16.mxu0 %v3323
    %5320 = vmatpush1.bf16.msra.mxu0 %v3322
    %5321 = vmatprep.subr.bf16.mxu0 %v3331
    %5322 = vmatpush1.bf16.msra.mxu0 %v3330
    %5323 = vmatprep.subr.bf16.mxu0 %v3339
    %5324 = vmatpush1.bf16.msra.mxu0 %v3338
    %5325 = vmatprep.subr.bf16.mxu0 %v3347
    %5326 = vmatpush1.bf16.msra.mxu0 %v3346
    %5327 = vmatprep.mubr.bf16.mxu0 %v5095
    %5328 = vmatmul.mubr.bf16.gmra.mrb[0].mxu0 %v5094
    %v5329 = vpop.f32.mrb[0].mxu0
    %v5330 = vadd.f32 0.0, %v5329
    %v5331 = vpop.f32.mrb[0].mxu0
    %v5332 = vadd.f32 0.0, %v5331
    %v5333 = vpop.f32.mrb[0].mxu0
    %v5334 = vpop.f32.mrb[0].mxu0
    %5335 = vdwg.mxu0
    %v5336 = vadd.f32 %v3449, %v5207
    %v5337 = vadd.f32 %v3451, %v5209
    %v5338 = vadd.f32 %v3522, %v5248
    %v5339 = vadd.f32 %v3524, %v5250
    %v5340 = vadd.f32 %v3595, %v5289
    %v5341 = vadd.f32 %v3597, %v5291
    %v5342 = vadd.f32 %v3668, %v5330
    %v5343 = vadd.f32 %v3670, %v5332
    %v5344 = vxor.u32 %v5336, 2147483648
    %v5345 = vxor.u32 %v5337, 2147483648
    %v5346 = vxor.u32 %v5338, 2147483648
    %v5347 = vxor.u32 %v5339, 2147483648
    %v5348 = vxor.u32 %v5340, 2147483648
    %v5349 = vxor.u32 %v5341, 2147483648
    %v5350 = vmul.f32 %v5344, 1.442695
    %v5351 = vpow.pop %v5350
    %v5352 = vmul.f32 %v5345, 1.442695
    %v5353 = vpow.pop %v5352
    %v5354 = vmul.f32 %v5346, 1.442695
    %v5355 = vpow.pop %v5354
    %v5356 = vmul.f32 %v5347, 1.442695
    %v5357 = vpow.pop %v5356
    %v5358 = vmul.f32 %v5348, 1.442695
    %v5359 = vpow.pop %v5358
    %v5360 = vmul.f32 %v5349, 1.442695
    %v5361 = vpow.pop %v5360
    %v5362 = vadd.f32 %v5351, 1.0
    %v5363 = vadd.f32 %v5353, 1.0
    %v5364 = vadd.f32 %v5355, 1.0
    %v5365 = vadd.f32 %v5357, 1.0
    %v5366 = vadd.f32 %v5359, 1.0
    %v5367 = vadd.f32 %v5361, 1.0
    %v5368 = vrcp.pop %v5362
    %v5369 = vmul.f32 1.0, %v5368
    %v5370 = vrcp.pop %v5363
    %v5371 = vmul.f32 1.0, %v5370
    %v5372 = vrcp.pop %v5364
    %v5373 = vmul.f32 1.0, %v5372
    %v5374 = vrcp.pop %v5365
    %v5375 = vmul.f32 1.0, %v5374
    %v5376 = vrcp.pop %v5366
    %v5377 = vmul.f32 1.0, %v5376
    %v5378 = vrcp.pop %v5367
    %v5379 = vmul.f32 1.0, %v5378
    %v5380 = vtanh.pop %v5342
    %v5381 = vtanh.pop %v5343
    %v5382 = vmul.f32 %v5373, %v5088
    %v5383 = vmul.f32 %v5375, %v5089
    %v5384 = vmul.f32 %v5369, %v5380
    %v5385 = vmul.f32 %v5371, %v5381
    %v5386 = vadd.f32 %v5382, %v5384
    %v5387 = vadd.f32 %v5383, %v5385
    %v5388 = vtanh.pop %v5386
    %v5389 = vtanh.pop %v5387
    %v5390 = vmul.f32 %v5377, %v5388
    %v5391 = vmul.f32 %v5379, %v5389
    %v5392 = vpack.c.bf16 %v5390, %v5390
    %v5393 = vpack.c.bf16 %v5391, %v5391
    %s5394 = scalar_lea.vmem [#allocation4], 1280
    %v5395 = vld [vmem:[%s5394] sm:$0xff]
    %v5396 = vld [vmem:[%s5394 + $0x8] sm:$0xff]
    %v5397 = vld [vmem:[%s5394 + $0x10] sm:$0xff]
    %v5398 = vld [vmem:[%s5394 + $0x18] sm:$0xff]
    %v5399 = vld [vmem:[%s5394 + $0x20] sm:$0xff]
    %v5400 = vld [vmem:[%s5394 + $0x28] sm:$0xff]
    %v5401 = vld [vmem:[%s5394 + $0x30] sm:$0xff]
    %v5402 = vld [vmem:[%s5394 + $0x38] sm:$0xff]
    %v5403 = vld [vmem:[%s5394 + $0x40] sm:$0xff]
    %v5404 = vld [vmem:[%s5394 + $0x48] sm:$0xff]
    %v5405 = vld [vmem:[%s5394 + $0x50] sm:$0xff]
    %v5406 = vld [vmem:[%s5394 + $0x58] sm:$0xff]
    %v5407 = vld [vmem:[%s5394 + $0x60] sm:$0xff]
    %v5408 = vld [vmem:[%s5394 + $0x68] sm:$0xff]
    %v5409 = vld [vmem:[%s5394 + $0x70] sm:$0xff]
    %v5410 = vld [vmem:[%s5394 + $0x78] sm:$0xff]
    %v5411 = vld [vmem:[%s5394 + $0x80] sm:$0xff]
    %v5412 = vld [vmem:[%s5394 + $0x88] sm:$0xff]
    %v5413 = vld [vmem:[%s5394 + $0x90] sm:$0xff]
    %v5414 = vld [vmem:[%s5394 + $0x98] sm:$0xff]
    %v5415 = vld [vmem:[%s5394 + $0xa0] sm:$0xff]
    %v5416 = vld [vmem:[%s5394 + $0xa8] sm:$0xff]
    %v5417 = vld [vmem:[%s5394 + $0xb0] sm:$0xff]
    %v5418 = vld [vmem:[%s5394 + $0xb8] sm:$0xff]
    %v5419 = vld [vmem:[%s5394 + $0xc0] sm:$0xff]
    %v5420 = vld [vmem:[%s5394 + $0xc8] sm:$0xff]
    %v5421 = vld [vmem:[%s5394 + $0xd0] sm:$0xff]
    %v5422 = vld [vmem:[%s5394 + $0xd8] sm:$0xff]
    %v5423 = vld [vmem:[%s5394 + $0xe0] sm:$0xff]
    %v5424 = vld [vmem:[%s5394 + $0xe8] sm:$0xff]
    %v5425 = vld [vmem:[%s5394 + $0xf0] sm:$0xff]
    %v5426 = vld [vmem:[%s5394 + $0xf8] sm:$0xff]
    %5427 = vmatprep.subr.bf16.mxu0 %v5396
    %5428 = vmatpush1.bf16.msra.mxu0 %v5395
    %5429 = vmatprep.subr.bf16.mxu0 %v5398
    %5430 = vmatpush1.bf16.msra.mxu0 %v5397
    %5431 = vmatprep.subr.bf16.mxu0 %v5400
    %5432 = vmatpush1.bf16.msra.mxu0 %v5399
    %5433 = vmatprep.subr.bf16.mxu0 %v5402
    %5434 = vmatpush1.bf16.msra.mxu0 %v5401
    %5435 = vmatprep.subr.bf16.mxu0 %v5404
    %5436 = vmatpush1.bf16.msra.mxu0 %v5403
    %5437 = vmatprep.subr.bf16.mxu0 %v5406
    %5438 = vmatpush1.bf16.msra.mxu0 %v5405
    %5439 = vmatprep.subr.bf16.mxu0 %v5408
    %5440 = vmatpush1.bf16.msra.mxu0 %v5407
    %5441 = vmatprep.subr.bf16.mxu0 %v5410
    %5442 = vmatpush1.bf16.msra.mxu0 %v5409
    %5443 = vmatprep.subr.bf16.mxu0 %v5412
    %5444 = vmatpush1.bf16.msra.mxu0 %v5411
    %5445 = vmatprep.subr.bf16.mxu0 %v5414
    %5446 = vmatpush1.bf16.msra.mxu0 %v5413
    %5447 = vmatprep.subr.bf16.mxu0 %v5416
    %5448 = vmatpush1.bf16.msra.mxu0 %v5415
    %5449 = vmatprep.subr.bf16.mxu0 %v5418
    %5450 = vmatpush1.bf16.msra.mxu0 %v5417
    %5451 = vmatprep.subr.bf16.mxu0 %v5420
    %5452 = vmatpush1.bf16.msra.mxu0 %v5419
    %5453 = vmatprep.subr.bf16.mxu0 %v5422
    %5454 = vmatpush1.bf16.msra.mxu0 %v5421
    %5455 = vmatprep.subr.bf16.mxu0 %v5424
    %5456 = vmatpush1.bf16.msra.mxu0 %v5423
    %5457 = vmatprep.subr.bf16.mxu0 %v5426
    %5458 = vmatpush1.bf16.msra.mxu0 %v5425
    %5459 = vmatprep.mubr.bf16.mxu0 %v5393
    %5460 = vmatmul.mubr.bf16.gmra.mrb[0].mxu0 %v5392
    %v5461 = vpop.f32.mrb[0].mxu0
    %v5462 = vadd.f32 0.0, %v5461
    %v5463 = vpop.f32.mrb[0].mxu0
    %v5464 = vadd.f32 0.0, %v5463
    %v5465 = vpop.f32.mrb[0].mxu0
    %v5466 = vpop.f32.mrb[0].mxu0
    %5467 = vdwg.mxu0
    %v5468 = vadd.f32 %v5170, %v5462
    %v5469 = vadd.f32 %v5171, %v5464
    %5470 = vmatprep.subr.bf16.mxu0 %v3221
    %5471 = vmatpush1.bf16.msra.mxu0 %v3220
    %5472 = vmatprep.subr.bf16.mxu0 %v3229
    %5473 = vmatpush1.bf16.msra.mxu0 %v3228
    %5474 = vmatprep.subr.bf16.mxu0 %v3237
    %5475 = vmatpush1.bf16.msra.mxu0 %v3236
    %5476 = vmatprep.subr.bf16.mxu0 %v3245
    %5477 = vmatpush1.bf16.msra.mxu0 %v3244
    %5478 = vmatprep.subr.bf16.mxu0 %v3253
    %5479 = vmatpush1.bf16.msra.mxu0 %v3252
    %5480 = vmatprep.subr.bf16.mxu0 %v3261
    %5481 = vmatpush1.bf16.msra.mxu0 %v3260
    %5482 = vmatprep.subr.bf16.mxu0 %v3269
    %5483 = vmatpush1.bf16.msra.mxu0 %v3268
    %5484 = vmatprep.subr.bf16.mxu0 %v3277
    %5485 = vmatpush1.bf16.msra.mxu0 %v3276
    %5486 = vmatprep.subr.bf16.mxu0 %v3285
    %5487 = vmatpush1.bf16.msra.mxu0 %v3284
    %5488 = vmatprep.subr.bf16.mxu0 %v3293
    %5489 = vmatpush1.bf16.msra.mxu0 %v3292
    %5490 = vmatprep.subr.bf16.mxu0 %v3301
    %5491 = vmatpush1.bf16.msra.mxu0 %v3300
    %5492 = vmatprep.subr.bf16.mxu0 %v3309
    %5493 = vmatpush1.bf16.msra.mxu0 %v3308
    %5494 = vmatprep.subr.bf16.mxu0 %v3317
    %5495 = vmatpush1.bf16.msra.mxu0 %v3316
    %5496 = vmatprep.subr.bf16.mxu0 %v3325
    %5497 = vmatpush1.bf16.msra.mxu0 %v3324
    %5498 = vmatprep.subr.bf16.mxu0 %v3333
    %5499 = vmatpush1.bf16.msra.mxu0 %v3332
    %5500 = vmatprep.subr.bf16.mxu0 %v3341
    %5501 = vmatpush1.bf16.msra.mxu0 %v3340
    %5502 = vmatprep.mubr.bf16.mxu0 %v5393
    %5503 = vmatmul.mubr.bf16.gmra.mrb[0].mxu0 %v5392
    %v5504 = vpop.f32.mrb[0].mxu0
    %v5505 = vadd.f32 0.0, %v5504
    %v5506 = vpop.f32.mrb[0].mxu0
    %v5507 = vadd.f32 0.0, %v5506
    %v5508 = vpop.f32.mrb[0].mxu0
    %v5509 = vpop.f32.mrb[0].mxu0
    %5510 = vdwg.mxu0
    %5511 = vmatprep.subr.bf16.mxu0 %v3223
    %5512 = vmatpush1.bf16.msra.mxu0 %v3222
    %5513 = vmatprep.subr.bf16.mxu0 %v3231
    %5514 = vmatpush1.bf16.msra.mxu0 %v3230
    %5515 = vmatprep.subr.bf16.mxu0 %v3239
    %5516 = vmatpush1.bf16.msra.mxu0 %v3238
    %5517 = vmatprep.subr.bf16.mxu0 %v3247
    %5518 = vmatpush1.bf16.msra.mxu0 %v3246
    %5519 = vmatprep.subr.bf16.mxu0 %v3255
    %5520 = vmatpush1.bf16.msra.mxu0 %v3254
    %5521 = vmatprep.subr.bf16.mxu0 %v3263
    %5522 = vmatpush1.bf16.msra.mxu0 %v3262
    %5523 = vmatprep.subr.bf16.mxu0 %v3271
    %5524 = vmatpush1.bf16.msra.mxu0 %v3270
    %5525 = vmatprep.subr.bf16.mxu0 %v3279
    %5526 = vmatpush1.bf16.msra.mxu0 %v3278
    %5527 = vmatprep.subr.bf16.mxu0 %v3287
    %5528 = vmatpush1.bf16.msra.mxu0 %v3286
    %5529 = vmatprep.subr.bf16.mxu0 %v3295
    %5530 = vmatpush1.bf16.msra.mxu0 %v3294
    %5531 = vmatprep.subr.bf16.mxu0 %v3303
    %5532 = vmatpush1.bf16.msra.mxu0 %v3302
    %5533 = vmatprep.subr.bf16.mxu0 %v3311
    %5534 = vmatpush1.bf16.msra.mxu0 %v3310
    %5535 = vmatprep.subr.bf16.mxu0 %v3319
    %5536 = vmatpush1.bf16.msra.mxu0 %v3318
    %5537 = vmatprep.subr.bf16.mxu0 %v3327
    %5538 = vmatpush1.bf16.msra.mxu0 %v3326
    %5539 = vmatprep.subr.bf16.mxu0 %v3335
    %5540 = vmatpush1.bf16.msra.mxu0 %v3334
    %5541 = vmatprep.subr.bf16.mxu0 %v3343
    %5542 = vmatpush1.bf16.msra.mxu0 %v3342
    %5543 = vmatprep.mubr.bf16.mxu0 %v5393
    %5544 = vmatmul.mubr.bf16.gmra.mrb[0].mxu0 %v5392
    %v5545 = vpop.f32.mrb[0].mxu0
    %v5546 = vadd.f32 0.0, %v5545
    %v5547 = vpop.f32.mrb[0].mxu0
    %v5548 = vadd.f32 0.0, %v5547
    %v5549 = vpop.f32.mrb[0].mxu0
    %v5550 = vpop.f32.mrb[0].mxu0
    %5551 = vdwg.mxu0
    %5552 = vmatprep.subr.bf16.mxu0 %v3225
    %5553 = vmatpush1.bf16.msra.mxu0 %v3224
    %5554 = vmatprep.subr.bf16.mxu0 %v3233
    %5555 = vmatpush1.bf16.msra.mxu0 %v3232
    %5556 = vmatprep.subr.bf16.mxu0 %v3241
    %5557 = vmatpush1.bf16.msra.mxu0 %v3240
    %5558 = vmatprep.subr.bf16.mxu0 %v3249
    %5559 = vmatpush1.bf16.msra.mxu0 %v3248
    %5560 = vmatprep.subr.bf16.mxu0 %v3257
    %5561 = vmatpush1.bf16.msra.mxu0 %v3256
    %5562 = vmatprep.subr.bf16.mxu0 %v3265
    %5563 = vmatpush1.bf16.msra.mxu0 %v3264
    %5564 = vmatprep.subr.bf16.mxu0 %v3273
    %5565 = vmatpush1.bf16.msra.mxu0 %v3272
    %5566 = vmatprep.subr.bf16.mxu0 %v3281
    %5567 = vmatpush1.bf16.msra.mxu0 %v3280
    %5568 = vmatprep.subr.bf16.mxu0 %v3289
    %5569 = vmatpush1.bf16.msra.mxu0 %v3288
    %5570 = vmatprep.subr.bf16.mxu0 %v3297
    %5571 = vmatpush1.bf16.msra.mxu0 %v3296
    %5572 = vmatprep.subr.bf16.mxu0 %v3305
    %5573 = vmatpush1.bf16.msra.mxu0 %v3304
    %5574 = vmatprep.subr.bf16.mxu0 %v3313
    %5575 = vmatpush1.bf16.msra.mxu0 %v3312
    %5576 = vmatprep.subr.bf16.mxu0 %v3321
    %5577 = vmatpush1.bf16.msra.mxu0 %v3320
    %5578 = vmatprep.subr.bf16.mxu0 %v3329
    %5579 = vmatpush1.bf16.msra.mxu0 %v3328
    %5580 = vmatprep.subr.bf16.mxu0 %v3337
    %5581 = vmatpush1.bf16.msra.mxu0 %v3336
    %5582 = vmatprep.subr.bf16.mxu0 %v3345
    %5583 = vmatpush1.bf16.msra.mxu0 %v3344
    %5584 = vmatprep.mubr.bf16.mxu0 %v5393
    %5585 = vmatmul.mubr.bf16.gmra.mrb[0].mxu0 %v5392
    %v5586 = vpop.f32.mrb[0].mxu0
    %v5587 = vadd.f32 0.0, %v5586
    %v5588 = vpop.f32.mrb[0].mxu0
    %v5589 = vadd.f32 0.0, %v5588
    %v5590 = vpop.f32.mrb[0].mxu0
    %v5591 = vpop.f32.mrb[0].mxu0
    %5592 = vdwg.mxu0
    %5593 = vmatprep.subr.bf16.mxu0 %v3227
    %5594 = vmatpush1.bf16.msra.mxu0 %v3226
    %5595 = vmatprep.subr.bf16.mxu0 %v3235
    %5596 = vmatpush1.bf16.msra.mxu0 %v3234
    %5597 = vmatprep.subr.bf16.mxu0 %v3243
    %5598 = vmatpush1.bf16.msra.mxu0 %v3242
    %5599 = vmatprep.subr.bf16.mxu0 %v3251
    %5600 = vmatpush1.bf16.msra.mxu0 %v3250
    %5601 = vmatprep.subr.bf16.mxu0 %v3259
    %5602 = vmatpush1.bf16.msra.mxu0 %v3258
    %5603 = vmatprep.subr.bf16.mxu0 %v3267
    %5604 = vmatpush1.bf16.msra.mxu0 %v3266
    %5605 = vmatprep.subr.bf16.mxu0 %v3275
    %5606 = vmatpush1.bf16.msra.mxu0 %v3274
    %5607 = vmatprep.subr.bf16.mxu0 %v3283
    %5608 = vmatpush1.bf16.msra.mxu0 %v3282
    %5609 = vmatprep.subr.bf16.mxu0 %v3291
    %5610 = vmatpush1.bf16.msra.mxu0 %v3290
    %5611 = vmatprep.subr.bf16.mxu0 %v3299
    %5612 = vmatpush1.bf16.msra.mxu0 %v3298
    %5613 = vmatprep.subr.bf16.mxu0 %v3307
    %5614 = vmatpush1.bf16.msra.mxu0 %v3306
    %5615 = vmatprep.subr.bf16.mxu0 %v3315
    %5616 = vmatpush1.bf16.msra.mxu0 %v3314
    %5617 = vmatprep.subr.bf16.mxu0 %v3323
    %5618 = vmatpush1.bf16.msra.mxu0 %v3322
    %5619 = vmatprep.subr.bf16.mxu0 %v3331
    %5620 = vmatpush1.bf16.msra.mxu0 %v3330
    %5621 = vmatprep.subr.bf16.mxu0 %v3339
    %5622 = vmatpush1.bf16.msra.mxu0 %v3338
    %5623 = vmatprep.subr.bf16.mxu0 %v3347
    %5624 = vmatpush1.bf16.msra.mxu0 %v3346
    %5625 = vmatprep.mubr.bf16.mxu0 %v5393
    %5626 = vmatmul.mubr.bf16.gmra.mrb[0].mxu0 %v5392
    %v5627 = vpop.f32.mrb[0].mxu0
    %v5628 = vadd.f32 0.0, %v5627
    %v5629 = vpop.f32.mrb[0].mxu0
    %v5630 = vadd.f32 0.0, %v5629
    %v5631 = vpop.f32.mrb[0].mxu0
    %v5632 = vpop.f32.mrb[0].mxu0
    %5633 = vdwg.mxu0
    %v5634 = vadd.f32 %v3455, %v5505
    %v5635 = vadd.f32 %v3457, %v5507
    %v5636 = vadd.f32 %v3528, %v5546
    %v5637 = vadd.f32 %v3530, %v5548
    %v5638 = vadd.f32 %v3601, %v5587
    %v5639 = vadd.f32 %v3603, %v5589
    %v5640 = vadd.f32 %v3674, %v5628
    %v5641 = vadd.f32 %v3676, %v5630
    %v5642 = vxor.u32 %v5634, 2147483648
    %v5643 = vxor.u32 %v5635, 2147483648
    %v5644 = vxor.u32 %v5636, 2147483648
    %v5645 = vxor.u32 %v5637, 2147483648
    %v5646 = vxor.u32 %v5638, 2147483648
    %v5647 = vxor.u32 %v5639, 2147483648
    %v5648 = vmul.f32 %v5642, 1.442695
    %v5649 = vpow.pop %v5648
    %v5650 = vmul.f32 %v5643, 1.442695
    %v5651 = vpow.pop %v5650
    %v5652 = vmul.f32 %v5644, 1.442695
    %v5653 = vpow.pop %v5652
    %v5654 = vmul.f32 %v5645, 1.442695
    %v5655 = vpow.pop %v5654
    %v5656 = vmul.f32 %v5646, 1.442695
    %v5657 = vpow.pop %v5656
    %v5658 = vmul.f32 %v5647, 1.442695
    %v5659 = vpow.pop %v5658
    %v5660 = vadd.f32 %v5649, 1.0
    %v5661 = vadd.f32 %v5651, 1.0
    %v5662 = vadd.f32 %v5653, 1.0
    %v5663 = vadd.f32 %v5655, 1.0
    %v5664 = vadd.f32 %v5657, 1.0
    %v5665 = vadd.f32 %v5659, 1.0
    %v5666 = vrcp.pop %v5660
    %v5667 = vmul.f32 1.0, %v5666
    %v5668 = vrcp.pop %v5661
    %v5669 = vmul.f32 1.0, %v5668
    %v5670 = vrcp.pop %v5662
    %v5671 = vmul.f32 1.0, %v5670
    %v5672 = vrcp.pop %v5663
    %v5673 = vmul.f32 1.0, %v5672
    %v5674 = vrcp.pop %v5664
    %v5675 = vmul.f32 1.0, %v5674
    %v5676 = vrcp.pop %v5665
    %v5677 = vmul.f32 1.0, %v5676
    %v5678 = vtanh.pop %v5640
    %v5679 = vtanh.pop %v5641
    %v5680 = vmul.f32 %v5671, %v5386
    %v5681 = vmul.f32 %v5673, %v5387
    %v5682 = vmul.f32 %v5667, %v5678
    %v5683 = vmul.f32 %v5669, %v5679
    %v5684 = vadd.f32 %v5680, %v5682
    %v5685 = vadd.f32 %v5681, %v5683
    %v5686 = vtanh.pop %v5684
    %v5687 = vtanh.pop %v5685
    %v5688 = vmul.f32 %v5675, %v5686
    %v5689 = vmul.f32 %v5677, %v5687
    %v5690 = vpack.c.bf16 %v5688, %v5688
    %v5691 = vpack.c.bf16 %v5689, %v5689
    %s5692 = scalar_lea.vmem [#allocation4], 1536
    %v5693 = vld [vmem:[%s5692] sm:$0xff]
    %v5694 = vld [vmem:[%s5692 + $0x8] sm:$0xff]
    %v5695 = vld [vmem:[%s5692 + $0x10] sm:$0xff]
    %v5696 = vld [vmem:[%s5692 + $0x18] sm:$0xff]
    %v5697 = vld [vmem:[%s5692 + $0x20] sm:$0xff]
    %v5698 = vld [vmem:[%s5692 + $0x28] sm:$0xff]
    %v5699 = vld [vmem:[%s5692 + $0x30] sm:$0xff]
    %v5700 = vld [vmem:[%s5692 + $0x38] sm:$0xff]
    %v5701 = vld [vmem:[%s5692 + $0x40] sm:$0xff]
    %v5702 = vld [vmem:[%s5692 + $0x48] sm:$0xff]
    %v5703 = vld [vmem:[%s5692 + $0x50] sm:$0xff]
    %v5704 = vld [vmem:[%s5692 + $0x58] sm:$0xff]
    %v5705 = vld [vmem:[%s5692 + $0x60] sm:$0xff]
    %v5706 = vld [vmem:[%s5692 + $0x68] sm:$0xff]
    %v5707 = vld [vmem:[%s5692 + $0x70] sm:$0xff]
    %v5708 = vld [vmem:[%s5692 + $0x78] sm:$0xff]
    %v5709 = vld [vmem:[%s5692 + $0x80] sm:$0xff]
    %v5710 = vld [vmem:[%s5692 + $0x88] sm:$0xff]
    %v5711 = vld [vmem:[%s5692 + $0x90] sm:$0xff]
    %v5712 = vld [vmem:[%s5692 + $0x98] sm:$0xff]
    %v5713 = vld [vmem:[%s5692 + $0xa0] sm:$0xff]
    %v5714 = vld [vmem:[%s5692 + $0xa8] sm:$0xff]
    %v5715 = vld [vmem:[%s5692 + $0xb0] sm:$0xff]
    %v5716 = vld [vmem:[%s5692 + $0xb8] sm:$0xff]
    %v5717 = vld [vmem:[%s5692 + $0xc0] sm:$0xff]
    %v5718 = vld [vmem:[%s5692 + $0xc8] sm:$0xff]
    %v5719 = vld [vmem:[%s5692 + $0xd0] sm:$0xff]
    %v5720 = vld [vmem:[%s5692 + $0xd8] sm:$0xff]
    %v5721 = vld [vmem:[%s5692 + $0xe0] sm:$0xff]
    %v5722 = vld [vmem:[%s5692 + $0xe8] sm:$0xff]
    %v5723 = vld [vmem:[%s5692 + $0xf0] sm:$0xff]
    %v5724 = vld [vmem:[%s5692 + $0xf8] sm:$0xff]
    %5725 = vmatprep.subr.bf16.mxu0 %v5694
    %5726 = vmatpush1.bf16.msra.mxu0 %v5693
    %5727 = vmatprep.subr.bf16.mxu0 %v5696
    %5728 = vmatpush1.bf16.msra.mxu0 %v5695
    %5729 = vmatprep.subr.bf16.mxu0 %v5698
    %5730 = vmatpush1.bf16.msra.mxu0 %v5697
    %5731 = vmatprep.subr.bf16.mxu0 %v5700
    %5732 = vmatpush1.bf16.msra.mxu0 %v5699
    %5733 = vmatprep.subr.bf16.mxu0 %v5702
    %5734 = vmatpush1.bf16.msra.mxu0 %v5701
    %5735 = vmatprep.subr.bf16.mxu0 %v5704
    %5736 = vmatpush1.bf16.msra.mxu0 %v5703
    %5737 = vmatprep.subr.bf16.mxu0 %v5706
    %5738 = vmatpush1.bf16.msra.mxu0 %v5705
    %5739 = vmatprep.subr.bf16.mxu0 %v5708
    %5740 = vmatpush1.bf16.msra.mxu0 %v5707
    %5741 = vmatprep.subr.bf16.mxu0 %v5710
    %5742 = vmatpush1.bf16.msra.mxu0 %v5709
    %5743 = vmatprep.subr.bf16.mxu0 %v5712
    %5744 = vmatpush1.bf16.msra.mxu0 %v5711
    %5745 = vmatprep.subr.bf16.mxu0 %v5714
    %5746 = vmatpush1.bf16.msra.mxu0 %v5713
    %5747 = vmatprep.subr.bf16.mxu0 %v5716
    %5748 = vmatpush1.bf16.msra.mxu0 %v5715
    %5749 = vmatprep.subr.bf16.mxu0 %v5718
    %5750 = vmatpush1.bf16.msra.mxu0 %v5717
    %5751 = vmatprep.subr.bf16.mxu0 %v5720
    %5752 = vmatpush1.bf16.msra.mxu0 %v5719
    %5753 = vmatprep.subr.bf16.mxu0 %v5722
    %5754 = vmatpush1.bf16.msra.mxu0 %v5721
    %5755 = vmatprep.subr.bf16.mxu0 %v5724
    %5756 = vmatpush1.bf16.msra.mxu0 %v5723
    %5757 = vmatprep.mubr.bf16.mxu0 %v5691
    %5758 = vmatmul.mubr.bf16.gmra.mrb[0].mxu0 %v5690
    %v5759 = vpop.f32.mrb[0].mxu0
    %v5760 = vadd.f32 0.0, %v5759
    %v5761 = vpop.f32.mrb[0].mxu0
    %v5762 = vadd.f32 0.0, %v5761
    %v5763 = vpop.f32.mrb[0].mxu0
    %v5764 = vpop.f32.mrb[0].mxu0
    %5765 = vdwg.mxu0
    %v5766 = vadd.f32 %v5468, %v5760
    %v5767 = vadd.f32 %v5469, %v5762
    %5768 = vmatprep.subr.bf16.mxu0 %v3221
    %5769 = vmatpush1.bf16.msra.mxu0 %v3220
    %5770 = vmatprep.subr.bf16.mxu0 %v3229
    %5771 = vmatpush1.bf16.msra.mxu0 %v3228
    %5772 = vmatprep.subr.bf16.mxu0 %v3237
    %5773 = vmatpush1.bf16.msra.mxu0 %v3236
    %5774 = vmatprep.subr.bf16.mxu0 %v3245
    %5775 = vmatpush1.bf16.msra.mxu0 %v3244
    %5776 = vmatprep.subr.bf16.mxu0 %v3253
    %5777 = vmatpush1.bf16.msra.mxu0 %v3252
    %5778 = vmatprep.subr.bf16.mxu0 %v3261
    %5779 = vmatpush1.bf16.msra.mxu0 %v3260
    %5780 = vmatprep.subr.bf16.mxu0 %v3269
    %5781 = vmatpush1.bf16.msra.mxu0 %v3268
    %5782 = vmatprep.subr.bf16.mxu0 %v3277
    %5783 = vmatpush1.bf16.msra.mxu0 %v3276
    %5784 = vmatprep.subr.bf16.mxu0 %v3285
    %5785 = vmatpush1.bf16.msra.mxu0 %v3284
    %5786 = vmatprep.subr.bf16.mxu0 %v3293
    %5787 = vmatpush1.bf16.msra.mxu0 %v3292
    %5788 = vmatprep.subr.bf16.mxu0 %v3301
    %5789 = vmatpush1.bf16.msra.mxu0 %v3300
    %5790 = vmatprep.subr.bf16.mxu0 %v3309
    %5791 = vmatpush1.bf16.msra.mxu0 %v3308
    %5792 = vmatprep.subr.bf16.mxu0 %v3317
    %5793 = vmatpush1.bf16.msra.mxu0 %v3316
    %5794 = vmatprep.subr.bf16.mxu0 %v3325
    %5795 = vmatpush1.bf16.msra.mxu0 %v3324
    %5796 = vmatprep.subr.bf16.mxu0 %v3333
    %5797 = vmatpush1.bf16.msra.mxu0 %v3332
    %5798 = vmatprep.subr.bf16.mxu0 %v3341
    %5799 = vmatpush1.bf16.msra.mxu0 %v3340
    %5800 = vmatprep.mubr.bf16.mxu0 %v5691
    %5801 = vmatmul.mubr.bf16.gmra.mrb[0].mxu0 %v5690
    %v5802 = vpop.f32.mrb[0].mxu0
    %v5803 = vadd.f32 0.0, %v5802
    %v5804 = vpop.f32.mrb[0].mxu0
    %v5805 = vadd.f32 0.0, %v5804
    %v5806 = vpop.f32.mrb[0].mxu0
    %v5807 = vpop.f32.mrb[0].mxu0
    %5808 = vdwg.mxu0
    %5809 = vmatprep.subr.bf16.mxu0 %v3223
    %5810 = vmatpush1.bf16.msra.mxu0 %v3222
    %5811 = vmatprep.subr.bf16.mxu0 %v3231
    %5812 = vmatpush1.bf16.msra.mxu0 %v3230
    %5813 = vmatprep.subr.bf16.mxu0 %v3239
    %5814 = vmatpush1.bf16.msra.mxu0 %v3238
    %5815 = vmatprep.subr.bf16.mxu0 %v3247
    %5816 = vmatpush1.bf16.msra.mxu0 %v3246
    %5817 = vmatprep.subr.bf16.mxu0 %v3255
    %5818 = vmatpush1.bf16.msra.mxu0 %v3254
    %5819 = vmatprep.subr.bf16.mxu0 %v3263
    %5820 = vmatpush1.bf16.msra.mxu0 %v3262
    %5821 = vmatprep.subr.bf16.mxu0 %v3271
    %5822 = vmatpush1.bf16.msra.mxu0 %v3270
    %5823 = vmatprep.subr.bf16.mxu0 %v3279
    %5824 = vmatpush1.bf16.msra.mxu0 %v3278
    %5825 = vmatprep.subr.bf16.mxu0 %v3287
    %5826 = vmatpush1.bf16.msra.mxu0 %v3286
    %5827 = vmatprep.subr.bf16.mxu0 %v3295
    %5828 = vmatpush1.bf16.msra.mxu0 %v3294
    %5829 = vmatprep.subr.bf16.mxu0 %v3303
    %5830 = vmatpush1.bf16.msra.mxu0 %v3302
    %5831 = vmatprep.subr.bf16.mxu0 %v3311
    %5832 = vmatpush1.bf16.msra.mxu0 %v3310
    %5833 = vmatprep.subr.bf16.mxu0 %v3319
    %5834 = vmatpush1.bf16.msra.mxu0 %v3318
    %5835 = vmatprep.subr.bf16.mxu0 %v3327
    %5836 = vmatpush1.bf16.msra.mxu0 %v3326
    %5837 = vmatprep.subr.bf16.mxu0 %v3335
    %5838 = vmatpush1.bf16.msra.mxu0 %v3334
    %5839 = vmatprep.subr.bf16.mxu0 %v3343
    %5840 = vmatpush1.bf16.msra.mxu0 %v3342
    %5841 = vmatprep.mubr.bf16.mxu0 %v5691
    %5842 = vmatmul.mubr.bf16.gmra.mrb[0].mxu0 %v5690
    %v5843 = vpop.f32.mrb[0].mxu0
    %v5844 = vadd.f32 0.0, %v5843
    %v5845 = vpop.f32.mrb[0].mxu0
    %v5846 = vadd.f32 0.0, %v5845
    %v5847 = vpop.f32.mrb[0].mxu0
    %v5848 = vpop.f32.mrb[0].mxu0
    %5849 = vdwg.mxu0
    %5850 = vmatprep.subr.bf16.mxu0 %v3225
    %5851 = vmatpush1.bf16.msra.mxu0 %v3224
    %5852 = vmatprep.subr.bf16.mxu0 %v3233
    %5853 = vmatpush1.bf16.msra.mxu0 %v3232
    %5854 = vmatprep.subr.bf16.mxu0 %v3241
    %5855 = vmatpush1.bf16.msra.mxu0 %v3240
    %5856 = vmatprep.subr.bf16.mxu0 %v3249
    %5857 = vmatpush1.bf16.msra.mxu0 %v3248
    %5858 = vmatprep.subr.bf16.mxu0 %v3257
    %5859 = vmatpush1.bf16.msra.mxu0 %v3256
    %5860 = vmatprep.subr.bf16.mxu0 %v3265
    %5861 = vmatpush1.bf16.msra.mxu0 %v3264
    %5862 = vmatprep.subr.bf16.mxu0 %v3273
    %5863 = vmatpush1.bf16.msra.mxu0 %v3272
    %5864 = vmatprep.subr.bf16.mxu0 %v3281
    %5865 = vmatpush1.bf16.msra.mxu0 %v3280
    %5866 = vmatprep.subr.bf16.mxu0 %v3289
    %5867 = vmatpush1.bf16.msra.mxu0 %v3288
    %5868 = vmatprep.subr.bf16.mxu0 %v3297
    %5869 = vmatpush1.bf16.msra.mxu0 %v3296
    %5870 = vmatprep.subr.bf16.mxu0 %v3305
    %5871 = vmatpush1.bf16.msra.mxu0 %v3304
    %5872 = vmatprep.subr.bf16.mxu0 %v3313
    %5873 = vmatpush1.bf16.msra.mxu0 %v3312
    %5874 = vmatprep.subr.bf16.mxu0 %v3321
    %5875 = vmatpush1.bf16.msra.mxu0 %v3320
    %5876 = vmatprep.subr.bf16.mxu0 %v3329
    %5877 = vmatpush1.bf16.msra.mxu0 %v3328
    %5878 = vmatprep.subr.bf16.mxu0 %v3337
    %5879 = vmatpush1.bf16.msra.mxu0 %v3336
    %5880 = vmatprep.subr.bf16.mxu0 %v3345
    %5881 = vmatpush1.bf16.msra.mxu0 %v3344
    %5882 = vmatprep.mubr.bf16.mxu0 %v5691
    %5883 = vmatmul.mubr.bf16.gmra.mrb[0].mxu0 %v5690
    %v5884 = vpop.f32.mrb[0].mxu0
    %v5885 = vadd.f32 0.0, %v5884
    %v5886 = vpop.f32.mrb[0].mxu0
    %v5887 = vadd.f32 0.0, %v5886
    %v5888 = vpop.f32.mrb[0].mxu0
    %v5889 = vpop.f32.mrb[0].mxu0
    %5890 = vdwg.mxu0
    %5891 = vmatprep.subr.bf16.mxu0 %v3227
    %5892 = vmatpush1.bf16.msra.mxu0 %v3226
    %5893 = vmatprep.subr.bf16.mxu0 %v3235
    %5894 = vmatpush1.bf16.msra.mxu0 %v3234
    %5895 = vmatprep.subr.bf16.mxu0 %v3243
    %5896 = vmatpush1.bf16.msra.mxu0 %v3242
    %5897 = vmatprep.subr.bf16.mxu0 %v3251
    %5898 = vmatpush1.bf16.msra.mxu0 %v3250
    %5899 = vmatprep.subr.bf16.mxu0 %v3259
    %5900 = vmatpush1.bf16.msra.mxu0 %v3258
    %5901 = vmatprep.subr.bf16.mxu0 %v3267
    %5902 = vmatpush1.bf16.msra.mxu0 %v3266
    %5903 = vmatprep.subr.bf16.mxu0 %v3275
    %5904 = vmatpush1.bf16.msra.mxu0 %v3274
    %5905 = vmatprep.subr.bf16.mxu0 %v3283
    %5906 = vmatpush1.bf16.msra.mxu0 %v3282
    %5907 = vmatprep.subr.bf16.mxu0 %v3291
    %5908 = vmatpush1.bf16.msra.mxu0 %v3290
    %5909 = vmatprep.subr.bf16.mxu0 %v3299
    %5910 = vmatpush1.bf16.msra.mxu0 %v3298
    %5911 = vmatprep.subr.bf16.mxu0 %v3307
    %5912 = vmatpush1.bf16.msra.mxu0 %v3306
    %5913 = vmatprep.subr.bf16.mxu0 %v3315
    %5914 = vmatpush1.bf16.msra.mxu0 %v3314
    %5915 = vmatprep.subr.bf16.mxu0 %v3323
    %5916 = vmatpush1.bf16.msra.mxu0 %v3322
    %5917 = vmatprep.subr.bf16.mxu0 %v3331
    %5918 = vmatpush1.bf16.msra.mxu0 %v3330
    %5919 = vmatprep.subr.bf16.mxu0 %v3339
    %5920 = vmatpush1.bf16.msra.mxu0 %v3338
    %5921 = vmatprep.subr.bf16.mxu0 %v3347
    %5922 = vmatpush1.bf16.msra.mxu0 %v3346
    %5923 = vmatprep.mubr.bf16.mxu0 %v5691
    %5924 = vmatmul.mubr.bf16.gmra.mrb[0].mxu0 %v5690
    %v5925 = vpop.f32.mrb[0].mxu0
    %v5926 = vadd.f32 0.0, %v5925
    %v5927 = vpop.f32.mrb[0].mxu0
    %v5928 = vadd.f32 0.0, %v5927
    %v5929 = vpop.f32.mrb[0].mxu0
    %v5930 = vpop.f32.mrb[0].mxu0
    %5931 = vdwg.mxu0
    %v5932 = vadd.f32 %v3459, %v5803
    %v5933 = vadd.f32 %v3461, %v5805
    %v5934 = vadd.f32 %v3532, %v5844
    %v5935 = vadd.f32 %v3534, %v5846
    %v5936 = vadd.f32 %v3605, %v5885
    %v5937 = vadd.f32 %v3607, %v5887
    %v5938 = vadd.f32 %v3678, %v5926
    %v5939 = vadd.f32 %v3680, %v5928
    %v5940 = vxor.u32 %v5932, 2147483648
    %v5941 = vxor.u32 %v5933, 2147483648
    %v5942 = vxor.u32 %v5934, 2147483648
    %v5943 = vxor.u32 %v5935, 2147483648
    %v5944 = vxor.u32 %v5936, 2147483648
    %v5945 = vxor.u32 %v5937, 2147483648
    %v5946 = vmul.f32 %v5940, 1.442695
    %v5947 = vpow.pop %v5946
    %v5948 = vmul.f32 %v5941, 1.442695
    %v5949 = vpow.pop %v5948
    %v5950 = vmul.f32 %v5942, 1.442695
    %v5951 = vpow.pop %v5950
    %v5952 = vmul.f32 %v5943, 1.442695
    %v5953 = vpow.pop %v5952
    %v5954 = vmul.f32 %v5944, 1.442695
    %v5955 = vpow.pop %v5954
    %v5956 = vmul.f32 %v5945, 1.442695
    %v5957 = vpow.pop %v5956
    %v5958 = vadd.f32 %v5947, 1.0
    %v5959 = vadd.f32 %v5949, 1.0
    %v5960 = vadd.f32 %v5951, 1.0
    %v5961 = vadd.f32 %v5953, 1.0
    %v5962 = vadd.f32 %v5955, 1.0
    %v5963 = vadd.f32 %v5957, 1.0
    %v5964 = vrcp.pop %v5958
    %v5965 = vmul.f32 1.0, %v5964
    %v5966 = vrcp.pop %v5959
    %v5967 = vmul.f32 1.0, %v5966
    %v5968 = vrcp.pop %v5960
    %v5969 = vmul.f32 1.0, %v5968
    %v5970 = vrcp.pop %v5961
    %v5971 = vmul.f32 1.0, %v5970
    %v5972 = vrcp.pop %v5962
    %v5973 = vmul.f32 1.0, %v5972
    %v5974 = vrcp.pop %v5963
    %v5975 = vmul.f32 1.0, %v5974
    %v5976 = vtanh.pop %v5938
    %v5977 = vtanh.pop %v5939
    %v5978 = vmul.f32 %v5969, %v5684
    %v5979 = vmul.f32 %v5971, %v5685
    %v5980 = vmul.f32 %v5965, %v5976
    %v5981 = vmul.f32 %v5967, %v5977
    %v5982 = vadd.f32 %v5978, %v5980
    %v5983 = vadd.f32 %v5979, %v5981
    %v5984 = vtanh.pop %v5982
    %v5985 = vtanh.pop %v5983
    %v5986 = vmul.f32 %v5973, %v5984
    %v5987 = vmul.f32 %v5975, %v5985
    %v5988 = vpack.c.bf16 %v5986, %v5986
    %v5989 = vpack.c.bf16 %v5987, %v5987
    %s5990 = scalar_lea.vmem [#allocation4], 1792
    %v5991 = vld [vmem:[%s5990] sm:$0xff]
    %v5992 = vld [vmem:[%s5990 + $0x8] sm:$0xff]
    %v5993 = vld [vmem:[%s5990 + $0x10] sm:$0xff]
    %v5994 = vld [vmem:[%s5990 + $0x18] sm:$0xff]
    %v5995 = vld [vmem:[%s5990 + $0x20] sm:$0xff]
    %v5996 = vld [vmem:[%s5990 + $0x28] sm:$0xff]
    %v5997 = vld [vmem:[%s5990 + $0x30] sm:$0xff]
    %v5998 = vld [vmem:[%s5990 + $0x38] sm:$0xff]
    %v5999 = vld [vmem:[%s5990 + $0x40] sm:$0xff]
    %v6000 = vld [vmem:[%s5990 + $0x48] sm:$0xff]
    %v6001 = vld [vmem:[%s5990 + $0x50] sm:$0xff]
    %v6002 = vld [vmem:[%s5990 + $0x58] sm:$0xff]
    %v6003 = vld [vmem:[%s5990 + $0x60] sm:$0xff]
    %v6004 = vld [vmem:[%s5990 + $0x68] sm:$0xff]
    %v6005 = vld [vmem:[%s5990 + $0x70] sm:$0xff]
    %v6006 = vld [vmem:[%s5990 + $0x78] sm:$0xff]
    %v6007 = vld [vmem:[%s5990 + $0x80] sm:$0xff]
    %v6008 = vld [vmem:[%s5990 + $0x88] sm:$0xff]
    %v6009 = vld [vmem:[%s5990 + $0x90] sm:$0xff]
    %v6010 = vld [vmem:[%s5990 + $0x98] sm:$0xff]
    %v6011 = vld [vmem:[%s5990 + $0xa0] sm:$0xff]
    %v6012 = vld [vmem:[%s5990 + $0xa8] sm:$0xff]
    %v6013 = vld [vmem:[%s5990 + $0xb0] sm:$0xff]
    %v6014 = vld [vmem:[%s5990 + $0xb8] sm:$0xff]
    %v6015 = vld [vmem:[%s5990 + $0xc0] sm:$0xff]
    %v6016 = vld [vmem:[%s5990 + $0xc8] sm:$0xff]
    %v6017 = vld [vmem:[%s5990 + $0xd0] sm:$0xff]
    %v6018 = vld [vmem:[%s5990 + $0xd8] sm:$0xff]
    %v6019 = vld [vmem:[%s5990 + $0xe0] sm:$0xff]
    %v6020 = vld [vmem:[%s5990 + $0xe8] sm:$0xff]
    %v6021 = vld [vmem:[%s5990 + $0xf0] sm:$0xff]
    %v6022 = vld [vmem:[%s5990 + $0xf8] sm:$0xff]
    %6023 = vmatprep.subr.bf16.mxu0 %v5992
    %6024 = vmatpush1.bf16.msra.mxu0 %v5991
    %6025 = vmatprep.subr.bf16.mxu0 %v5994
    %6026 = vmatpush1.bf16.msra.mxu0 %v5993
    %6027 = vmatprep.subr.bf16.mxu0 %v5996
    %6028 = vmatpush1.bf16.msra.mxu0 %v5995
    %6029 = vmatprep.subr.bf16.mxu0 %v5998
    %6030 = vmatpush1.bf16.msra.mxu0 %v5997
    %6031 = vmatprep.subr.bf16.mxu0 %v6000
    %6032 = vmatpush1.bf16.msra.mxu0 %v5999
    %6033 = vmatprep.subr.bf16.mxu0 %v6002
    %6034 = vmatpush1.bf16.msra.mxu0 %v6001
    %6035 = vmatprep.subr.bf16.mxu0 %v6004
    %6036 = vmatpush1.bf16.msra.mxu0 %v6003
    %6037 = vmatprep.subr.bf16.mxu0 %v6006
    %6038 = vmatpush1.bf16.msra.mxu0 %v6005
    %6039 = vmatprep.subr.bf16.mxu0 %v6008
    %6040 = vmatpush1.bf16.msra.mxu0 %v6007
    %6041 = vmatprep.subr.bf16.mxu0 %v6010
    %6042 = vmatpush1.bf16.msra.mxu0 %v6009
    %6043 = vmatprep.subr.bf16.mxu0 %v6012
    %6044 = vmatpush1.bf16.msra.mxu0 %v6011
    %6045 = vmatprep.subr.bf16.mxu0 %v6014
    %6046 = vmatpush1.bf16.msra.mxu0 %v6013
    %6047 = vmatprep.subr.bf16.mxu0 %v6016
    %6048 = vmatpush1.bf16.msra.mxu0 %v6015
    %6049 = vmatprep.subr.bf16.mxu0 %v6018
    %6050 = vmatpush1.bf16.msra.mxu0 %v6017
    %6051 = vmatprep.subr.bf16.mxu0 %v6020
    %6052 = vmatpush1.bf16.msra.mxu0 %v6019
    %6053 = vmatprep.subr.bf16.mxu0 %v6022
    %6054 = vmatpush1.bf16.msra.mxu0 %v6021
    %6055 = vmatprep.mubr.bf16.mxu0 %v5989
    %6056 = vmatmul.mubr.bf16.gmra.mrb[0].mxu0 %v5988
    %v6057 = vpop.f32.mrb[0].mxu0
    %v6058 = vadd.f32 0.0, %v6057
    %v6059 = vpop.f32.mrb[0].mxu0
    %v6060 = vadd.f32 0.0, %v6059
    %v6061 = vpop.f32.mrb[0].mxu0
    %v6062 = vpop.f32.mrb[0].mxu0
    %6063 = vdwg.mxu0
    %v6064 = vadd.f32 %v5766, %v6058
    %v6065 = vadd.f32 %v5767, %v6060
    %v6066 = vld [vmem:[%s7] sm:$0x3]
    %v6068 = vlaneseq
    %v6069 = vshrl.u32 %v6068, 7
    %v6070 = vsub.s32 0, %v6069
    %v6071 = vrot.slane %v6066, %v6070
    %v6072 = vlaneseq
    %v6073 = vshrl.u32 %v6072, 7
    %v6074 = vsub.s32 1, %v6073
    %v6075 = vrot.slane %v6066, %v6074
    %v6078 = vadd.f32 %v6064, %v6071
    %v6079 = vadd.f32 %v6065, %v6075
    %v6080 = vmax.f32 %v6078, 0.0
    %v6081 = vmax.f32 %v6079, 0.0
    %v6082 = vld [vmem:[%s8] sm:$0xff]
    %v6083 = vld [vmem:[%s8 + $0x8] sm:$0xff]
    %v6084 = vld [vmem:[%s8 + $0x10] sm:$0xff]
    %v6085 = vld [vmem:[%s8 + $0x18] sm:$0xff]
    %v6086 = vld [vmem:[%s8 + $0x20] sm:$0xff]
    %v6087 = vld [vmem:[%s8 + $0x28] sm:$0xff]
    %v6088 = vld [vmem:[%s8 + $0x30] sm:$0xff]
    %v6089 = vld [vmem:[%s8 + $0x38] sm:$0xff]
    %v6090 = vld [vmem:[%s8 + $0x40] sm:$0xff]
    %v6091 = vld [vmem:[%s8 + $0x48] sm:$0xff]
    %v6092 = vld [vmem:[%s8 + $0x50] sm:$0xff]
    %v6093 = vld [vmem:[%s8 + $0x58] sm:$0xff]
    %v6094 = vld [vmem:[%s8 + $0x60] sm:$0xff]
    %v6095 = vld [vmem:[%s8 + $0x68] sm:$0xff]
    %v6096 = vld [vmem:[%s8 + $0x70] sm:$0xff]
    %v6097 = vld [vmem:[%s8 + $0x78] sm:$0xff]
    %v6098 = vld [vmem:[%s8 + $0x80] sm:$0xff]
    %v6099 = vld [vmem:[%s8 + $0x88] sm:$0xff]
    %v6100 = vld [vmem:[%s8 + $0x90] sm:$0xff]
    %v6101 = vld [vmem:[%s8 + $0x98] sm:$0xff]
    %v6102 = vld [vmem:[%s8 + $0xa0] sm:$0xff]
    %v6103 = vld [vmem:[%s8 + $0xa8] sm:$0xff]
    %v6104 = vld [vmem:[%s8 + $0xb0] sm:$0xff]
    %v6105 = vld [vmem:[%s8 + $0xb8] sm:$0xff]
    %v6106 = vld [vmem:[%s8 + $0xc0] sm:$0xff]
    %v6107 = vld [vmem:[%s8 + $0xc8] sm:$0xff]
    %v6108 = vld [vmem:[%s8 + $0xd0] sm:$0xff]
    %v6109 = vld [vmem:[%s8 + $0xd8] sm:$0xff]
    %v6110 = vld [vmem:[%s8 + $0xe0] sm:$0xff]
    %v6111 = vld [vmem:[%s8 + $0xe8] sm:$0xff]
    %v6112 = vld [vmem:[%s8 + $0xf0] sm:$0xff]
    %v6113 = vld [vmem:[%s8 + $0xf8] sm:$0xff]
    %v6114 = vld [vmem:[%s9] sm:$0x1]
    %v6116 = vlaneseq
    %v6117 = vshrl.u32 %v6116, 7
    %v6118 = vsub.s32 0, %v6117
    %v6119 = vrot.slane %v6114, %v6118
    %6121 = vmatprep.subr.mxu0 0.0
    %6122 = vmatpush1.msra.mxu0 %v6082
    %6123 = vmatprep.subr.mxu0 0.0
    %6124 = vmatpush1.msra.mxu0 %v6083
    %6125 = vmatprep.subr.mxu0 0.0
    %6126 = vmatpush1.msra.mxu0 %v6084
    %6127 = vmatprep.subr.mxu0 0.0
    %6128 = vmatpush1.msra.mxu0 %v6085
    %6129 = vmatprep.subr.mxu0 0.0
    %6130 = vmatpush1.msra.mxu0 %v6086
    %6131 = vmatprep.subr.mxu0 0.0
    %6132 = vmatpush1.msra.mxu0 %v6087
    %6133 = vmatprep.subr.mxu0 0.0
    %6134 = vmatpush1.msra.mxu0 %v6088
    %6135 = vmatprep.subr.mxu0 0.0
    %6136 = vmatpush1.msra.mxu0 %v6089
    %6137 = vmatprep.subr.mxu0 0.0
    %6138 = vmatpush1.msra.mxu0 %v6090
    %6139 = vmatprep.subr.mxu0 0.0
    %6140 = vmatpush1.msra.mxu0 %v6091
    %6141 = vmatprep.subr.mxu0 0.0
    %6142 = vmatpush1.msra.mxu0 %v6092
    %6143 = vmatprep.subr.mxu0 0.0
    %6144 = vmatpush1.msra.mxu0 %v6093
    %6145 = vmatprep.subr.mxu0 0.0
    %6146 = vmatpush1.msra.mxu0 %v6094
    %6147 = vmatprep.subr.mxu0 0.0
    %6148 = vmatpush1.msra.mxu0 %v6095
    %6149 = vmatprep.subr.mxu0 0.0
    %6150 = vmatpush1.msra.mxu0 %v6096
    %6151 = vmatprep.subr.mxu0 0.0
    %6152 = vmatpush1.msra.mxu0 %v6097
    %6153 = vmatprep.subr.mxu0 0.0
    %6154 = vmatpush1.msra.mxu0 %v6098
    %6155 = vmatprep.subr.mxu0 0.0
    %6156 = vmatpush1.msra.mxu0 %v6099
    %6157 = vmatprep.subr.mxu0 0.0
    %6158 = vmatpush1.msra.mxu0 %v6100
    %6159 = vmatprep.subr.mxu0 0.0
    %6160 = vmatpush1.msra.mxu0 %v6101
    %6161 = vmatprep.subr.mxu0 0.0
    %6162 = vmatpush1.msra.mxu0 %v6102
    %6163 = vmatprep.subr.mxu0 0.0
    %6164 = vmatpush1.msra.mxu0 %v6103
    %6165 = vmatprep.subr.mxu0 0.0
    %6166 = vmatpush1.msra.mxu0 %v6104
    %6167 = vmatprep.subr.mxu0 0.0
    %6168 = vmatpush1.msra.mxu0 %v6105
    %6169 = vmatprep.subr.mxu0 0.0
    %6170 = vmatpush1.msra.mxu0 %v6106
    %6171 = vmatprep.subr.mxu0 0.0
    %6172 = vmatpush1.msra.mxu0 %v6107
    %6173 = vmatprep.subr.mxu0 0.0
    %6174 = vmatpush1.msra.mxu0 %v6108
    %6175 = vmatprep.subr.mxu0 0.0
    %6176 = vmatpush1.msra.mxu0 %v6109
    %6177 = vmatprep.subr.mxu0 0.0
    %6178 = vmatpush1.msra.mxu0 %v6110
    %6179 = vmatprep.subr.mxu0 0.0
    %6180 = vmatpush1.msra.mxu0 %v6111
    %6181 = vmatprep.subr.mxu0 0.0
    %6182 = vmatpush1.msra.mxu0 %v6112
    %6183 = vmatprep.subr.mxu0 0.0
    %6184 = vmatpush1.msra.mxu0 %v6113
    %6185 = vmatprep.mubr.f32.mxu0 %v6081
    %6186 = vmatmul.mubr.f32.gmra.mrb[0].mxu0 %v6080
    %v6187 = vpop.f32.mrb[0].mxu0
    %v6188 = vadd.f32 %v6119, %v6187
    %v6189 = vpop.f32.mrb[0].mxu0
    %6190 = vdwg.mxu0
    %vm6191 = vcmask 80896
    %6192 = vst.msk [vmem:[%s10] sm:$0xff] %vm6191, %v6188
    // Predicated region
    $region38: #{forward.1} parent=1 // pred_check
      _
    $region39: #{forward.1} parent=1 // pred_check_branch
      %6194 = sbr.rel (0) target = $region41
    $region40: #{forward.1} parent=1 // pred_region
      _
    $region41: #{forward.1} parent=1 // pred_fallthru
      _
    // Predicated region
    $region42: #{forward.1} parent=1 // pred_check
      _
    $region43: #{forward.1} parent=1 // pred_check_branch
      %6196 = sbr.rel (0) target = $region45
    $region44: #{forward.1} parent=1 // pred_region
      _
    $region45: #{forward.1} parent=1 // pred_fallthru
      _
    %6197 = vsyncpa [#allocation7], 1
  %6198 = vsyncmov [#allocation3]
  %s6199 = vpop.sfrf %6198
  %p6200 = scmp.eq.s32.totalorder %s6199, 0
  %p6201 = pneg %p6200
  %6203 = shalt.err (%p6201)
  %6204 = vsyncmov [#allocation5]
  %s6205 = vpop.sfrf %6204
  %p6206 = scmp.eq.s32.totalorder %s6205, 0
  %p6207 = pneg %p6206
  %6209 = shalt.err (%p6207)

</llo_original>
